<compile_context>
chip_gen: v6e
topology: v6e:2x2x1
jax: 0.10.0
libtpu: 0.0.40
codegen_flags: <defaults>
</compile_context>

<pallas_src>
import functools
import math

import jax
import jax.numpy as jnp
from jax import lax
from jax.experimental import pallas as pl
from jax.experimental.pallas import tpu as pltpu

EPS = 1e-15
F32 = jnp.float32
BF16 = jnp.bfloat16


def _bf(x):
    return x.astype(BF16)


def _fold_bn(w, b, bn, eps=1e-5):
    """Fold eval-mode BatchNorm1d into the preceding Linear (y = xW + b)."""
    scale = bn['gamma'] / jnp.sqrt(bn['var'] + eps)
    shift = bn['beta'] - bn['mean'] * scale
    return w * scale[None, :], (b * scale + shift).reshape(1, -1)


def _const_spec(w):
    nd = w.ndim
    return pl.BlockSpec(w.shape, lambda i, _nd=nd: (0,) * _nd)


def _row_tile(n):
    for t in (512, 256, 128, 64, 32, 16, 8):
        if t <= n and n % t == 0:
            return t
    return n


# ------------------------------------------------------------------------
# Kernel 1: full-graph (sparse) GINConv + NN block, node rows tiled.
# x shipped once; the row tile is sliced from the resident full x.
# ------------------------------------------------------------------------
def _gin_full_kernel(adj_ref, x_ref, w1_ref, b1_ref, w2_ref, b2_ref, o_ref, *,
                     eps, tm):
    xall = x_ref[...]                                       # [N, Din] f32
    start = pl.program_id(0) * tm
    if tm % 8 == 0:
        start = pl.multiple_of(start, 8)
    xrow = x_ref[pl.ds(start, tm), :]                       # [tm, Din]
    agg = jnp.dot(adj_ref[...], _bf(xall), preferred_element_type=F32)
    z = (1.0 + eps) * xrow + agg
    h = jnp.maximum(jnp.dot(_bf(z), w1_ref[...], preferred_element_type=F32)
                    + b1_ref[...], 0.0)                     # fc1 + BN(folded) + ReLU
    o_ref[...] = jnp.maximum(
        jnp.dot(_bf(h), w2_ref[...], preferred_element_type=F32) + b2_ref[...],
        0.0)                                                # fc2 + ReLU


def gin_conv_full(p, adj_bf, x, eps=0.0):
    N, Din = x.shape
    Dout = p['w2'].shape[1]
    w1f, b1f = _fold_bn(p['w1'], p['b1'], p['bn'])
    tm = _row_tile(N)
    return pl.pallas_call(
        functools.partial(_gin_full_kernel, eps=eps, tm=tm),
        out_shape=jax.ShapeDtypeStruct((N, Dout), F32),
        grid=(N // tm,),
        in_specs=[pl.BlockSpec((tm, N), lambda i: (i, 0)),
                  pl.BlockSpec((N, Din), lambda i: (0, 0)),
                  pl.BlockSpec((Din, Dout), lambda i: (0, 0)),
                  pl.BlockSpec((1, Dout), lambda i: (0, 0)),
                  pl.BlockSpec((Dout, Dout), lambda i: (0, 0)),
                  pl.BlockSpec((1, Dout), lambda i: (0, 0))],
        out_specs=pl.BlockSpec((tm, Dout), lambda i: (i, 0)),
        compiler_params=pltpu.CompilerParams(dimension_semantics=("parallel",)),
    )(adj_bf, x.astype(F32), _bf(w1f), b1f, _bf(p['w2']), p['b2'].reshape(1, -1))


# ------------------------------------------------------------------------
# Shared in-kernel mincut-pool math on one graph.
# Returns (S^T X, normalized S^T A S, per-graph mincut loss, per-graph ortho loss)
# ------------------------------------------------------------------------
def _mincut_math(xg, adj_bf, adj_f, s):
    K = s.shape[-1]
    sb = _bf(s)
    out_x = lax.dot_general(sb, _bf(xg), (((0,), (0,)), ((), ())),
                            preferred_element_type=F32)                 # [K, D]
    sta = lax.dot_general(sb, adj_bf, (((0,), (0,)), ((), ())),
                          preferred_element_type=F32)                   # [K, N]
    out_adj = jnp.dot(_bf(sta), sb, preferred_element_type=F32)         # [K, K]
    ss = lax.dot_general(sb, sb, (((0,), (0,)), ((), ())),
                         preferred_element_type=F32)                    # [K, K]

    ri = lax.broadcasted_iota(jnp.int32, (K, K), 0)
    ci = lax.broadcasted_iota(jnp.int32, (K, K), 1)
    eye = (ri == ci).astype(F32)

    # mincut loss: -trace(S^T A S) / trace(S^T D S)
    mincut_num = jnp.sum(out_adj * eye, axis=(-2, -1), keepdims=True)   # [1, 1]
    d_flat = jnp.sum(adj_f, axis=-1, keepdims=True)                     # [N, 1]
    mincut_den = jnp.sum(d_flat * jnp.sum(s * s, axis=-1, keepdims=True),
                         axis=(-2, -1), keepdims=True)                  # [1, 1]
    mc = -(mincut_num / mincut_den)

    # orthogonality loss: || SS/||SS||_F - I/sqrt(K) ||_F
    ss_norm = jnp.sqrt(jnp.sum(ss * ss, axis=(-2, -1), keepdims=True))
    diff = ss / ss_norm - eye * (1.0 / math.sqrt(K))
    ortho = jnp.sqrt(jnp.sum(diff * diff, axis=(-2, -1), keepdims=True))

    # zero diagonal + symmetric degree normalization (as in dense_mincut_pool)
    out_adj_z = out_adj * (1.0 - eye)
    deg_row = jnp.sum(out_adj_z, axis=-1, keepdims=True)                # [K, 1]
    dsq_row = jnp.sqrt(deg_row) + EPS
    dsq_col = jnp.sum(eye * dsq_row, axis=-2, keepdims=True)            # [1, K] (= transpose, no XLU xpose)
    out_adj_norm = out_adj_z / dsq_row / dsq_col
    return out_x, out_adj_norm, mc, ortho


# ------------------------------------------------------------------------
# Kernel 2 (stage 1): masked mincut pool + max readout + in-kernel losses.
# ------------------------------------------------------------------------
def _pool_stage_kernel(x_ref, adj_ref, mask_ref, pw_ref, pb_ref,
                       ox_ref, oadj_ref, ord_ref, omc_ref, oor_ref):
    x = x_ref[0]                                    # [N, D] f32
    adj_raw = adj_ref[0]                            # [N, N] bf16
    adj_bf = _bf(adj_raw)
    adj_f = adj_raw.astype(F32)
    m = mask_ref[0]                                 # [N, 1] f32

    logits = jnp.dot(_bf(x), pw_ref[...], preferred_element_type=F32) + pb_ref[...]
    logits = logits - jnp.max(logits, axis=-1, keepdims=True)
    e = jnp.exp(logits)
    s = e * pl.reciprocal(jnp.sum(e, axis=-1, keepdims=True), approx=True)

    xm = x * m
    s = s * m
    out_x, out_adj, mc, ortho = _mincut_math(xm, adj_bf, adj_f, s)
    ox_ref[0] = out_x
    oadj_ref[0] = out_adj
    ord_ref[0] = jnp.max(out_x, axis=0, keepdims=True)
    omc_ref[0] = mc
    oor_ref[0] = ortho


def pool_stage(x, adj_bf, maskf, pool_w, pool_b):
    B, N, D = x.shape
    K = pool_w.shape[1]
    ox, oadj, rd, mc, orth = pl.pallas_call(
        _pool_stage_kernel,
        out_shape=(jax.ShapeDtypeStruct((B, K, D), F32),
                   jax.ShapeDtypeStruct((B, K, K), F32),
                   jax.ShapeDtypeStruct((B, 1, D), F32),
                   jax.ShapeDtypeStruct((B, 1, 1), F32),
                   jax.ShapeDtypeStruct((B, 1, 1), F32)),
        grid=(B,),
        in_specs=[pl.BlockSpec((1, N, D), lambda i: (i, 0, 0)),
                  pl.BlockSpec((1, N, N), lambda i: (i, 0, 0)),
                  pl.BlockSpec((1, N, 1), lambda i: (i, 0, 0)),
                  pl.BlockSpec((D, K), lambda i: (0, 0)),
                  pl.BlockSpec((1, K), lambda i: (0, 0))],
        out_specs=(pl.BlockSpec((1, K, D), lambda i: (i, 0, 0)),
                   pl.BlockSpec((1, K, K), lambda i: (i, 0, 0)),
                   pl.BlockSpec((1, 1, D), lambda i: (i, 0, 0)),
                   pl.BlockSpec((1, 1, 1), lambda i: (i, 0, 0)),
                   pl.BlockSpec((1, 1, 1), lambda i: (i, 0, 0))),
        compiler_params=pltpu.CompilerParams(dimension_semantics=("parallel",)),
    )(x, adj_bf, maskf, _bf(pool_w), pool_b.reshape(1, K))
    return ox, oadj, rd[:, 0, :], jnp.mean(mc), jnp.mean(orth)


# ------------------------------------------------------------------------
# Kernel 3 (stages 2 & 3): DenseGINConv+NN -> mincut pool (+losses, +adj
# renorm) -> 6-layer transformer (shared weights) -> max readout.
# One graph per grid step; everything stays in VMEM.
# ------------------------------------------------------------------------
def _gin_pool_trans_kernel(x_ref, adj_ref, w1_ref, b1_ref, w2_ref, b2_ref,
                           pw_ref, pb_ref,
                           wq_ref, wk_ref, wv_ref, bq_ref, bk_ref, bv_ref,
                           wo_ref, ob_ref, l1w_ref, l1b_ref, l2w_ref, l2b_ref,
                           g1_ref, be1_ref, g2_ref, be2_ref,
                           ox_ref, oadj_ref, ord_ref, omc_ref, oor_ref,
                           *, eps, nhead, num_layers):
    x_in = x_ref[0]                                 # [N, D] f32
    adj_raw = adj_ref[0]                            # [N, N] f32 (normalized)
    adj_bf = _bf(adj_raw)
    adj_f = adj_raw.astype(F32)
    D = x_ref.shape[-1]
    dh = D // nhead
    scale = 1.0 / math.sqrt(dh)

    # --- DenseGINConv + NN (fc1 + BN(eval, folded) + ReLU + fc2 + ReLU) ---
    agg = jnp.dot(adj_bf, _bf(x_in), preferred_element_type=F32)
    z = (1.0 + eps) * x_in + agg
    h = jnp.maximum(jnp.dot(_bf(z), w1_ref[...], preferred_element_type=F32)
                    + b1_ref[...], 0.0)
    xg = jnp.maximum(jnp.dot(_bf(h), w2_ref[...], preferred_element_type=F32)
                     + b2_ref[...], 0.0)

    # --- mincut pool: s = softmax(xg @ pw + pb) (no mask in stages 2/3) ---
    logits = jnp.dot(_bf(xg), pw_ref[...], preferred_element_type=F32) + pb_ref[...]
    logits = logits - jnp.max(logits, axis=-1, keepdims=True)
    e = jnp.exp(logits)
    s = e * pl.reciprocal(jnp.sum(e, axis=-1, keepdims=True), approx=True)

    out_x, out_adj, mc, ortho = _mincut_math(xg, adj_bf, adj_f, s)
    oadj_ref[0] = out_adj
    omc_ref[0] = mc
    oor_ref[0] = ortho

    # --- transformer encoder stack (post-norm; weights shared by all layers) ---
    wq = wq_ref[...]; wk = wk_ref[...]; wv = wv_ref[...]       # [nh, D, dh] bf16
    bq = bq_ref[...]; bk = bk_ref[...]; bv = bv_ref[...]       # [nh, 1, dh] f32
    wo = wo_ref[...]; ob = ob_ref[...]                         # [nh, dh, D] / [1, D]
    l1w = l1w_ref[...]; l1b = l1b_ref[...]
    l2w = l2w_ref[...]; l2b = l2b_ref[...]
    g1 = g1_ref[...]; be1 = be1_ref[...]
    g2 = g2_ref[...]; be2 = be2_ref[...]

    def layer_norm(v, g, b):
        mu = jnp.mean(v, axis=-1, keepdims=True)
        var = jnp.mean((v - mu) ** 2, axis=-1, keepdims=True)
        return (v - mu) * lax.rsqrt(var + 1e-5) * g + b

    def one_layer(_, xc):                                      # xc: [S, D] f32
        xb = _bf(xc)
        acc = None
        for hh in range(nhead):                                # static head loop
            q = (jnp.dot(xb, wq[hh], preferred_element_type=F32) + bq[hh]) * scale
            k = jnp.dot(xb, wk[hh], preferred_element_type=F32) + bk[hh]
            v = jnp.dot(xb, wv[hh], preferred_element_type=F32) + bv[hh]
            sc = lax.dot_general(_bf(q), _bf(k), (((1,), (1,)), ((), ())),
                                 preferred_element_type=F32)   # [S, S], no transpose
            sc = sc - jnp.max(sc, axis=-1, keepdims=True)
            ee = jnp.exp(sc)
            p = ee * pl.reciprocal(jnp.sum(ee, axis=-1, keepdims=True), approx=True)
            av = jnp.dot(_bf(p), _bf(v), preferred_element_type=F32)       # [S, dh]
            contrib = jnp.dot(_bf(av), wo[hh], preferred_element_type=F32)  # [S, D]
            acc = contrib if acc is None else acc + contrib
        x1 = layer_norm(xc + acc + ob, g1, be1)
        hmid = jnp.maximum(jnp.dot(_bf(x1), l1w, preferred_element_type=F32) + l1b, 0.0)
        ff = jnp.dot(_bf(hmid), l2w, preferred_element_type=F32) + l2b
        return layer_norm(x1 + ff, g2, be2)

    xt = lax.fori_loop(0, num_layers, one_layer, out_x)
    ox_ref[0] = xt
    ord_ref[0] = jnp.max(xt, axis=0, keepdims=True)            # fused max readout


def prep_transformer(p, nhead):
    """Pre-split / pre-cast the (shared) encoder-layer weights for the kernel."""
    D = p['in_w'].shape[0]
    dh = D // nhead
    in_w, in_b = p['in_w'], p['in_b']
    wq = _bf(in_w[:, :D].reshape(D, nhead, dh).transpose(1, 0, 2))
    wk = _bf(in_w[:, D:2 * D].reshape(D, nhead, dh).transpose(1, 0, 2))
    wv = _bf(in_w[:, 2 * D:].reshape(D, nhead, dh).transpose(1, 0, 2))
    bq = in_b[:D].reshape(nhead, 1, dh).astype(F32)
    bk = in_b[D:2 * D].reshape(nhead, 1, dh).astype(F32)
    bv = in_b[2 * D:].reshape(nhead, 1, dh).astype(F32)
    wo = _bf(p['out_w'].reshape(nhead, dh, D))
    ob = p['out_b'].reshape(1, D).astype(F32)
    l1w = _bf(p['lin1_w']); l1b = p['lin1_b'].reshape(1, -1).astype(F32)
    l2w = _bf(p['lin2_w']); l2b = p['lin2_b'].reshape(1, -1).astype(F32)
    g1 = p['ln1_g'].reshape(1, D).astype(F32); be1 = p['ln1_b'].reshape(1, D).astype(F32)
    g2 = p['ln2_g'].reshape(1, D).astype(F32); be2 = p['ln2_b'].reshape(1, D).astype(F32)
    return [wq, wk, wv, bq, bk, bv, wo, ob, l1w, l1b, l2w, l2b, g1, be1, g2, be2]


def gin_pool_trans_stage(nn_p, pool_w, pool_b, trans_ws, x, adj, *,
                         nhead=2, num_layers=6, eps=0.0):
    B, N, D = x.shape
    K = pool_w.shape[1]
    w1f, b1f = _fold_bn(nn_p['w1'], nn_p['b1'], nn_p['bn'])
    weights = [_bf(w1f), b1f, _bf(nn_p['w2']), nn_p['b2'].reshape(1, -1),
               _bf(pool_w), pool_b.reshape(1, K)] + trans_ws

    in_specs = ([pl.BlockSpec((1, N, D), lambda i: (i, 0, 0)),
                 pl.BlockSpec((1, N, N), lambda i: (i, 0, 0))] +
                [_const_spec(w) for w in weights])
    out_shapes = (jax.ShapeDtypeStruct((B, K, D), F32),
                  jax.ShapeDtypeStruct((B, K, K), F32),
                  jax.ShapeDtypeStruct((B, 1, D), F32),
                  jax.ShapeDtypeStruct((B, 1, 1), F32),
                  jax.ShapeDtypeStruct((B, 1, 1), F32))
    out_specs = (pl.BlockSpec((1, K, D), lambda i: (i, 0, 0)),
                 pl.BlockSpec((1, K, K), lambda i: (i, 0, 0)),
                 pl.BlockSpec((1, 1, D), lambda i: (i, 0, 0)),
                 pl.BlockSpec((1, 1, 1), lambda i: (i, 0, 0)),
                 pl.BlockSpec((1, 1, 1), lambda i: (i, 0, 0)))

    ox, oadj, rd, mc, orth = pl.pallas_call(
        functools.partial(_gin_pool_trans_kernel, eps=eps, nhead=nhead,
                          num_layers=num_layers),
        out_shape=out_shapes,
        grid=(B,),
        in_specs=in_specs,
        out_specs=out_specs,
        compiler_params=pltpu.CompilerParams(dimension_semantics=("parallel",)),
        # TODO(synk): at large max_nodes (e.g. the default num_nodes=548 path)
        # tile N and set vmem_limit_bytes explicitly for v7x's 64 MiB VMEM.
    )(x, adj, *weights)
    return ox, oadj, rd[:, 0, :], jnp.mean(mc), jnp.mean(orth)


# ------------------------------- JAX glue ----------------------------------
def lstm_bidirectional(p, x):
    B, T, D = x.shape

    def run(weights, reverse):
        Wih, Whh, bih, bhh = weights
        H = Whh.shape[0]                    # static (from weight shape, not a traced leaf)
        xp = (x.reshape(B * T, D) @ Wih + bih).reshape(B, T, 4 * H)
        xp = jnp.swapaxes(xp, 0, 1)         # [T, B, 4H]

        def step(carry, xt):
            h, c = carry
            gates = xt + h @ Whh + bhh
            i, f, g, o = jnp.split(gates, 4, axis=-1)
            c = jax.nn.sigmoid(f) * c + jax.nn.sigmoid(i) * jnp.tanh(g)
            h = jax.nn.sigmoid(o) * jnp.tanh(c)
            return (h, c), h

        init = (jnp.zeros((B, H), F32), jnp.zeros((B, H), F32))
        _, hs = jax.lax.scan(step, init, xp, reverse=reverse)
        return jnp.swapaxes(hs, 0, 1)       # [B, T, H]

    return jnp.concatenate([run(p['fwd'], False), run(p['bwd'], True)], axis=-1)


def jumping_knowledge(p, xs):
    x = jnp.stack(xs, axis=1)               # [B, T, D]
    alpha = lstm_bidirectional(p['lstm'], x)  # [B, T, 2H]
    aw, ab = p['att']
    alpha = (alpha @ aw + ab)[..., 0]        # [B, T]
    alpha = jax.nn.softmax(alpha, axis=-1)
    return (x * alpha[..., None]).sum(axis=1)


def cross_entropy(logits, y):
    logp = jax.nn.log_softmax(logits, axis=-1)
    return -jnp.mean(jnp.take_along_axis(logp, y[:, None], axis=-1)[:, 0])


def to_dense_batch(x, batch, num_graphs, max_nodes):
    N = x.shape[0]
    counts = jnp.bincount(batch, length=num_graphs)
    starts = jnp.concatenate([jnp.zeros(1, counts.dtype), jnp.cumsum(counts)[:-1]])
    pos = jnp.arange(N) - starts[batch]
    xd = jnp.zeros((num_graphs, max_nodes, x.shape[1]), x.dtype).at[batch, pos].set(x)
    mask = jnp.zeros((num_graphs, max_nodes), bool).at[batch, pos].set(True)
    return xd, mask, pos


def to_dense_adj(edge_index, batch, pos, num_graphs, max_nodes):
    src, dst = edge_index[0], edge_index[1]
    b = batch[src]
    adj = jnp.zeros((num_graphs, max_nodes, max_nodes), F32)
    return adj.at[b, pos[src], pos[dst]].add(1.0)


def full_dense_adj(edge_index, num_nodes):
    src, dst = edge_index[0], edge_index[1]
    return jnp.zeros((num_nodes, num_nodes), F32).at[dst, src].add(1.0)


# ---------------------------- parameter init --------------------------------
def linear_init(key, fan_in, fan_out):
    k1, k2 = jax.random.split(key)
    bound = 1.0 / math.sqrt(fan_in)
    w = jax.random.uniform(k1, (fan_in, fan_out), F32, -bound, bound)
    b = jax.random.uniform(k2, (fan_out,), F32, -bound, bound)
    return w, b


def bn_init(n):
    return {'gamma': jnp.ones(n, F32), 'beta': jnp.zeros(n, F32),
            'mean': jnp.zeros(n, F32), 'var': jnp.ones(n, F32)}


def nn_init(key, c_in, c_out):
    k1, k2 = jax.random.split(key)
    w1, b1 = linear_init(k1, c_in, c_out)
    w2, b2 = linear_init(k2, c_out, c_out)
    return {'w1': w1, 'b1': b1, 'bn': bn_init(c_out), 'w2': w2, 'b2': b2}


def encoder_layer_init(key, dim, dim_ff):
    ks = jax.random.split(key, 4)
    in_w, in_b = linear_init(ks[0], dim, 3 * dim)
    out_w, out_b = linear_init(ks[1], dim, dim)
    l1w, l1b = linear_init(ks[2], dim, dim_ff)
    l2w, l2b = linear_init(ks[3], dim_ff, dim)
    return {'in_w': in_w, 'in_b': in_b, 'out_w': out_w, 'out_b': out_b,
            'lin1_w': l1w, 'lin1_b': l1b, 'lin2_w': l2w, 'lin2_b': l2b,
            'ln1_g': jnp.ones(dim), 'ln1_b': jnp.zeros(dim),
            'ln2_g': jnp.ones(dim), 'ln2_b': jnp.zeros(dim)}


def lstm_init(key, input_size, hidden):
    ks = jax.random.split(key, 8)
    bound = 1.0 / math.sqrt(hidden)

    def u(k, shape):
        return jax.random.uniform(k, shape, F32, -bound, bound)

    fwd = (u(ks[0], (input_size, 4 * hidden)), u(ks[1], (hidden, 4 * hidden)),
           u(ks[2], (4 * hidden,)), u(ks[3], (4 * hidden,)))
    bwd = (u(ks[4], (input_size, 4 * hidden)), u(ks[5], (hidden, 4 * hidden)),
           u(ks[6], (4 * hidden,)), u(ks[7], (4 * hidden,)))
    # NOTE: no integer 'hidden' leaf here — it would become a tracer under jit.
    return {'fwd': fwd, 'bwd': bwd}


def init_hatnetc(key, in_channels, dim, out_channels, num_nodes=548):
    n1 = int(0.5 * num_nodes)
    n2 = int(0.5 * n1)
    n3 = int(0.5 * n2)
    ks = jax.random.split(key, 11)
    h_lstm = (3 * dim) // 2
    params = {
        'conv1_nn': nn_init(ks[0], in_channels, dim),
        'conv2_nn': nn_init(ks[1], dim, dim),
        'conv3_nn': nn_init(ks[2], dim, dim),
        'pool1': linear_init(ks[3], dim, n1),
        'pool2': linear_init(ks[4], dim, n2),
        'pool3': linear_init(ks[5], dim, n3),
        'trans1': encoder_layer_init(ks[6], dim, dim),      # dim_feedforward = dim
        'fc1': {'lin': linear_init(ks[7], dim, dim), 'bn': bn_init(dim)},
        'fc2': linear_init(ks[8], dim, out_channels),
        'jk': {'lstm': lstm_init(ks[9], dim, h_lstm),
               'att': linear_init(ks[10], 2 * h_lstm, 1)},
    }
    return params, (n1, n2, n3)


# ------------------------------- forward ------------------------------------
def hatnetc_forward(params, x, edge_index, batch, y, num_graphs, max_nodes):
    N = x.shape[0]

    # conv1: sparse GINConv + NN on the full node set
    A_full = full_dense_adj(edge_index, N)                  # 0/1 counts -> lossless bf16
    x = gin_conv_full(params['conv1_nn'], _bf(A_full), x)

    xd, mask, pos = to_dense_batch(x, batch, num_graphs, max_nodes)
    adj = to_dense_adj(edge_index, batch, pos, num_graphs, max_nodes)
    maskf = mask.astype(F32).reshape(num_graphs, max_nodes, 1)

    # stage 1: pool1 (masked mincut) + max readout, fully fused
    pw1, pb1 = params['pool1']
    xd, adj, rd1, mc1, o1 = pool_stage(xd, _bf(adj), maskf, pw1, pb1)
    outputs = [rd1]

    trans_ws = prep_transformer(params['trans1'], nhead=2)

    # stage 2: conv2 + pool2 + transformer + max readout, fully fused
    pw2, pb2 = params['pool2']
    xd, adj, rd2, mc2, o2 = gin_pool_trans_stage(
        params['conv2_nn'], pw2, pb2, trans_ws, xd, adj)
    outputs.append(rd2)

    # stage 3: conv3 + pool3 + transformer + max readout, fully fused
    # (mc2/o2 overwritten, exactly as in the PyTorch reference)
    pw3, pb3 = params['pool3']
    xd, adj, rd3, mc2, o2 = gin_pool_trans_stage(
        params['conv3_nn'], pw3, pb3, trans_ws, xd, adj)
    outputs.append(rd3)

    h = jumping_knowledge(params['jk'], outputs)

    # classification head: fc1 + BN(eval, folded) + ReLU + dropout(id) + fc2
    # left to XLA — (B=2, dim=32, out=3) is far below a pallas launch's cost.
    w1, b1 = params['fc1']['lin']
    w1f, b1f = _fold_bn(w1, b1, params['fc1']['bn'])
    hid = jnp.maximum(h @ w1f + b1f, 0.0)
    w2, b2 = params['fc2']
    logits = hid @ w2 + b2

    loss = cross_entropy(logits, y) + (mc1 + mc2) + (o1 + o2)
    return logits, loss


# --------------------------------- main --------------------------------------
if __name__ == "__main__":
    key = jax.random.PRNGKey(0)
    in_channels, dim, out_channels = 4, 32, 3
    num_nodes_arg = 16          # -> pooled cluster sizes 8, 4, 2
    B = 2
    nodes_per_graph = 8
    N = B * nodes_per_graph

    kx, kp = jax.random.split(key)
    x = jax.random.normal(kx, (N, in_channels), F32)

    # bidirected ring graph per component
    edges = []
    for g in range(B):
        off = g * nodes_per_graph
        for i in range(nodes_per_graph):
            j = (i + 1) % nodes_per_graph
            edges.append((off + i, off + j))
            edges.append((off + j, off + i))
    edge_index = jnp.array(edges, jnp.int32).T        # [2, E]
    batch = jnp.repeat(jnp.arange(B, dtype=jnp.int32), nodes_per_graph)
    y = jnp.array([0, 1], jnp.int32)

    params, pool_sizes = init_hatnetc(kp, in_channels, dim, out_channels, num_nodes_arg)

    fwd = jax.jit(hatnetc_forward, static_argnums=(5, 6))
    logits, loss = fwd(params, x, edge_index, batch, y, B, nodes_per_graph)
    jax.block_until_ready((logits, loss))
    assert logits.shape == (B, out_channels)
    assert loss.shape == ()
    print("KERNEL_OK")
</pallas_src>

<mosaic_0001>
module attributes {stable_mosaic.version = 11 : i64} {
  func.func private @main(%arg0: i32) attributes {dimension_semantics = [#tpu.dimension_semantics<core_parallel>], iteration_bounds = array<i64: 2>, tpu.core_type = #tpu.core_type<sc_scalar_subcore>, window_params = []} {
    return
  }
}

module attributes {stable_mosaic.version = 11 : i64} {
  func.func private @main(%arg0: i32) attributes {dimension_semantics = [#tpu.dimension_semantics<core_parallel>], iteration_bounds = array<i64: 2>, tpu.core_type = #tpu.core_type<sc_scalar_subcore>, window_params = []} {
    return
  }
}

module attributes {stable_mosaic.version = 11 : i64} {
  func.func @_gin_full_kernel(%arg0: i32, %arg1: memref<16x16xbf16, #tpu.memory_space<vmem>>, %arg2: memref<16x4xf32, #tpu.memory_space<vmem>>, %arg3: memref<4x32xbf16, #tpu.memory_space<vmem>>, %arg4: memref<1x32xf32, #tpu.memory_space<vmem>>, %arg5: memref<32x32xbf16, #tpu.memory_space<vmem>>, %arg6: memref<1x32xf32, #tpu.memory_space<vmem>>, %arg7: memref<16x32xf32, #tpu.memory_space<vmem>>) attributes {dimension_semantics = [#tpu.dimension_semantics<parallel>], iteration_bounds = array<i64: 1>, scalar_prefetch = 0 : i64, scratch_operands = 0 : i64, tpu.core_type = #tpu.core_type<tc>, window_params = [{transform_indices = @transform_0, window_bounds = array<i64: 16, 16>}, {pipeline_mode = #tpu.pipeline_mode<synchronous>, transform_indices = @transform_1, window_bounds = array<i64: 16, 4>}, {pipeline_mode = #tpu.pipeline_mode<synchronous>, transform_indices = @transform_2, window_bounds = array<i64: 4, 32>}, {pipeline_mode = #tpu.pipeline_mode<synchronous>, transform_indices = @transform_3, window_bounds = array<i64: 1, 32>}, {pipeline_mode = #tpu.pipeline_mode<synchronous>, transform_indices = @transform_4, window_bounds = array<i64: 32, 32>}, {pipeline_mode = #tpu.pipeline_mode<synchronous>, transform_indices = @transform_5, window_bounds = array<i64: 1, 32>}, {transform_indices = @transform_6, window_bounds = array<i64: 16, 32>}]} {
    %c0 = arith.constant 0 : index
    %c0_0 = arith.constant 0 : index
    %0 = vector.load %arg2[%c0, %c0_0] : memref<16x4xf32, #tpu.memory_space<vmem>>, vector<16x4xf32>
    %c16_i32 = arith.constant 16 : i32
    %1 = arith.muli %arg0, %c16_i32 : i32
    %2 = tpu.assume_multiple %1, 8 : i32
    %3 = arith.index_cast %2 : i32 to index
    %c0_1 = arith.constant 0 : index
    %4 = vector.load %arg2[%3, %c0_1] : memref<16x4xf32, #tpu.memory_space<vmem>>, vector<16x4xf32>
    %c0_2 = arith.constant 0 : index
    %c0_3 = arith.constant 0 : index
    %5 = vector.load %arg1[%c0_2, %c0_3] : memref<16x16xbf16, #tpu.memory_space<vmem>>, vector<16x16xbf16>
    %6 = arith.truncf %0 : vector<16x4xf32> to vector<16x4xbf16>
    %cst = arith.constant dense<0.000000e+00> : vector<16x4xf32>
    %7 = tpu.matmul %5, %6, %cst {dimension_numbers = #tpu.dot_dimension_numbers<[1], [0], [0], [1], [0, 0, 1, 1], [], []>} : vector<16x16xbf16>, vector<16x4xbf16>, vector<16x4xf32> -> vector<16x4xf32>
    %cst_4 = arith.constant 1.000000e+00 : f32
    %8 = vector.broadcast %cst_4 : f32 to vector<16x4xf32>
    %9 = arith.mulf %8, %4 : vector<16x4xf32>
    %10 = arith.addf %9, %7 : vector<16x4xf32>
    %11 = arith.truncf %10 : vector<16x4xf32> to vector<16x4xbf16>
    %c0_5 = arith.constant 0 : index
    %c0_6 = arith.constant 0 : index
    %12 = vector.load %arg3[%c0_5, %c0_6] : memref<4x32xbf16, #tpu.memory_space<vmem>>, vector<4x32xbf16>
    %cst_7 = arith.constant dense<0.000000e+00> : vector<16x32xf32>
    %13 = tpu.matmul %11, %12, %cst_7 {dimension_numbers = #tpu.dot_dimension_numbers<[1], [0], [0], [1], [0, 0, 1, 1], [], []>} : vector<16x4xbf16>, vector<4x32xbf16>, vector<16x32xf32> -> vector<16x32xf32>
    %c0_8 = arith.constant 0 : index
    %c0_9 = arith.constant 0 : index
    %14 = vector.load %arg4[%c0_8, %c0_9] : memref<1x32xf32, #tpu.memory_space<vmem>>, vector<1x32xf32>
    %15 = vector.broadcast %14 : vector<1x32xf32> to vector<16x32xf32>
    %16 = arith.addf %13, %15 : vector<16x32xf32>
    %cst_10 = arith.constant 0.000000e+00 : f32
    %17 = vector.broadcast %cst_10 : f32 to vector<16x32xf32>
    %18 = arith.maximumf %16, %17 : vector<16x32xf32>
    %19 = arith.truncf %18 : vector<16x32xf32> to vector<16x32xbf16>
    %c0_11 = arith.constant 0 : index
    %c0_12 = arith.constant 0 : index
    %20 = vector.load %arg5[%c0_11, %c0_12] : memref<32x32xbf16, #tpu.memory_space<vmem>>, vector<32x32xbf16>
    %cst_13 = arith.constant dense<0.000000e+00> : vector<16x32xf32>
    %21 = tpu.matmul %19, %20, %cst_13 {dimension_numbers = #tpu.dot_dimension_numbers<[1], [0], [0], [1], [0, 0, 1, 1], [], []>} : vector<16x32xbf16>, vector<32x32xbf16>, vector<16x32xf32> -> vector<16x32xf32>
    %c0_14 = arith.constant 0 : index
    %c0_15 = arith.constant 0 : index
    %22 = vector.load %arg6[%c0_14, %c0_15] : memref<1x32xf32, #tpu.memory_space<vmem>>, vector<1x32xf32>
    %23 = vector.broadcast %22 : vector<1x32xf32> to vector<16x32xf32>
    %24 = arith.addf %21, %23 : vector<16x32xf32>
    %cst_16 = arith.constant 0.000000e+00 : f32
    %25 = vector.broadcast %cst_16 : f32 to vector<16x32xf32>
    %26 = arith.maximumf %24, %25 : vector<16x32xf32>
    %c0_17 = arith.constant 0 : index
    %c0_18 = arith.constant 0 : index
    %27 = vector.load %arg7[%c0_17, %c0_18] : memref<16x32xf32, #tpu.memory_space<vmem>>, vector<16x32xf32>
    tpu.vector_store %arg7[%c0_17, %c0_18], %26 {strides = array<i32>} : memref<16x32xf32, #tpu.memory_space<vmem>>, vector<16x32xf32>,
    return
  }
  func.func @transform_0(%arg0: i32) -> (i32, i32) {
    %c0_i32 = arith.constant 0 : i32
    %c0_i32_0 = arith.constant 0 : i32
    return %arg0, %c0_i32 : i32, i32
  }
  func.func @transform_1(%arg0: i32) -> (i32, i32) {
    %c0_i32 = arith.constant 0 : i32
    %c0_i32_0 = arith.constant 0 : i32
    %c0_i32_1 = arith.constant 0 : i32
    return %c0_i32, %c0_i32_0 : i32, i32
  }
  func.func @transform_2(%arg0: i32) -> (i32, i32) {
    %c0_i32 = arith.constant 0 : i32
    %c0_i32_0 = arith.constant 0 : i32
    %c0_i32_1 = arith.constant 0 : i32
    return %c0_i32, %c0_i32_0 : i32, i32
  }
  func.func @transform_3(%arg0: i32) -> (i32, i32) {
    %c0_i32 = arith.constant 0 : i32
    %c0_i32_0 = arith.constant 0 : i32
    %c0_i32_1 = arith.constant 0 : i32
    return %c0_i32, %c0_i32_0 : i32, i32
  }
  func.func @transform_4(%arg0: i32) -> (i32, i32) {
    %c0_i32 = arith.constant 0 : i32
    %c0_i32_0 = arith.constant 0 : i32
    %c0_i32_1 = arith.constant 0 : i32
    return %c0_i32, %c0_i32_0 : i32, i32
  }
  func.func @transform_5(%arg0: i32) -> (i32, i32) {
    %c0_i32 = arith.constant 0 : i32
    %c0_i32_0 = arith.constant 0 : i32
    %c0_i32_1 = arith.constant 0 : i32
    return %c0_i32, %c0_i32_0 : i32, i32
  }
  func.func @transform_6(%arg0: i32) -> (i32, i32) {
    %c0_i32 = arith.constant 0 : i32
    %c0_i32_0 = arith.constant 0 : i32
    return %arg0, %c0_i32 : i32, i32
  }
}

module attributes {stable_mosaic.version = 11 : i64} {
  func.func @_pool_stage_kernel(%arg0: i32, %arg1: memref<1x8x32xf32, #tpu.memory_space<vmem>>, %arg2: memref<1x8x8xbf16, #tpu.memory_space<vmem>>, %arg3: memref<1x8x1xf32, #tpu.memory_space<vmem>>, %arg4: memref<32x8xbf16, #tpu.memory_space<vmem>>, %arg5: memref<1x8xf32, #tpu.memory_space<vmem>>, %arg6: memref<1x8x32xf32, #tpu.memory_space<vmem>>, %arg7: memref<1x8x8xf32, #tpu.memory_space<vmem>>, %arg8: memref<1x1x32xf32, #tpu.memory_space<vmem>>, %arg9: memref<1x1x1xf32, #tpu.memory_space<vmem>>, %arg10: memref<1x1x1xf32, #tpu.memory_space<vmem>>) attributes {dimension_semantics = [#tpu.dimension_semantics<parallel>], iteration_bounds = array<i64: 2>, scalar_prefetch = 0 : i64, scratch_operands = 0 : i64, tpu.core_type = #tpu.core_type<tc>, window_params = [{transform_indices = @transform_0, window_bounds = array<i64: 1, 8, 32>}, {transform_indices = @transform_1, window_bounds = array<i64: 1, 8, 8>}, {transform_indices = @transform_2, window_bounds = array<i64: 1, 8, 1>}, {pipeline_mode = #tpu.pipeline_mode<synchronous>, transform_indices = @transform_3, window_bounds = array<i64: 32, 8>}, {pipeline_mode = #tpu.pipeline_mode<synchronous>, transform_indices = @transform_4, window_bounds = array<i64: 1, 8>}, {transform_indices = @transform_5, window_bounds = array<i64: 1, 8, 32>}, {transform_indices = @transform_6, window_bounds = array<i64: 1, 8, 8>}, {transform_indices = @transform_7, window_bounds = array<i64: 1, 1, 32>}, {transform_indices = @transform_8, window_bounds = array<i64: 1, 1, 1>}, {transform_indices = @transform_9, window_bounds = array<i64: 1, 1, 1>}]} {
    %c0 = arith.constant 0 : index
    %c0_0 = arith.constant 0 : index
    %c0_1 = arith.constant 0 : index
    %0 = vector.load %arg1[%c0, %c0_0, %c0_1] : memref<1x8x32xf32, #tpu.memory_space<vmem>>, vector<1x8x32xf32>
    %1 = vector.shape_cast %0 : vector<1x8x32xf32> to vector<8x32xf32>
    %c0_2 = arith.constant 0 : index
    %c0_3 = arith.constant 0 : index
    %c0_4 = arith.constant 0 : index
    %2 = vector.load %arg2[%c0_2, %c0_3, %c0_4] : memref<1x8x8xbf16, #tpu.memory_space<vmem>>, vector<1x8x8xbf16>
    %3 = vector.shape_cast %2 : vector<1x8x8xbf16> to vector<8x8xbf16>
    %4 = arith.extf %3 : vector<8x8xbf16> to vector<8x8xf32>
    %c0_5 = arith.constant 0 : index
    %c0_6 = arith.constant 0 : index
    %c0_7 = arith.constant 0 : index
    %5 = vector.load %arg3[%c0_5, %c0_6, %c0_7] : memref<1x8x1xf32, #tpu.memory_space<vmem>>, vector<1x8x1xf32>
    %6 = vector.shape_cast %5 : vector<1x8x1xf32> to vector<8x1xf32>
    %7 = arith.truncf %1 : vector<8x32xf32> to vector<8x32xbf16>
    %c0_8 = arith.constant 0 : index
    %c0_9 = arith.constant 0 : index
    %8 = vector.load %arg4[%c0_8, %c0_9] : memref<32x8xbf16, #tpu.memory_space<vmem>>, vector<32x8xbf16>
    %cst = arith.constant dense<0.000000e+00> : vector<8x8xf32>
    %9 = tpu.matmul %7, %8, %cst {dimension_numbers = #tpu.dot_dimension_numbers<[1], [0], [0], [1], [0, 0, 1, 1], [], []>} : vector<8x32xbf16>, vector<32x8xbf16>, vector<8x8xf32> -> vector<8x8xf32>
    %c0_10 = arith.constant 0 : index
    %c0_11 = arith.constant 0 : index
    %10 = vector.load %arg5[%c0_10, %c0_11] : memref<1x8xf32, #tpu.memory_space<vmem>>, vector<1x8xf32>
    %11 = vector.broadcast %10 : vector<1x8xf32> to vector<8x8xf32>
    %12 = arith.addf %9, %11 : vector<8x8xf32>
    %cst_12 = arith.constant dense<0xFF800000> : vector<8xf32>
    %13 = vector.multi_reduction <maximumf>, %12, %cst_12 [1] : vector<8x8xf32> to vector<8xf32>
    %14 = vector.shape_cast %13 : vector<8xf32> to vector<8x1xf32>
    %15 = vector.broadcast %14 : vector<8x1xf32> to vector<8x8xf32>
    %16 = arith.subf %12, %15 : vector<8x8xf32>
    %17 = math.exp %16 : vector<8x8xf32>
    %cst_13 = arith.constant dense<0.000000e+00> : vector<8xf32>
    %18 = vector.multi_reduction <add>, %17, %cst_13 [1] : vector<8x8xf32> to vector<8xf32>
    %19 = vector.shape_cast %18 : vector<8xf32> to vector<8x1xf32>
    %20 = tpu.reciprocal %19 {approx = true} : vector<8x1xf32> -> vector<8x1xf32>
    %21 = vector.broadcast %20 : vector<8x1xf32> to vector<8x8xf32>
    %22 = arith.mulf %17, %21 : vector<8x8xf32>
    %23 = vector.broadcast %6 : vector<8x1xf32> to vector<8x32xf32>
    %24 = arith.mulf %1, %23 : vector<8x32xf32>
    %25 = vector.broadcast %6 : vector<8x1xf32> to vector<8x8xf32>
    %26 = arith.mulf %22, %25 : vector<8x8xf32>
    %27 = arith.truncf %26 : vector<8x8xf32> to vector<8x8xbf16>
    %28 = arith.truncf %24 : vector<8x32xf32> to vector<8x32xbf16>
    %cst_14 = arith.constant dense<0.000000e+00> : vector<8x32xf32>
    %29 = tpu.matmul %27, %28, %cst_14 {dimension_numbers = #tpu.dot_dimension_numbers<[0], [0], [1], [1], [0, 1, 1, 1], [], []>} : vector<8x8xbf16>, vector<8x32xbf16>, vector<8x32xf32> -> vector<8x32xf32>
    %cst_15 = arith.constant dense<0.000000e+00> : vector<8x8xf32>
    %30 = tpu.matmul %27, %3, %cst_15 {dimension_numbers = #tpu.dot_dimension_numbers<[0], [0], [1], [1], [0, 1, 1, 1], [], []>} : vector<8x8xbf16>, vector<8x8xbf16>, vector<8x8xf32> -> vector<8x8xf32>
    %31 = arith.truncf %30 : vector<8x8xf32> to vector<8x8xbf16>
    %cst_16 = arith.constant dense<0.000000e+00> : vector<8x8xf32>
    %32 = tpu.matmul %31, %27, %cst_16 {dimension_numbers = #tpu.dot_dimension_numbers<[1], [0], [0], [1], [0, 0, 1, 1], [], []>} : vector<8x8xbf16>, vector<8x8xbf16>, vector<8x8xf32> -> vector<8x8xf32>
    %cst_17 = arith.constant dense<0.000000e+00> : vector<8x8xf32>
    %33 = tpu.matmul %27, %27, %cst_17 {dimension_numbers = #tpu.dot_dimension_numbers<[0], [0], [1], [1], [0, 1, 1, 1], [], []>} : vector<8x8xbf16>, vector<8x8xbf16>, vector<8x8xf32> -> vector<8x8xf32>
    %34 = tpu.iota {dimensions = array<i32: 0>} : vector<8x8xi32>
    %35 = tpu.iota {dimensions = array<i32: 1>} : vector<8x8xi32>
    %36 = arith.cmpi eq, %34, %35 : vector<8x8xi32>
    %37 = arith.extui %36 : vector<8x8xi1> to vector<8x8xi32>
    %38 = arith.sitofp %37 : vector<8x8xi32> to vector<8x8xf32>
    %39 = arith.mulf %32, %38 : vector<8x8xf32>
    %40 = vector.shape_cast %39 : vector<8x8xf32> to vector<1x8x8xf32>
    %cst_18 = arith.constant dense<0.000000e+00> : vector<1xf32>
    %41 = vector.multi_reduction <add>, %40, %cst_18 [1, 2] : vector<1x8x8xf32> to vector<1xf32>
    %42 = vector.shape_cast %41 : vector<1xf32> to vector<1x1x1xf32>
    %43 = vector.extract %42[0, 0, 0] : f32 from vector<1x1x1xf32>
    %44 = vector.broadcast %43 : f32 to vector<1x1xf32>
    %cst_19 = arith.constant dense<0.000000e+00> : vector<8xf32>
    %45 = vector.multi_reduction <add>, %4, %cst_19 [1] : vector<8x8xf32> to vector<8xf32>
    %46 = vector.shape_cast %45 : vector<8xf32> to vector<8x1xf32>
    %47 = arith.mulf %26, %26 : vector<8x8xf32>
    %cst_20 = arith.constant dense<0.000000e+00> : vector<8xf32>
    %48 = vector.multi_reduction <add>, %47, %cst_20 [1] : vector<8x8xf32> to vector<8xf32>
    %49 = vector.shape_cast %48 : vector<8xf32> to vector<8x1xf32>
    %50 = arith.mulf %46, %49 : vector<8x1xf32>
    %51 = vector.shape_cast %50 : vector<8x1xf32> to vector<1x8x1xf32>
    %cst_21 = arith.constant dense<0.000000e+00> : vector<1xf32>
    %52 = vector.multi_reduction <add>, %51, %cst_21 [1, 2] : vector<1x8x1xf32> to vector<1xf32>
    %53 = vector.shape_cast %52 : vector<1xf32> to vector<1x1x1xf32>
    %54 = vector.extract %53[0, 0, 0] : f32 from vector<1x1x1xf32>
    %55 = vector.broadcast %54 : f32 to vector<1x1xf32>
    %56 = arith.divf %44, %55 : vector<1x1xf32>
    %cst_22 = arith.constant 0.000000e+00 : f32
    %57 = vector.broadcast %cst_22 : f32 to vector<1x1xf32>
    %58 = arith.subf %57, %56 : vector<1x1xf32>
    %59 = arith.mulf %33, %33 : vector<8x8xf32>
    %60 = vector.shape_cast %59 : vector<8x8xf32> to vector<1x8x8xf32>
    %cst_23 = arith.constant dense<0.000000e+00> : vector<1xf32>
    %61 = vector.multi_reduction <add>, %60, %cst_23 [1, 2] : vector<1x8x8xf32> to vector<1xf32>
    %62 = vector.shape_cast %61 : vector<1xf32> to vector<1x1x1xf32>
    %63 = vector.extract %62[0, 0, 0] : f32 from vector<1x1x1xf32>
    %64 = vector.broadcast %63 : f32 to vector<1x1xf32>
    %65 = math.sqrt %64 : vector<1x1xf32>
    %66 = vector.broadcast %65 : vector<1x1xf32> to vector<8x8xf32>
    %67 = arith.divf %33, %66 : vector<8x8xf32>
    %cst_24 = arith.constant 0.353553385 : f32
    %68 = vector.broadcast %cst_24 : f32 to vector<8x8xf32>
    %69 = arith.mulf %38, %68 : vector<8x8xf32>
    %70 = arith.subf %67, %69 : vector<8x8xf32>
    %71 = arith.mulf %70, %70 : vector<8x8xf32>
    %72 = vector.shape_cast %71 : vector<8x8xf32> to vector<1x8x8xf32>
    %cst_25 = arith.constant dense<0.000000e+00> : vector<1xf32>
    %73 = vector.multi_reduction <add>, %72, %cst_25 [1, 2] : vector<1x8x8xf32> to vector<1xf32>
    %74 = vector.shape_cast %73 : vector<1xf32> to vector<1x1x1xf32>
    %75 = vector.extract %74[0, 0, 0] : f32 from vector<1x1x1xf32>
    %76 = vector.broadcast %75 : f32 to vector<1x1xf32>
    %77 = math.sqrt %76 : vector<1x1xf32>
    %cst_26 = arith.constant 1.000000e+00 : f32
    %78 = vector.broadcast %cst_26 : f32 to vector<8x8xf32>
    %79 = arith.subf %78, %38 : vector<8x8xf32>
    %80 = arith.mulf %32, %79 : vector<8x8xf32>
    %cst_27 = arith.constant dense<0.000000e+00> : vector<8xf32>
    %81 = vector.multi_reduction <add>, %80, %cst_27 [1] : vector<8x8xf32> to vector<8xf32>
    %82 = vector.shape_cast %81 : vector<8xf32> to vector<8x1xf32>
    %83 = math.sqrt %82 : vector<8x1xf32>
    %cst_28 = arith.constant 1.000000e-15 : f32
    %84 = vector.broadcast %cst_28 : f32 to vector<8x1xf32>
    %85 = arith.addf %83, %84 : vector<8x1xf32>
    %86 = vector.broadcast %85 : vector<8x1xf32> to vector<8x8xf32>
    %87 = arith.mulf %38, %86 : vector<8x8xf32>
    %cst_29 = arith.constant dense<0.000000e+00> : vector<8xf32>
    %88 = vector.multi_reduction <add>, %87, %cst_29 [0] : vector<8x8xf32> to vector<8xf32>
    %89 = vector.shape_cast %88 : vector<8xf32> to vector<1x8xf32>
    %90 = vector.broadcast %85 : vector<8x1xf32> to vector<8x8xf32>
    %91 = arith.divf %80, %90 : vector<8x8xf32>
    %92 = vector.broadcast %89 : vector<1x8xf32> to vector<8x8xf32>
    %93 = arith.divf %91, %92 : vector<8x8xf32>
    %c0_30 = arith.constant 0 : index
    %c0_31 = arith.constant 0 : index
    %c0_32 = arith.constant 0 : index
    %94 = vector.load %arg6[%c0_30, %c0_31, %c0_32] : memref<1x8x32xf32, #tpu.memory_space<vmem>>, vector<1x8x32xf32>
    %95 = vector.shape_cast %94 : vector<1x8x32xf32> to vector<8x32xf32>
    %96 = vector.shape_cast %29 : vector<8x32xf32> to vector<1x8x32xf32>
    tpu.vector_store %arg6[%c0_30, %c0_31, %c0_32], %96 {strides = array<i32>} : memref<1x8x32xf32, #tpu.memory_space<vmem>>, vector<1x8x32xf32>,
    %c0_33 = arith.constant 0 : index
    %c0_34 = arith.constant 0 : index
    %c0_35 = arith.constant 0 : index
    %97 = vector.load %arg7[%c0_33, %c0_34, %c0_35] : memref<1x8x8xf32, #tpu.memory_space<vmem>>, vector<1x8x8xf32>
    %98 = vector.shape_cast %97 : vector<1x8x8xf32> to vector<8x8xf32>
    %99 = vector.shape_cast %93 : vector<8x8xf32> to vector<1x8x8xf32>
    tpu.vector_store %arg7[%c0_33, %c0_34, %c0_35], %99 {strides = array<i32>} : memref<1x8x8xf32, #tpu.memory_space<vmem>>, vector<1x8x8xf32>,
    %cst_36 = arith.constant dense<0xFF800000> : vector<32xf32>
    %100 = vector.multi_reduction <maximumf>, %29, %cst_36 [0] : vector<8x32xf32> to vector<32xf32>
    %101 = vector.shape_cast %100 : vector<32xf32> to vector<1x32xf32>
    %c0_37 = arith.constant 0 : index
    %c0_38 = arith.constant 0 : index
    %c0_39 = arith.constant 0 : index
    %102 = vector.load %arg8[%c0_37, %c0_38, %c0_39] : memref<1x1x32xf32, #tpu.memory_space<vmem>>, vector<1x1x32xf32>
    %103 = vector.shape_cast %102 : vector<1x1x32xf32> to vector<1x32xf32>
    %104 = vector.shape_cast %101 : vector<1x32xf32> to vector<1x1x32xf32>
    tpu.vector_store %arg8[%c0_37, %c0_38, %c0_39], %104 {strides = array<i32>} : memref<1x1x32xf32, #tpu.memory_space<vmem>>, vector<1x1x32xf32>,
    %c0_40 = arith.constant 0 : index
    %c0_41 = arith.constant 0 : index
    %c0_42 = arith.constant 0 : index
    %105 = vector.load %arg9[%c0_40, %c0_41, %c0_42] : memref<1x1x1xf32, #tpu.memory_space<vmem>>, vector<1x1x1xf32>
    %106 = vector.shape_cast %105 : vector<1x1x1xf32> to vector<1x1xf32>
    %107 = vector.shape_cast %58 : vector<1x1xf32> to vector<1x1x1xf32>
    tpu.vector_store %arg9[%c0_40, %c0_41, %c0_42], %107 {strides = array<i32>} : memref<1x1x1xf32, #tpu.memory_space<vmem>>, vector<1x1x1xf32>,
    %c0_43 = arith.constant 0 : index
    %c0_44 = arith.constant 0 : index
    %c0_45 = arith.constant 0 : index
    %108 = vector.load %arg10[%c0_43, %c0_44, %c0_45] : memref<1x1x1xf32, #tpu.memory_space<vmem>>, vector<1x1x1xf32>
    %109 = vector.shape_cast %108 : vector<1x1x1xf32> to vector<1x1xf32>
    %110 = vector.shape_cast %77 : vector<1x1xf32> to vector<1x1x1xf32>
    tpu.vector_store %arg10[%c0_43, %c0_44, %c0_45], %110 {strides = array<i32>} : memref<1x1x1xf32, #tpu.memory_space<vmem>>, vector<1x1x1xf32>,
    return
  }
  func.func @transform_0(%arg0: i32) -> (i32, i32, i32) {
    %c0_i32 = arith.constant 0 : i32
    %c0_i32_0 = arith.constant 0 : i32
    %c0_i32_1 = arith.constant 0 : i32
    return %arg0, %c0_i32, %c0_i32_0 : i32, i32, i32
  }
  func.func @transform_1(%arg0: i32) -> (i32, i32, i32) {
    %c0_i32 = arith.constant 0 : i32
    %c0_i32_0 = arith.constant 0 : i32
    %c0_i32_1 = arith.constant 0 : i32
    return %arg0, %c0_i32, %c0_i32_0 : i32, i32, i32
  }
  func.func @transform_2(%arg0: i32) -> (i32, i32, i32) {
    %c0_i32 = arith.constant 0 : i32
    %c0_i32_0 = arith.constant 0 : i32
    %c0_i32_1 = arith.constant 0 : i32
    return %arg0, %c0_i32, %c0_i32_0 : i32, i32, i32
  }
  func.func @transform_3(%arg0: i32) -> (i32, i32) {
    %c0_i32 = arith.constant 0 : i32
    %c0_i32_0 = arith.constant 0 : i32
    %c0_i32_1 = arith.constant 0 : i32
    return %c0_i32, %c0_i32_0 : i32, i32
  }
  func.func @transform_4(%arg0: i32) -> (i32, i32) {
    %c0_i32 = arith.constant 0 : i32
    %c0_i32_0 = arith.constant 0 : i32
    %c0_i32_1 = arith.constant 0 : i32
    return %c0_i32, %c0_i32_0 : i32, i32
  }
  func.func @transform_5(%arg0: i32) -> (i32, i32, i32) {
    %c0_i32 = arith.constant 0 : i32
    %c0_i32_0 = arith.constant 0 : i32
    %c0_i32_1 = arith.constant 0 : i32
    return %arg0, %c0_i32, %c0_i32_0 : i32, i32, i32
  }
  func.func @transform_6(%arg0: i32) -> (i32, i32, i32) {
    %c0_i32 = arith.constant 0 : i32
    %c0_i32_0 = arith.constant 0 : i32
    %c0_i32_1 = arith.constant 0 : i32
    return %arg0, %c0_i32, %c0_i32_0 : i32, i32, i32
  }
  func.func @transform_7(%arg0: i32) -> (i32, i32, i32) {
    %c0_i32 = arith.constant 0 : i32
    %c0_i32_0 = arith.constant 0 : i32
    %c0_i32_1 = arith.constant 0 : i32
    return %arg0, %c0_i32, %c0_i32_0 : i32, i32, i32
  }
  func.func @transform_8(%arg0: i32) -> (i32, i32, i32) {
    %c0_i32 = arith.constant 0 : i32
    %c0_i32_0 = arith.constant 0 : i32
    %c0_i32_1 = arith.constant 0 : i32
    return %arg0, %c0_i32, %c0_i32_0 : i32, i32, i32
  }
  func.func @transform_9(%arg0: i32) -> (i32, i32, i32) {
    %c0_i32 = arith.constant 0 : i32
    %c0_i32_0 = arith.constant 0 : i32
    %c0_i32_1 = arith.constant 0 : i32
    return %arg0, %c0_i32, %c0_i32_0 : i32, i32, i32
  }
}

module attributes {stable_mosaic.version = 11 : i64} {
  func.func @_gin_pool_trans_kernel(%arg0: i32, %arg1: memref<1x8x32xf32, #tpu.memory_space<vmem>>, %arg2: memref<1x8x8xf32, #tpu.memory_space<vmem>>, %arg3: memref<32x32xbf16, #tpu.memory_space<vmem>>, %arg4: memref<1x32xf32, #tpu.memory_space<vmem>>, %arg5: memref<32x32xbf16, #tpu.memory_space<vmem>>, %arg6: memref<1x32xf32, #tpu.memory_space<vmem>>, %arg7: memref<32x4xbf16, #tpu.memory_space<vmem>>, %arg8: memref<1x4xf32, #tpu.memory_space<vmem>>, %arg9: memref<2x32x16xbf16, #tpu.memory_space<vmem>>, %arg10: memref<2x32x16xbf16, #tpu.memory_space<vmem>>, %arg11: memref<2x32x16xbf16, #tpu.memory_space<vmem>>, %arg12: memref<2x1x16xf32, #tpu.memory_space<vmem>>, %arg13: memref<2x1x16xf32, #tpu.memory_space<vmem>>, %arg14: memref<2x1x16xf32, #tpu.memory_space<vmem>>, %arg15: memref<2x16x32xbf16, #tpu.memory_space<vmem>>, %arg16: memref<1x32xf32, #tpu.memory_space<vmem>>, %arg17: memref<32x32xbf16, #tpu.memory_space<vmem>>, %arg18: memref<1x32xf32, #tpu.memory_space<vmem>>, %arg19: memref<32x32xbf16, #tpu.memory_space<vmem>>, %arg20: memref<1x32xf32, #tpu.memory_space<vmem>>, %arg21: memref<1x32xf32, #tpu.memory_space<vmem>>, %arg22: memref<1x32xf32, #tpu.memory_space<vmem>>, %arg23: memref<1x32xf32, #tpu.memory_space<vmem>>, %arg24: memref<1x32xf32, #tpu.memory_space<vmem>>, %arg25: memref<1x4x32xf32, #tpu.memory_space<vmem>>, %arg26: memref<1x4x4xf32, #tpu.memory_space<vmem>>, %arg27: memref<1x1x32xf32, #tpu.memory_space<vmem>>, %arg28: memref<1x1x1xf32, #tpu.memory_space<vmem>>, %arg29: memref<1x1x1xf32, #tpu.memory_space<vmem>>) attributes {dimension_semantics = [#tpu.dimension_semantics<parallel>], iteration_bounds = array<i64: 2>, scalar_prefetch = 0 : i64, scratch_operands = 0 : i64, tpu.core_type = #tpu.core_type<tc>, window_params = [{transform_indices = @transform_0, window_bounds = array<i64: 1, 8, 32>}, {transform_indices = @transform_1, window_bounds = array<i64: 1, 8, 8>}, {pipeline_mode = #tpu.pipeline_mode<synchronous>, transform_indices = @transform_2, window_bounds = array<i64: 32, 32>}, {pipeline_mode = #tpu.pipeline_mode<synchronous>, transform_indices = @transform_3, window_bounds = array<i64: 1, 32>}, {pipeline_mode = #tpu.pipeline_mode<synchronous>, transform_indices = @transform_4, window_bounds = array<i64: 32, 32>}, {pipeline_mode = #tpu.pipeline_mode<synchronous>, transform_indices = @transform_5, window_bounds = array<i64: 1, 32>}, {pipeline_mode = #tpu.pipeline_mode<synchronous>, transform_indices = @transform_6, window_bounds = array<i64: 32, 4>}, {pipeline_mode = #tpu.pipeline_mode<synchronous>, transform_indices = @transform_7, window_bounds = array<i64: 1, 4>}, {pipeline_mode = #tpu.pipeline_mode<synchronous>, transform_indices = @transform_8, window_bounds = array<i64: 2, 32, 16>}, {pipeline_mode = #tpu.pipeline_mode<synchronous>, transform_indices = @transform_9, window_bounds = array<i64: 2, 32, 16>}, {pipeline_mode = #tpu.pipeline_mode<synchronous>, transform_indices = @transform_10, window_bounds = array<i64: 2, 32, 16>}, {pipeline_mode = #tpu.pipeline_mode<synchronous>, transform_indices = @transform_11, window_bounds = array<i64: 2, 1, 16>}, {pipeline_mode = #tpu.pipeline_mode<synchronous>, transform_indices = @transform_12, window_bounds = array<i64: 2, 1, 16>}, {pipeline_mode = #tpu.pipeline_mode<synchronous>, transform_indices = @transform_13, window_bounds = array<i64: 2, 1, 16>}, {pipeline_mode = #tpu.pipeline_mode<synchronous>, transform_indices = @transform_14, window_bounds = array<i64: 2, 16, 32>}, {pipeline_mode = #tpu.pipeline_mode<synchronous>, transform_indices = @transform_15, window_bounds = array<i64: 1, 32>}, {pipeline_mode = #tpu.pipeline_mode<synchronous>, transform_indices = @transform_16, window_bounds = array<i64: 32, 32>}, {pipeline_mode = #tpu.pipeline_mode<synchronous>, transform_indices = @transform_17, window_bounds = array<i64: 1, 32>}, {pipeline_mode = #tpu.pipeline_mode<synchronous>, transform_indices = @transform_18, window_bounds = array<i64: 32, 32>}, {pipeline_mode = #tpu.pipeline_mode<synchronous>, transform_indices = @transform_19, window_bounds = array<i64: 1, 32>}, {pipeline_mode = #tpu.pipeline_mode<synchronous>, transform_indices = @transform_20, window_bounds = array<i64: 1, 32>}, {pipeline_mode = #tpu.pipeline_mode<synchronous>, transform_indices = @transform_21, window_bounds = array<i64: 1, 32>}, {pipeline_mode = #tpu.pipeline_mode<synchronous>, transform_indices = @transform_22, window_bounds = array<i64: 1, 32>}, {pipeline_mode = #tpu.pipeline_mode<synchronous>, transform_indices = @transform_23, window_bounds = array<i64: 1, 32>}, {transform_indices = @transform_24, window_bounds = array<i64: 1, 4, 32>}, {transform_indices = @transform_25, window_bounds = array<i64: 1, 4, 4>}, {transform_indices = @transform_26, window_bounds = array<i64: 1, 1, 32>}, {transform_indices = @transform_27, window_bounds = array<i64: 1, 1, 1>}, {transform_indices = @transform_28, window_bounds = array<i64: 1, 1, 1>}]} {
    %c0 = arith.constant 0 : index
    %c0_0 = arith.constant 0 : index
    %c0_1 = arith.constant 0 : index
    %0 = vector.load %arg1[%c0, %c0_0, %c0_1] : memref<1x8x32xf32, #tpu.memory_space<vmem>>, vector<1x8x32xf32>
    %1 = vector.shape_cast %0 : vector<1x8x32xf32> to vector<8x32xf32>
    %c0_2 = arith.constant 0 : index
    %c0_3 = arith.constant 0 : index
    %c0_4 = arith.constant 0 : index
    %2 = vector.load %arg2[%c0_2, %c0_3, %c0_4] : memref<1x8x8xf32, #tpu.memory_space<vmem>>, vector<1x8x8xf32>
    %3 = vector.shape_cast %2 : vector<1x8x8xf32> to vector<8x8xf32>
    %4 = arith.truncf %3 : vector<8x8xf32> to vector<8x8xbf16>
    %5 = arith.truncf %1 : vector<8x32xf32> to vector<8x32xbf16>
    %cst = arith.constant dense<0.000000e+00> : vector<8x32xf32>
    %6 = tpu.matmul %4, %5, %cst {dimension_numbers = #tpu.dot_dimension_numbers<[1], [0], [0], [1], [0, 0, 1, 1], [], []>} : vector<8x8xbf16>, vector<8x32xbf16>, vector<8x32xf32> -> vector<8x32xf32>
    %cst_5 = arith.constant 1.000000e+00 : f32
    %7 = vector.broadcast %cst_5 : f32 to vector<8x32xf32>
    %8 = arith.mulf %7, %1 : vector<8x32xf32>
    %9 = arith.addf %8, %6 : vector<8x32xf32>
    %10 = arith.truncf %9 : vector<8x32xf32> to vector<8x32xbf16>
    %c0_6 = arith.constant 0 : index
    %c0_7 = arith.constant 0 : index
    %11 = vector.load %arg3[%c0_6, %c0_7] : memref<32x32xbf16, #tpu.memory_space<vmem>>, vector<32x32xbf16>
    %cst_8 = arith.constant dense<0.000000e+00> : vector<8x32xf32>
    %12 = tpu.matmul %10, %11, %cst_8 {dimension_numbers = #tpu.dot_dimension_numbers<[1], [0], [0], [1], [0, 0, 1, 1], [], []>} : vector<8x32xbf16>, vector<32x32xbf16>, vector<8x32xf32> -> vector<8x32xf32>
    %c0_9 = arith.constant 0 : index
    %c0_10 = arith.constant 0 : index
    %13 = vector.load %arg4[%c0_9, %c0_10] : memref<1x32xf32, #tpu.memory_space<vmem>>, vector<1x32xf32>
    %14 = vector.broadcast %13 : vector<1x32xf32> to vector<8x32xf32>
    %15 = arith.addf %12, %14 : vector<8x32xf32>
    %cst_11 = arith.constant 0.000000e+00 : f32
    %16 = vector.broadcast %cst_11 : f32 to vector<8x32xf32>
    %17 = arith.maximumf %15, %16 : vector<8x32xf32>
    %18 = arith.truncf %17 : vector<8x32xf32> to vector<8x32xbf16>
    %c0_12 = arith.constant 0 : index
    %c0_13 = arith.constant 0 : index
    %19 = vector.load %arg5[%c0_12, %c0_13] : memref<32x32xbf16, #tpu.memory_space<vmem>>, vector<32x32xbf16>
    %cst_14 = arith.constant dense<0.000000e+00> : vector<8x32xf32>
    %20 = tpu.matmul %18, %19, %cst_14 {dimension_numbers = #tpu.dot_dimension_numbers<[1], [0], [0], [1], [0, 0, 1, 1], [], []>} : vector<8x32xbf16>, vector<32x32xbf16>, vector<8x32xf32> -> vector<8x32xf32>
    %c0_15 = arith.constant 0 : index
    %c0_16 = arith.constant 0 : index
    %21 = vector.load %arg6[%c0_15, %c0_16] : memref<1x32xf32, #tpu.memory_space<vmem>>, vector<1x32xf32>
    %22 = vector.broadcast %21 : vector<1x32xf32> to vector<8x32xf32>
    %23 = arith.addf %20, %22 : vector<8x32xf32>
    %cst_17 = arith.constant 0.000000e+00 : f32
    %24 = vector.broadcast %cst_17 : f32 to vector<8x32xf32>
    %25 = arith.maximumf %23, %24 : vector<8x32xf32>
    %26 = arith.truncf %25 : vector<8x32xf32> to vector<8x32xbf16>
    %c0_18 = arith.constant 0 : index
    %c0_19 = arith.constant 0 : index
    %27 = vector.load %arg7[%c0_18, %c0_19] : memref<32x4xbf16, #tpu.memory_space<vmem>>, vector<32x4xbf16>
    %cst_20 = arith.constant dense<0.000000e+00> : vector<8x4xf32>
    %28 = tpu.matmul %26, %27, %cst_20 {dimension_numbers = #tpu.dot_dimension_numbers<[1], [0], [0], [1], [0, 0, 1, 1], [], []>} : vector<8x32xbf16>, vector<32x4xbf16>, vector<8x4xf32> -> vector<8x4xf32>
    %c0_21 = arith.constant 0 : index
    %c0_22 = arith.constant 0 : index
    %29 = vector.load %arg8[%c0_21, %c0_22] : memref<1x4xf32, #tpu.memory_space<vmem>>, vector<1x4xf32>
    %30 = vector.broadcast %29 : vector<1x4xf32> to vector<8x4xf32>
    %31 = arith.addf %28, %30 : vector<8x4xf32>
    %cst_23 = arith.constant dense<0xFF800000> : vector<8xf32>
    %32 = vector.multi_reduction <maximumf>, %31, %cst_23 [1] : vector<8x4xf32> to vector<8xf32>
    %33 = vector.shape_cast %32 : vector<8xf32> to vector<8x1xf32>
    %34 = vector.broadcast %33 : vector<8x1xf32> to vector<8x4xf32>
    %35 = arith.subf %31, %34 : vector<8x4xf32>
    %36 = math.exp %35 : vector<8x4xf32>
    %cst_24 = arith.constant dense<0.000000e+00> : vector<8xf32>
    %37 = vector.multi_reduction <add>, %36, %cst_24 [1] : vector<8x4xf32> to vector<8xf32>
    %38 = vector.shape_cast %37 : vector<8xf32> to vector<8x1xf32>
    %39 = tpu.reciprocal %38 {approx = true} : vector<8x1xf32> -> vector<8x1xf32>
    %40 = vector.broadcast %39 : vector<8x1xf32> to vector<8x4xf32>
    %41 = arith.mulf %36, %40 : vector<8x4xf32>
    %42 = arith.truncf %41 : vector<8x4xf32> to vector<8x4xbf16>
    %43 = arith.truncf %25 : vector<8x32xf32> to vector<8x32xbf16>
    %cst_25 = arith.constant dense<0.000000e+00> : vector<4x32xf32>
    %44 = tpu.matmul %42, %43, %cst_25 {dimension_numbers = #tpu.dot_dimension_numbers<[0], [0], [1], [1], [0, 1, 1, 1], [], []>} : vector<8x4xbf16>, vector<8x32xbf16>, vector<4x32xf32> -> vector<4x32xf32>
    %cst_26 = arith.constant dense<0.000000e+00> : vector<4x8xf32>
    %45 = tpu.matmul %42, %4, %cst_26 {dimension_numbers = #tpu.dot_dimension_numbers<[0], [0], [1], [1], [0, 1, 1, 1], [], []>} : vector<8x4xbf16>, vector<8x8xbf16>, vector<4x8xf32> -> vector<4x8xf32>
    %46 = arith.truncf %45 : vector<4x8xf32> to vector<4x8xbf16>
    %cst_27 = arith.constant dense<0.000000e+00> : vector<4x4xf32>
    %47 = tpu.matmul %46, %42, %cst_27 {dimension_numbers = #tpu.dot_dimension_numbers<[1], [0], [0], [1], [0, 0, 1, 1], [], []>} : vector<4x8xbf16>, vector<8x4xbf16>, vector<4x4xf32> -> vector<4x4xf32>
    %cst_28 = arith.constant dense<0.000000e+00> : vector<4x4xf32>
    %48 = tpu.matmul %42, %42, %cst_28 {dimension_numbers = #tpu.dot_dimension_numbers<[0], [0], [1], [1], [0, 1, 1, 1], [], []>} : vector<8x4xbf16>, vector<8x4xbf16>, vector<4x4xf32> -> vector<4x4xf32>
    %49 = tpu.iota {dimensions = array<i32: 0>} : vector<4x4xi32>
    %50 = tpu.iota {dimensions = array<i32: 1>} : vector<4x4xi32>
    %51 = arith.cmpi eq, %49, %50 : vector<4x4xi32>
    %52 = arith.extui %51 : vector<4x4xi1> to vector<4x4xi32>
    %53 = arith.sitofp %52 : vector<4x4xi32> to vector<4x4xf32>
    %54 = arith.mulf %47, %53 : vector<4x4xf32>
    %55 = vector.shape_cast %54 : vector<4x4xf32> to vector<1x4x4xf32>
    %cst_29 = arith.constant dense<0.000000e+00> : vector<1xf32>
    %56 = vector.multi_reduction <add>, %55, %cst_29 [1, 2] : vector<1x4x4xf32> to vector<1xf32>
    %57 = vector.shape_cast %56 : vector<1xf32> to vector<1x1x1xf32>
    %58 = vector.extract %57[0, 0, 0] : f32 from vector<1x1x1xf32>
    %59 = vector.broadcast %58 : f32 to vector<1x1xf32>
    %cst_30 = arith.constant dense<0.000000e+00> : vector<8xf32>
    %60 = vector.multi_reduction <add>, %3, %cst_30 [1] : vector<8x8xf32> to vector<8xf32>
    %61 = vector.shape_cast %60 : vector<8xf32> to vector<8x1xf32>
    %62 = arith.mulf %41, %41 : vector<8x4xf32>
    %cst_31 = arith.constant dense<0.000000e+00> : vector<8xf32>
    %63 = vector.multi_reduction <add>, %62, %cst_31 [1] : vector<8x4xf32> to vector<8xf32>
    %64 = vector.shape_cast %63 : vector<8xf32> to vector<8x1xf32>
    %65 = arith.mulf %61, %64 : vector<8x1xf32>
    %66 = vector.shape_cast %65 : vector<8x1xf32> to vector<1x8x1xf32>
    %cst_32 = arith.constant dense<0.000000e+00> : vector<1xf32>
    %67 = vector.multi_reduction <add>, %66, %cst_32 [1, 2] : vector<1x8x1xf32> to vector<1xf32>
    %68 = vector.shape_cast %67 : vector<1xf32> to vector<1x1x1xf32>
    %69 = vector.extract %68[0, 0, 0] : f32 from vector<1x1x1xf32>
    %70 = vector.broadcast %69 : f32 to vector<1x1xf32>
    %71 = arith.divf %59, %70 : vector<1x1xf32>
    %cst_33 = arith.constant 0.000000e+00 : f32
    %72 = vector.broadcast %cst_33 : f32 to vector<1x1xf32>
    %73 = arith.subf %72, %71 : vector<1x1xf32>
    %74 = arith.mulf %48, %48 : vector<4x4xf32>
    %75 = vector.shape_cast %74 : vector<4x4xf32> to vector<1x4x4xf32>
    %cst_34 = arith.constant dense<0.000000e+00> : vector<1xf32>
    %76 = vector.multi_reduction <add>, %75, %cst_34 [1, 2] : vector<1x4x4xf32> to vector<1xf32>
    %77 = vector.shape_cast %76 : vector<1xf32> to vector<1x1x1xf32>
    %78 = vector.extract %77[0, 0, 0] : f32 from vector<1x1x1xf32>
    %79 = vector.broadcast %78 : f32 to vector<1x1xf32>
    %80 = math.sqrt %79 : vector<1x1xf32>
    %81 = vector.broadcast %80 : vector<1x1xf32> to vector<4x4xf32>
    %82 = arith.divf %48, %81 : vector<4x4xf32>
    %cst_35 = arith.constant 5.000000e-01 : f32
    %83 = vector.broadcast %cst_35 : f32 to vector<4x4xf32>
    %84 = arith.mulf %53, %83 : vector<4x4xf32>
    %85 = arith.subf %82, %84 : vector<4x4xf32>
    %86 = arith.mulf %85, %85 : vector<4x4xf32>
    %87 = vector.shape_cast %86 : vector<4x4xf32> to vector<1x4x4xf32>
    %cst_36 = arith.constant dense<0.000000e+00> : vector<1xf32>
    %88 = vector.multi_reduction <add>, %87, %cst_36 [1, 2] : vector<1x4x4xf32> to vector<1xf32>
    %89 = vector.shape_cast %88 : vector<1xf32> to vector<1x1x1xf32>
    %90 = vector.extract %89[0, 0, 0] : f32 from vector<1x1x1xf32>
    %91 = vector.broadcast %90 : f32 to vector<1x1xf32>
    %92 = math.sqrt %91 : vector<1x1xf32>
    %cst_37 = arith.constant 1.000000e+00 : f32
    %93 = vector.broadcast %cst_37 : f32 to vector<4x4xf32>
    %94 = arith.subf %93, %53 : vector<4x4xf32>
    %95 = arith.mulf %47, %94 : vector<4x4xf32>
    %cst_38 = arith.constant dense<0.000000e+00> : vector<4xf32>
    %96 = vector.multi_reduction <add>, %95, %cst_38 [1] : vector<4x4xf32> to vector<4xf32>
    %97 = vector.shape_cast %96 : vector<4xf32> to vector<4x1xf32>
    %98 = math.sqrt %97 : vector<4x1xf32>
    %cst_39 = arith.constant 1.000000e-15 : f32
    %99 = vector.broadcast %cst_39 : f32 to vector<4x1xf32>
    %100 = arith.addf %98, %99 : vector<4x1xf32>
    %101 = vector.broadcast %100 : vector<4x1xf32> to vector<4x4xf32>
    %102 = arith.mulf %53, %101 : vector<4x4xf32>
    %cst_40 = arith.constant dense<0.000000e+00> : vector<4xf32>
    %103 = vector.multi_reduction <add>, %102, %cst_40 [0] : vector<4x4xf32> to vector<4xf32>
    %104 = vector.shape_cast %103 : vector<4xf32> to vector<1x4xf32>
    %105 = vector.broadcast %100 : vector<4x1xf32> to vector<4x4xf32>
    %106 = arith.divf %95, %105 : vector<4x4xf32>
    %107 = vector.broadcast %104 : vector<1x4xf32> to vector<4x4xf32>
    %108 = arith.divf %106, %107 : vector<4x4xf32>
    %c0_41 = arith.constant 0 : index
    %c0_42 = arith.constant 0 : index
    %c0_43 = arith.constant 0 : index
    %109 = vector.load %arg26[%c0_41, %c0_42, %c0_43] : memref<1x4x4xf32, #tpu.memory_space<vmem>>, vector<1x4x4xf32>
    %110 = vector.shape_cast %109 : vector<1x4x4xf32> to vector<4x4xf32>
    %111 = vector.shape_cast %108 : vector<4x4xf32> to vector<1x4x4xf32>
    tpu.vector_store %arg26[%c0_41, %c0_42, %c0_43], %111 {strides = array<i32>} : memref<1x4x4xf32, #tpu.memory_space<vmem>>, vector<1x4x4xf32>,
    %c0_44 = arith.constant 0 : index
    %c0_45 = arith.constant 0 : index
    %c0_46 = arith.constant 0 : index
    %112 = vector.load %arg28[%c0_44, %c0_45, %c0_46] : memref<1x1x1xf32, #tpu.memory_space<vmem>>, vector<1x1x1xf32>
    %113 = vector.shape_cast %112 : vector<1x1x1xf32> to vector<1x1xf32>
    %114 = vector.shape_cast %73 : vector<1x1xf32> to vector<1x1x1xf32>
    tpu.vector_store %arg28[%c0_44, %c0_45, %c0_46], %114 {strides = array<i32>} : memref<1x1x1xf32, #tpu.memory_space<vmem>>, vector<1x1x1xf32>,
    %c0_47 = arith.constant 0 : index
    %c0_48 = arith.constant 0 : index
    %c0_49 = arith.constant 0 : index
    %115 = vector.load %arg29[%c0_47, %c0_48, %c0_49] : memref<1x1x1xf32, #tpu.memory_space<vmem>>, vector<1x1x1xf32>
    %116 = vector.shape_cast %115 : vector<1x1x1xf32> to vector<1x1xf32>
    %117 = vector.shape_cast %92 : vector<1x1xf32> to vector<1x1x1xf32>
    tpu.vector_store %arg29[%c0_47, %c0_48, %c0_49], %117 {strides = array<i32>} : memref<1x1x1xf32, #tpu.memory_space<vmem>>, vector<1x1x1xf32>,
    %c0_50 = arith.constant 0 : index
    %c0_51 = arith.constant 0 : index
    %c0_52 = arith.constant 0 : index
    %118 = vector.load %arg9[%c0_50, %c0_51, %c0_52] : memref<2x32x16xbf16, #tpu.memory_space<vmem>>, vector<2x32x16xbf16>
    %c0_53 = arith.constant 0 : index
    %c0_54 = arith.constant 0 : index
    %c0_55 = arith.constant 0 : index
    %119 = vector.load %arg10[%c0_53, %c0_54, %c0_55] : memref<2x32x16xbf16, #tpu.memory_space<vmem>>, vector<2x32x16xbf16>
    %c0_56 = arith.constant 0 : index
    %c0_57 = arith.constant 0 : index
    %c0_58 = arith.constant 0 : index
    %120 = vector.load %arg11[%c0_56, %c0_57, %c0_58] : memref<2x32x16xbf16, #tpu.memory_space<vmem>>, vector<2x32x16xbf16>
    %c0_59 = arith.constant 0 : index
    %c0_60 = arith.constant 0 : index
    %c0_61 = arith.constant 0 : index
    %121 = vector.load %arg12[%c0_59, %c0_60, %c0_61] : memref<2x1x16xf32, #tpu.memory_space<vmem>>, vector<2x1x16xf32>
    %c0_62 = arith.constant 0 : index
    %c0_63 = arith.constant 0 : index
    %c0_64 = arith.constant 0 : index
    %122 = vector.load %arg13[%c0_62, %c0_63, %c0_64] : memref<2x1x16xf32, #tpu.memory_space<vmem>>, vector<2x1x16xf32>
    %c0_65 = arith.constant 0 : index
    %c0_66 = arith.constant 0 : index
    %c0_67 = arith.constant 0 : index
    %123 = vector.load %arg14[%c0_65, %c0_66, %c0_67] : memref<2x1x16xf32, #tpu.memory_space<vmem>>, vector<2x1x16xf32>
    %c0_68 = arith.constant 0 : index
    %c0_69 = arith.constant 0 : index
    %c0_70 = arith.constant 0 : index
    %124 = vector.load %arg15[%c0_68, %c0_69, %c0_70] : memref<2x16x32xbf16, #tpu.memory_space<vmem>>, vector<2x16x32xbf16>
    %c0_71 = arith.constant 0 : index
    %c0_72 = arith.constant 0 : index
    %125 = vector.load %arg16[%c0_71, %c0_72] : memref<1x32xf32, #tpu.memory_space<vmem>>, vector<1x32xf32>
    %c0_73 = arith.constant 0 : index
    %c0_74 = arith.constant 0 : index
    %126 = vector.load %arg17[%c0_73, %c0_74] : memref<32x32xbf16, #tpu.memory_space<vmem>>, vector<32x32xbf16>
    %c0_75 = arith.constant 0 : index
    %c0_76 = arith.constant 0 : index
    %127 = vector.load %arg18[%c0_75, %c0_76] : memref<1x32xf32, #tpu.memory_space<vmem>>, vector<1x32xf32>
    %c0_77 = arith.constant 0 : index
    %c0_78 = arith.constant 0 : index
    %128 = vector.load %arg19[%c0_77, %c0_78] : memref<32x32xbf16, #tpu.memory_space<vmem>>, vector<32x32xbf16>
    %c0_79 = arith.constant 0 : index
    %c0_80 = arith.constant 0 : index
    %129 = vector.load %arg20[%c0_79, %c0_80] : memref<1x32xf32, #tpu.memory_space<vmem>>, vector<1x32xf32>
    %c0_81 = arith.constant 0 : index
    %c0_82 = arith.constant 0 : index
    %130 = vector.load %arg21[%c0_81, %c0_82] : memref<1x32xf32, #tpu.memory_space<vmem>>, vector<1x32xf32>
    %c0_83 = arith.constant 0 : index
    %c0_84 = arith.constant 0 : index
    %131 = vector.load %arg22[%c0_83, %c0_84] : memref<1x32xf32, #tpu.memory_space<vmem>>, vector<1x32xf32>
    %c0_85 = arith.constant 0 : index
    %c0_86 = arith.constant 0 : index
    %132 = vector.load %arg23[%c0_85, %c0_86] : memref<1x32xf32, #tpu.memory_space<vmem>>, vector<1x32xf32>
    %c0_87 = arith.constant 0 : index
    %c0_88 = arith.constant 0 : index
    %133 = vector.load %arg24[%c0_87, %c0_88] : memref<1x32xf32, #tpu.memory_space<vmem>>, vector<1x32xf32>
    %c0_i32 = arith.constant 0 : i32
    %c6_i32 = arith.constant 6 : i32
    %134 = arith.addi %c0_i32, %c6_i32 : i32
    %c1_i32 = arith.constant 1 : i32
    %135 = scf.for %arg30 = %c0_i32 to %134 step %c1_i32 iter_args(%arg31 = %44) -> (vector<4x32xf32>)  : i32 {
      %144 = arith.truncf %arg31 : vector<4x32xf32> to vector<4x32xbf16>
      %145 = vector.extract_strided_slice %118 {offsets = [0, 0, 0], sizes = [1, 32, 16], strides = [1, 1, 1]} : vector<2x32x16xbf16> to vector<1x32x16xbf16>
      %146 = vector.shape_cast %145 : vector<1x32x16xbf16> to vector<32x16xbf16>
      %cst_96 = arith.constant dense<0.000000e+00> : vector<4x16xf32>
      %147 = tpu.matmul %144, %146, %cst_96 {dimension_numbers = #tpu.dot_dimension_numbers<[1], [0], [0], [1], [0, 0, 1, 1], [], []>} : vector<4x32xbf16>, vector<32x16xbf16>, vector<4x16xf32> -> vector<4x16xf32>
      %148 = vector.extract_strided_slice %121 {offsets = [0, 0, 0], sizes = [1, 1, 16], strides = [1, 1, 1]} : vector<2x1x16xf32> to vector<1x1x16xf32>
      %149 = vector.shape_cast %148 : vector<1x1x16xf32> to vector<1x16xf32>
      %150 = vector.broadcast %149 : vector<1x16xf32> to vector<4x16xf32>
      %151 = arith.addf %147, %150 : vector<4x16xf32>
      %cst_97 = arith.constant 2.500000e-01 : f32
      %152 = vector.broadcast %cst_97 : f32 to vector<4x16xf32>
      %153 = arith.mulf %151, %152 : vector<4x16xf32>
      %154 = vector.extract_strided_slice %119 {offsets = [0, 0, 0], sizes = [1, 32, 16], strides = [1, 1, 1]} : vector<2x32x16xbf16> to vector<1x32x16xbf16>
      %155 = vector.shape_cast %154 : vector<1x32x16xbf16> to vector<32x16xbf16>
      %cst_98 = arith.constant dense<0.000000e+00> : vector<4x16xf32>
      %156 = tpu.matmul %144, %155, %cst_98 {dimension_numbers = #tpu.dot_dimension_numbers<[1], [0], [0], [1], [0, 0, 1, 1], [], []>} : vector<4x32xbf16>, vector<32x16xbf16>, vector<4x16xf32> -> vector<4x16xf32>
      %157 = vector.extract_strided_slice %122 {offsets = [0, 0, 0], sizes = [1, 1, 16], strides = [1, 1, 1]} : vector<2x1x16xf32> to vector<1x1x16xf32>
      %158 = vector.shape_cast %157 : vector<1x1x16xf32> to vector<1x16xf32>
      %159 = vector.broadcast %158 : vector<1x16xf32> to vector<4x16xf32>
      %160 = arith.addf %156, %159 : vector<4x16xf32>
      %161 = vector.extract_strided_slice %120 {offsets = [0, 0, 0], sizes = [1, 32, 16], strides = [1, 1, 1]} : vector<2x32x16xbf16> to vector<1x32x16xbf16>
      %162 = vector.shape_cast %161 : vector<1x32x16xbf16> to vector<32x16xbf16>
      %cst_99 = arith.constant dense<0.000000e+00> : vector<4x16xf32>
      %163 = tpu.matmul %144, %162, %cst_99 {dimension_numbers = #tpu.dot_dimension_numbers<[1], [0], [0], [1], [0, 0, 1, 1], [], []>} : vector<4x32xbf16>, vector<32x16xbf16>, vector<4x16xf32> -> vector<4x16xf32>
      %164 = vector.extract_strided_slice %123 {offsets = [0, 0, 0], sizes = [1, 1, 16], strides = [1, 1, 1]} : vector<2x1x16xf32> to vector<1x1x16xf32>
      %165 = vector.shape_cast %164 : vector<1x1x16xf32> to vector<1x16xf32>
      %166 = vector.broadcast %165 : vector<1x16xf32> to vector<4x16xf32>
      %167 = arith.addf %163, %166 : vector<4x16xf32>
      %168 = arith.truncf %153 : vector<4x16xf32> to vector<4x16xbf16>
      %169 = arith.truncf %160 : vector<4x16xf32> to vector<4x16xbf16>
      %cst_100 = arith.constant dense<0.000000e+00> : vector<4x4xf32>
      %170 = tpu.matmul %168, %169, %cst_100 {dimension_numbers = #tpu.dot_dimension_numbers<[1], [1], [0], [0], [0, 0, 1, 0], [], []>} : vector<4x16xbf16>, vector<4x16xbf16>, vector<4x4xf32> -> vector<4x4xf32>
      %cst_101 = arith.constant dense<0xFF800000> : vector<4xf32>
      %171 = vector.multi_reduction <maximumf>, %170, %cst_101 [1] : vector<4x4xf32> to vector<4xf32>
      %172 = vector.shape_cast %171 : vector<4xf32> to vector<4x1xf32>
      %173 = vector.broadcast %172 : vector<4x1xf32> to vector<4x4xf32>
      %174 = arith.subf %170, %173 : vector<4x4xf32>
      %175 = math.exp %174 : vector<4x4xf32>
      %cst_102 = arith.constant dense<0.000000e+00> : vector<4xf32>
      %176 = vector.multi_reduction <add>, %175, %cst_102 [1] : vector<4x4xf32> to vector<4xf32>
      %177 = vector.shape_cast %176 : vector<4xf32> to vector<4x1xf32>
      %178 = tpu.reciprocal %177 {approx = true} : vector<4x1xf32> -> vector<4x1xf32>
      %179 = vector.broadcast %178 : vector<4x1xf32> to vector<4x4xf32>
      %180 = arith.mulf %175, %179 : vector<4x4xf32>
      %181 = arith.truncf %180 : vector<4x4xf32> to vector<4x4xbf16>
      %182 = arith.truncf %167 : vector<4x16xf32> to vector<4x16xbf16>
      %cst_103 = arith.constant dense<0.000000e+00> : vector<4x16xf32>
      %183 = tpu.matmul %181, %182, %cst_103 {dimension_numbers = #tpu.dot_dimension_numbers<[1], [0], [0], [1], [0, 0, 1, 1], [], []>} : vector<4x4xbf16>, vector<4x16xbf16>, vector<4x16xf32> -> vector<4x16xf32>
      %184 = arith.truncf %183 : vector<4x16xf32> to vector<4x16xbf16>
      %185 = vector.extract_strided_slice %124 {offsets = [0, 0, 0], sizes = [1, 16, 32], strides = [1, 1, 1]} : vector<2x16x32xbf16> to vector<1x16x32xbf16>
      %186 = vector.shape_cast %185 : vector<1x16x32xbf16> to vector<16x32xbf16>
      %cst_104 = arith.constant dense<0.000000e+00> : vector<4x32xf32>
      %187 = tpu.matmul %184, %186, %cst_104 {dimension_numbers = #tpu.dot_dimension_numbers<[1], [0], [0], [1], [0, 0, 1, 1], [], []>} : vector<4x16xbf16>, vector<16x32xbf16>, vector<4x32xf32> -> vector<4x32xf32>
      %188 = vector.extract_strided_slice %118 {offsets = [1, 0, 0], sizes = [1, 32, 16], strides = [1, 1, 1]} : vector<2x32x16xbf16> to vector<1x32x16xbf16>
      %189 = vector.shape_cast %188 : vector<1x32x16xbf16> to vector<32x16xbf16>
      %cst_105 = arith.constant dense<0.000000e+00> : vector<4x16xf32>
      %190 = tpu.matmul %144, %189, %cst_105 {dimension_numbers = #tpu.dot_dimension_numbers<[1], [0], [0], [1], [0, 0, 1, 1], [], []>} : vector<4x32xbf16>, vector<32x16xbf16>, vector<4x16xf32> -> vector<4x16xf32>
      %191 = vector.extract_strided_slice %121 {offsets = [1, 0, 0], sizes = [1, 1, 16], strides = [1, 1, 1]} : vector<2x1x16xf32> to vector<1x1x16xf32>
      %192 = vector.shape_cast %191 : vector<1x1x16xf32> to vector<1x16xf32>
      %193 = vector.broadcast %192 : vector<1x16xf32> to vector<4x16xf32>
      %194 = arith.addf %190, %193 : vector<4x16xf32>
      %cst_106 = arith.constant 2.500000e-01 : f32
      %195 = vector.broadcast %cst_106 : f32 to vector<4x16xf32>
      %196 = arith.mulf %194, %195 : vector<4x16xf32>
      %197 = vector.extract_strided_slice %119 {offsets = [1, 0, 0], sizes = [1, 32, 16], strides = [1, 1, 1]} : vector<2x32x16xbf16> to vector<1x32x16xbf16>
      %198 = vector.shape_cast %197 : vector<1x32x16xbf16> to vector<32x16xbf16>
      %cst_107 = arith.constant dense<0.000000e+00> : vector<4x16xf32>
      %199 = tpu.matmul %144, %198, %cst_107 {dimension_numbers = #tpu.dot_dimension_numbers<[1], [0], [0], [1], [0, 0, 1, 1], [], []>} : vector<4x32xbf16>, vector<32x16xbf16>, vector<4x16xf32> -> vector<4x16xf32>
      %200 = vector.extract_strided_slice %122 {offsets = [1, 0, 0], sizes = [1, 1, 16], strides = [1, 1, 1]} : vector<2x1x16xf32> to vector<1x1x16xf32>
      %201 = vector.shape_cast %200 : vector<1x1x16xf32> to vector<1x16xf32>
      %202 = vector.broadcast %201 : vector<1x16xf32> to vector<4x16xf32>
      %203 = arith.addf %199, %202 : vector<4x16xf32>
      %204 = vector.extract_strided_slice %120 {offsets = [1, 0, 0], sizes = [1, 32, 16], strides = [1, 1, 1]} : vector<2x32x16xbf16> to vector<1x32x16xbf16>
      %205 = vector.shape_cast %204 : vector<1x32x16xbf16> to vector<32x16xbf16>
      %cst_108 = arith.constant dense<0.000000e+00> : vector<4x16xf32>
      %206 = tpu.matmul %144, %205, %cst_108 {dimension_numbers = #tpu.dot_dimension_numbers<[1], [0], [0], [1], [0, 0, 1, 1], [], []>} : vector<4x32xbf16>, vector<32x16xbf16>, vector<4x16xf32> -> vector<4x16xf32>
      %207 = vector.extract_strided_slice %123 {offsets = [1, 0, 0], sizes = [1, 1, 16], strides = [1, 1, 1]} : vector<2x1x16xf32> to vector<1x1x16xf32>
      %208 = vector.shape_cast %207 : vector<1x1x16xf32> to vector<1x16xf32>
      %209 = vector.broadcast %208 : vector<1x16xf32> to vector<4x16xf32>
      %210 = arith.addf %206, %209 : vector<4x16xf32>
      %211 = arith.truncf %196 : vector<4x16xf32> to vector<4x16xbf16>
      %212 = arith.truncf %203 : vector<4x16xf32> to vector<4x16xbf16>
      %cst_109 = arith.constant dense<0.000000e+00> : vector<4x4xf32>
      %213 = tpu.matmul %211, %212, %cst_109 {dimension_numbers = #tpu.dot_dimension_numbers<[1], [1], [0], [0], [0, 0, 1, 0], [], []>} : vector<4x16xbf16>, vector<4x16xbf16>, vector<4x4xf32> -> vector<4x4xf32>
      %cst_110 = arith.constant dense<0xFF800000> : vector<4xf32>
      %214 = vector.multi_reduction <maximumf>, %213, %cst_110 [1] : vector<4x4xf32> to vector<4xf32>
      %215 = vector.shape_cast %214 : vector<4xf32> to vector<4x1xf32>
      %216 = vector.broadcast %215 : vector<4x1xf32> to vector<4x4xf32>
      %217 = arith.subf %213, %216 : vector<4x4xf32>
      %218 = math.exp %217 : vector<4x4xf32>
      %cst_111 = arith.constant dense<0.000000e+00> : vector<4xf32>
      %219 = vector.multi_reduction <add>, %218, %cst_111 [1] : vector<4x4xf32> to vector<4xf32>
      %220 = vector.shape_cast %219 : vector<4xf32> to vector<4x1xf32>
      %221 = tpu.reciprocal %220 {approx = true} : vector<4x1xf32> -> vector<4x1xf32>
      %222 = vector.broadcast %221 : vector<4x1xf32> to vector<4x4xf32>
      %223 = arith.mulf %218, %222 : vector<4x4xf32>
      %224 = arith.truncf %223 : vector<4x4xf32> to vector<4x4xbf16>
      %225 = arith.truncf %210 : vector<4x16xf32> to vector<4x16xbf16>
      %cst_112 = arith.constant dense<0.000000e+00> : vector<4x16xf32>
      %226 = tpu.matmul %224, %225, %cst_112 {dimension_numbers = #tpu.dot_dimension_numbers<[1], [0], [0], [1], [0, 0, 1, 1], [], []>} : vector<4x4xbf16>, vector<4x16xbf16>, vector<4x16xf32> -> vector<4x16xf32>
      %227 = arith.truncf %226 : vector<4x16xf32> to vector<4x16xbf16>
      %228 = vector.extract_strided_slice %124 {offsets = [1, 0, 0], sizes = [1, 16, 32], strides = [1, 1, 1]} : vector<2x16x32xbf16> to vector<1x16x32xbf16>
      %229 = vector.shape_cast %228 : vector<1x16x32xbf16> to vector<16x32xbf16>
      %cst_113 = arith.constant dense<0.000000e+00> : vector<4x32xf32>
      %230 = tpu.matmul %227, %229, %cst_113 {dimension_numbers = #tpu.dot_dimension_numbers<[1], [0], [0], [1], [0, 0, 1, 1], [], []>} : vector<4x16xbf16>, vector<16x32xbf16>, vector<4x32xf32> -> vector<4x32xf32>
      %231 = arith.addf %187, %230 : vector<4x32xf32>
      %232 = arith.addf %arg31, %231 : vector<4x32xf32>
      %233 = vector.broadcast %125 : vector<1x32xf32> to vector<4x32xf32>
      %234 = arith.addf %232, %233 : vector<4x32xf32>
      %cst_114 = arith.constant dense<0.000000e+00> : vector<4xf32>
      %235 = vector.multi_reduction <add>, %234, %cst_114 [1] : vector<4x32xf32> to vector<4xf32>
      %236 = vector.shape_cast %235 : vector<4xf32> to vector<4x1xf32>
      %cst_115 = arith.constant 3.200000e+01 : f32
      %237 = vector.broadcast %cst_115 : f32 to vector<4x1xf32>
      %238 = arith.divf %236, %237 : vector<4x1xf32>
      %239 = vector.broadcast %238 : vector<4x1xf32> to vector<4x32xf32>
      %240 = arith.subf %234, %239 : vector<4x32xf32>
      %241 = arith.mulf %240, %240 : vector<4x32xf32>
      %cst_116 = arith.constant dense<0.000000e+00> : vector<4xf32>
      %242 = vector.multi_reduction <add>, %241, %cst_116 [1] : vector<4x32xf32> to vector<4xf32>
      %243 = vector.shape_cast %242 : vector<4xf32> to vector<4x1xf32>
      %cst_117 = arith.constant 3.200000e+01 : f32
      %244 = vector.broadcast %cst_117 : f32 to vector<4x1xf32>
      %245 = arith.divf %243, %244 : vector<4x1xf32>
      %246 = vector.broadcast %238 : vector<4x1xf32> to vector<4x32xf32>
      %247 = arith.subf %234, %246 : vector<4x32xf32>
      %cst_118 = arith.constant 9.99999974E-6 : f32
      %248 = vector.broadcast %cst_118 : f32 to vector<4x1xf32>
      %249 = arith.addf %245, %248 : vector<4x1xf32>
      %250 = math.rsqrt %249 : vector<4x1xf32>
      %251 = vector.broadcast %250 : vector<4x1xf32> to vector<4x32xf32>
      %252 = arith.mulf %247, %251 : vector<4x32xf32>
      %253 = vector.broadcast %130 : vector<1x32xf32> to vector<4x32xf32>
      %254 = arith.mulf %252, %253 : vector<4x32xf32>
      %255 = vector.broadcast %131 : vector<1x32xf32> to vector<4x32xf32>
      %256 = arith.addf %254, %255 : vector<4x32xf32>
      %257 = arith.truncf %256 : vector<4x32xf32> to vector<4x32xbf16>
      %cst_119 = arith.constant dense<0.000000e+00> : vector<4x32xf32>
      %258 = tpu.matmul %257, %126, %cst_119 {dimension_numbers = #tpu.dot_dimension_numbers<[1], [0], [0], [1], [0, 0, 1, 1], [], []>} : vector<4x32xbf16>, vector<32x32xbf16>, vector<4x32xf32> -> vector<4x32xf32>
      %259 = vector.broadcast %127 : vector<1x32xf32> to vector<4x32xf32>
      %260 = arith.addf %258, %259 : vector<4x32xf32>
      %cst_120 = arith.constant 0.000000e+00 : f32
      %261 = vector.broadcast %cst_120 : f32 to vector<4x32xf32>
      %262 = arith.maximumf %260, %261 : vector<4x32xf32>
      %263 = arith.truncf %262 : vector<4x32xf32> to vector<4x32xbf16>
      %cst_121 = arith.constant dense<0.000000e+00> : vector<4x32xf32>
      %264 = tpu.matmul %263, %128, %cst_121 {dimension_numbers = #tpu.dot_dimension_numbers<[1], [0], [0], [1], [0, 0, 1, 1], [], []>} : vector<4x32xbf16>, vector<32x32xbf16>, vector<4x32xf32> -> vector<4x32xf32>
      %265 = vector.broadcast %129 : vector<1x32xf32> to vector<4x32xf32>
      %266 = arith.addf %264, %265 : vector<4x32xf32>
      %267 = arith.addf %256, %266 : vector<4x32xf32>
      %cst_122 = arith.constant dense<0.000000e+00> : vector<4xf32>
      %268 = vector.multi_reduction <add>, %267, %cst_122 [1] : vector<4x32xf32> to vector<4xf32>
      %269 = vector.shape_cast %268 : vector<4xf32> to vector<4x1xf32>
      %cst_123 = arith.constant 3.200000e+01 : f32
      %270 = vector.broadcast %cst_123 : f32 to vector<4x1xf32>
      %271 = arith.divf %269, %270 : vector<4x1xf32>
      %272 = vector.broadcast %271 : vector<4x1xf32> to vector<4x32xf32>
      %273 = arith.subf %267, %272 : vector<4x32xf32>
      %274 = arith.mulf %273, %273 : vector<4x32xf32>
      %cst_124 = arith.constant dense<0.000000e+00> : vector<4xf32>
      %275 = vector.multi_reduction <add>, %274, %cst_124 [1] : vector<4x32xf32> to vector<4xf32>
      %276 = vector.shape_cast %275 : vector<4xf32> to vector<4x1xf32>
      %cst_125 = arith.constant 3.200000e+01 : f32
      %277 = vector.broadcast %cst_125 : f32 to vector<4x1xf32>
      %278 = arith.divf %276, %277 : vector<4x1xf32>
      %279 = vector.broadcast %271 : vector<4x1xf32> to vector<4x32xf32>
      %280 = arith.subf %267, %279 : vector<4x32xf32>
      %cst_126 = arith.constant 9.99999974E-6 : f32
      %281 = vector.broadcast %cst_126 : f32 to vector<4x1xf32>
      %282 = arith.addf %278, %281 : vector<4x1xf32>
      %283 = math.rsqrt %282 : vector<4x1xf32>
      %284 = vector.broadcast %283 : vector<4x1xf32> to vector<4x32xf32>
      %285 = arith.mulf %280, %284 : vector<4x32xf32>
      %286 = vector.broadcast %132 : vector<1x32xf32> to vector<4x32xf32>
      %287 = arith.mulf %285, %286 : vector<4x32xf32>
      %288 = vector.broadcast %133 : vector<1x32xf32> to vector<4x32xf32>
      %289 = arith.addf %287, %288 : vector<4x32xf32>
      scf.yield %289 : vector<4x32xf32>
    }
    %c0_89 = arith.constant 0 : index
    %c0_90 = arith.constant 0 : index
    %c0_91 = arith.constant 0 : index
    %136 = vector.load %arg25[%c0_89, %c0_90, %c0_91] : memref<1x4x32xf32, #tpu.memory_space<vmem>>, vector<1x4x32xf32>
    %137 = vector.shape_cast %136 : vector<1x4x32xf32> to vector<4x32xf32>
    %138 = vector.shape_cast %135 : vector<4x32xf32> to vector<1x4x32xf32>
    tpu.vector_store %arg25[%c0_89, %c0_90, %c0_91], %138 {strides = array<i32>} : memref<1x4x32xf32, #tpu.memory_space<vmem>>, vector<1x4x32xf32>,
    %cst_92 = arith.constant dense<0xFF800000> : vector<32xf32>
    %139 = vector.multi_reduction <maximumf>, %135, %cst_92 [0] : vector<4x32xf32> to vector<32xf32>
    %140 = vector.shape_cast %139 : vector<32xf32> to vector<1x32xf32>
    %c0_93 = arith.constant 0 : index
    %c0_94 = arith.constant 0 : index
    %c0_95 = arith.constant 0 : index
    %141 = vector.load %arg27[%c0_93, %c0_94, %c0_95] : memref<1x1x32xf32, #tpu.memory_space<vmem>>, vector<1x1x32xf32>
    %142 = vector.shape_cast %141 : vector<1x1x32xf32> to vector<1x32xf32>
    %143 = vector.shape_cast %140 : vector<1x32xf32> to vector<1x1x32xf32>
    tpu.vector_store %arg27[%c0_93, %c0_94, %c0_95], %143 {strides = array<i32>} : memref<1x1x32xf32, #tpu.memory_space<vmem>>, vector<1x1x32xf32>,
    return
  }
  func.func @transform_0(%arg0: i32) -> (i32, i32, i32) {
    %c0_i32 = arith.constant 0 : i32
    %c0_i32_0 = arith.constant 0 : i32
    %c0_i32_1 = arith.constant 0 : i32
    return %arg0, %c0_i32, %c0_i32_0 : i32, i32, i32
  }
  func.func @transform_1(%arg0: i32) -> (i32, i32, i32) {
    %c0_i32 = arith.constant 0 : i32
    %c0_i32_0 = arith.constant 0 : i32
    %c0_i32_1 = arith.constant 0 : i32
    return %arg0, %c0_i32, %c0_i32_0 : i32, i32, i32
  }
  func.func @transform_2(%arg0: i32) -> (i32, i32) {
    %c0_i32 = arith.constant 0 : i32
    %c0_i32_0 = arith.constant 0 : i32
    %c0_i32_1 = arith.constant 0 : i32
    return %c0_i32, %c0_i32_0 : i32, i32
  }
  func.func @transform_3(%arg0: i32) -> (i32, i32) {
    %c0_i32 = arith.constant 0 : i32
    %c0_i32_0 = arith.constant 0 : i32
    %c0_i32_1 = arith.constant 0 : i32
    return %c0_i32, %c0_i32_0 : i32, i32
  }
  func.func @transform_4(%arg0: i32) -> (i32, i32) {
    %c0_i32 = arith.constant 0 : i32
    %c0_i32_0 = arith.constant 0 : i32
    %c0_i32_1 = arith.constant 0 : i32
    return %c0_i32, %c0_i32_0 : i32, i32
  }
  func.func @transform_5(%arg0: i32) -> (i32, i32) {
    %c0_i32 = arith.constant 0 : i32
    %c0_i32_0 = arith.constant 0 : i32
    %c0_i32_1 = arith.constant 0 : i32
    return %c0_i32, %c0_i32_0 : i32, i32
  }
  func.func @transform_6(%arg0: i32) -> (i32, i32) {
    %c0_i32 = arith.constant 0 : i32
    %c0_i32_0 = arith.constant 0 : i32
    %c0_i32_1 = arith.constant 0 : i32
    return %c0_i32, %c0_i32_0 : i32, i32
  }
  func.func @transform_7(%arg0: i32) -> (i32, i32) {
    %c0_i32 = arith.constant 0 : i32
    %c0_i32_0 = arith.constant 0 : i32
    %c0_i32_1 = arith.constant 0 : i32
    return %c0_i32, %c0_i32_0 : i32, i32
  }
  func.func @transform_8(%arg0: i32) -> (i32, i32, i32) {
    %c0_i32 = arith.constant 0 : i32
    %c0_i32_0 = arith.constant 0 : i32
    %c0_i32_1 = arith.constant 0 : i32
    %c0_i32_2 = arith.constant 0 : i32
    return %c0_i32, %c0_i32_0, %c0_i32_1 : i32, i32, i32
  }
  func.func @transform_9(%arg0: i32) -> (i32, i32, i32) {
    %c0_i32 = arith.constant 0 : i32
    %c0_i32_0 = arith.constant 0 : i32
    %c0_i32_1 = arith.constant 0 : i32
    %c0_i32_2 = arith.constant 0 : i32
    return %c0_i32, %c0_i32_0, %c0_i32_1 : i32, i32, i32
  }
  func.func @transform_10(%arg0: i32) -> (i32, i32, i32) {
    %c0_i32 = arith.constant 0 : i32
    %c0_i32_0 = arith.constant 0 : i32
    %c0_i32_1 = arith.constant 0 : i32
    %c0_i32_2 = arith.constant 0 : i32
    return %c0_i32, %c0_i32_0, %c0_i32_1 : i32, i32, i32
  }
  func.func @transform_11(%arg0: i32) -> (i32, i32, i32) {
    %c0_i32 = arith.constant 0 : i32
    %c0_i32_0 = arith.constant 0 : i32
    %c0_i32_1 = arith.constant 0 : i32
    %c0_i32_2 = arith.constant 0 : i32
    return %c0_i32, %c0_i32_0, %c0_i32_1 : i32, i32, i32
  }
  func.func @transform_12(%arg0: i32) -> (i32, i32, i32) {
    %c0_i32 = arith.constant 0 : i32
    %c0_i32_0 = arith.constant 0 : i32
    %c0_i32_1 = arith.constant 0 : i32
    %c0_i32_2 = arith.constant 0 : i32
    return %c0_i32, %c0_i32_0, %c0_i32_1 : i32, i32, i32
  }
  func.func @transform_13(%arg0: i32) -> (i32, i32, i32) {
    %c0_i32 = arith.constant 0 : i32
    %c0_i32_0 = arith.constant 0 : i32
    %c0_i32_1 = arith.constant 0 : i32
    %c0_i32_2 = arith.constant 0 : i32
    return %c0_i32, %c0_i32_0, %c0_i32_1 : i32, i32, i32
  }
  func.func @transform_14(%arg0: i32) -> (i32, i32, i32) {
    %c0_i32 = arith.constant 0 : i32
    %c0_i32_0 = arith.constant 0 : i32
    %c0_i32_1 = arith.constant 0 : i32
    %c0_i32_2 = arith.constant 0 : i32
    return %c0_i32, %c0_i32_0, %c0_i32_1 : i32, i32, i32
  }
  func.func @transform_15(%arg0: i32) -> (i32, i32) {
    %c0_i32 = arith.constant 0 : i32
    %c0_i32_0 = arith.constant 0 : i32
    %c0_i32_1 = arith.constant 0 : i32
    return %c0_i32, %c0_i32_0 : i32, i32
  }
  func.func @transform_16(%arg0: i32) -> (i32, i32) {
    %c0_i32 = arith.constant 0 : i32
    %c0_i32_0 = arith.constant 0 : i32
    %c0_i32_1 = arith.constant 0 : i32
    return %c0_i32, %c0_i32_0 : i32, i32
  }
  func.func @transform_17(%arg0: i32) -> (i32, i32) {
    %c0_i32 = arith.constant 0 : i32
    %c0_i32_0 = arith.constant 0 : i32
    %c0_i32_1 = arith.constant 0 : i32
    return %c0_i32, %c0_i32_0 : i32, i32
  }
  func.func @transform_18(%arg0: i32) -> (i32, i32) {
    %c0_i32 = arith.constant 0 : i32
    %c0_i32_0 = arith.constant 0 : i32
    %c0_i32_1 = arith.constant 0 : i32
    return %c0_i32, %c0_i32_0 : i32, i32
  }
  func.func @transform_19(%arg0: i32) -> (i32, i32) {
    %c0_i32 = arith.constant 0 : i32
    %c0_i32_0 = arith.constant 0 : i32
    %c0_i32_1 = arith.constant 0 : i32
    return %c0_i32, %c0_i32_0 : i32, i32
  }
  func.func @transform_20(%arg0: i32) -> (i32, i32) {
    %c0_i32 = arith.constant 0 : i32
    %c0_i32_0 = arith.constant 0 : i32
    %c0_i32_1 = arith.constant 0 : i32
    return %c0_i32, %c0_i32_0 : i32, i32
  }
  func.func @transform_21(%arg0: i32) -> (i32, i32) {
    %c0_i32 = arith.constant 0 : i32
    %c0_i32_0 = arith.constant 0 : i32
    %c0_i32_1 = arith.constant 0 : i32
    return %c0_i32, %c0_i32_0 : i32, i32
  }
  func.func @transform_22(%arg0: i32) -> (i32, i32) {
    %c0_i32 = arith.constant 0 : i32
    %c0_i32_0 = arith.constant 0 : i32
    %c0_i32_1 = arith.constant 0 : i32
    return %c0_i32, %c0_i32_0 : i32, i32
  }
  func.func @transform_23(%arg0: i32) -> (i32, i32) {
    %c0_i32 = arith.constant 0 : i32
    %c0_i32_0 = arith.constant 0 : i32
    %c0_i32_1 = arith.constant 0 : i32
    return %c0_i32, %c0_i32_0 : i32, i32
  }
  func.func @transform_24(%arg0: i32) -> (i32, i32, i32) {
    %c0_i32 = arith.constant 0 : i32
    %c0_i32_0 = arith.constant 0 : i32
    %c0_i32_1 = arith.constant 0 : i32
    return %arg0, %c0_i32, %c0_i32_0 : i32, i32, i32
  }
  func.func @transform_25(%arg0: i32) -> (i32, i32, i32) {
    %c0_i32 = arith.constant 0 : i32
    %c0_i32_0 = arith.constant 0 : i32
    %c0_i32_1 = arith.constant 0 : i32
    return %arg0, %c0_i32, %c0_i32_0 : i32, i32, i32
  }
  func.func @transform_26(%arg0: i32) -> (i32, i32, i32) {
    %c0_i32 = arith.constant 0 : i32
    %c0_i32_0 = arith.constant 0 : i32
    %c0_i32_1 = arith.constant 0 : i32
    return %arg0, %c0_i32, %c0_i32_0 : i32, i32, i32
  }
  func.func @transform_27(%arg0: i32) -> (i32, i32, i32) {
    %c0_i32 = arith.constant 0 : i32
    %c0_i32_0 = arith.constant 0 : i32
    %c0_i32_1 = arith.constant 0 : i32
    return %arg0, %c0_i32, %c0_i32_0 : i32, i32, i32
  }
  func.func @transform_28(%arg0: i32) -> (i32, i32, i32) {
    %c0_i32 = arith.constant 0 : i32
    %c0_i32_0 = arith.constant 0 : i32
    %c0_i32_1 = arith.constant 0 : i32
    return %arg0, %c0_i32, %c0_i32_0 : i32, i32, i32
  }
}

module attributes {stable_mosaic.version = 11 : i64} {
  func.func @_gin_pool_trans_kernel(%arg0: i32, %arg1: memref<1x4x32xf32, #tpu.memory_space<vmem>>, %arg2: memref<1x4x4xf32, #tpu.memory_space<vmem>>, %arg3: memref<32x32xbf16, #tpu.memory_space<vmem>>, %arg4: memref<1x32xf32, #tpu.memory_space<vmem>>, %arg5: memref<32x32xbf16, #tpu.memory_space<vmem>>, %arg6: memref<1x32xf32, #tpu.memory_space<vmem>>, %arg7: memref<32x2xbf16, #tpu.memory_space<vmem>>, %arg8: memref<1x2xf32, #tpu.memory_space<vmem>>, %arg9: memref<2x32x16xbf16, #tpu.memory_space<vmem>>, %arg10: memref<2x32x16xbf16, #tpu.memory_space<vmem>>, %arg11: memref<2x32x16xbf16, #tpu.memory_space<vmem>>, %arg12: memref<2x1x16xf32, #tpu.memory_space<vmem>>, %arg13: memref<2x1x16xf32, #tpu.memory_space<vmem>>, %arg14: memref<2x1x16xf32, #tpu.memory_space<vmem>>, %arg15: memref<2x16x32xbf16, #tpu.memory_space<vmem>>, %arg16: memref<1x32xf32, #tpu.memory_space<vmem>>, %arg17: memref<32x32xbf16, #tpu.memory_space<vmem>>, %arg18: memref<1x32xf32, #tpu.memory_space<vmem>>, %arg19: memref<32x32xbf16, #tpu.memory_space<vmem>>, %arg20: memref<1x32xf32, #tpu.memory_space<vmem>>, %arg21: memref<1x32xf32, #tpu.memory_space<vmem>>, %arg22: memref<1x32xf32, #tpu.memory_space<vmem>>, %arg23: memref<1x32xf32, #tpu.memory_space<vmem>>, %arg24: memref<1x32xf32, #tpu.memory_space<vmem>>, %arg25: memref<1x2x32xf32, #tpu.memory_space<vmem>>, %arg26: memref<1x2x2xf32, #tpu.memory_space<vmem>>, %arg27: memref<1x1x32xf32, #tpu.memory_space<vmem>>, %arg28: memref<1x1x1xf32, #tpu.memory_space<vmem>>, %arg29: memref<1x1x1xf32, #tpu.memory_space<vmem>>) attributes {dimension_semantics = [#tpu.dimension_semantics<parallel>], iteration_bounds = array<i64: 2>, scalar_prefetch = 0 : i64, scratch_operands = 0 : i64, tpu.core_type = #tpu.core_type<tc>, window_params = [{transform_indices = @transform_0, window_bounds = array<i64: 1, 4, 32>}, {transform_indices = @transform_1, window_bounds = array<i64: 1, 4, 4>}, {pipeline_mode = #tpu.pipeline_mode<synchronous>, transform_indices = @transform_2, window_bounds = array<i64: 32, 32>}, {pipeline_mode = #tpu.pipeline_mode<synchronous>, transform_indices = @transform_3, window_bounds = array<i64: 1, 32>}, {pipeline_mode = #tpu.pipeline_mode<synchronous>, transform_indices = @transform_4, window_bounds = array<i64: 32, 32>}, {pipeline_mode = #tpu.pipeline_mode<synchronous>, transform_indices = @transform_5, window_bounds = array<i64: 1, 32>}, {pipeline_mode = #tpu.pipeline_mode<synchronous>, transform_indices = @transform_6, window_bounds = array<i64: 32, 2>}, {pipeline_mode = #tpu.pipeline_mode<synchronous>, transform_indices = @transform_7, window_bounds = array<i64: 1, 2>}, {pipeline_mode = #tpu.pipeline_mode<synchronous>, transform_indices = @transform_8, window_bounds = array<i64: 2, 32, 16>}, {pipeline_mode = #tpu.pipeline_mode<synchronous>, transform_indices = @transform_9, window_bounds = array<i64: 2, 32, 16>}, {pipeline_mode = #tpu.pipeline_mode<synchronous>, transform_indices = @transform_10, window_bounds = array<i64: 2, 32, 16>}, {pipeline_mode = #tpu.pipeline_mode<synchronous>, transform_indices = @transform_11, window_bounds = array<i64: 2, 1, 16>}, {pipeline_mode = #tpu.pipeline_mode<synchronous>, transform_indices = @transform_12, window_bounds = array<i64: 2, 1, 16>}, {pipeline_mode = #tpu.pipeline_mode<synchronous>, transform_indices = @transform_13, window_bounds = array<i64: 2, 1, 16>}, {pipeline_mode = #tpu.pipeline_mode<synchronous>, transform_indices = @transform_14, window_bounds = array<i64: 2, 16, 32>}, {pipeline_mode = #tpu.pipeline_mode<synchronous>, transform_indices = @transform_15, window_bounds = array<i64: 1, 32>}, {pipeline_mode = #tpu.pipeline_mode<synchronous>, transform_indices = @transform_16, window_bounds = array<i64: 32, 32>}, {pipeline_mode = #tpu.pipeline_mode<synchronous>, transform_indices = @transform_17, window_bounds = array<i64: 1, 32>}, {pipeline_mode = #tpu.pipeline_mode<synchronous>, transform_indices = @transform_18, window_bounds = array<i64: 32, 32>}, {pipeline_mode = #tpu.pipeline_mode<synchronous>, transform_indices = @transform_19, window_bounds = array<i64: 1, 32>}, {pipeline_mode = #tpu.pipeline_mode<synchronous>, transform_indices = @transform_20, window_bounds = array<i64: 1, 32>}, {pipeline_mode = #tpu.pipeline_mode<synchronous>, transform_indices = @transform_21, window_bounds = array<i64: 1, 32>}, {pipeline_mode = #tpu.pipeline_mode<synchronous>, transform_indices = @transform_22, window_bounds = array<i64: 1, 32>}, {pipeline_mode = #tpu.pipeline_mode<synchronous>, transform_indices = @transform_23, window_bounds = array<i64: 1, 32>}, {transform_indices = @transform_24, window_bounds = array<i64: 1, 2, 32>}, {transform_indices = @transform_25, window_bounds = array<i64: 1, 2, 2>}, {transform_indices = @transform_26, window_bounds = array<i64: 1, 1, 32>}, {transform_indices = @transform_27, window_bounds = array<i64: 1, 1, 1>}, {transform_indices = @transform_28, window_bounds = array<i64: 1, 1, 1>}]} {
    %c0 = arith.constant 0 : index
    %c0_0 = arith.constant 0 : index
    %c0_1 = arith.constant 0 : index
    %0 = vector.load %arg1[%c0, %c0_0, %c0_1] : memref<1x4x32xf32, #tpu.memory_space<vmem>>, vector<1x4x32xf32>
    %1 = vector.shape_cast %0 : vector<1x4x32xf32> to vector<4x32xf32>
    %c0_2 = arith.constant 0 : index
    %c0_3 = arith.constant 0 : index
    %c0_4 = arith.constant 0 : index
    %2 = vector.load %arg2[%c0_2, %c0_3, %c0_4] : memref<1x4x4xf32, #tpu.memory_space<vmem>>, vector<1x4x4xf32>
    %3 = vector.shape_cast %2 : vector<1x4x4xf32> to vector<4x4xf32>
    %4 = arith.truncf %3 : vector<4x4xf32> to vector<4x4xbf16>
    %5 = arith.truncf %1 : vector<4x32xf32> to vector<4x32xbf16>
    %cst = arith.constant dense<0.000000e+00> : vector<4x32xf32>
    %6 = tpu.matmul %4, %5, %cst {dimension_numbers = #tpu.dot_dimension_numbers<[1], [0], [0], [1], [0, 0, 1, 1], [], []>} : vector<4x4xbf16>, vector<4x32xbf16>, vector<4x32xf32> -> vector<4x32xf32>
    %cst_5 = arith.constant 1.000000e+00 : f32
    %7 = vector.broadcast %cst_5 : f32 to vector<4x32xf32>
    %8 = arith.mulf %7, %1 : vector<4x32xf32>
    %9 = arith.addf %8, %6 : vector<4x32xf32>
    %10 = arith.truncf %9 : vector<4x32xf32> to vector<4x32xbf16>
    %c0_6 = arith.constant 0 : index
    %c0_7 = arith.constant 0 : index
    %11 = vector.load %arg3[%c0_6, %c0_7] : memref<32x32xbf16, #tpu.memory_space<vmem>>, vector<32x32xbf16>
    %cst_8 = arith.constant dense<0.000000e+00> : vector<4x32xf32>
    %12 = tpu.matmul %10, %11, %cst_8 {dimension_numbers = #tpu.dot_dimension_numbers<[1], [0], [0], [1], [0, 0, 1, 1], [], []>} : vector<4x32xbf16>, vector<32x32xbf16>, vector<4x32xf32> -> vector<4x32xf32>
    %c0_9 = arith.constant 0 : index
    %c0_10 = arith.constant 0 : index
    %13 = vector.load %arg4[%c0_9, %c0_10] : memref<1x32xf32, #tpu.memory_space<vmem>>, vector<1x32xf32>
    %14 = vector.broadcast %13 : vector<1x32xf32> to vector<4x32xf32>
    %15 = arith.addf %12, %14 : vector<4x32xf32>
    %cst_11 = arith.constant 0.000000e+00 : f32
    %16 = vector.broadcast %cst_11 : f32 to vector<4x32xf32>
    %17 = arith.maximumf %15, %16 : vector<4x32xf32>
    %18 = arith.truncf %17 : vector<4x32xf32> to vector<4x32xbf16>
    %c0_12 = arith.constant 0 : index
    %c0_13 = arith.constant 0 : index
    %19 = vector.load %arg5[%c0_12, %c0_13] : memref<32x32xbf16, #tpu.memory_space<vmem>>, vector<32x32xbf16>
    %cst_14 = arith.constant dense<0.000000e+00> : vector<4x32xf32>
    %20 = tpu.matmul %18, %19, %cst_14 {dimension_numbers = #tpu.dot_dimension_numbers<[1], [0], [0], [1], [0, 0, 1, 1], [], []>} : vector<4x32xbf16>, vector<32x32xbf16>, vector<4x32xf32> -> vector<4x32xf32>
    %c0_15 = arith.constant 0 : index
    %c0_16 = arith.constant 0 : index
    %21 = vector.load %arg6[%c0_15, %c0_16] : memref<1x32xf32, #tpu.memory_space<vmem>>, vector<1x32xf32>
    %22 = vector.broadcast %21 : vector<1x32xf32> to vector<4x32xf32>
    %23 = arith.addf %20, %22 : vector<4x32xf32>
    %cst_17 = arith.constant 0.000000e+00 : f32
    %24 = vector.broadcast %cst_17 : f32 to vector<4x32xf32>
    %25 = arith.maximumf %23, %24 : vector<4x32xf32>
    %26 = arith.truncf %25 : vector<4x32xf32> to vector<4x32xbf16>
    %c0_18 = arith.constant 0 : index
    %c0_19 = arith.constant 0 : index
    %27 = vector.load %arg7[%c0_18, %c0_19] : memref<32x2xbf16, #tpu.memory_space<vmem>>, vector<32x2xbf16>
    %cst_20 = arith.constant dense<0.000000e+00> : vector<4x2xf32>
    %28 = tpu.matmul %26, %27, %cst_20 {dimension_numbers = #tpu.dot_dimension_numbers<[1], [0], [0], [1], [0, 0, 1, 1], [], []>} : vector<4x32xbf16>, vector<32x2xbf16>, vector<4x2xf32> -> vector<4x2xf32>
    %c0_21 = arith.constant 0 : index
    %c0_22 = arith.constant 0 : index
    %29 = vector.load %arg8[%c0_21, %c0_22] : memref<1x2xf32, #tpu.memory_space<vmem>>, vector<1x2xf32>
    %30 = vector.broadcast %29 : vector<1x2xf32> to vector<4x2xf32>
    %31 = arith.addf %28, %30 : vector<4x2xf32>
    %cst_23 = arith.constant dense<0xFF800000> : vector<4xf32>
    %32 = vector.multi_reduction <maximumf>, %31, %cst_23 [1] : vector<4x2xf32> to vector<4xf32>
    %33 = vector.shape_cast %32 : vector<4xf32> to vector<4x1xf32>
    %34 = vector.broadcast %33 : vector<4x1xf32> to vector<4x2xf32>
    %35 = arith.subf %31, %34 : vector<4x2xf32>
    %36 = math.exp %35 : vector<4x2xf32>
    %cst_24 = arith.constant dense<0.000000e+00> : vector<4xf32>
    %37 = vector.multi_reduction <add>, %36, %cst_24 [1] : vector<4x2xf32> to vector<4xf32>
    %38 = vector.shape_cast %37 : vector<4xf32> to vector<4x1xf32>
    %39 = tpu.reciprocal %38 {approx = true} : vector<4x1xf32> -> vector<4x1xf32>
    %40 = vector.broadcast %39 : vector<4x1xf32> to vector<4x2xf32>
    %41 = arith.mulf %36, %40 : vector<4x2xf32>
    %42 = arith.truncf %41 : vector<4x2xf32> to vector<4x2xbf16>
    %43 = arith.truncf %25 : vector<4x32xf32> to vector<4x32xbf16>
    %cst_25 = arith.constant dense<0.000000e+00> : vector<2x32xf32>
    %44 = tpu.matmul %42, %43, %cst_25 {dimension_numbers = #tpu.dot_dimension_numbers<[0], [0], [1], [1], [0, 1, 1, 1], [], []>} : vector<4x2xbf16>, vector<4x32xbf16>, vector<2x32xf32> -> vector<2x32xf32>
    %cst_26 = arith.constant dense<0.000000e+00> : vector<2x4xf32>
    %45 = tpu.matmul %42, %4, %cst_26 {dimension_numbers = #tpu.dot_dimension_numbers<[0], [0], [1], [1], [0, 1, 1, 1], [], []>} : vector<4x2xbf16>, vector<4x4xbf16>, vector<2x4xf32> -> vector<2x4xf32>
    %46 = arith.truncf %45 : vector<2x4xf32> to vector<2x4xbf16>
    %cst_27 = arith.constant dense<0.000000e+00> : vector<2x2xf32>
    %47 = tpu.matmul %46, %42, %cst_27 {dimension_numbers = #tpu.dot_dimension_numbers<[1], [0], [0], [1], [0, 0, 1, 1], [], []>} : vector<2x4xbf16>, vector<4x2xbf16>, vector<2x2xf32> -> vector<2x2xf32>
    %cst_28 = arith.constant dense<0.000000e+00> : vector<2x2xf32>
    %48 = tpu.matmul %42, %42, %cst_28 {dimension_numbers = #tpu.dot_dimension_numbers<[0], [0], [1], [1], [0, 1, 1, 1], [], []>} : vector<4x2xbf16>, vector<4x2xbf16>, vector<2x2xf32> -> vector<2x2xf32>
    %49 = tpu.iota {dimensions = array<i32: 0>} : vector<2x2xi32>
    %50 = tpu.iota {dimensions = array<i32: 1>} : vector<2x2xi32>
    %51 = arith.cmpi eq, %49, %50 : vector<2x2xi32>
    %52 = arith.extui %51 : vector<2x2xi1> to vector<2x2xi32>
    %53 = arith.sitofp %52 : vector<2x2xi32> to vector<2x2xf32>
    %54 = arith.mulf %47, %53 : vector<2x2xf32>
    %55 = vector.shape_cast %54 : vector<2x2xf32> to vector<1x2x2xf32>
    %cst_29 = arith.constant dense<0.000000e+00> : vector<1xf32>
    %56 = vector.multi_reduction <add>, %55, %cst_29 [1, 2] : vector<1x2x2xf32> to vector<1xf32>
    %57 = vector.shape_cast %56 : vector<1xf32> to vector<1x1x1xf32>
    %58 = vector.extract %57[0, 0, 0] : f32 from vector<1x1x1xf32>
    %59 = vector.broadcast %58 : f32 to vector<1x1xf32>
    %cst_30 = arith.constant dense<0.000000e+00> : vector<4xf32>
    %60 = vector.multi_reduction <add>, %3, %cst_30 [1] : vector<4x4xf32> to vector<4xf32>
    %61 = vector.shape_cast %60 : vector<4xf32> to vector<4x1xf32>
    %62 = arith.mulf %41, %41 : vector<4x2xf32>
    %cst_31 = arith.constant dense<0.000000e+00> : vector<4xf32>
    %63 = vector.multi_reduction <add>, %62, %cst_31 [1] : vector<4x2xf32> to vector<4xf32>
    %64 = vector.shape_cast %63 : vector<4xf32> to vector<4x1xf32>
    %65 = arith.mulf %61, %64 : vector<4x1xf32>
    %66 = vector.shape_cast %65 : vector<4x1xf32> to vector<1x4x1xf32>
    %cst_32 = arith.constant dense<0.000000e+00> : vector<1xf32>
    %67 = vector.multi_reduction <add>, %66, %cst_32 [1, 2] : vector<1x4x1xf32> to vector<1xf32>
    %68 = vector.shape_cast %67 : vector<1xf32> to vector<1x1x1xf32>
    %69 = vector.extract %68[0, 0, 0] : f32 from vector<1x1x1xf32>
    %70 = vector.broadcast %69 : f32 to vector<1x1xf32>
    %71 = arith.divf %59, %70 : vector<1x1xf32>
    %cst_33 = arith.constant 0.000000e+00 : f32
    %72 = vector.broadcast %cst_33 : f32 to vector<1x1xf32>
    %73 = arith.subf %72, %71 : vector<1x1xf32>
    %74 = arith.mulf %48, %48 : vector<2x2xf32>
    %75 = vector.shape_cast %74 : vector<2x2xf32> to vector<1x2x2xf32>
    %cst_34 = arith.constant dense<0.000000e+00> : vector<1xf32>
    %76 = vector.multi_reduction <add>, %75, %cst_34 [1, 2] : vector<1x2x2xf32> to vector<1xf32>
    %77 = vector.shape_cast %76 : vector<1xf32> to vector<1x1x1xf32>
    %78 = vector.extract %77[0, 0, 0] : f32 from vector<1x1x1xf32>
    %79 = vector.broadcast %78 : f32 to vector<1x1xf32>
    %80 = math.sqrt %79 : vector<1x1xf32>
    %81 = vector.broadcast %80 : vector<1x1xf32> to vector<2x2xf32>
    %82 = arith.divf %48, %81 : vector<2x2xf32>
    %cst_35 = arith.constant 0.707106769 : f32
    %83 = vector.broadcast %cst_35 : f32 to vector<2x2xf32>
    %84 = arith.mulf %53, %83 : vector<2x2xf32>
    %85 = arith.subf %82, %84 : vector<2x2xf32>
    %86 = arith.mulf %85, %85 : vector<2x2xf32>
    %87 = vector.shape_cast %86 : vector<2x2xf32> to vector<1x2x2xf32>
    %cst_36 = arith.constant dense<0.000000e+00> : vector<1xf32>
    %88 = vector.multi_reduction <add>, %87, %cst_36 [1, 2] : vector<1x2x2xf32> to vector<1xf32>
    %89 = vector.shape_cast %88 : vector<1xf32> to vector<1x1x1xf32>
    %90 = vector.extract %89[0, 0, 0] : f32 from vector<1x1x1xf32>
    %91 = vector.broadcast %90 : f32 to vector<1x1xf32>
    %92 = math.sqrt %91 : vector<1x1xf32>
    %cst_37 = arith.constant 1.000000e+00 : f32
    %93 = vector.broadcast %cst_37 : f32 to vector<2x2xf32>
    %94 = arith.subf %93, %53 : vector<2x2xf32>
    %95 = arith.mulf %47, %94 : vector<2x2xf32>
    %cst_38 = arith.constant dense<0.000000e+00> : vector<2xf32>
    %96 = vector.multi_reduction <add>, %95, %cst_38 [1] : vector<2x2xf32> to vector<2xf32>
    %97 = vector.shape_cast %96 : vector<2xf32> to vector<2x1xf32>
    %98 = math.sqrt %97 : vector<2x1xf32>
    %cst_39 = arith.constant 1.000000e-15 : f32
    %99 = vector.broadcast %cst_39 : f32 to vector<2x1xf32>
    %100 = arith.addf %98, %99 : vector<2x1xf32>
    %101 = vector.broadcast %100 : vector<2x1xf32> to vector<2x2xf32>
    %102 = arith.mulf %53, %101 : vector<2x2xf32>
    %cst_40 = arith.constant dense<0.000000e+00> : vector<2xf32>
    %103 = vector.multi_reduction <add>, %102, %cst_40 [0] : vector<2x2xf32> to vector<2xf32>
    %104 = vector.shape_cast %103 : vector<2xf32> to vector<1x2xf32>
    %105 = vector.broadcast %100 : vector<2x1xf32> to vector<2x2xf32>
    %106 = arith.divf %95, %105 : vector<2x2xf32>
    %107 = vector.broadcast %104 : vector<1x2xf32> to vector<2x2xf32>
    %108 = arith.divf %106, %107 : vector<2x2xf32>
    %c0_41 = arith.constant 0 : index
    %c0_42 = arith.constant 0 : index
    %c0_43 = arith.constant 0 : index
    %109 = vector.load %arg26[%c0_41, %c0_42, %c0_43] : memref<1x2x2xf32, #tpu.memory_space<vmem>>, vector<1x2x2xf32>
    %110 = vector.shape_cast %109 : vector<1x2x2xf32> to vector<2x2xf32>
    %111 = vector.shape_cast %108 : vector<2x2xf32> to vector<1x2x2xf32>
    tpu.vector_store %arg26[%c0_41, %c0_42, %c0_43], %111 {strides = array<i32>} : memref<1x2x2xf32, #tpu.memory_space<vmem>>, vector<1x2x2xf32>,
    %c0_44 = arith.constant 0 : index
    %c0_45 = arith.constant 0 : index
    %c0_46 = arith.constant 0 : index
    %112 = vector.load %arg28[%c0_44, %c0_45, %c0_46] : memref<1x1x1xf32, #tpu.memory_space<vmem>>, vector<1x1x1xf32>
    %113 = vector.shape_cast %112 : vector<1x1x1xf32> to vector<1x1xf32>
    %114 = vector.shape_cast %73 : vector<1x1xf32> to vector<1x1x1xf32>
    tpu.vector_store %arg28[%c0_44, %c0_45, %c0_46], %114 {strides = array<i32>} : memref<1x1x1xf32, #tpu.memory_space<vmem>>, vector<1x1x1xf32>,
    %c0_47 = arith.constant 0 : index
    %c0_48 = arith.constant 0 : index
    %c0_49 = arith.constant 0 : index
    %115 = vector.load %arg29[%c0_47, %c0_48, %c0_49] : memref<1x1x1xf32, #tpu.memory_space<vmem>>, vector<1x1x1xf32>
    %116 = vector.shape_cast %115 : vector<1x1x1xf32> to vector<1x1xf32>
    %117 = vector.shape_cast %92 : vector<1x1xf32> to vector<1x1x1xf32>
    tpu.vector_store %arg29[%c0_47, %c0_48, %c0_49], %117 {strides = array<i32>} : memref<1x1x1xf32, #tpu.memory_space<vmem>>, vector<1x1x1xf32>,
    %c0_50 = arith.constant 0 : index
    %c0_51 = arith.constant 0 : index
    %c0_52 = arith.constant 0 : index
    %118 = vector.load %arg9[%c0_50, %c0_51, %c0_52] : memref<2x32x16xbf16, #tpu.memory_space<vmem>>, vector<2x32x16xbf16>
    %c0_53 = arith.constant 0 : index
    %c0_54 = arith.constant 0 : index
    %c0_55 = arith.constant 0 : index
    %119 = vector.load %arg10[%c0_53, %c0_54, %c0_55] : memref<2x32x16xbf16, #tpu.memory_space<vmem>>, vector<2x32x16xbf16>
    %c0_56 = arith.constant 0 : index
    %c0_57 = arith.constant 0 : index
    %c0_58 = arith.constant 0 : index
    %120 = vector.load %arg11[%c0_56, %c0_57, %c0_58] : memref<2x32x16xbf16, #tpu.memory_space<vmem>>, vector<2x32x16xbf16>
    %c0_59 = arith.constant 0 : index
    %c0_60 = arith.constant 0 : index
    %c0_61 = arith.constant 0 : index
    %121 = vector.load %arg12[%c0_59, %c0_60, %c0_61] : memref<2x1x16xf32, #tpu.memory_space<vmem>>, vector<2x1x16xf32>
    %c0_62 = arith.constant 0 : index
    %c0_63 = arith.constant 0 : index
    %c0_64 = arith.constant 0 : index
    %122 = vector.load %arg13[%c0_62, %c0_63, %c0_64] : memref<2x1x16xf32, #tpu.memory_space<vmem>>, vector<2x1x16xf32>
    %c0_65 = arith.constant 0 : index
    %c0_66 = arith.constant 0 : index
    %c0_67 = arith.constant 0 : index
    %123 = vector.load %arg14[%c0_65, %c0_66, %c0_67] : memref<2x1x16xf32, #tpu.memory_space<vmem>>, vector<2x1x16xf32>
    %c0_68 = arith.constant 0 : index
    %c0_69 = arith.constant 0 : index
    %c0_70 = arith.constant 0 : index
    %124 = vector.load %arg15[%c0_68, %c0_69, %c0_70] : memref<2x16x32xbf16, #tpu.memory_space<vmem>>, vector<2x16x32xbf16>
    %c0_71 = arith.constant 0 : index
    %c0_72 = arith.constant 0 : index
    %125 = vector.load %arg16[%c0_71, %c0_72] : memref<1x32xf32, #tpu.memory_space<vmem>>, vector<1x32xf32>
    %c0_73 = arith.constant 0 : index
    %c0_74 = arith.constant 0 : index
    %126 = vector.load %arg17[%c0_73, %c0_74] : memref<32x32xbf16, #tpu.memory_space<vmem>>, vector<32x32xbf16>
    %c0_75 = arith.constant 0 : index
    %c0_76 = arith.constant 0 : index
    %127 = vector.load %arg18[%c0_75, %c0_76] : memref<1x32xf32, #tpu.memory_space<vmem>>, vector<1x32xf32>
    %c0_77 = arith.constant 0 : index
    %c0_78 = arith.constant 0 : index
    %128 = vector.load %arg19[%c0_77, %c0_78] : memref<32x32xbf16, #tpu.memory_space<vmem>>, vector<32x32xbf16>
    %c0_79 = arith.constant 0 : index
    %c0_80 = arith.constant 0 : index
    %129 = vector.load %arg20[%c0_79, %c0_80] : memref<1x32xf32, #tpu.memory_space<vmem>>, vector<1x32xf32>
    %c0_81 = arith.constant 0 : index
    %c0_82 = arith.constant 0 : index
    %130 = vector.load %arg21[%c0_81, %c0_82] : memref<1x32xf32, #tpu.memory_space<vmem>>, vector<1x32xf32>
    %c0_83 = arith.constant 0 : index
    %c0_84 = arith.constant 0 : index
    %131 = vector.load %arg22[%c0_83, %c0_84] : memref<1x32xf32, #tpu.memory_space<vmem>>, vector<1x32xf32>
    %c0_85 = arith.constant 0 : index
    %c0_86 = arith.constant 0 : index
    %132 = vector.load %arg23[%c0_85, %c0_86] : memref<1x32xf32, #tpu.memory_space<vmem>>, vector<1x32xf32>
    %c0_87 = arith.constant 0 : index
    %c0_88 = arith.constant 0 : index
    %133 = vector.load %arg24[%c0_87, %c0_88] : memref<1x32xf32, #tpu.memory_space<vmem>>, vector<1x32xf32>
    %c0_i32 = arith.constant 0 : i32
    %c6_i32 = arith.constant 6 : i32
    %134 = arith.addi %c0_i32, %c6_i32 : i32
    %c1_i32 = arith.constant 1 : i32
    %135 = scf.for %arg30 = %c0_i32 to %134 step %c1_i32 iter_args(%arg31 = %44) -> (vector<2x32xf32>)  : i32 {
      %144 = arith.truncf %arg31 : vector<2x32xf32> to vector<2x32xbf16>
      %145 = vector.extract_strided_slice %118 {offsets = [0, 0, 0], sizes = [1, 32, 16], strides = [1, 1, 1]} : vector<2x32x16xbf16> to vector<1x32x16xbf16>
      %146 = vector.shape_cast %145 : vector<1x32x16xbf16> to vector<32x16xbf16>
      %cst_96 = arith.constant dense<0.000000e+00> : vector<2x16xf32>
      %147 = tpu.matmul %144, %146, %cst_96 {dimension_numbers = #tpu.dot_dimension_numbers<[1], [0], [0], [1], [0, 0, 1, 1], [], []>} : vector<2x32xbf16>, vector<32x16xbf16>, vector<2x16xf32> -> vector<2x16xf32>
      %148 = vector.extract_strided_slice %121 {offsets = [0, 0, 0], sizes = [1, 1, 16], strides = [1, 1, 1]} : vector<2x1x16xf32> to vector<1x1x16xf32>
      %149 = vector.shape_cast %148 : vector<1x1x16xf32> to vector<1x16xf32>
      %150 = vector.broadcast %149 : vector<1x16xf32> to vector<2x16xf32>
      %151 = arith.addf %147, %150 : vector<2x16xf32>
      %cst_97 = arith.constant 2.500000e-01 : f32
      %152 = vector.broadcast %cst_97 : f32 to vector<2x16xf32>
      %153 = arith.mulf %151, %152 : vector<2x16xf32>
      %154 = vector.extract_strided_slice %119 {offsets = [0, 0, 0], sizes = [1, 32, 16], strides = [1, 1, 1]} : vector<2x32x16xbf16> to vector<1x32x16xbf16>
      %155 = vector.shape_cast %154 : vector<1x32x16xbf16> to vector<32x16xbf16>
      %cst_98 = arith.constant dense<0.000000e+00> : vector<2x16xf32>
      %156 = tpu.matmul %144, %155, %cst_98 {dimension_numbers = #tpu.dot_dimension_numbers<[1], [0], [0], [1], [0, 0, 1, 1], [], []>} : vector<2x32xbf16>, vector<32x16xbf16>, vector<2x16xf32> -> vector<2x16xf32>
      %157 = vector.extract_strided_slice %122 {offsets = [0, 0, 0], sizes = [1, 1, 16], strides = [1, 1, 1]} : vector<2x1x16xf32> to vector<1x1x16xf32>
      %158 = vector.shape_cast %157 : vector<1x1x16xf32> to vector<1x16xf32>
      %159 = vector.broadcast %158 : vector<1x16xf32> to vector<2x16xf32>
      %160 = arith.addf %156, %159 : vector<2x16xf32>
      %161 = vector.extract_strided_slice %120 {offsets = [0, 0, 0], sizes = [1, 32, 16], strides = [1, 1, 1]} : vector<2x32x16xbf16> to vector<1x32x16xbf16>
      %162 = vector.shape_cast %161 : vector<1x32x16xbf16> to vector<32x16xbf16>
      %cst_99 = arith.constant dense<0.000000e+00> : vector<2x16xf32>
      %163 = tpu.matmul %144, %162, %cst_99 {dimension_numbers = #tpu.dot_dimension_numbers<[1], [0], [0], [1], [0, 0, 1, 1], [], []>} : vector<2x32xbf16>, vector<32x16xbf16>, vector<2x16xf32> -> vector<2x16xf32>
      %164 = vector.extract_strided_slice %123 {offsets = [0, 0, 0], sizes = [1, 1, 16], strides = [1, 1, 1]} : vector<2x1x16xf32> to vector<1x1x16xf32>
      %165 = vector.shape_cast %164 : vector<1x1x16xf32> to vector<1x16xf32>
      %166 = vector.broadcast %165 : vector<1x16xf32> to vector<2x16xf32>
      %167 = arith.addf %163, %166 : vector<2x16xf32>
      %168 = arith.truncf %153 : vector<2x16xf32> to vector<2x16xbf16>
      %169 = arith.truncf %160 : vector<2x16xf32> to vector<2x16xbf16>
      %cst_100 = arith.constant dense<0.000000e+00> : vector<2x2xf32>
      %170 = tpu.matmul %168, %169, %cst_100 {dimension_numbers = #tpu.dot_dimension_numbers<[1], [1], [0], [0], [0, 0, 1, 0], [], []>} : vector<2x16xbf16>, vector<2x16xbf16>, vector<2x2xf32> -> vector<2x2xf32>
      %cst_101 = arith.constant dense<0xFF800000> : vector<2xf32>
      %171 = vector.multi_reduction <maximumf>, %170, %cst_101 [1] : vector<2x2xf32> to vector<2xf32>
      %172 = vector.shape_cast %171 : vector<2xf32> to vector<2x1xf32>
      %173 = vector.broadcast %172 : vector<2x1xf32> to vector<2x2xf32>
      %174 = arith.subf %170, %173 : vector<2x2xf32>
      %175 = math.exp %174 : vector<2x2xf32>
      %cst_102 = arith.constant dense<0.000000e+00> : vector<2xf32>
      %176 = vector.multi_reduction <add>, %175, %cst_102 [1] : vector<2x2xf32> to vector<2xf32>
      %177 = vector.shape_cast %176 : vector<2xf32> to vector<2x1xf32>
      %178 = tpu.reciprocal %177 {approx = true} : vector<2x1xf32> -> vector<2x1xf32>
      %179 = vector.broadcast %178 : vector<2x1xf32> to vector<2x2xf32>
      %180 = arith.mulf %175, %179 : vector<2x2xf32>
      %181 = arith.truncf %180 : vector<2x2xf32> to vector<2x2xbf16>
      %182 = arith.truncf %167 : vector<2x16xf32> to vector<2x16xbf16>
      %cst_103 = arith.constant dense<0.000000e+00> : vector<2x16xf32>
      %183 = tpu.matmul %181, %182, %cst_103 {dimension_numbers = #tpu.dot_dimension_numbers<[1], [0], [0], [1], [0, 0, 1, 1], [], []>} : vector<2x2xbf16>, vector<2x16xbf16>, vector<2x16xf32> -> vector<2x16xf32>
      %184 = arith.truncf %183 : vector<2x16xf32> to vector<2x16xbf16>
      %185 = vector.extract_strided_slice %124 {offsets = [0, 0, 0], sizes = [1, 16, 32], strides = [1, 1, 1]} : vector<2x16x32xbf16> to vector<1x16x32xbf16>
      %186 = vector.shape_cast %185 : vector<1x16x32xbf16> to vector<16x32xbf16>
      %cst_104 = arith.constant dense<0.000000e+00> : vector<2x32xf32>
      %187 = tpu.matmul %184, %186, %cst_104 {dimension_numbers = #tpu.dot_dimension_numbers<[1], [0], [0], [1], [0, 0, 1, 1], [], []>} : vector<2x16xbf16>, vector<16x32xbf16>, vector<2x32xf32> -> vector<2x32xf32>
      %188 = vector.extract_strided_slice %118 {offsets = [1, 0, 0], sizes = [1, 32, 16], strides = [1, 1, 1]} : vector<2x32x16xbf16> to vector<1x32x16xbf16>
      %189 = vector.shape_cast %188 : vector<1x32x16xbf16> to vector<32x16xbf16>
      %cst_105 = arith.constant dense<0.000000e+00> : vector<2x16xf32>
      %190 = tpu.matmul %144, %189, %cst_105 {dimension_numbers = #tpu.dot_dimension_numbers<[1], [0], [0], [1], [0, 0, 1, 1], [], []>} : vector<2x32xbf16>, vector<32x16xbf16>, vector<2x16xf32> -> vector<2x16xf32>
      %191 = vector.extract_strided_slice %121 {offsets = [1, 0, 0], sizes = [1, 1, 16], strides = [1, 1, 1]} : vector<2x1x16xf32> to vector<1x1x16xf32>
      %192 = vector.shape_cast %191 : vector<1x1x16xf32> to vector<1x16xf32>
      %193 = vector.broadcast %192 : vector<1x16xf32> to vector<2x16xf32>
      %194 = arith.addf %190, %193 : vector<2x16xf32>
      %cst_106 = arith.constant 2.500000e-01 : f32
      %195 = vector.broadcast %cst_106 : f32 to vector<2x16xf32>
      %196 = arith.mulf %194, %195 : vector<2x16xf32>
      %197 = vector.extract_strided_slice %119 {offsets = [1, 0, 0], sizes = [1, 32, 16], strides = [1, 1, 1]} : vector<2x32x16xbf16> to vector<1x32x16xbf16>
      %198 = vector.shape_cast %197 : vector<1x32x16xbf16> to vector<32x16xbf16>
      %cst_107 = arith.constant dense<0.000000e+00> : vector<2x16xf32>
      %199 = tpu.matmul %144, %198, %cst_107 {dimension_numbers = #tpu.dot_dimension_numbers<[1], [0], [0], [1], [0, 0, 1, 1], [], []>} : vector<2x32xbf16>, vector<32x16xbf16>, vector<2x16xf32> -> vector<2x16xf32>
      %200 = vector.extract_strided_slice %122 {offsets = [1, 0, 0], sizes = [1, 1, 16], strides = [1, 1, 1]} : vector<2x1x16xf32> to vector<1x1x16xf32>
      %201 = vector.shape_cast %200 : vector<1x1x16xf32> to vector<1x16xf32>
      %202 = vector.broadcast %201 : vector<1x16xf32> to vector<2x16xf32>
      %203 = arith.addf %199, %202 : vector<2x16xf32>
      %204 = vector.extract_strided_slice %120 {offsets = [1, 0, 0], sizes = [1, 32, 16], strides = [1, 1, 1]} : vector<2x32x16xbf16> to vector<1x32x16xbf16>
      %205 = vector.shape_cast %204 : vector<1x32x16xbf16> to vector<32x16xbf16>
      %cst_108 = arith.constant dense<0.000000e+00> : vector<2x16xf32>
      %206 = tpu.matmul %144, %205, %cst_108 {dimension_numbers = #tpu.dot_dimension_numbers<[1], [0], [0], [1], [0, 0, 1, 1], [], []>} : vector<2x32xbf16>, vector<32x16xbf16>, vector<2x16xf32> -> vector<2x16xf32>
      %207 = vector.extract_strided_slice %123 {offsets = [1, 0, 0], sizes = [1, 1, 16], strides = [1, 1, 1]} : vector<2x1x16xf32> to vector<1x1x16xf32>
      %208 = vector.shape_cast %207 : vector<1x1x16xf32> to vector<1x16xf32>
      %209 = vector.broadcast %208 : vector<1x16xf32> to vector<2x16xf32>
      %210 = arith.addf %206, %209 : vector<2x16xf32>
      %211 = arith.truncf %196 : vector<2x16xf32> to vector<2x16xbf16>
      %212 = arith.truncf %203 : vector<2x16xf32> to vector<2x16xbf16>
      %cst_109 = arith.constant dense<0.000000e+00> : vector<2x2xf32>
      %213 = tpu.matmul %211, %212, %cst_109 {dimension_numbers = #tpu.dot_dimension_numbers<[1], [1], [0], [0], [0, 0, 1, 0], [], []>} : vector<2x16xbf16>, vector<2x16xbf16>, vector<2x2xf32> -> vector<2x2xf32>
      %cst_110 = arith.constant dense<0xFF800000> : vector<2xf32>
      %214 = vector.multi_reduction <maximumf>, %213, %cst_110 [1] : vector<2x2xf32> to vector<2xf32>
      %215 = vector.shape_cast %214 : vector<2xf32> to vector<2x1xf32>
      %216 = vector.broadcast %215 : vector<2x1xf32> to vector<2x2xf32>
      %217 = arith.subf %213, %216 : vector<2x2xf32>
      %218 = math.exp %217 : vector<2x2xf32>
      %cst_111 = arith.constant dense<0.000000e+00> : vector<2xf32>
      %219 = vector.multi_reduction <add>, %218, %cst_111 [1] : vector<2x2xf32> to vector<2xf32>
      %220 = vector.shape_cast %219 : vector<2xf32> to vector<2x1xf32>
      %221 = tpu.reciprocal %220 {approx = true} : vector<2x1xf32> -> vector<2x1xf32>
      %222 = vector.broadcast %221 : vector<2x1xf32> to vector<2x2xf32>
      %223 = arith.mulf %218, %222 : vector<2x2xf32>
      %224 = arith.truncf %223 : vector<2x2xf32> to vector<2x2xbf16>
      %225 = arith.truncf %210 : vector<2x16xf32> to vector<2x16xbf16>
      %cst_112 = arith.constant dense<0.000000e+00> : vector<2x16xf32>
      %226 = tpu.matmul %224, %225, %cst_112 {dimension_numbers = #tpu.dot_dimension_numbers<[1], [0], [0], [1], [0, 0, 1, 1], [], []>} : vector<2x2xbf16>, vector<2x16xbf16>, vector<2x16xf32> -> vector<2x16xf32>
      %227 = arith.truncf %226 : vector<2x16xf32> to vector<2x16xbf16>
      %228 = vector.extract_strided_slice %124 {offsets = [1, 0, 0], sizes = [1, 16, 32], strides = [1, 1, 1]} : vector<2x16x32xbf16> to vector<1x16x32xbf16>
      %229 = vector.shape_cast %228 : vector<1x16x32xbf16> to vector<16x32xbf16>
      %cst_113 = arith.constant dense<0.000000e+00> : vector<2x32xf32>
      %230 = tpu.matmul %227, %229, %cst_113 {dimension_numbers = #tpu.dot_dimension_numbers<[1], [0], [0], [1], [0, 0, 1, 1], [], []>} : vector<2x16xbf16>, vector<16x32xbf16>, vector<2x32xf32> -> vector<2x32xf32>
      %231 = arith.addf %187, %230 : vector<2x32xf32>
      %232 = arith.addf %arg31, %231 : vector<2x32xf32>
      %233 = vector.broadcast %125 : vector<1x32xf32> to vector<2x32xf32>
      %234 = arith.addf %232, %233 : vector<2x32xf32>
      %cst_114 = arith.constant dense<0.000000e+00> : vector<2xf32>
      %235 = vector.multi_reduction <add>, %234, %cst_114 [1] : vector<2x32xf32> to vector<2xf32>
      %236 = vector.shape_cast %235 : vector<2xf32> to vector<2x1xf32>
      %cst_115 = arith.constant 3.200000e+01 : f32
      %237 = vector.broadcast %cst_115 : f32 to vector<2x1xf32>
      %238 = arith.divf %236, %237 : vector<2x1xf32>
      %239 = vector.broadcast %238 : vector<2x1xf32> to vector<2x32xf32>
      %240 = arith.subf %234, %239 : vector<2x32xf32>
      %241 = arith.mulf %240, %240 : vector<2x32xf32>
      %cst_116 = arith.constant dense<0.000000e+00> : vector<2xf32>
      %242 = vector.multi_reduction <add>, %241, %cst_116 [1] : vector<2x32xf32> to vector<2xf32>
      %243 = vector.shape_cast %242 : vector<2xf32> to vector<2x1xf32>
      %cst_117 = arith.constant 3.200000e+01 : f32
      %244 = vector.broadcast %cst_117 : f32 to vector<2x1xf32>
      %245 = arith.divf %243, %244 : vector<2x1xf32>
      %246 = vector.broadcast %238 : vector<2x1xf32> to vector<2x32xf32>
      %247 = arith.subf %234, %246 : vector<2x32xf32>
      %cst_118 = arith.constant 9.99999974E-6 : f32
      %248 = vector.broadcast %cst_118 : f32 to vector<2x1xf32>
      %249 = arith.addf %245, %248 : vector<2x1xf32>
      %250 = math.rsqrt %249 : vector<2x1xf32>
      %251 = vector.broadcast %250 : vector<2x1xf32> to vector<2x32xf32>
      %252 = arith.mulf %247, %251 : vector<2x32xf32>
      %253 = vector.broadcast %130 : vector<1x32xf32> to vector<2x32xf32>
      %254 = arith.mulf %252, %253 : vector<2x32xf32>
      %255 = vector.broadcast %131 : vector<1x32xf32> to vector<2x32xf32>
      %256 = arith.addf %254, %255 : vector<2x32xf32>
      %257 = arith.truncf %256 : vector<2x32xf32> to vector<2x32xbf16>
      %cst_119 = arith.constant dense<0.000000e+00> : vector<2x32xf32>
      %258 = tpu.matmul %257, %126, %cst_119 {dimension_numbers = #tpu.dot_dimension_numbers<[1], [0], [0], [1], [0, 0, 1, 1], [], []>} : vector<2x32xbf16>, vector<32x32xbf16>, vector<2x32xf32> -> vector<2x32xf32>
      %259 = vector.broadcast %127 : vector<1x32xf32> to vector<2x32xf32>
      %260 = arith.addf %258, %259 : vector<2x32xf32>
      %cst_120 = arith.constant 0.000000e+00 : f32
      %261 = vector.broadcast %cst_120 : f32 to vector<2x32xf32>
      %262 = arith.maximumf %260, %261 : vector<2x32xf32>
      %263 = arith.truncf %262 : vector<2x32xf32> to vector<2x32xbf16>
      %cst_121 = arith.constant dense<0.000000e+00> : vector<2x32xf32>
      %264 = tpu.matmul %263, %128, %cst_121 {dimension_numbers = #tpu.dot_dimension_numbers<[1], [0], [0], [1], [0, 0, 1, 1], [], []>} : vector<2x32xbf16>, vector<32x32xbf16>, vector<2x32xf32> -> vector<2x32xf32>
      %265 = vector.broadcast %129 : vector<1x32xf32> to vector<2x32xf32>
      %266 = arith.addf %264, %265 : vector<2x32xf32>
      %267 = arith.addf %256, %266 : vector<2x32xf32>
      %cst_122 = arith.constant dense<0.000000e+00> : vector<2xf32>
      %268 = vector.multi_reduction <add>, %267, %cst_122 [1] : vector<2x32xf32> to vector<2xf32>
      %269 = vector.shape_cast %268 : vector<2xf32> to vector<2x1xf32>
      %cst_123 = arith.constant 3.200000e+01 : f32
      %270 = vector.broadcast %cst_123 : f32 to vector<2x1xf32>
      %271 = arith.divf %269, %270 : vector<2x1xf32>
      %272 = vector.broadcast %271 : vector<2x1xf32> to vector<2x32xf32>
      %273 = arith.subf %267, %272 : vector<2x32xf32>
      %274 = arith.mulf %273, %273 : vector<2x32xf32>
      %cst_124 = arith.constant dense<0.000000e+00> : vector<2xf32>
      %275 = vector.multi_reduction <add>, %274, %cst_124 [1] : vector<2x32xf32> to vector<2xf32>
      %276 = vector.shape_cast %275 : vector<2xf32> to vector<2x1xf32>
      %cst_125 = arith.constant 3.200000e+01 : f32
      %277 = vector.broadcast %cst_125 : f32 to vector<2x1xf32>
      %278 = arith.divf %276, %277 : vector<2x1xf32>
      %279 = vector.broadcast %271 : vector<2x1xf32> to vector<2x32xf32>
      %280 = arith.subf %267, %279 : vector<2x32xf32>
      %cst_126 = arith.constant 9.99999974E-6 : f32
      %281 = vector.broadcast %cst_126 : f32 to vector<2x1xf32>
      %282 = arith.addf %278, %281 : vector<2x1xf32>
      %283 = math.rsqrt %282 : vector<2x1xf32>
      %284 = vector.broadcast %283 : vector<2x1xf32> to vector<2x32xf32>
      %285 = arith.mulf %280, %284 : vector<2x32xf32>
      %286 = vector.broadcast %132 : vector<1x32xf32> to vector<2x32xf32>
      %287 = arith.mulf %285, %286 : vector<2x32xf32>
      %288 = vector.broadcast %133 : vector<1x32xf32> to vector<2x32xf32>
      %289 = arith.addf %287, %288 : vector<2x32xf32>
      scf.yield %289 : vector<2x32xf32>
    }
    %c0_89 = arith.constant 0 : index
    %c0_90 = arith.constant 0 : index
    %c0_91 = arith.constant 0 : index
    %136 = vector.load %arg25[%c0_89, %c0_90, %c0_91] : memref<1x2x32xf32, #tpu.memory_space<vmem>>, vector<1x2x32xf32>
    %137 = vector.shape_cast %136 : vector<1x2x32xf32> to vector<2x32xf32>
    %138 = vector.shape_cast %135 : vector<2x32xf32> to vector<1x2x32xf32>
    tpu.vector_store %arg25[%c0_89, %c0_90, %c0_91], %138 {strides = array<i32>} : memref<1x2x32xf32, #tpu.memory_space<vmem>>, vector<1x2x32xf32>,
    %cst_92 = arith.constant dense<0xFF800000> : vector<32xf32>
    %139 = vector.multi_reduction <maximumf>, %135, %cst_92 [0] : vector<2x32xf32> to vector<32xf32>
    %140 = vector.shape_cast %139 : vector<32xf32> to vector<1x32xf32>
    %c0_93 = arith.constant 0 : index
    %c0_94 = arith.constant 0 : index
    %c0_95 = arith.constant 0 : index
    %141 = vector.load %arg27[%c0_93, %c0_94, %c0_95] : memref<1x1x32xf32, #tpu.memory_space<vmem>>, vector<1x1x32xf32>
    %142 = vector.shape_cast %141 : vector<1x1x32xf32> to vector<1x32xf32>
    %143 = vector.shape_cast %140 : vector<1x32xf32> to vector<1x1x32xf32>
    tpu.vector_store %arg27[%c0_93, %c0_94, %c0_95], %143 {strides = array<i32>} : memref<1x1x32xf32, #tpu.memory_space<vmem>>, vector<1x1x32xf32>,
    return
  }
  func.func @transform_0(%arg0: i32) -> (i32, i32, i32) {
    %c0_i32 = arith.constant 0 : i32
    %c0_i32_0 = arith.constant 0 : i32
    %c0_i32_1 = arith.constant 0 : i32
    return %arg0, %c0_i32, %c0_i32_0 : i32, i32, i32
  }
  func.func @transform_1(%arg0: i32) -> (i32, i32, i32) {
    %c0_i32 = arith.constant 0 : i32
    %c0_i32_0 = arith.constant 0 : i32
    %c0_i32_1 = arith.constant 0 : i32
    return %arg0, %c0_i32, %c0_i32_0 : i32, i32, i32
  }
  func.func @transform_2(%arg0: i32) -> (i32, i32) {
    %c0_i32 = arith.constant 0 : i32
    %c0_i32_0 = arith.constant 0 : i32
    %c0_i32_1 = arith.constant 0 : i32
    return %c0_i32, %c0_i32_0 : i32, i32
  }
  func.func @transform_3(%arg0: i32) -> (i32, i32) {
    %c0_i32 = arith.constant 0 : i32
    %c0_i32_0 = arith.constant 0 : i32
    %c0_i32_1 = arith.constant 0 : i32
    return %c0_i32, %c0_i32_0 : i32, i32
  }
  func.func @transform_4(%arg0: i32) -> (i32, i32) {
    %c0_i32 = arith.constant 0 : i32
    %c0_i32_0 = arith.constant 0 : i32
    %c0_i32_1 = arith.constant 0 : i32
    return %c0_i32, %c0_i32_0 : i32, i32
  }
  func.func @transform_5(%arg0: i32) -> (i32, i32) {
    %c0_i32 = arith.constant 0 : i32
    %c0_i32_0 = arith.constant 0 : i32
    %c0_i32_1 = arith.constant 0 : i32
    return %c0_i32, %c0_i32_0 : i32, i32
  }
  func.func @transform_6(%arg0: i32) -> (i32, i32) {
    %c0_i32 = arith.constant 0 : i32
    %c0_i32_0 = arith.constant 0 : i32
    %c0_i32_1 = arith.constant 0 : i32
    return %c0_i32, %c0_i32_0 : i32, i32
  }
  func.func @transform_7(%arg0: i32) -> (i32, i32) {
    %c0_i32 = arith.constant 0 : i32
    %c0_i32_0 = arith.constant 0 : i32
    %c0_i32_1 = arith.constant 0 : i32
    return %c0_i32, %c0_i32_0 : i32, i32
  }
  func.func @transform_8(%arg0: i32) -> (i32, i32, i32) {
    %c0_i32 = arith.constant 0 : i32
    %c0_i32_0 = arith.constant 0 : i32
    %c0_i32_1 = arith.constant 0 : i32
    %c0_i32_2 = arith.constant 0 : i32
    return %c0_i32, %c0_i32_0, %c0_i32_1 : i32, i32, i32
  }
  func.func @transform_9(%arg0: i32) -> (i32, i32, i32) {
    %c0_i32 = arith.constant 0 : i32
    %c0_i32_0 = arith.constant 0 : i32
    %c0_i32_1 = arith.constant 0 : i32
    %c0_i32_2 = arith.constant 0 : i32
    return %c0_i32, %c0_i32_0, %c0_i32_1 : i32, i32, i32
  }
  func.func @transform_10(%arg0: i32) -> (i32, i32, i32) {
    %c0_i32 = arith.constant 0 : i32
    %c0_i32_0 = arith.constant 0 : i32
    %c0_i32_1 = arith.constant 0 : i32
    %c0_i32_2 = arith.constant 0 : i32
    return %c0_i32, %c0_i32_0, %c0_i32_1 : i32, i32, i32
  }
  func.func @transform_11(%arg0: i32) -> (i32, i32, i32) {
    %c0_i32 = arith.constant 0 : i32
    %c0_i32_0 = arith.constant 0 : i32
    %c0_i32_1 = arith.constant 0 : i32
    %c0_i32_2 = arith.constant 0 : i32
    return %c0_i32, %c0_i32_0, %c0_i32_1 : i32, i32, i32
  }
  func.func @transform_12(%arg0: i32) -> (i32, i32, i32) {
    %c0_i32 = arith.constant 0 : i32
    %c0_i32_0 = arith.constant 0 : i32
    %c0_i32_1 = arith.constant 0 : i32
    %c0_i32_2 = arith.constant 0 : i32
    return %c0_i32, %c0_i32_0, %c0_i32_1 : i32, i32, i32
  }
  func.func @transform_13(%arg0: i32) -> (i32, i32, i32) {
    %c0_i32 = arith.constant 0 : i32
    %c0_i32_0 = arith.constant 0 : i32
    %c0_i32_1 = arith.constant 0 : i32
    %c0_i32_2 = arith.constant 0 : i32
    return %c0_i32, %c0_i32_0, %c0_i32_1 : i32, i32, i32
  }
  func.func @transform_14(%arg0: i32) -> (i32, i32, i32) {
    %c0_i32 = arith.constant 0 : i32
    %c0_i32_0 = arith.constant 0 : i32
    %c0_i32_1 = arith.constant 0 : i32
    %c0_i32_2 = arith.constant 0 : i32
    return %c0_i32, %c0_i32_0, %c0_i32_1 : i32, i32, i32
  }
  func.func @transform_15(%arg0: i32) -> (i32, i32) {
    %c0_i32 = arith.constant 0 : i32
    %c0_i32_0 = arith.constant 0 : i32
    %c0_i32_1 = arith.constant 0 : i32
    return %c0_i32, %c0_i32_0 : i32, i32
  }
  func.func @transform_16(%arg0: i32) -> (i32, i32) {
    %c0_i32 = arith.constant 0 : i32
    %c0_i32_0 = arith.constant 0 : i32
    %c0_i32_1 = arith.constant 0 : i32
    return %c0_i32, %c0_i32_0 : i32, i32
  }
  func.func @transform_17(%arg0: i32) -> (i32, i32) {
    %c0_i32 = arith.constant 0 : i32
    %c0_i32_0 = arith.constant 0 : i32
    %c0_i32_1 = arith.constant 0 : i32
    return %c0_i32, %c0_i32_0 : i32, i32
  }
  func.func @transform_18(%arg0: i32) -> (i32, i32) {
    %c0_i32 = arith.constant 0 : i32
    %c0_i32_0 = arith.constant 0 : i32
    %c0_i32_1 = arith.constant 0 : i32
    return %c0_i32, %c0_i32_0 : i32, i32
  }
  func.func @transform_19(%arg0: i32) -> (i32, i32) {
    %c0_i32 = arith.constant 0 : i32
    %c0_i32_0 = arith.constant 0 : i32
    %c0_i32_1 = arith.constant 0 : i32
    return %c0_i32, %c0_i32_0 : i32, i32
  }
  func.func @transform_20(%arg0: i32) -> (i32, i32) {
    %c0_i32 = arith.constant 0 : i32
    %c0_i32_0 = arith.constant 0 : i32
    %c0_i32_1 = arith.constant 0 : i32
    return %c0_i32, %c0_i32_0 : i32, i32
  }
  func.func @transform_21(%arg0: i32) -> (i32, i32) {
    %c0_i32 = arith.constant 0 : i32
    %c0_i32_0 = arith.constant 0 : i32
    %c0_i32_1 = arith.constant 0 : i32
    return %c0_i32, %c0_i32_0 : i32, i32
  }
  func.func @transform_22(%arg0: i32) -> (i32, i32) {
    %c0_i32 = arith.constant 0 : i32
    %c0_i32_0 = arith.constant 0 : i32
    %c0_i32_1 = arith.constant 0 : i32
    return %c0_i32, %c0_i32_0 : i32, i32
  }
  func.func @transform_23(%arg0: i32) -> (i32, i32) {
    %c0_i32 = arith.constant 0 : i32
    %c0_i32_0 = arith.constant 0 : i32
    %c0_i32_1 = arith.constant 0 : i32
    return %c0_i32, %c0_i32_0 : i32, i32
  }
  func.func @transform_24(%arg0: i32) -> (i32, i32, i32) {
    %c0_i32 = arith.constant 0 : i32
    %c0_i32_0 = arith.constant 0 : i32
    %c0_i32_1 = arith.constant 0 : i32
    return %arg0, %c0_i32, %c0_i32_0 : i32, i32, i32
  }
  func.func @transform_25(%arg0: i32) -> (i32, i32, i32) {
    %c0_i32 = arith.constant 0 : i32
    %c0_i32_0 = arith.constant 0 : i32
    %c0_i32_1 = arith.constant 0 : i32
    return %arg0, %c0_i32, %c0_i32_0 : i32, i32, i32
  }
  func.func @transform_26(%arg0: i32) -> (i32, i32, i32) {
    %c0_i32 = arith.constant 0 : i32
    %c0_i32_0 = arith.constant 0 : i32
    %c0_i32_1 = arith.constant 0 : i32
    return %arg0, %c0_i32, %c0_i32_0 : i32, i32, i32
  }
  func.func @transform_27(%arg0: i32) -> (i32, i32, i32) {
    %c0_i32 = arith.constant 0 : i32
    %c0_i32_0 = arith.constant 0 : i32
    %c0_i32_1 = arith.constant 0 : i32
    return %arg0, %c0_i32, %c0_i32_0 : i32, i32, i32
  }
  func.func @transform_28(%arg0: i32) -> (i32, i32, i32) {
    %c0_i32 = arith.constant 0 : i32
    %c0_i32_0 = arith.constant 0 : i32
    %c0_i32_1 = arith.constant 0 : i32
    return %arg0, %c0_i32, %c0_i32_0 : i32, i32, i32
  }
}

</mosaic_0001>

<llo_original>
// kernel: custom-call.10
$region0: #{custom-call.10}
  %s0 = inlined_call_operand.vmem [shape: bf16[2,48], index: 0, kind: output, shape index: {}]

// kernel: custom-call.11
$region0: #{custom-call.11}
  %s0 = inlined_call_operand.vmem [shape: f32[2,48], index: 0, kind: output, shape index: {}]

// kernel: hatnetc_forward.4
$region0: #{hatnetc_forward.4}
  #allocation0 [shape = 'u32[]', space=smem, size = 0x4, offset = 0x4, fixed_abs, tag = 'smem constant byte address 0x4 - core index']
  #allocation1 [shape = 'u32[144,128]{1,0:T(1,128)}', space=vmem, size = 0x12000, scoped, tag = 'internal scratch']
  %s0 = inlined_call_operand.vmem [shape: bf16[16,16], index: 0, kind: input, shape index: {}]
  %s1 = inlined_call_operand.vmem [shape: f32[16,4], index: 1, kind: input, shape index: {}]
  %s2 = inlined_call_operand.vmem [shape: bf16[4,32], index: 2, kind: input, shape index: {}]
  %s3 = inlined_call_operand.vmem [shape: f32[1,32], index: 3, kind: input, shape index: {}]
  %s4 = inlined_call_operand.vmem [shape: bf16[32,32], index: 4, kind: input, shape index: {}]
  %s5 = inlined_call_operand.vmem [shape: f32[1,32], index: 5, kind: input, shape index: {}]
  %s6 = inlined_call_operand.vmem [shape: f32[16,32], index: 6, kind: output, shape index: {}]
  %s7 = sld [smem:[#allocation0]]
  $region34: #{hatnetc_forward.4} parent=0
    _
  %s9 = ssub.s32 1, %s7
  %s10 = scalar_select 0, %s9, %s7
  // Predicated region
  $region2: #{hatnetc_forward.4} parent=0 // pred_check
    _
  $region3: #{hatnetc_forward.4} parent=0 // pred_check_branch
    %12 = sbr.rel (0) target = $region5
  $region4: #{hatnetc_forward.4} parent=0 // pred_region
    _
  $region5: #{hatnetc_forward.4} parent=0 // pred_fallthru
    _
  // Predicated region
  $region6: #{hatnetc_forward.4} parent=0 // pred_check
    _
  $region7: #{hatnetc_forward.4} parent=0 // pred_check_branch
    %14 = sbr.rel (0) target = $region9
  $region8: #{hatnetc_forward.4} parent=0 // pred_region
    _
  $region9: #{hatnetc_forward.4} parent=0 // pred_fallthru
    _
  // Predicated region
  $region10: #{hatnetc_forward.4} parent=0 // pred_check
    _
  $region11: #{hatnetc_forward.4} parent=0 // pred_check_branch
    %16 = sbr.rel (0) target = $region13
  $region12: #{hatnetc_forward.4} parent=0 // pred_region
    _
  $region13: #{hatnetc_forward.4} parent=0 // pred_fallthru
    _
  // Predicated region
  $region14: #{hatnetc_forward.4} parent=0 // pred_check
    _
  $region15: #{hatnetc_forward.4} parent=0 // pred_check_branch
    %18 = sbr.rel (0) target = $region17
  $region16: #{hatnetc_forward.4} parent=0 // pred_region
    _
  $region17: #{hatnetc_forward.4} parent=0 // pred_fallthru
    _
  // Predicated region
  $region18: #{hatnetc_forward.4} parent=0 // pred_check
    _
  $region19: #{hatnetc_forward.4} parent=0 // pred_check_branch
    %20 = sbr.rel (0) target = $region21
  $region20: #{hatnetc_forward.4} parent=0 // pred_region
    _
  $region21: #{hatnetc_forward.4} parent=0 // pred_fallthru
    _
  // Predicated region
  $region22: #{hatnetc_forward.4} parent=0 // pred_check
    _
  $region23: #{hatnetc_forward.4} parent=0 // pred_check_branch
    %22 = sbr.rel (0) target = $region25
  $region24: #{hatnetc_forward.4} parent=0 // pred_region
    _
  $region25: #{hatnetc_forward.4} parent=0 // pred_fallthru
    _
  %v24 = vld [vmem:[%s1] sm:$0xff]
  %v25 = vld [vmem:[%s1 + $0x8] sm:$0xff]
  %s26 = smul.u32 0, 16
  %s27 = scalar_lea.vmem %s1, %s26
  %v28 = vld [vmem:[%s27] sm:$0xff]
  %v29 = vld [vmem:[%s27 + $0x8] sm:$0xff]
  %v30 = vld [vmem:[%s0] sm:$0xf]
  %v31 = vld [vmem:[%s0 + $0x4] sm:$0xf]
  %v32 = vpack.c.bf16 %v25, %v24
  %v35 = vunpack.c.l.b16 %v30
  %v36 = vunpack.c.l.b16 %v31
  %v37 = vpack.c.b16 %v36, %v35
  %vm38 = vcmask 130048
  %v40 = vsel %vm38, %v37, 0
  %42 = vmatprep.subr.bf16.mxu0 0
  %43 = vmatpush1.bf16.msra.mxu0 0
  %44 = vmatprep.subr.bf16.mxu0 0
  %45 = vmatpush1.bf16.msra.mxu0 0
  %46 = vmatprep.subr.bf16.mxu0 0
  %47 = vmatpush1.bf16.msra.mxu0 0
  %48 = vmatprep.subr.bf16.mxu0 0
  %49 = vmatpush1.bf16.msra.mxu0 0
  %50 = vmatprep.subr.bf16.mxu0 0
  %51 = vmatpush1.bf16.msra.mxu0 0
  %52 = vmatprep.subr.bf16.mxu0 0
  %53 = vmatpush1.bf16.msra.mxu0 0
  %54 = vmatprep.subr.bf16.mxu0 0
  %55 = vmatpush1.bf16.msra.mxu0 0
  %56 = vmatprep.subr.bf16.mxu0 0
  %57 = vmatpush1.bf16.msra.mxu0 %v32
  %58 = vmatprep.subr.bf16.mxu0 0
  %59 = vmatpush2.bf16.msra.mxu0 0
  %60 = vmatprep.subr.bf16.mxu0 0
  %61 = vmatpush2.bf16.msra.mxu0 0
  %62 = vmatprep.subr.bf16.mxu0 0
  %63 = vmatpush2.bf16.msra.mxu0 0
  %64 = vmatprep.subr.bf16.mxu0 0
  %65 = vmatpush2.bf16.msra.mxu0 0
  %66 = vmatprep.subr.bf16.mxu0 0
  %67 = vmatpush2.bf16.msra.mxu0 0
  %68 = vmatprep.subr.bf16.mxu0 0
  %69 = vmatpush2.bf16.msra.mxu0 0
  %70 = vmatprep.subr.bf16.mxu0 0
  %71 = vmatpush2.bf16.msra.mxu0 0
  %72 = vmatprep.subr.bf16.mxu0 0
  %73 = vmatpush2.bf16.msra.mxu0 0
  %74 = vmatprep.mubr.bf16.mxu0 0
  %75 = vmatmul.mubr.bf16.gmra.mxu0 %v40
  %v76 = vpop.f32.mrf.mxu0
  %v77 = vadd.f32 0.0, %v76
  %v78 = vpop.f32.mrf.mxu0
  %v79 = vpop.f32.mrf.mxu0
  %v80 = vadd.f32 0.0, %v79
  %v81 = vpop.f32.mrf.mxu0
  %82 = vdwg.mxu0
  %v83 = vadd.f32 %v28, %v77
  %v84 = vadd.f32 %v29, %v80
  %v85 = vpack.c.bf16 %v84, %v83
  %v86 = vld [vmem:[%s2] sm:$0x3]
  %v87 = vld [vmem:[%s3] sm:$0x1]
  %v89 = vlaneseq
  %v90 = vshrl.u32 %v89, 7
  %v91 = vsub.s32 0, %v90
  %v92 = vrot.slane %v87, %v91
  %vm94 = vcmask 31744
  %v96 = vsel %vm94, %v85, 0
  %vm98 = vcmask 1041408
  %v100 = vsel %vm98, %v86, 0
  %102 = vmatprep.subr.bf16.mxu0 0
  %103 = vmatpush1.bf16.msra.mxu0 0
  %104 = vmatprep.subr.bf16.mxu0 0
  %105 = vmatpush1.bf16.msra.mxu0 0
  %106 = vmatprep.subr.bf16.mxu0 0
  %107 = vmatpush1.bf16.msra.mxu0 0
  %108 = vmatprep.subr.bf16.mxu0 0
  %109 = vmatpush1.bf16.msra.mxu0 0
  %110 = vmatprep.subr.bf16.mxu0 0
  %111 = vmatpush1.bf16.msra.mxu0 0
  %112 = vmatprep.subr.bf16.mxu0 0
  %113 = vmatpush1.bf16.msra.mxu0 0
  %114 = vmatprep.subr.bf16.mxu0 0
  %115 = vmatpush1.bf16.msra.mxu0 0
  %116 = vmatprep.subr.bf16.mxu0 0
  %117 = vmatpush1.bf16.msra.mxu0 %v100
  %118 = vmatprep.subr.bf16.mxu0 0
  %119 = vmatpush2.bf16.msra.mxu0 0
  %120 = vmatprep.subr.bf16.mxu0 0
  %121 = vmatpush2.bf16.msra.mxu0 0
  %122 = vmatprep.subr.bf16.mxu0 0
  %123 = vmatpush2.bf16.msra.mxu0 0
  %124 = vmatprep.subr.bf16.mxu0 0
  %125 = vmatpush2.bf16.msra.mxu0 0
  %126 = vmatprep.subr.bf16.mxu0 0
  %127 = vmatpush2.bf16.msra.mxu0 0
  %128 = vmatprep.subr.bf16.mxu0 0
  %129 = vmatpush2.bf16.msra.mxu0 0
  %130 = vmatprep.subr.bf16.mxu0 0
  %131 = vmatpush2.bf16.msra.mxu0 0
  %132 = vmatprep.subr.bf16.mxu0 0
  %133 = vmatpush2.bf16.msra.mxu0 0
  %134 = vmatprep.mubr.bf16.mxu0 0
  %135 = vmatmul.mubr.bf16.gmra.mxu0 %v96
  %v136 = vpop.f32.mrf.mxu0
  %v137 = vadd.f32 %v92, %v136
  %v138 = vpop.f32.mrf.mxu0
  %v139 = vpop.f32.mrf.mxu0
  %v140 = vadd.f32 %v92, %v139
  %v141 = vpop.f32.mrf.mxu0
  %142 = vdwg.mxu0
  %v143 = vmax.f32 %v137, 0.0
  %v144 = vmax.f32 %v140, 0.0
  %v145 = vpack.c.bf16 %v144, %v143
  %v146 = vld [vmem:[%s4] sm:$0xf]
  %v147 = vld [vmem:[%s4 + $0x4] sm:$0xf]
  %v148 = vld [vmem:[%s4 + $0x8] sm:$0xf]
  %v149 = vld [vmem:[%s4 + $0xc] sm:$0xf]
  %v150 = vld [vmem:[%s5] sm:$0x1]
  %v152 = vlaneseq
  %v153 = vshrl.u32 %v152, 7
  %v154 = vsub.s32 0, %v153
  %v155 = vrot.slane %v150, %v154
  %v161 = vunpack.c.l.b16 %v146
  %v162 = vunpack.c.l.b16 %v147
  %v163 = vunpack.c.l.b16 %v148
  %v164 = vunpack.c.l.b16 %v149
  %v165 = vpack.c.b16 %v162, %v161
  %v166 = vpack.c.b16 %v164, %v163
  %vm169 = vcmask 261120
  %v171 = vsel %vm169, %v145, 0
  %173 = vmatprep.subr.bf16.mxu0 0
  %174 = vmatpush1.bf16.msra.mxu0 0
  %175 = vmatprep.subr.bf16.mxu0 0
  %176 = vmatpush1.bf16.msra.mxu0 0
  %177 = vmatprep.subr.bf16.mxu0 0
  %178 = vmatpush1.bf16.msra.mxu0 0
  %179 = vmatprep.subr.bf16.mxu0 0
  %180 = vmatpush1.bf16.msra.mxu0 0
  %181 = vmatprep.subr.bf16.mxu0 0
  %182 = vmatpush1.bf16.msra.mxu0 0
  %183 = vmatprep.subr.bf16.mxu0 0
  %184 = vmatpush1.bf16.msra.mxu0 0
  %185 = vmatprep.subr.bf16.mxu0 0
  %186 = vmatpush1.bf16.msra.mxu0 %v166
  %187 = vmatprep.subr.bf16.mxu0 0
  %188 = vmatpush1.bf16.msra.mxu0 %v165
  %189 = vmatprep.subr.bf16.mxu0 0
  %190 = vmatpush2.bf16.msra.mxu0 0
  %191 = vmatprep.subr.bf16.mxu0 0
  %192 = vmatpush2.bf16.msra.mxu0 0
  %193 = vmatprep.subr.bf16.mxu0 0
  %194 = vmatpush2.bf16.msra.mxu0 0
  %195 = vmatprep.subr.bf16.mxu0 0
  %196 = vmatpush2.bf16.msra.mxu0 0
  %197 = vmatprep.subr.bf16.mxu0 0
  %198 = vmatpush2.bf16.msra.mxu0 0
  %199 = vmatprep.subr.bf16.mxu0 0
  %200 = vmatpush2.bf16.msra.mxu0 0
  %201 = vmatprep.subr.bf16.mxu0 0
  %202 = vmatpush2.bf16.msra.mxu0 0
  %203 = vmatprep.subr.bf16.mxu0 0
  %204 = vmatpush2.bf16.msra.mxu0 0
  %205 = vmatprep.mubr.bf16.mxu0 0
  %206 = vmatmul.mubr.bf16.gmra.mxu0 %v171
  %v207 = vpop.f32.mrf.mxu0
  %v208 = vadd.f32 %v155, %v207
  %v209 = vpop.f32.mrf.mxu0
  %v210 = vpop.f32.mrf.mxu0
  %v211 = vadd.f32 %v155, %v210
  %v212 = vpop.f32.mrf.mxu0
  %213 = vdwg.mxu0
  %v214 = vmax.f32 %v208, 0.0
  %v215 = vmax.f32 %v211, 0.0
  %216 = vst.msk [vmem:[%s6] sm:$0xff] %vm169, %v214
  %217 = vst.msk [vmem:[%s6 + $0x8] sm:$0xff] %vm169, %v215
  // Predicated region
  $region26: #{hatnetc_forward.4} parent=0 // pred_check
    _
  $region27: #{hatnetc_forward.4} parent=0 // pred_check_branch
    %219 = sbr.rel (0) target = $region29
  $region28: #{hatnetc_forward.4} parent=0 // pred_region
    _
  $region29: #{hatnetc_forward.4} parent=0 // pred_fallthru
    _
  // Predicated region
  $region30: #{hatnetc_forward.4} parent=0 // pred_check
    _
  $region31: #{hatnetc_forward.4} parent=0 // pred_check_branch
    %221 = sbr.rel (0) target = $region33
  $region32: #{hatnetc_forward.4} parent=0 // pred_region
    _
  $region33: #{hatnetc_forward.4} parent=0 // pred_fallthru
    _

// kernel: hatnetc_forward.5
$region0: #{hatnetc_forward.5}
  #allocation0 [shape = 'u32[]', space=smem, size = 0x4, offset = 0x4, fixed_abs, tag = 'smem constant byte address 0x4 - core index']
  #allocation1 [shape = 'u32[144,128]{1,0:T(1,128)}', space=vmem, size = 0x12000, scoped, tag = 'internal scratch']
  %s0 = inlined_call_operand.vmem [shape: f32[2,8,32], index: 0, kind: input, shape index: {}]
  %s1 = inlined_call_operand.vmem [shape: bf16[2,8,8], index: 1, kind: input, shape index: {}]
  %s2 = inlined_call_operand.vmem [shape: f32[2,8,1], index: 2, kind: input, shape index: {}]
  %s3 = inlined_call_operand.vmem [shape: bf16[32,8], index: 3, kind: input, shape index: {}]
  %s4 = inlined_call_operand.vmem [shape: f32[1,8], index: 4, kind: input, shape index: {}]
  %s5 = inlined_call_operand.vmem [shape: f32[2,8,32], index: 5, kind: output, shape index: {0}]
  %s6 = inlined_call_operand.vmem [shape: f32[2,8,8], index: 6, kind: output, shape index: {1}]
  %s7 = inlined_call_operand.vmem [shape: f32[2,1,32], index: 7, kind: output, shape index: {2}]
  %s8 = inlined_call_operand.vmem [shape: f32[2,1,1], index: 8, kind: output, shape index: {3}]
  %s9 = inlined_call_operand.vmem [shape: f32[2,1,1], index: 9, kind: output, shape index: {4}]
  %10 = xla_tuple %s5, %s6, %s7, %s8, %s9
  %s11 = sld [smem:[#allocation0]]
  $region85: #{hatnetc_forward.5} parent=0
    _
  %s13 = ssub.s32 1, %s11
  %s14 = scalar_select 0, %s13, %s11
  loop: start=0, step=1, limit=4
  $region2: #{hatnetc_forward.5} parent=0 // loop_pre_header
    _
  $region3: #{hatnetc_forward.5} parent=0 // loop_header
    %s16 = sphi 0, %s20
    %p17 = scmp.ge.s32.totalorder %s16, 4
    %s26 = sphi 0, %s28
    %s29 = sphi 0, %s26
    %s30 = sphi 0, %s29
    %s46 = sphi 0, %s30
    %s52 = sphi 0, %s54
    %s55 = sphi 0, %s52
    %s56 = sphi 0, %s55
    %s72 = sphi 0, %s56
    %s78 = sphi 0, %s80
    %s81 = sphi 0, %s78
    %s82 = sphi 0, %s81
    %s98 = sphi 0, %s82
    %s102 = sphi 0, %s102
    %s104 = sphi 0, %s102
    %s105 = sphi 0, %s104
    %s119 = sphi 0, %s105
    %s123 = sphi 0, %s123
    %s125 = sphi 0, %s123
    %s126 = sphi 0, %s125
    %s140 = sphi 0, %s126
    %s146 = sphi 0, %s148
    %s149 = sphi 0, %s146
    %s150 = sphi 0, %s149
    %s166 = sphi 0, %s150
    %s172 = sphi 0, %s174
    %s175 = sphi 0, %s172
    %s176 = sphi 0, %s175
    %s192 = sphi 0, %s176
    %s198 = sphi 0, %s200
    %s201 = sphi 0, %s198
    %s202 = sphi 0, %s201
    %s218 = sphi 0, %s202
    %s224 = sphi 0, %s226
    %s227 = sphi 0, %s224
    %s228 = sphi 0, %s227
    %s244 = sphi 0, %s228
    %s250 = sphi 0, %s252
    %s253 = sphi 0, %s250
    %s254 = sphi 0, %s253
    %s270 = sphi 0, %s254
  $region4: #{hatnetc_forward.5} parent=0 // loop_header_branch
    %19 = sbr.rel (%p17) target = $region8
  $region5: #{hatnetc_forward.5} parent=0 // loop_body
    %s21 = ssub.s32 %s16, 1
    %s22 = ssub.s32 %s16, 2
    %s23 = sadd.s32 %s16, 1
    %s24 = ssub.s32 %s16, %s23
    %p25 = scmp.eq.s32.totalorder %s24, 0
    %s27 = sadd.s32 %s26, 1
    %s28 = scalar_select %p25, %s26, %s27
    %p31 = pneg %p25
    %p32 = scmp.eq.s32.totalorder %s16, 1
    %p33 = por %p31, %p32
    %p34 = scmp.ne.s32.totalorder %s26, %s29
    %p35 = scmp.eq.s32.totalorder %s16, 0
    %p36 = por %p34, %p35
    %p37 = scmp.ne.s32.totalorder %s26, %s29
    %p38 = scmp.eq.s32.totalorder %s21, 1
    %p39 = por %p37, %p38
    %p40 = scmp.ne.s32.totalorder %s29, %s30
    %p41 = scmp.eq.s32.totalorder %s21, 0
    %p42 = por %p40, %p41
    %p43 = scmp.ne.s32.totalorder %s29, %s30
    %p44 = scmp.eq.s32.totalorder %s22, 1
    %p45 = por %p43, %p44
    %p47 = scmp.ne.s32.totalorder %s30, %s46
    %p48 = scmp.eq.s32.totalorder %s22, 0
    %p49 = por %p47, %p48
    %s50 = ssub.s32 %s16, %s23
    %p51 = scmp.eq.s32.totalorder %s50, 0
    %s53 = sadd.s32 %s52, 1
    %s54 = scalar_select %p51, %s52, %s53
    %p57 = pneg %p51
    %p58 = scmp.eq.s32.totalorder %s16, 1
    %p59 = por %p57, %p58
    %p60 = scmp.ne.s32.totalorder %s52, %s55
    %p61 = scmp.eq.s32.totalorder %s16, 0
    %p62 = por %p60, %p61
    %p63 = scmp.ne.s32.totalorder %s52, %s55
    %p64 = scmp.eq.s32.totalorder %s21, 1
    %p65 = por %p63, %p64
    %p66 = scmp.ne.s32.totalorder %s55, %s56
    %p67 = scmp.eq.s32.totalorder %s21, 0
    %p68 = por %p66, %p67
    %p69 = scmp.ne.s32.totalorder %s55, %s56
    %p70 = scmp.eq.s32.totalorder %s22, 1
    %p71 = por %p69, %p70
    %p73 = scmp.ne.s32.totalorder %s56, %s72
    %p74 = scmp.eq.s32.totalorder %s22, 0
    %p75 = por %p73, %p74
    %s76 = ssub.s32 %s16, %s23
    %p77 = scmp.eq.s32.totalorder %s76, 0
    %s79 = sadd.s32 %s78, 1
    %s80 = scalar_select %p77, %s78, %s79
    %p83 = pneg %p77
    %p84 = scmp.eq.s32.totalorder %s16, 1
    %p85 = por %p83, %p84
    %p86 = scmp.ne.s32.totalorder %s78, %s81
    %p87 = scmp.eq.s32.totalorder %s16, 0
    %p88 = por %p86, %p87
    %p89 = scmp.ne.s32.totalorder %s78, %s81
    %p90 = scmp.eq.s32.totalorder %s21, 1
    %p91 = por %p89, %p90
    %p92 = scmp.ne.s32.totalorder %s81, %s82
    %p93 = scmp.eq.s32.totalorder %s21, 0
    %p94 = por %p92, %p93
    %p95 = scmp.ne.s32.totalorder %s81, %s82
    %p96 = scmp.eq.s32.totalorder %s22, 1
    %p97 = por %p95, %p96
    %p99 = scmp.ne.s32.totalorder %s82, %s98
    %p100 = scmp.eq.s32.totalorder %s22, 0
    %p101 = por %p99, %p100
    %s103 = sadd.s32 %s102, 1
    %p106 = scmp.eq.s32.totalorder %s16, 1
    %p107 = scmp.ne.s32.totalorder %s102, %s104
    %p108 = scmp.eq.s32.totalorder %s16, 0
    %p109 = por %p107, %p108
    %p110 = scmp.ne.s32.totalorder %s102, %s104
    %p111 = scmp.eq.s32.totalorder %s21, 1
    %p112 = por %p110, %p111
    %p113 = scmp.ne.s32.totalorder %s104, %s105
    %p114 = scmp.eq.s32.totalorder %s21, 0
    %p115 = por %p113, %p114
    %p116 = scmp.ne.s32.totalorder %s104, %s105
    %p117 = scmp.eq.s32.totalorder %s22, 1
    %p118 = por %p116, %p117
    %p120 = scmp.ne.s32.totalorder %s105, %s119
    %p121 = scmp.eq.s32.totalorder %s22, 0
    %p122 = por %p120, %p121
    %s124 = sadd.s32 %s123, 1
    %p127 = scmp.eq.s32.totalorder %s16, 1
    %p128 = scmp.ne.s32.totalorder %s123, %s125
    %p129 = scmp.eq.s32.totalorder %s16, 0
    %p130 = por %p128, %p129
    %p131 = scmp.ne.s32.totalorder %s123, %s125
    %p132 = scmp.eq.s32.totalorder %s21, 1
    %p133 = por %p131, %p132
    %p134 = scmp.ne.s32.totalorder %s125, %s126
    %p135 = scmp.eq.s32.totalorder %s21, 0
    %p136 = por %p134, %p135
    %p137 = scmp.ne.s32.totalorder %s125, %s126
    %p138 = scmp.eq.s32.totalorder %s22, 1
    %p139 = por %p137, %p138
    %p141 = scmp.ne.s32.totalorder %s126, %s140
    %p142 = scmp.eq.s32.totalorder %s22, 0
    %p143 = por %p141, %p142
    %s144 = ssub.s32 %s16, %s23
    %p145 = scmp.eq.s32.totalorder %s144, 0
    %s147 = sadd.s32 %s146, 1
    %s148 = scalar_select %p145, %s146, %s147
    %p151 = pneg %p145
    %p152 = scmp.eq.s32.totalorder %s16, 1
    %p153 = por %p151, %p152
    %p154 = scmp.ne.s32.totalorder %s146, %s149
    %p155 = scmp.eq.s32.totalorder %s16, 0
    %p156 = por %p154, %p155
    %p157 = scmp.ne.s32.totalorder %s146, %s149
    %p158 = scmp.eq.s32.totalorder %s21, 1
    %p159 = por %p157, %p158
    %p160 = scmp.ne.s32.totalorder %s149, %s150
    %p161 = scmp.eq.s32.totalorder %s21, 0
    %p162 = por %p160, %p161
    %p163 = scmp.ne.s32.totalorder %s149, %s150
    %p164 = scmp.eq.s32.totalorder %s22, 1
    %p165 = por %p163, %p164
    %p167 = scmp.ne.s32.totalorder %s150, %s166
    %p168 = scmp.eq.s32.totalorder %s22, 0
    %p169 = por %p167, %p168
    %s170 = ssub.s32 %s16, %s23
    %p171 = scmp.eq.s32.totalorder %s170, 0
    %s173 = sadd.s32 %s172, 1
    %s174 = scalar_select %p171, %s172, %s173
    %p177 = pneg %p171
    %p178 = scmp.eq.s32.totalorder %s16, 1
    %p179 = por %p177, %p178
    %p180 = scmp.ne.s32.totalorder %s172, %s175
    %p181 = scmp.eq.s32.totalorder %s16, 0
    %p182 = por %p180, %p181
    %p183 = scmp.ne.s32.totalorder %s172, %s175
    %p184 = scmp.eq.s32.totalorder %s21, 1
    %p185 = por %p183, %p184
    %p186 = scmp.ne.s32.totalorder %s175, %s176
    %p187 = scmp.eq.s32.totalorder %s21, 0
    %p188 = por %p186, %p187
    %p189 = scmp.ne.s32.totalorder %s175, %s176
    %p190 = scmp.eq.s32.totalorder %s22, 1
    %p191 = por %p189, %p190
    %p193 = scmp.ne.s32.totalorder %s176, %s192
    %p194 = scmp.eq.s32.totalorder %s22, 0
    %p195 = por %p193, %p194
    %s196 = ssub.s32 %s16, %s23
    %p197 = scmp.eq.s32.totalorder %s196, 0
    %s199 = sadd.s32 %s198, 1
    %s200 = scalar_select %p197, %s198, %s199
    %p203 = pneg %p197
    %p204 = scmp.eq.s32.totalorder %s16, 1
    %p205 = por %p203, %p204
    %p206 = scmp.ne.s32.totalorder %s198, %s201
    %p207 = scmp.eq.s32.totalorder %s16, 0
    %p208 = por %p206, %p207
    %p209 = scmp.ne.s32.totalorder %s198, %s201
    %p210 = scmp.eq.s32.totalorder %s21, 1
    %p211 = por %p209, %p210
    %p212 = scmp.ne.s32.totalorder %s201, %s202
    %p213 = scmp.eq.s32.totalorder %s21, 0
    %p214 = por %p212, %p213
    %p215 = scmp.ne.s32.totalorder %s201, %s202
    %p216 = scmp.eq.s32.totalorder %s22, 1
    %p217 = por %p215, %p216
    %p219 = scmp.ne.s32.totalorder %s202, %s218
    %p220 = scmp.eq.s32.totalorder %s22, 0
    %p221 = por %p219, %p220
    %s222 = ssub.s32 %s16, %s23
    %p223 = scmp.eq.s32.totalorder %s222, 0
    %s225 = sadd.s32 %s224, 1
    %s226 = scalar_select %p223, %s224, %s225
    %p229 = pneg %p223
    %p230 = scmp.eq.s32.totalorder %s16, 1
    %p231 = por %p229, %p230
    %p232 = scmp.ne.s32.totalorder %s224, %s227
    %p233 = scmp.eq.s32.totalorder %s16, 0
    %p234 = por %p232, %p233
    %p235 = scmp.ne.s32.totalorder %s224, %s227
    %p236 = scmp.eq.s32.totalorder %s21, 1
    %p237 = por %p235, %p236
    %p238 = scmp.ne.s32.totalorder %s227, %s228
    %p239 = scmp.eq.s32.totalorder %s21, 0
    %p240 = por %p238, %p239
    %p241 = scmp.ne.s32.totalorder %s227, %s228
    %p242 = scmp.eq.s32.totalorder %s22, 1
    %p243 = por %p241, %p242
    %p245 = scmp.ne.s32.totalorder %s228, %s244
    %p246 = scmp.eq.s32.totalorder %s22, 0
    %p247 = por %p245, %p246
    %s248 = ssub.s32 %s16, %s23
    %p249 = scmp.eq.s32.totalorder %s248, 0
    %s251 = sadd.s32 %s250, 1
    %s252 = scalar_select %p249, %s250, %s251
    %p255 = pneg %p249
    %p256 = scmp.eq.s32.totalorder %s16, 1
    %p257 = por %p255, %p256
    %p258 = scmp.ne.s32.totalorder %s250, %s253
    %p259 = scmp.eq.s32.totalorder %s16, 0
    %p260 = por %p258, %p259
    %p261 = scmp.ne.s32.totalorder %s250, %s253
    %p262 = scmp.eq.s32.totalorder %s21, 1
    %p263 = por %p261, %p262
    %p264 = scmp.ne.s32.totalorder %s253, %s254
    %p265 = scmp.eq.s32.totalorder %s21, 0
    %p266 = por %p264, %p265
    %p267 = scmp.ne.s32.totalorder %s253, %s254
    %p268 = scmp.eq.s32.totalorder %s22, 1
    %p269 = por %p267, %p268
    %p271 = scmp.ne.s32.totalorder %s254, %s270
    %p272 = scmp.eq.s32.totalorder %s22, 0
    %p273 = por %p271, %p272
    %p274 = scmp.le.s32.totalorder 1, %s16
    %p275 = scmp.lt.s32.totalorder %s16, 3
    %p276 = pnand %p274, %p275
    %p277 = pneg %p276
    // Predicated region
    $region9: #{hatnetc_forward.5} parent=5 // pred_check
      _
    $region10: #{hatnetc_forward.5} parent=5 // pred_check_branch
      %279 = sbr.rel (%p276) target = $region12
    $region11: #{hatnetc_forward.5} parent=5 // pred_region
      %s280 = ssub.s32 %s16, 1
      // Predicated region
      $region13: #{hatnetc_forward.5} parent=11 // pred_check
        %p281 = pneg %p115
      $region14: #{hatnetc_forward.5} parent=11 // pred_check_branch
        %283 = sbr.rel (%p281) target = $region16
      $region15: #{hatnetc_forward.5} parent=11 // pred_region
        _
      $region16: #{hatnetc_forward.5} parent=11 // pred_fallthru
        _
      // Predicated region
      $region17: #{hatnetc_forward.5} parent=11 // pred_check
        %p284 = pneg %p136
      $region18: #{hatnetc_forward.5} parent=11 // pred_check_branch
        %286 = sbr.rel (%p284) target = $region20
      $region19: #{hatnetc_forward.5} parent=11 // pred_region
        _
      $region20: #{hatnetc_forward.5} parent=11 // pred_fallthru
        _
    $region12: #{hatnetc_forward.5} parent=5 // pred_fallthru
      _
    %p287 = scmp.lt.s32.totalorder %s16, 2
    // Predicated region
    $region21: #{hatnetc_forward.5} parent=5 // pred_check
      %p288 = pneg %p287
    $region22: #{hatnetc_forward.5} parent=5 // pred_check_branch
      %290 = sbr.rel (%p288) target = $region24
    $region23: #{hatnetc_forward.5} parent=5 // pred_region
      // Predicated region
      $region25: #{hatnetc_forward.5} parent=23 // pred_check
        %p291 = pneg %p36
      $region26: #{hatnetc_forward.5} parent=23 // pred_check_branch
        %293 = sbr.rel (%p291) target = $region28
      $region27: #{hatnetc_forward.5} parent=23 // pred_region
        %p294 = scmp.lt.s32.totalorder %s16, 1
        %s295 = scalar_select %p294, %s16, 1
        %s296 = smul.addr %s295, 8
        %s297 = scalar_lea.vmem %s0, %s296
      $region28: #{hatnetc_forward.5} parent=23 // pred_fallthru
        _
      // Predicated region
      $region29: #{hatnetc_forward.5} parent=23 // pred_check
        %p298 = pneg %p62
      $region30: #{hatnetc_forward.5} parent=23 // pred_check_branch
        %300 = sbr.rel (%p298) target = $region32
      $region31: #{hatnetc_forward.5} parent=23 // pred_region
        %p301 = scmp.lt.s32.totalorder %s16, 1
        %s302 = scalar_select %p301, %s16, 1
        %s303 = smul.addr %s302, 4
        %s304 = scalar_lea.vmem %s1, %s303
      $region32: #{hatnetc_forward.5} parent=23 // pred_fallthru
        _
      // Predicated region
      $region33: #{hatnetc_forward.5} parent=23 // pred_check
        %p305 = pneg %p88
      $region34: #{hatnetc_forward.5} parent=23 // pred_check_branch
        %307 = sbr.rel (%p305) target = $region36
      $region35: #{hatnetc_forward.5} parent=23 // pred_region
        %p308 = scmp.lt.s32.totalorder %s16, 1
        %s309 = scalar_select %p308, %s16, 1
        %s310 = smul.addr %s309, 8
        %s311 = scalar_lea.vmem %s2, %s310
      $region36: #{hatnetc_forward.5} parent=23 // pred_fallthru
        _
    $region24: #{hatnetc_forward.5} parent=5 // pred_fallthru
      _
    %p312 = scmp.le.s32.totalorder 1, %s16
    %p313 = scmp.lt.s32.totalorder %s16, 3
    %p314 = pnand %p312, %p313
    %p315 = pneg %p314
    // Predicated region
    $region37: #{hatnetc_forward.5} parent=5 // pred_check
      _
    $region38: #{hatnetc_forward.5} parent=5 // pred_check_branch
      %317 = sbr.rel (%p314) target = $region40
    $region39: #{hatnetc_forward.5} parent=5 // pred_region
      %s318 = ssub.s32 %s16, 1
      %p319 = scmp.lt.s32.totalorder %s21, 1
      %s320 = scalar_select %p319, %s21, 1
      %s321 = smul.addr %s320, 8
      %s322 = scalar_lea.vmem %s0, %s321
      %p323 = pneg %p42
      %p324 = pneg %p39
      %p325 = scmp.lt.s32.totalorder %s21, 1
      %s326 = scalar_select %p325, %s21, 1
      %s327 = smul.addr %s326, 4
      %s328 = scalar_lea.vmem %s1, %s327
      %p329 = pneg %p68
      %p330 = pneg %p65
      %p331 = scmp.lt.s32.totalorder %s21, 1
      %s332 = scalar_select %p331, %s21, 1
      %s333 = smul.addr %s332, 8
      %s334 = scalar_lea.vmem %s2, %s333
      %p335 = pneg %p94
      %p336 = pneg %p91
      %p337 = pneg %p115
      %p338 = pneg %p112
      %p339 = pneg %p136
      %p340 = pneg %p133
      %p341 = pneg %p162
      %p342 = pneg %p159
      %p343 = scmp.lt.s32.totalorder %s21, 1
      %s344 = scalar_select %p343, %s21, 1
      %s345 = smul.addr %s344, 8
      %s346 = scalar_lea.vmem %s5, %s345
      %p347 = pneg %p188
      %p348 = pneg %p185
      %p349 = scmp.lt.s32.totalorder %s21, 1
      %s350 = scalar_select %p349, %s21, 1
      %s351 = smul.addr %s350, 8
      %s352 = scalar_lea.vmem %s6, %s351
      %p353 = pneg %p214
      %p354 = pneg %p211
      %p355 = scmp.lt.s32.totalorder %s21, 1
      %s356 = scalar_select %p355, %s21, 1
      %s357 = scalar_lea.vmem %s7, %s356
      %p358 = pneg %p240
      %p359 = pneg %p237
      %p360 = scmp.lt.s32.totalorder %s21, 1
      %s361 = scalar_select %p360, %s21, 1
      %s362 = scalar_lea.vmem %s8, %s361
      %p363 = pneg %p266
      %p364 = pneg %p263
      %p365 = scmp.lt.s32.totalorder %s21, 1
      %s366 = scalar_select %p365, %s21, 1
      %s367 = scalar_lea.vmem %s9, %s366
      %p368 = scmp.lt.s32.totalorder %s21, 1
      %s369 = scalar_select %p368, %s21, 1
      %s370 = smul.addr %s369, 8
      %s371 = scalar_lea.vmem %s0, %s370
      %p372 = scmp.lt.s32.totalorder %s21, 1
      %s373 = scalar_select %p372, %s21, 1
      %s374 = smul.addr %s373, 4
      %s375 = scalar_lea.vmem %s1, %s374
      %p376 = scmp.lt.s32.totalorder %s21, 1
      %s377 = scalar_select %p376, %s21, 1
      %s378 = smul.addr %s377, 8
      %s379 = scalar_lea.vmem %s2, %s378
      %p380 = scmp.lt.s32.totalorder %s21, 1
      %s381 = scalar_select %p380, %s21, 1
      %s382 = smul.addr %s381, 8
      %s383 = scalar_lea.vmem %s5, %s382
      %p384 = scmp.lt.s32.totalorder %s21, 1
      %s385 = scalar_select %p384, %s21, 1
      %s386 = smul.addr %s385, 8
      %s387 = scalar_lea.vmem %s6, %s386
      %p388 = scmp.lt.s32.totalorder %s21, 1
      %s389 = scalar_select %p388, %s21, 1
      %s390 = scalar_lea.vmem %s7, %s389
      %p391 = scmp.lt.s32.totalorder %s21, 1
      %s392 = scalar_select %p391, %s21, 1
      %s393 = scalar_lea.vmem %s8, %s392
      %p394 = scmp.lt.s32.totalorder %s21, 1
      %s395 = scalar_select %p394, %s21, 1
      %s396 = scalar_lea.vmem %s9, %s395
      %v398 = vld [vmem:[%s371] sm:$0xff]
      %v399 = vld [vmem:[%s375] sm:$0xf]
      %v400 = vunpack.c.l.bf16 %v399
      %v401 = vld [vmem:[%s379] sm:$0xff]
      %v402 = vpack.c.bf16 %v398, %v398
      %v403 = vld [vmem:[%s3] sm:$0xf]
      %v404 = vld [vmem:[%s3 + $0x4] sm:$0xf]
      %v405 = vld [vmem:[%s3 + $0x8] sm:$0xf]
      %v406 = vld [vmem:[%s3 + $0xc] sm:$0xf]
      %v407 = vld [vmem:[%s4] sm:$0x1]
      %v409 = vlaneseq
      %v410 = vshrl.u32 %v409, 7
      %v411 = vsub.s32 0, %v410
      %v412 = vrot.slane %v407, %v411
      %v418 = vunpack.c.l.b16 %v403
      %v419 = vunpack.c.l.b16 %v404
      %v420 = vunpack.c.l.b16 %v405
      %v421 = vunpack.c.l.b16 %v406
      %v422 = vpack.c.b16 %v419, %v418
      %v423 = vpack.c.b16 %v421, %v420
      %vm426 = vcmask 261120
      %v428 = vsel %vm426, %v402, 0
      %430 = vmatprep.subr.bf16.mxu0 0
      %431 = vmatpush1.bf16.msra.mxu0 0
      %432 = vmatprep.subr.bf16.mxu0 0
      %433 = vmatpush1.bf16.msra.mxu0 0
      %434 = vmatprep.subr.bf16.mxu0 0
      %435 = vmatpush1.bf16.msra.mxu0 0
      %436 = vmatprep.subr.bf16.mxu0 0
      %437 = vmatpush1.bf16.msra.mxu0 0
      %438 = vmatprep.subr.bf16.mxu0 0
      %439 = vmatpush1.bf16.msra.mxu0 0
      %440 = vmatprep.subr.bf16.mxu0 0
      %441 = vmatpush1.bf16.msra.mxu0 0
      %442 = vmatprep.subr.bf16.mxu0 0
      %443 = vmatpush1.bf16.msra.mxu0 %v423
      %444 = vmatprep.subr.bf16.mxu0 0
      %445 = vmatpush1.bf16.msra.mxu0 %v422
      %446 = vmatprep.subr.bf16.mxu0 0
      %447 = vmatpush2.bf16.msra.mxu0 0
      %448 = vmatprep.subr.bf16.mxu0 0
      %449 = vmatpush2.bf16.msra.mxu0 0
      %450 = vmatprep.subr.bf16.mxu0 0
      %451 = vmatpush2.bf16.msra.mxu0 0
      %452 = vmatprep.subr.bf16.mxu0 0
      %453 = vmatpush2.bf16.msra.mxu0 0
      %454 = vmatprep.subr.bf16.mxu0 0
      %455 = vmatpush2.bf16.msra.mxu0 0
      %456 = vmatprep.subr.bf16.mxu0 0
      %457 = vmatpush2.bf16.msra.mxu0 0
      %458 = vmatprep.subr.bf16.mxu0 0
      %459 = vmatpush2.bf16.msra.mxu0 0
      %460 = vmatprep.subr.bf16.mxu0 0
      %461 = vmatpush2.bf16.msra.mxu0 0
      %462 = vmatprep.mubr.bf16.mxu0 0
      %463 = vmatmul.mubr.bf16.gmra.mxu0 %v428
      %v464 = vpop.f32.mrf.mxu0
      %v465 = vadd.f32 %v412, %v464
      %v466 = vpop.f32.mrf.mxu0
      %v467 = vpop.f32.mrf.mxu0
      %v468 = vpop.f32.mrf.mxu0
      %469 = vdwg.mxu0
      %vm470 = vcmask 64512
      %v471 = vsel %vm470, %v465, -inf
      %472 = vmax.xlane.f32.xlu0 %v471
      %v473 = vpop.xlane.xlu0 %472
      %v474 = vsub.f32 %v465, %v473
      %v475 = vmul.f32 %v474, 1.442695
      %v476 = vpow.pop %v475
      %v477 = vsel %vm470, %v476, 0.0
      %478 = vadd.xlane.f32.xlu0 %v477
      %v479 = vpop.xlane.xlu0 %478
      %v480 = vrcp.pop %v479
      %v481 = vmul.f32 %v476, %v480
      %483 = vset.pattern.permute.xlu0 0
      %484 = vperm.xlu0 %483, %v401
      %v485 = vpop.permute.xlu0 %484
      %v487 = vmul.f32 %v398, %v485
      %v488 = vmul.f32 %v481, %v485
      %v489 = vpack.c.bf16 %v488, %v488
      %v490 = vpack.c.bf16 %v487, %v487
      %491 = vxpose.xlu0.c.b16.start [1/8] %v489, 128
      %492 = vxpose.xlu0.c.b16.cont [2/8] 0, 128
      %493 = vxpose.xlu0.c.b16.cont [3/8] 0, 128
      %494 = vxpose.xlu0.c.b16.cont [4/8] 0, 128
      %495 = vxpose.xlu0.c.b16.cont [5/8] 0, 128
      %496 = vxpose.xlu0.c.b16.cont [6/8] 0, 128
      %497 = vxpose.xlu0.c.b16.cont [7/8] 0, 128
      %498 = vxpose.xlu0.c.b16.end [8/8] 0, 128
      %v499 = vpop.trf.xlu0
      %v500 = vpop.trf.xlu0
      %v501 = vpop.trf.xlu0
      %v502 = vpop.trf.xlu0
      %v503 = vpop.trf.xlu0
      %v504 = vpop.trf.xlu0
      %v505 = vpop.trf.xlu0
      %v506 = vpop.trf.xlu0
      %v508 = vsel %vm470, %v499, 0
      %vm510 = vcmask 1043456
      %v512 = vsel %vm510, %v490, 0
      %514 = vmatprep.subr.bf16.mxu0 0
      %515 = vmatpush1.bf16.msra.mxu0 0
      %516 = vmatprep.subr.bf16.mxu0 0
      %517 = vmatpush1.bf16.msra.mxu0 0
      %518 = vmatprep.subr.bf16.mxu0 0
      %519 = vmatpush1.bf16.msra.mxu0 0
      %520 = vmatprep.subr.bf16.mxu0 0
      %521 = vmatpush1.bf16.msra.mxu0 0
      %522 = vmatprep.subr.bf16.mxu0 0
      %523 = vmatpush1.bf16.msra.mxu0 0
      %524 = vmatprep.subr.bf16.mxu0 0
      %525 = vmatpush1.bf16.msra.mxu0 0
      %526 = vmatprep.subr.bf16.mxu0 0
      %527 = vmatpush1.bf16.msra.mxu0 0
      %528 = vmatprep.subr.bf16.mxu0 0
      %529 = vmatpush1.bf16.msra.mxu0 %v512
      %530 = vmatprep.subr.bf16.mxu0 0
      %531 = vmatpush2.bf16.msra.mxu0 0
      %532 = vmatprep.subr.bf16.mxu0 0
      %533 = vmatpush2.bf16.msra.mxu0 0
      %534 = vmatprep.subr.bf16.mxu0 0
      %535 = vmatpush2.bf16.msra.mxu0 0
      %536 = vmatprep.subr.bf16.mxu0 0
      %537 = vmatpush2.bf16.msra.mxu0 0
      %538 = vmatprep.subr.bf16.mxu0 0
      %539 = vmatpush2.bf16.msra.mxu0 0
      %540 = vmatprep.subr.bf16.mxu0 0
      %541 = vmatpush2.bf16.msra.mxu0 0
      %542 = vmatprep.subr.bf16.mxu0 0
      %543 = vmatpush2.bf16.msra.mxu0 0
      %544 = vmatprep.subr.bf16.mxu0 0
      %545 = vmatpush2.bf16.msra.mxu0 0
      %546 = vmatprep.mubr.bf16.mxu0 0
      %547 = vmatmul.mubr.bf16.gmra.mxu0 %v508
      %v548 = vpop.f32.mrf.mxu0
      %v549 = vadd.f32 0.0, %v548
      %v550 = vpop.f32.mrf.mxu0
      %v551 = vpop.f32.mrf.mxu0
      %v552 = vpop.f32.mrf.mxu0
      %553 = vdwg.mxu0
      %v555 = vsel %vm510, %v399, 0
      %557 = vmatprep.subr.bf16.mxu0 0
      %558 = vmatpush1.bf16.msra.mxu0 0
      %559 = vmatprep.subr.bf16.mxu0 0
      %560 = vmatpush1.bf16.msra.mxu0 0
      %561 = vmatprep.subr.bf16.mxu0 0
      %562 = vmatpush1.bf16.msra.mxu0 0
      %563 = vmatprep.subr.bf16.mxu0 0
      %564 = vmatpush1.bf16.msra.mxu0 0
      %565 = vmatprep.subr.bf16.mxu0 0
      %566 = vmatpush1.bf16.msra.mxu0 0
      %567 = vmatprep.subr.bf16.mxu0 0
      %568 = vmatpush1.bf16.msra.mxu0 0
      %569 = vmatprep.subr.bf16.mxu0 0
      %570 = vmatpush1.bf16.msra.mxu0 0
      %571 = vmatprep.subr.bf16.mxu0 0
      %572 = vmatpush1.bf16.msra.mxu0 %v555
      %573 = vmatprep.subr.bf16.mxu0 0
      %574 = vmatpush2.bf16.msra.mxu0 0
      %575 = vmatprep.subr.bf16.mxu0 0
      %576 = vmatpush2.bf16.msra.mxu0 0
      %577 = vmatprep.subr.bf16.mxu0 0
      %578 = vmatpush2.bf16.msra.mxu0 0
      %579 = vmatprep.subr.bf16.mxu0 0
      %580 = vmatpush2.bf16.msra.mxu0 0
      %581 = vmatprep.subr.bf16.mxu0 0
      %582 = vmatpush2.bf16.msra.mxu0 0
      %583 = vmatprep.subr.bf16.mxu0 0
      %584 = vmatpush2.bf16.msra.mxu0 0
      %585 = vmatprep.subr.bf16.mxu0 0
      %586 = vmatpush2.bf16.msra.mxu0 0
      %587 = vmatprep.subr.bf16.mxu0 0
      %588 = vmatpush2.bf16.msra.mxu0 0
      %589 = vmatprep.mubr.bf16.mxu0 0
      %590 = vmatmul.mubr.bf16.gmra.mxu0 %v508
      %v591 = vpop.f32.mrf.mxu0
      %v592 = vadd.f32 0.0, %v591
      %v593 = vpop.f32.mrf.mxu0
      %v594 = vpop.f32.mrf.mxu0
      %v595 = vpop.f32.mrf.mxu0
      %596 = vdwg.mxu0
      %v597 = vpack.c.bf16 %v592, %v592
      %v599 = vsel %vm470, %v597, 0
      %v602 = vsel %vm510, %v489, 0
      %604 = vmatprep.subr.bf16.mxu0 0
      %605 = vmatpush1.bf16.msra.mxu0 0
      %606 = vmatprep.subr.bf16.mxu0 0
      %607 = vmatpush1.bf16.msra.mxu0 0
      %608 = vmatprep.subr.bf16.mxu0 0
      %609 = vmatpush1.bf16.msra.mxu0 0
      %610 = vmatprep.subr.bf16.mxu0 0
      %611 = vmatpush1.bf16.msra.mxu0 0
      %612 = vmatprep.subr.bf16.mxu0 0
      %613 = vmatpush1.bf16.msra.mxu0 0
      %614 = vmatprep.subr.bf16.mxu0 0
      %615 = vmatpush1.bf16.msra.mxu0 0
      %616 = vmatprep.subr.bf16.mxu0 0
      %617 = vmatpush1.bf16.msra.mxu0 0
      %618 = vmatprep.subr.bf16.mxu0 0
      %619 = vmatpush1.bf16.msra.mxu0 %v602
      %620 = vmatprep.subr.bf16.mxu0 0
      %621 = vmatpush2.bf16.msra.mxu0 0
      %622 = vmatprep.subr.bf16.mxu0 0
      %623 = vmatpush2.bf16.msra.mxu0 0
      %624 = vmatprep.subr.bf16.mxu0 0
      %625 = vmatpush2.bf16.msra.mxu0 0
      %626 = vmatprep.subr.bf16.mxu0 0
      %627 = vmatpush2.bf16.msra.mxu0 0
      %628 = vmatprep.subr.bf16.mxu0 0
      %629 = vmatpush2.bf16.msra.mxu0 0
      %630 = vmatprep.subr.bf16.mxu0 0
      %631 = vmatpush2.bf16.msra.mxu0 0
      %632 = vmatprep.subr.bf16.mxu0 0
      %633 = vmatpush2.bf16.msra.mxu0 0
      %634 = vmatprep.subr.bf16.mxu0 0
      %635 = vmatpush2.bf16.msra.mxu0 0
      %636 = vmatprep.mubr.bf16.mxu0 0
      %637 = vmatmul.mubr.bf16.gmra.mxu0 %v599
      %v638 = vpop.f32.mrf.mxu0
      %v639 = vadd.f32 0.0, %v638
      %v640 = vpop.f32.mrf.mxu0
      %v641 = vpop.f32.mrf.mxu0
      %v642 = vpop.f32.mrf.mxu0
      %643 = vdwg.mxu0
      %644 = vmatprep.subr.bf16.mxu0 0
      %645 = vmatpush1.bf16.msra.mxu0 0
      %646 = vmatprep.subr.bf16.mxu0 0
      %647 = vmatpush1.bf16.msra.mxu0 0
      %648 = vmatprep.subr.bf16.mxu0 0
      %649 = vmatpush1.bf16.msra.mxu0 0
      %650 = vmatprep.subr.bf16.mxu0 0
      %651 = vmatpush1.bf16.msra.mxu0 0
      %652 = vmatprep.subr.bf16.mxu0 0
      %653 = vmatpush1.bf16.msra.mxu0 0
      %654 = vmatprep.subr.bf16.mxu0 0
      %655 = vmatpush1.bf16.msra.mxu0 0
      %656 = vmatprep.subr.bf16.mxu0 0
      %657 = vmatpush1.bf16.msra.mxu0 0
      %658 = vmatprep.subr.bf16.mxu0 0
      %659 = vmatpush1.bf16.msra.mxu0 %v602
      %660 = vmatprep.subr.bf16.mxu0 0
      %661 = vmatpush2.bf16.msra.mxu0 0
      %662 = vmatprep.subr.bf16.mxu0 0
      %663 = vmatpush2.bf16.msra.mxu0 0
      %664 = vmatprep.subr.bf16.mxu0 0
      %665 = vmatpush2.bf16.msra.mxu0 0
      %666 = vmatprep.subr.bf16.mxu0 0
      %667 = vmatpush2.bf16.msra.mxu0 0
      %668 = vmatprep.subr.bf16.mxu0 0
      %669 = vmatpush2.bf16.msra.mxu0 0
      %670 = vmatprep.subr.bf16.mxu0 0
      %671 = vmatpush2.bf16.msra.mxu0 0
      %672 = vmatprep.subr.bf16.mxu0 0
      %673 = vmatpush2.bf16.msra.mxu0 0
      %674 = vmatprep.subr.bf16.mxu0 0
      %675 = vmatpush2.bf16.msra.mxu0 0
      %676 = vmatprep.mubr.bf16.mxu0 0
      %677 = vmatmul.mubr.bf16.gmra.mxu0 %v508
      %v678 = vpop.f32.mrf.mxu0
      %v679 = vadd.f32 0.0, %v678
      %v680 = vpop.f32.mrf.mxu0
      %v681 = vpop.f32.mrf.mxu0
      %v682 = vpop.f32.mrf.mxu0
      %683 = vdwg.mxu0
      %v684 = vlaneseq
      %v685 = vshrl.u32 %v684, 7
      %v686 = vlaneseq
      %v687 = vand.u32 %v686, 127
      %vm688 = vcmp.eq.s32.totalorder %v685, %v687
      %v689 = vsel %vm688, 1, 0
      %v690 = vcvt.s32.f32 %v689
      %v691 = vmul.f32 %v639, %v690
      %v692 = vsel %vm470, %v691, 0.0
      %693 = vadd.xlane.f32.xlu0 %v692
      %v694 = vpop.xlane.xlu0 %693
      %v695 = vrot.slane %v694, 4
      %v696 = vadd.f32 %v694, %v695
      %v697 = vrot.slane %v696, 2
      %v698 = vadd.f32 %v696, %v697
      %v699 = vrot.slane %v698, 1
      %v700 = vadd.f32 %v698, %v699
      %s701 = vtos %v700
      %v702 = vstv %s701
      %v703 = vsel %vm470, %v400, 0.0
      %704 = vadd.xlane.f32.xlu0 %v703
      %v705 = vpop.xlane.xlu0 %704
      %v706 = vmul.f32 %v488, %v488
      %v707 = vsel %vm470, %v706, 0.0
      %708 = vadd.xlane.f32.xlu0 %v707
      %v709 = vpop.xlane.xlu0 %708
      %v710 = vmul.f32 %v705, %v709
      %vm711 = vcmask 7168
      %v712 = vsel %vm711, %v710, 0.0
      %713 = vadd.xlane.f32.xlu0 %v712
      %v714 = vpop.xlane.xlu0 %713
      %v715 = vrot.slane %v714, 4
      %v716 = vadd.f32 %v714, %v715
      %v717 = vrot.slane %v716, 2
      %v718 = vadd.f32 %v716, %v717
      %v719 = vrot.slane %v718, 1
      %v720 = vadd.f32 %v718, %v719
      %s721 = vtos %v720
      %v722 = vstv %s721
      %v723 = vrcp.pop %v722
      %v724 = vmul.f32 %v702, %v723
      %v725 = vsub.f32 0.0, %v724
      %v726 = vmul.f32 %v679, %v679
      %v727 = vsel %vm470, %v726, 0.0
      %728 = vadd.xlane.f32.xlu0 %v727
      %v729 = vpop.xlane.xlu0 %728
      %v730 = vrot.slane %v729, 4
      %v731 = vadd.f32 %v729, %v730
      %v732 = vrot.slane %v731, 2
      %v733 = vadd.f32 %v731, %v732
      %v734 = vrot.slane %v733, 1
      %v735 = vadd.f32 %v733, %v734
      %s736 = vtos %v735
      %v737 = vstv %s736
      %v738 = vrsqrt.pop %v737
      %v739 = vmul.f32 %v737, %v738
      %vm740 = vcmp.eq.f32.partialorder %v737, inf
      %v741 = vsel %vm740, %v737, %v739
      %vm742 = vcmp.eq.f32.partialorder %v737, 0.0
      %v743 = vand.u32 %v737, 2147483648
      %v744 = vsel %vm742, %v743, %v741
      %v745 = vrcp.pop %v744
      %v746 = vmul.f32 %v679, %v745
      %v747 = vmul.f32 %v690, 0.35355338
      %v748 = vsub.f32 %v746, %v747
      %v749 = vmul.f32 %v748, %v748
      %v750 = vsel %vm470, %v749, 0.0
      %751 = vadd.xlane.f32.xlu0 %v750
      %v752 = vpop.xlane.xlu0 %751
      %v753 = vrot.slane %v752, 4
      %v754 = vadd.f32 %v752, %v753
      %v755 = vrot.slane %v754, 2
      %v756 = vadd.f32 %v754, %v755
      %v757 = vrot.slane %v756, 1
      %v758 = vadd.f32 %v756, %v757
      %s759 = vtos %v758
      %v760 = vstv %s759
      %v761 = vrsqrt.pop %v760
      %v762 = vmul.f32 %v760, %v761
      %vm763 = vcmp.eq.f32.partialorder %v760, inf
      %v764 = vsel %vm763, %v760, %v762
      %vm765 = vcmp.eq.f32.partialorder %v760, 0.0
      %v766 = vand.u32 %v760, 2147483648
      %v767 = vsel %vm765, %v766, %v764
      %v768 = vsub.f32 1.0, %v690
      %v769 = vmul.f32 %v639, %v768
      %v770 = vsel %vm470, %v769, 0.0
      %771 = vadd.xlane.f32.xlu0 %v770
      %v772 = vpop.xlane.xlu0 %771
      %v773 = vrsqrt.pop %v772
      %v774 = vmul.f32 %v772, %v773
      %vm775 = vcmp.eq.f32.partialorder %v772, inf
      %v776 = vsel %vm775, %v772, %v774
      %vm777 = vcmp.eq.f32.partialorder %v772, 0.0
      %v778 = vand.u32 %v772, 2147483648
      %v779 = vsel %vm777, %v778, %v776
      %v780 = vadd.f32 %v779, 1e-15
      %v781 = vmul.f32 %v690, %v780
      %v782 = vsel %vm470, %v781, 0.0
      %v783 = vrot.slane %v782, 4
      %v784 = vadd.f32 %v782, %v783
      %v785 = vrot.slane %v784, 2
      %v786 = vadd.f32 %v784, %v785
      %v787 = vrot.slane %v786, 1
      %v788 = vadd.f32 %v786, %v787
      %v789 = vrcp.pop %v780
      %v790 = vmul.f32 %v769, %v789
      %v791 = vrcp.pop %v788
      %v792 = vmul.f32 %v790, %v791
      %793 = vst.msk [vmem:[%s383] sm:$0xff] %vm426, %v549
      %794 = vst.msk [vmem:[%s387] sm:$0xff] %vm470, %v792
      %v795 = vsel %vm426, %v549, -inf
      %v796 = vrot.slane %v795, 4
      %v797 = vmax.f32 %v795, %v796
      %v798 = vrot.slane %v797, 2
      %v799 = vmax.f32 %v797, %v798
      %v800 = vrot.slane %v799, 1
      %v801 = vmax.f32 %v799, %v800
      %vm802 = vcmask 253952
      %803 = vst.msk [vmem:[%s390] sm:$0x1] %vm802, %v801
      %vm804 = vcmask 0
      %805 = vst.msk [vmem:[%s393] sm:$0x1] %vm804, %v725
      %806 = vst.msk [vmem:[%s396] sm:$0x1] %vm804, %v767
      %p807 = scmp.lt.s32.totalorder %s21, 1
      %s808 = scalar_select %p807, %s21, 1
      %s809 = smul.addr %s808, 8
      %s810 = scalar_lea.vmem %s5, %s809
      %p811 = scmp.lt.s32.totalorder %s21, 1
      %s812 = scalar_select %p811, %s21, 1
      %s813 = smul.addr %s812, 8
      %s814 = scalar_lea.vmem %s6, %s813
      %p815 = scmp.lt.s32.totalorder %s21, 1
      %s816 = scalar_select %p815, %s21, 1
      %s817 = scalar_lea.vmem %s7, %s816
      %p818 = scmp.lt.s32.totalorder %s21, 1
      %s819 = scalar_select %p818, %s21, 1
      %s820 = scalar_lea.vmem %s8, %s819
      %p821 = scmp.lt.s32.totalorder %s21, 1
      %s822 = scalar_select %p821, %s21, 1
      %s823 = scalar_lea.vmem %s9, %s822
      // Predicated region
      $region41: #{hatnetc_forward.5} parent=39 // pred_check
        %p824 = pneg %p159
      $region42: #{hatnetc_forward.5} parent=39 // pred_check_branch
        %826 = sbr.rel (%p824) target = $region44
      $region43: #{hatnetc_forward.5} parent=39 // pred_region
        _
      $region44: #{hatnetc_forward.5} parent=39 // pred_fallthru
        _
      // Predicated region
      $region45: #{hatnetc_forward.5} parent=39 // pred_check
        %p827 = pneg %p185
      $region46: #{hatnetc_forward.5} parent=39 // pred_check_branch
        %829 = sbr.rel (%p827) target = $region48
      $region47: #{hatnetc_forward.5} parent=39 // pred_region
        _
      $region48: #{hatnetc_forward.5} parent=39 // pred_fallthru
        _
      // Predicated region
      $region49: #{hatnetc_forward.5} parent=39 // pred_check
        %p830 = pneg %p211
      $region50: #{hatnetc_forward.5} parent=39 // pred_check_branch
        %832 = sbr.rel (%p830) target = $region52
      $region51: #{hatnetc_forward.5} parent=39 // pred_region
        _
      $region52: #{hatnetc_forward.5} parent=39 // pred_fallthru
        _
      // Predicated region
      $region53: #{hatnetc_forward.5} parent=39 // pred_check
        %p833 = pneg %p237
      $region54: #{hatnetc_forward.5} parent=39 // pred_check_branch
        %835 = sbr.rel (%p833) target = $region56
      $region55: #{hatnetc_forward.5} parent=39 // pred_region
        _
      $region56: #{hatnetc_forward.5} parent=39 // pred_fallthru
        _
      // Predicated region
      $region57: #{hatnetc_forward.5} parent=39 // pred_check
        %p836 = pneg %p263
      $region58: #{hatnetc_forward.5} parent=39 // pred_check_branch
        %838 = sbr.rel (%p836) target = $region60
      $region59: #{hatnetc_forward.5} parent=39 // pred_region
        _
      $region60: #{hatnetc_forward.5} parent=39 // pred_fallthru
        _
    $region40: #{hatnetc_forward.5} parent=5 // pred_fallthru
      _
    %p839 = scmp.le.s32.totalorder 2, %s16
    // Predicated region
    $region61: #{hatnetc_forward.5} parent=5 // pred_check
      %p840 = pneg %p839
    $region62: #{hatnetc_forward.5} parent=5 // pred_check_branch
      %842 = sbr.rel (%p840) target = $region64
    $region63: #{hatnetc_forward.5} parent=5 // pred_region
      %s843 = ssub.s32 %s16, 2
      // Predicated region
      $region65: #{hatnetc_forward.5} parent=63 // pred_check
        %p844 = pneg %p165
      $region66: #{hatnetc_forward.5} parent=63 // pred_check_branch
        %846 = sbr.rel (%p844) target = $region68
      $region67: #{hatnetc_forward.5} parent=63 // pred_region
        %p847 = scmp.lt.s32.totalorder %s22, 1
        %s848 = scalar_select %p847, %s22, 1
        %s849 = smul.addr %s848, 8
        %s850 = scalar_lea.vmem %s5, %s849
      $region68: #{hatnetc_forward.5} parent=63 // pred_fallthru
        _
      // Predicated region
      $region69: #{hatnetc_forward.5} parent=63 // pred_check
        %p851 = pneg %p191
      $region70: #{hatnetc_forward.5} parent=63 // pred_check_branch
        %853 = sbr.rel (%p851) target = $region72
      $region71: #{hatnetc_forward.5} parent=63 // pred_region
        %p854 = scmp.lt.s32.totalorder %s22, 1
        %s855 = scalar_select %p854, %s22, 1
        %s856 = smul.addr %s855, 8
        %s857 = scalar_lea.vmem %s6, %s856
      $region72: #{hatnetc_forward.5} parent=63 // pred_fallthru
        _
      // Predicated region
      $region73: #{hatnetc_forward.5} parent=63 // pred_check
        %p858 = pneg %p217
      $region74: #{hatnetc_forward.5} parent=63 // pred_check_branch
        %860 = sbr.rel (%p858) target = $region76
      $region75: #{hatnetc_forward.5} parent=63 // pred_region
        %p861 = scmp.lt.s32.totalorder %s22, 1
        %s862 = scalar_select %p861, %s22, 1
        %s863 = scalar_lea.vmem %s7, %s862
      $region76: #{hatnetc_forward.5} parent=63 // pred_fallthru
        _
      // Predicated region
      $region77: #{hatnetc_forward.5} parent=63 // pred_check
        %p864 = pneg %p243
      $region78: #{hatnetc_forward.5} parent=63 // pred_check_branch
        %866 = sbr.rel (%p864) target = $region80
      $region79: #{hatnetc_forward.5} parent=63 // pred_region
        %p867 = scmp.lt.s32.totalorder %s22, 1
        %s868 = scalar_select %p867, %s22, 1
        %s869 = scalar_lea.vmem %s8, %s868
      $region80: #{hatnetc_forward.5} parent=63 // pred_fallthru
        _
      // Predicated region
      $region81: #{hatnetc_forward.5} parent=63 // pred_check
        %p870 = pneg %p269
      $region82: #{hatnetc_forward.5} parent=63 // pred_check_branch
        %872 = sbr.rel (%p870) target = $region84
      $region83: #{hatnetc_forward.5} parent=63 // pred_region
        %p873 = scmp.lt.s32.totalorder %s22, 1
        %s874 = scalar_select %p873, %s22, 1
        %s875 = scalar_lea.vmem %s9, %s874
      $region84: #{hatnetc_forward.5} parent=63 // pred_fallthru
        _
    $region64: #{hatnetc_forward.5} parent=5 // pred_fallthru
      _
  $region6: #{hatnetc_forward.5} parent=0 // loop_footer
    %s20 = sadd.s32 1, %s16
  $region7: #{hatnetc_forward.5} parent=0 // loop_footer_branch
    %15 = sbr.rel target = $region3
  $region8: #{hatnetc_forward.5} parent=0 // loop_exit
    _

// kernel: hatnetc_forward.6
$region0: #{hatnetc_forward.6}
  #allocation0 [shape = 'u32[]', space=smem, size = 0x4, offset = 0x4, fixed_abs, tag = 'smem constant byte address 0x4 - core index']
  #allocation1 [shape = 'u32[144,128]{1,0:T(1,128)}', space=vmem, size = 0x12000, scoped, tag = 'internal scratch']
  %s0 = inlined_call_operand.vmem [shape: f32[2,8,32], index: 0, kind: input, shape index: {}]
  %s1 = inlined_call_operand.vmem [shape: f32[2,8,8], index: 1, kind: input, shape index: {}]
  %s2 = inlined_call_operand.vmem [shape: bf16[32,32], index: 2, kind: input, shape index: {}]
  %s3 = inlined_call_operand.vmem [shape: f32[1,32], index: 3, kind: input, shape index: {}]
  %s4 = inlined_call_operand.vmem [shape: bf16[32,32], index: 4, kind: input, shape index: {}]
  %s5 = inlined_call_operand.vmem [shape: f32[1,32], index: 5, kind: input, shape index: {}]
  %s6 = inlined_call_operand.vmem [shape: bf16[32,4], index: 6, kind: input, shape index: {}]
  %s7 = inlined_call_operand.vmem [shape: f32[1,4], index: 7, kind: input, shape index: {}]
  %s8 = inlined_call_operand.vmem [shape: bf16[2,32,16], index: 8, kind: input, shape index: {}]
  %s9 = inlined_call_operand.vmem [shape: bf16[2,32,16], index: 9, kind: input, shape index: {}]
  %s10 = inlined_call_operand.vmem [shape: bf16[2,32,16], index: 10, kind: input, shape index: {}]
  %s11 = inlined_call_operand.vmem [shape: f32[2,1,16], index: 11, kind: input, shape index: {}]
  %s12 = inlined_call_operand.vmem [shape: f32[2,1,16], index: 12, kind: input, shape index: {}]
  %s13 = inlined_call_operand.vmem [shape: f32[2,1,16], index: 13, kind: input, shape index: {}]
  %s14 = inlined_call_operand.vmem [shape: bf16[2,16,32], index: 14, kind: input, shape index: {}]
  %s15 = inlined_call_operand.vmem [shape: f32[1,32], index: 15, kind: input, shape index: {}]
  %s16 = inlined_call_operand.vmem [shape: bf16[32,32], index: 16, kind: input, shape index: {}]
  %s17 = inlined_call_operand.vmem [shape: f32[1,32], index: 17, kind: input, shape index: {}]
  %s18 = inlined_call_operand.vmem [shape: bf16[32,32], index: 18, kind: input, shape index: {}]
  %s19 = inlined_call_operand.vmem [shape: f32[1,32], index: 19, kind: input, shape index: {}]
  %s20 = inlined_call_operand.vmem [shape: f32[1,32], index: 20, kind: input, shape index: {}]
  %s21 = inlined_call_operand.vmem [shape: f32[1,32], index: 21, kind: input, shape index: {}]
  %s22 = inlined_call_operand.vmem [shape: f32[1,32], index: 22, kind: input, shape index: {}]
  %s23 = inlined_call_operand.vmem [shape: f32[1,32], index: 23, kind: input, shape index: {}]
  %s24 = inlined_call_operand.vmem [shape: f32[2,4,32], index: 24, kind: output, shape index: {0}]
  %s25 = inlined_call_operand.vmem [shape: f32[2,4,4], index: 25, kind: output, shape index: {1}]
  %s26 = inlined_call_operand.vmem [shape: f32[2,1,32], index: 26, kind: output, shape index: {2}]
  %s27 = inlined_call_operand.hbm [shape: f32[2,1,1], index: 27, kind: output, shape index: {3}]
  %s28 = inlined_call_operand.hbm [shape: f32[2,1,1], index: 28, kind: output, shape index: {4}]
  %29 = xla_tuple %s24, %s25, %s26, %s27, %s28
  %s30 = sld [smem:[#allocation0]]
  $region168: #{hatnetc_forward.6} parent=0
    _
  %s32 = ssub.s32 1, %s30
  %s33 = scalar_select 0, %s32, %s30
  $region1: #{hatnetc_forward.6} parent=0
    #allocation2 [shape = 'u8[1024]{0}', space=vmem, size = 0x400, scoped, tag = 'output window, operand 3']
    #allocation3 [shape = 's32[2]{0}', space=sflag, size = 0x8, scoped, tag = 'scoped memory for hatnetc_forward.6']
    #allocation4 [shape = 'u8[1024]{0}', space=vmem, size = 0x400, scoped, tag = 'output window, operand 4']
    #allocation5 [shape = 's32[2]{0}', space=sflag, size = 0x8, scoped, tag = 'scoped memory for hatnetc_forward.6']
    %34 = vsyncpa [#allocation3], 0
    %s35 = scalar_lea.sflag [#allocation3], 1
    %36 = vsyncpa %s35, 0
    %37 = vsyncpa [#allocation5], 0
    %s38 = scalar_lea.sflag [#allocation5], 1
    %39 = vsyncpa %s38, 0
    loop: start=0, step=1, limit=4
    $region2: #{hatnetc_forward.6} parent=1 // loop_pre_header
      _
    $region3: #{hatnetc_forward.6} parent=1 // loop_header
      %s41 = sphi 0, %s45
      %p42 = scmp.ge.s32.totalorder %s41, 4
      %s51 = sphi 0, %s53
      %s54 = sphi 0, %s51
      %s55 = sphi 0, %s54
      %s71 = sphi 0, %s55
      %s77 = sphi 0, %s79
      %s80 = sphi 0, %s77
      %s81 = sphi 0, %s80
      %s97 = sphi 0, %s81
      %s101 = sphi 0, %s101
      %s103 = sphi 0, %s101
      %s104 = sphi 0, %s103
      %s118 = sphi 0, %s104
      %s122 = sphi 0, %s122
      %s124 = sphi 0, %s122
      %s125 = sphi 0, %s124
      %s139 = sphi 0, %s125
      %s143 = sphi 0, %s143
      %s145 = sphi 0, %s143
      %s146 = sphi 0, %s145
      %s160 = sphi 0, %s146
      %s164 = sphi 0, %s164
      %s166 = sphi 0, %s164
      %s167 = sphi 0, %s166
      %s181 = sphi 0, %s167
      %s185 = sphi 0, %s185
      %s187 = sphi 0, %s185
      %s188 = sphi 0, %s187
      %s202 = sphi 0, %s188
      %s206 = sphi 0, %s206
      %s208 = sphi 0, %s206
      %s209 = sphi 0, %s208
      %s223 = sphi 0, %s209
      %s227 = sphi 0, %s227
      %s229 = sphi 0, %s227
      %s230 = sphi 0, %s229
      %s244 = sphi 0, %s230
      %s248 = sphi 0, %s248
      %s250 = sphi 0, %s248
      %s251 = sphi 0, %s250
      %s265 = sphi 0, %s251
      %s269 = sphi 0, %s269
      %s271 = sphi 0, %s269
      %s272 = sphi 0, %s271
      %s286 = sphi 0, %s272
      %s290 = sphi 0, %s290
      %s292 = sphi 0, %s290
      %s293 = sphi 0, %s292
      %s307 = sphi 0, %s293
      %s311 = sphi 0, %s311
      %s313 = sphi 0, %s311
      %s314 = sphi 0, %s313
      %s328 = sphi 0, %s314
      %s332 = sphi 0, %s332
      %s334 = sphi 0, %s332
      %s335 = sphi 0, %s334
      %s349 = sphi 0, %s335
      %s353 = sphi 0, %s353
      %s355 = sphi 0, %s353
      %s356 = sphi 0, %s355
      %s370 = sphi 0, %s356
      %s374 = sphi 0, %s374
      %s376 = sphi 0, %s374
      %s377 = sphi 0, %s376
      %s391 = sphi 0, %s377
      %s395 = sphi 0, %s395
      %s397 = sphi 0, %s395
      %s398 = sphi 0, %s397
      %s412 = sphi 0, %s398
      %s416 = sphi 0, %s416
      %s418 = sphi 0, %s416
      %s419 = sphi 0, %s418
      %s433 = sphi 0, %s419
      %s437 = sphi 0, %s437
      %s439 = sphi 0, %s437
      %s440 = sphi 0, %s439
      %s454 = sphi 0, %s440
      %s458 = sphi 0, %s458
      %s460 = sphi 0, %s458
      %s461 = sphi 0, %s460
      %s475 = sphi 0, %s461
      %s479 = sphi 0, %s479
      %s481 = sphi 0, %s479
      %s482 = sphi 0, %s481
      %s496 = sphi 0, %s482
      %s500 = sphi 0, %s500
      %s502 = sphi 0, %s500
      %s503 = sphi 0, %s502
      %s517 = sphi 0, %s503
      %s521 = sphi 0, %s521
      %s523 = sphi 0, %s521
      %s524 = sphi 0, %s523
      %s538 = sphi 0, %s524
      %s542 = sphi 0, %s542
      %s544 = sphi 0, %s542
      %s545 = sphi 0, %s544
      %s559 = sphi 0, %s545
      %s565 = sphi 0, %s567
      %s568 = sphi 0, %s565
      %s569 = sphi 0, %s568
      %s585 = sphi 0, %s569
      %s591 = sphi 0, %s593
      %s594 = sphi 0, %s591
      %s595 = sphi 0, %s594
      %s611 = sphi 0, %s595
      %s617 = sphi 0, %s619
      %s620 = sphi 0, %s617
      %s621 = sphi 0, %s620
      %s637 = sphi 0, %s621
      %s643 = sphi 0, %s645
      %s646 = sphi 0, %s643
      %s647 = sphi 0, %s646
      %s663 = sphi 0, %s647
      %s669 = sphi 0, %s671
      %s672 = sphi 0, %s669
      %s673 = sphi 0, %s672
      %s689 = sphi 0, %s673
    $region4: #{hatnetc_forward.6} parent=1 // loop_header_branch
      %44 = sbr.rel (%p42) target = $region8
    $region5: #{hatnetc_forward.6} parent=1 // loop_body
      %s46 = ssub.s32 %s41, 1
      %s47 = ssub.s32 %s41, 2
      %s48 = sadd.s32 %s41, 1
      %s49 = ssub.s32 %s41, %s48
      %p50 = scmp.eq.s32.totalorder %s49, 0
      %s52 = sadd.s32 %s51, 1
      %s53 = scalar_select %p50, %s51, %s52
      %p56 = pneg %p50
      %p57 = scmp.eq.s32.totalorder %s41, 1
      %p58 = por %p56, %p57
      %p59 = scmp.ne.s32.totalorder %s51, %s54
      %p60 = scmp.eq.s32.totalorder %s41, 0
      %p61 = por %p59, %p60
      %p62 = scmp.ne.s32.totalorder %s51, %s54
      %p63 = scmp.eq.s32.totalorder %s46, 1
      %p64 = por %p62, %p63
      %p65 = scmp.ne.s32.totalorder %s54, %s55
      %p66 = scmp.eq.s32.totalorder %s46, 0
      %p67 = por %p65, %p66
      %p68 = scmp.ne.s32.totalorder %s54, %s55
      %p69 = scmp.eq.s32.totalorder %s47, 1
      %p70 = por %p68, %p69
      %p72 = scmp.ne.s32.totalorder %s55, %s71
      %p73 = scmp.eq.s32.totalorder %s47, 0
      %p74 = por %p72, %p73
      %s75 = ssub.s32 %s41, %s48
      %p76 = scmp.eq.s32.totalorder %s75, 0
      %s78 = sadd.s32 %s77, 1
      %s79 = scalar_select %p76, %s77, %s78
      %p82 = pneg %p76
      %p83 = scmp.eq.s32.totalorder %s41, 1
      %p84 = por %p82, %p83
      %p85 = scmp.ne.s32.totalorder %s77, %s80
      %p86 = scmp.eq.s32.totalorder %s41, 0
      %p87 = por %p85, %p86
      %p88 = scmp.ne.s32.totalorder %s77, %s80
      %p89 = scmp.eq.s32.totalorder %s46, 1
      %p90 = por %p88, %p89
      %p91 = scmp.ne.s32.totalorder %s80, %s81
      %p92 = scmp.eq.s32.totalorder %s46, 0
      %p93 = por %p91, %p92
      %p94 = scmp.ne.s32.totalorder %s80, %s81
      %p95 = scmp.eq.s32.totalorder %s47, 1
      %p96 = por %p94, %p95
      %p98 = scmp.ne.s32.totalorder %s81, %s97
      %p99 = scmp.eq.s32.totalorder %s47, 0
      %p100 = por %p98, %p99
      %s102 = sadd.s32 %s101, 1
      %p105 = scmp.eq.s32.totalorder %s41, 1
      %p106 = scmp.ne.s32.totalorder %s101, %s103
      %p107 = scmp.eq.s32.totalorder %s41, 0
      %p108 = por %p106, %p107
      %p109 = scmp.ne.s32.totalorder %s101, %s103
      %p110 = scmp.eq.s32.totalorder %s46, 1
      %p111 = por %p109, %p110
      %p112 = scmp.ne.s32.totalorder %s103, %s104
      %p113 = scmp.eq.s32.totalorder %s46, 0
      %p114 = por %p112, %p113
      %p115 = scmp.ne.s32.totalorder %s103, %s104
      %p116 = scmp.eq.s32.totalorder %s47, 1
      %p117 = por %p115, %p116
      %p119 = scmp.ne.s32.totalorder %s104, %s118
      %p120 = scmp.eq.s32.totalorder %s47, 0
      %p121 = por %p119, %p120
      %s123 = sadd.s32 %s122, 1
      %p126 = scmp.eq.s32.totalorder %s41, 1
      %p127 = scmp.ne.s32.totalorder %s122, %s124
      %p128 = scmp.eq.s32.totalorder %s41, 0
      %p129 = por %p127, %p128
      %p130 = scmp.ne.s32.totalorder %s122, %s124
      %p131 = scmp.eq.s32.totalorder %s46, 1
      %p132 = por %p130, %p131
      %p133 = scmp.ne.s32.totalorder %s124, %s125
      %p134 = scmp.eq.s32.totalorder %s46, 0
      %p135 = por %p133, %p134
      %p136 = scmp.ne.s32.totalorder %s124, %s125
      %p137 = scmp.eq.s32.totalorder %s47, 1
      %p138 = por %p136, %p137
      %p140 = scmp.ne.s32.totalorder %s125, %s139
      %p141 = scmp.eq.s32.totalorder %s47, 0
      %p142 = por %p140, %p141
      %s144 = sadd.s32 %s143, 1
      %p147 = scmp.eq.s32.totalorder %s41, 1
      %p148 = scmp.ne.s32.totalorder %s143, %s145
      %p149 = scmp.eq.s32.totalorder %s41, 0
      %p150 = por %p148, %p149
      %p151 = scmp.ne.s32.totalorder %s143, %s145
      %p152 = scmp.eq.s32.totalorder %s46, 1
      %p153 = por %p151, %p152
      %p154 = scmp.ne.s32.totalorder %s145, %s146
      %p155 = scmp.eq.s32.totalorder %s46, 0
      %p156 = por %p154, %p155
      %p157 = scmp.ne.s32.totalorder %s145, %s146
      %p158 = scmp.eq.s32.totalorder %s47, 1
      %p159 = por %p157, %p158
      %p161 = scmp.ne.s32.totalorder %s146, %s160
      %p162 = scmp.eq.s32.totalorder %s47, 0
      %p163 = por %p161, %p162
      %s165 = sadd.s32 %s164, 1
      %p168 = scmp.eq.s32.totalorder %s41, 1
      %p169 = scmp.ne.s32.totalorder %s164, %s166
      %p170 = scmp.eq.s32.totalorder %s41, 0
      %p171 = por %p169, %p170
      %p172 = scmp.ne.s32.totalorder %s164, %s166
      %p173 = scmp.eq.s32.totalorder %s46, 1
      %p174 = por %p172, %p173
      %p175 = scmp.ne.s32.totalorder %s166, %s167
      %p176 = scmp.eq.s32.totalorder %s46, 0
      %p177 = por %p175, %p176
      %p178 = scmp.ne.s32.totalorder %s166, %s167
      %p179 = scmp.eq.s32.totalorder %s47, 1
      %p180 = por %p178, %p179
      %p182 = scmp.ne.s32.totalorder %s167, %s181
      %p183 = scmp.eq.s32.totalorder %s47, 0
      %p184 = por %p182, %p183
      %s186 = sadd.s32 %s185, 1
      %p189 = scmp.eq.s32.totalorder %s41, 1
      %p190 = scmp.ne.s32.totalorder %s185, %s187
      %p191 = scmp.eq.s32.totalorder %s41, 0
      %p192 = por %p190, %p191
      %p193 = scmp.ne.s32.totalorder %s185, %s187
      %p194 = scmp.eq.s32.totalorder %s46, 1
      %p195 = por %p193, %p194
      %p196 = scmp.ne.s32.totalorder %s187, %s188
      %p197 = scmp.eq.s32.totalorder %s46, 0
      %p198 = por %p196, %p197
      %p199 = scmp.ne.s32.totalorder %s187, %s188
      %p200 = scmp.eq.s32.totalorder %s47, 1
      %p201 = por %p199, %p200
      %p203 = scmp.ne.s32.totalorder %s188, %s202
      %p204 = scmp.eq.s32.totalorder %s47, 0
      %p205 = por %p203, %p204
      %s207 = sadd.s32 %s206, 1
      %p210 = scmp.eq.s32.totalorder %s41, 1
      %p211 = scmp.ne.s32.totalorder %s206, %s208
      %p212 = scmp.eq.s32.totalorder %s41, 0
      %p213 = por %p211, %p212
      %p214 = scmp.ne.s32.totalorder %s206, %s208
      %p215 = scmp.eq.s32.totalorder %s46, 1
      %p216 = por %p214, %p215
      %p217 = scmp.ne.s32.totalorder %s208, %s209
      %p218 = scmp.eq.s32.totalorder %s46, 0
      %p219 = por %p217, %p218
      %p220 = scmp.ne.s32.totalorder %s208, %s209
      %p221 = scmp.eq.s32.totalorder %s47, 1
      %p222 = por %p220, %p221
      %p224 = scmp.ne.s32.totalorder %s209, %s223
      %p225 = scmp.eq.s32.totalorder %s47, 0
      %p226 = por %p224, %p225
      %s228 = sadd.s32 %s227, 1
      %p231 = scmp.eq.s32.totalorder %s41, 1
      %p232 = scmp.ne.s32.totalorder %s227, %s229
      %p233 = scmp.eq.s32.totalorder %s41, 0
      %p234 = por %p232, %p233
      %p235 = scmp.ne.s32.totalorder %s227, %s229
      %p236 = scmp.eq.s32.totalorder %s46, 1
      %p237 = por %p235, %p236
      %p238 = scmp.ne.s32.totalorder %s229, %s230
      %p239 = scmp.eq.s32.totalorder %s46, 0
      %p240 = por %p238, %p239
      %p241 = scmp.ne.s32.totalorder %s229, %s230
      %p242 = scmp.eq.s32.totalorder %s47, 1
      %p243 = por %p241, %p242
      %p245 = scmp.ne.s32.totalorder %s230, %s244
      %p246 = scmp.eq.s32.totalorder %s47, 0
      %p247 = por %p245, %p246
      %s249 = sadd.s32 %s248, 1
      %p252 = scmp.eq.s32.totalorder %s41, 1
      %p253 = scmp.ne.s32.totalorder %s248, %s250
      %p254 = scmp.eq.s32.totalorder %s41, 0
      %p255 = por %p253, %p254
      %p256 = scmp.ne.s32.totalorder %s248, %s250
      %p257 = scmp.eq.s32.totalorder %s46, 1
      %p258 = por %p256, %p257
      %p259 = scmp.ne.s32.totalorder %s250, %s251
      %p260 = scmp.eq.s32.totalorder %s46, 0
      %p261 = por %p259, %p260
      %p262 = scmp.ne.s32.totalorder %s250, %s251
      %p263 = scmp.eq.s32.totalorder %s47, 1
      %p264 = por %p262, %p263
      %p266 = scmp.ne.s32.totalorder %s251, %s265
      %p267 = scmp.eq.s32.totalorder %s47, 0
      %p268 = por %p266, %p267
      %s270 = sadd.s32 %s269, 1
      %p273 = scmp.eq.s32.totalorder %s41, 1
      %p274 = scmp.ne.s32.totalorder %s269, %s271
      %p275 = scmp.eq.s32.totalorder %s41, 0
      %p276 = por %p274, %p275
      %p277 = scmp.ne.s32.totalorder %s269, %s271
      %p278 = scmp.eq.s32.totalorder %s46, 1
      %p279 = por %p277, %p278
      %p280 = scmp.ne.s32.totalorder %s271, %s272
      %p281 = scmp.eq.s32.totalorder %s46, 0
      %p282 = por %p280, %p281
      %p283 = scmp.ne.s32.totalorder %s271, %s272
      %p284 = scmp.eq.s32.totalorder %s47, 1
      %p285 = por %p283, %p284
      %p287 = scmp.ne.s32.totalorder %s272, %s286
      %p288 = scmp.eq.s32.totalorder %s47, 0
      %p289 = por %p287, %p288
      %s291 = sadd.s32 %s290, 1
      %p294 = scmp.eq.s32.totalorder %s41, 1
      %p295 = scmp.ne.s32.totalorder %s290, %s292
      %p296 = scmp.eq.s32.totalorder %s41, 0
      %p297 = por %p295, %p296
      %p298 = scmp.ne.s32.totalorder %s290, %s292
      %p299 = scmp.eq.s32.totalorder %s46, 1
      %p300 = por %p298, %p299
      %p301 = scmp.ne.s32.totalorder %s292, %s293
      %p302 = scmp.eq.s32.totalorder %s46, 0
      %p303 = por %p301, %p302
      %p304 = scmp.ne.s32.totalorder %s292, %s293
      %p305 = scmp.eq.s32.totalorder %s47, 1
      %p306 = por %p304, %p305
      %p308 = scmp.ne.s32.totalorder %s293, %s307
      %p309 = scmp.eq.s32.totalorder %s47, 0
      %p310 = por %p308, %p309
      %s312 = sadd.s32 %s311, 1
      %p315 = scmp.eq.s32.totalorder %s41, 1
      %p316 = scmp.ne.s32.totalorder %s311, %s313
      %p317 = scmp.eq.s32.totalorder %s41, 0
      %p318 = por %p316, %p317
      %p319 = scmp.ne.s32.totalorder %s311, %s313
      %p320 = scmp.eq.s32.totalorder %s46, 1
      %p321 = por %p319, %p320
      %p322 = scmp.ne.s32.totalorder %s313, %s314
      %p323 = scmp.eq.s32.totalorder %s46, 0
      %p324 = por %p322, %p323
      %p325 = scmp.ne.s32.totalorder %s313, %s314
      %p326 = scmp.eq.s32.totalorder %s47, 1
      %p327 = por %p325, %p326
      %p329 = scmp.ne.s32.totalorder %s314, %s328
      %p330 = scmp.eq.s32.totalorder %s47, 0
      %p331 = por %p329, %p330
      %s333 = sadd.s32 %s332, 1
      %p336 = scmp.eq.s32.totalorder %s41, 1
      %p337 = scmp.ne.s32.totalorder %s332, %s334
      %p338 = scmp.eq.s32.totalorder %s41, 0
      %p339 = por %p337, %p338
      %p340 = scmp.ne.s32.totalorder %s332, %s334
      %p341 = scmp.eq.s32.totalorder %s46, 1
      %p342 = por %p340, %p341
      %p343 = scmp.ne.s32.totalorder %s334, %s335
      %p344 = scmp.eq.s32.totalorder %s46, 0
      %p345 = por %p343, %p344
      %p346 = scmp.ne.s32.totalorder %s334, %s335
      %p347 = scmp.eq.s32.totalorder %s47, 1
      %p348 = por %p346, %p347
      %p350 = scmp.ne.s32.totalorder %s335, %s349
      %p351 = scmp.eq.s32.totalorder %s47, 0
      %p352 = por %p350, %p351
      %s354 = sadd.s32 %s353, 1
      %p357 = scmp.eq.s32.totalorder %s41, 1
      %p358 = scmp.ne.s32.totalorder %s353, %s355
      %p359 = scmp.eq.s32.totalorder %s41, 0
      %p360 = por %p358, %p359
      %p361 = scmp.ne.s32.totalorder %s353, %s355
      %p362 = scmp.eq.s32.totalorder %s46, 1
      %p363 = por %p361, %p362
      %p364 = scmp.ne.s32.totalorder %s355, %s356
      %p365 = scmp.eq.s32.totalorder %s46, 0
      %p366 = por %p364, %p365
      %p367 = scmp.ne.s32.totalorder %s355, %s356
      %p368 = scmp.eq.s32.totalorder %s47, 1
      %p369 = por %p367, %p368
      %p371 = scmp.ne.s32.totalorder %s356, %s370
      %p372 = scmp.eq.s32.totalorder %s47, 0
      %p373 = por %p371, %p372
      %s375 = sadd.s32 %s374, 1
      %p378 = scmp.eq.s32.totalorder %s41, 1
      %p379 = scmp.ne.s32.totalorder %s374, %s376
      %p380 = scmp.eq.s32.totalorder %s41, 0
      %p381 = por %p379, %p380
      %p382 = scmp.ne.s32.totalorder %s374, %s376
      %p383 = scmp.eq.s32.totalorder %s46, 1
      %p384 = por %p382, %p383
      %p385 = scmp.ne.s32.totalorder %s376, %s377
      %p386 = scmp.eq.s32.totalorder %s46, 0
      %p387 = por %p385, %p386
      %p388 = scmp.ne.s32.totalorder %s376, %s377
      %p389 = scmp.eq.s32.totalorder %s47, 1
      %p390 = por %p388, %p389
      %p392 = scmp.ne.s32.totalorder %s377, %s391
      %p393 = scmp.eq.s32.totalorder %s47, 0
      %p394 = por %p392, %p393
      %s396 = sadd.s32 %s395, 1
      %p399 = scmp.eq.s32.totalorder %s41, 1
      %p400 = scmp.ne.s32.totalorder %s395, %s397
      %p401 = scmp.eq.s32.totalorder %s41, 0
      %p402 = por %p400, %p401
      %p403 = scmp.ne.s32.totalorder %s395, %s397
      %p404 = scmp.eq.s32.totalorder %s46, 1
      %p405 = por %p403, %p404
      %p406 = scmp.ne.s32.totalorder %s397, %s398
      %p407 = scmp.eq.s32.totalorder %s46, 0
      %p408 = por %p406, %p407
      %p409 = scmp.ne.s32.totalorder %s397, %s398
      %p410 = scmp.eq.s32.totalorder %s47, 1
      %p411 = por %p409, %p410
      %p413 = scmp.ne.s32.totalorder %s398, %s412
      %p414 = scmp.eq.s32.totalorder %s47, 0
      %p415 = por %p413, %p414
      %s417 = sadd.s32 %s416, 1
      %p420 = scmp.eq.s32.totalorder %s41, 1
      %p421 = scmp.ne.s32.totalorder %s416, %s418
      %p422 = scmp.eq.s32.totalorder %s41, 0
      %p423 = por %p421, %p422
      %p424 = scmp.ne.s32.totalorder %s416, %s418
      %p425 = scmp.eq.s32.totalorder %s46, 1
      %p426 = por %p424, %p425
      %p427 = scmp.ne.s32.totalorder %s418, %s419
      %p428 = scmp.eq.s32.totalorder %s46, 0
      %p429 = por %p427, %p428
      %p430 = scmp.ne.s32.totalorder %s418, %s419
      %p431 = scmp.eq.s32.totalorder %s47, 1
      %p432 = por %p430, %p431
      %p434 = scmp.ne.s32.totalorder %s419, %s433
      %p435 = scmp.eq.s32.totalorder %s47, 0
      %p436 = por %p434, %p435
      %s438 = sadd.s32 %s437, 1
      %p441 = scmp.eq.s32.totalorder %s41, 1
      %p442 = scmp.ne.s32.totalorder %s437, %s439
      %p443 = scmp.eq.s32.totalorder %s41, 0
      %p444 = por %p442, %p443
      %p445 = scmp.ne.s32.totalorder %s437, %s439
      %p446 = scmp.eq.s32.totalorder %s46, 1
      %p447 = por %p445, %p446
      %p448 = scmp.ne.s32.totalorder %s439, %s440
      %p449 = scmp.eq.s32.totalorder %s46, 0
      %p450 = por %p448, %p449
      %p451 = scmp.ne.s32.totalorder %s439, %s440
      %p452 = scmp.eq.s32.totalorder %s47, 1
      %p453 = por %p451, %p452
      %p455 = scmp.ne.s32.totalorder %s440, %s454
      %p456 = scmp.eq.s32.totalorder %s47, 0
      %p457 = por %p455, %p456
      %s459 = sadd.s32 %s458, 1
      %p462 = scmp.eq.s32.totalorder %s41, 1
      %p463 = scmp.ne.s32.totalorder %s458, %s460
      %p464 = scmp.eq.s32.totalorder %s41, 0
      %p465 = por %p463, %p464
      %p466 = scmp.ne.s32.totalorder %s458, %s460
      %p467 = scmp.eq.s32.totalorder %s46, 1
      %p468 = por %p466, %p467
      %p469 = scmp.ne.s32.totalorder %s460, %s461
      %p470 = scmp.eq.s32.totalorder %s46, 0
      %p471 = por %p469, %p470
      %p472 = scmp.ne.s32.totalorder %s460, %s461
      %p473 = scmp.eq.s32.totalorder %s47, 1
      %p474 = por %p472, %p473
      %p476 = scmp.ne.s32.totalorder %s461, %s475
      %p477 = scmp.eq.s32.totalorder %s47, 0
      %p478 = por %p476, %p477
      %s480 = sadd.s32 %s479, 1
      %p483 = scmp.eq.s32.totalorder %s41, 1
      %p484 = scmp.ne.s32.totalorder %s479, %s481
      %p485 = scmp.eq.s32.totalorder %s41, 0
      %p486 = por %p484, %p485
      %p487 = scmp.ne.s32.totalorder %s479, %s481
      %p488 = scmp.eq.s32.totalorder %s46, 1
      %p489 = por %p487, %p488
      %p490 = scmp.ne.s32.totalorder %s481, %s482
      %p491 = scmp.eq.s32.totalorder %s46, 0
      %p492 = por %p490, %p491
      %p493 = scmp.ne.s32.totalorder %s481, %s482
      %p494 = scmp.eq.s32.totalorder %s47, 1
      %p495 = por %p493, %p494
      %p497 = scmp.ne.s32.totalorder %s482, %s496
      %p498 = scmp.eq.s32.totalorder %s47, 0
      %p499 = por %p497, %p498
      %s501 = sadd.s32 %s500, 1
      %p504 = scmp.eq.s32.totalorder %s41, 1
      %p505 = scmp.ne.s32.totalorder %s500, %s502
      %p506 = scmp.eq.s32.totalorder %s41, 0
      %p507 = por %p505, %p506
      %p508 = scmp.ne.s32.totalorder %s500, %s502
      %p509 = scmp.eq.s32.totalorder %s46, 1
      %p510 = por %p508, %p509
      %p511 = scmp.ne.s32.totalorder %s502, %s503
      %p512 = scmp.eq.s32.totalorder %s46, 0
      %p513 = por %p511, %p512
      %p514 = scmp.ne.s32.totalorder %s502, %s503
      %p515 = scmp.eq.s32.totalorder %s47, 1
      %p516 = por %p514, %p515
      %p518 = scmp.ne.s32.totalorder %s503, %s517
      %p519 = scmp.eq.s32.totalorder %s47, 0
      %p520 = por %p518, %p519
      %s522 = sadd.s32 %s521, 1
      %p525 = scmp.eq.s32.totalorder %s41, 1
      %p526 = scmp.ne.s32.totalorder %s521, %s523
      %p527 = scmp.eq.s32.totalorder %s41, 0
      %p528 = por %p526, %p527
      %p529 = scmp.ne.s32.totalorder %s521, %s523
      %p530 = scmp.eq.s32.totalorder %s46, 1
      %p531 = por %p529, %p530
      %p532 = scmp.ne.s32.totalorder %s523, %s524
      %p533 = scmp.eq.s32.totalorder %s46, 0
      %p534 = por %p532, %p533
      %p535 = scmp.ne.s32.totalorder %s523, %s524
      %p536 = scmp.eq.s32.totalorder %s47, 1
      %p537 = por %p535, %p536
      %p539 = scmp.ne.s32.totalorder %s524, %s538
      %p540 = scmp.eq.s32.totalorder %s47, 0
      %p541 = por %p539, %p540
      %s543 = sadd.s32 %s542, 1
      %p546 = scmp.eq.s32.totalorder %s41, 1
      %p547 = scmp.ne.s32.totalorder %s542, %s544
      %p548 = scmp.eq.s32.totalorder %s41, 0
      %p549 = por %p547, %p548
      %p550 = scmp.ne.s32.totalorder %s542, %s544
      %p551 = scmp.eq.s32.totalorder %s46, 1
      %p552 = por %p550, %p551
      %p553 = scmp.ne.s32.totalorder %s544, %s545
      %p554 = scmp.eq.s32.totalorder %s46, 0
      %p555 = por %p553, %p554
      %p556 = scmp.ne.s32.totalorder %s544, %s545
      %p557 = scmp.eq.s32.totalorder %s47, 1
      %p558 = por %p556, %p557
      %p560 = scmp.ne.s32.totalorder %s545, %s559
      %p561 = scmp.eq.s32.totalorder %s47, 0
      %p562 = por %p560, %p561
      %s563 = ssub.s32 %s41, %s48
      %p564 = scmp.eq.s32.totalorder %s563, 0
      %s566 = sadd.s32 %s565, 1
      %s567 = scalar_select %p564, %s565, %s566
      %p570 = pneg %p564
      %p571 = scmp.eq.s32.totalorder %s41, 1
      %p572 = por %p570, %p571
      %p573 = scmp.ne.s32.totalorder %s565, %s568
      %p574 = scmp.eq.s32.totalorder %s41, 0
      %p575 = por %p573, %p574
      %p576 = scmp.ne.s32.totalorder %s565, %s568
      %p577 = scmp.eq.s32.totalorder %s46, 1
      %p578 = por %p576, %p577
      %p579 = scmp.ne.s32.totalorder %s568, %s569
      %p580 = scmp.eq.s32.totalorder %s46, 0
      %p581 = por %p579, %p580
      %p582 = scmp.ne.s32.totalorder %s568, %s569
      %p583 = scmp.eq.s32.totalorder %s47, 1
      %p584 = por %p582, %p583
      %p586 = scmp.ne.s32.totalorder %s569, %s585
      %p587 = scmp.eq.s32.totalorder %s47, 0
      %p588 = por %p586, %p587
      %s589 = ssub.s32 %s41, %s48
      %p590 = scmp.eq.s32.totalorder %s589, 0
      %s592 = sadd.s32 %s591, 1
      %s593 = scalar_select %p590, %s591, %s592
      %p596 = pneg %p590
      %p597 = scmp.eq.s32.totalorder %s41, 1
      %p598 = por %p596, %p597
      %p599 = scmp.ne.s32.totalorder %s591, %s594
      %p600 = scmp.eq.s32.totalorder %s41, 0
      %p601 = por %p599, %p600
      %p602 = scmp.ne.s32.totalorder %s591, %s594
      %p603 = scmp.eq.s32.totalorder %s46, 1
      %p604 = por %p602, %p603
      %p605 = scmp.ne.s32.totalorder %s594, %s595
      %p606 = scmp.eq.s32.totalorder %s46, 0
      %p607 = por %p605, %p606
      %p608 = scmp.ne.s32.totalorder %s594, %s595
      %p609 = scmp.eq.s32.totalorder %s47, 1
      %p610 = por %p608, %p609
      %p612 = scmp.ne.s32.totalorder %s595, %s611
      %p613 = scmp.eq.s32.totalorder %s47, 0
      %p614 = por %p612, %p613
      %s615 = ssub.s32 %s41, %s48
      %p616 = scmp.eq.s32.totalorder %s615, 0
      %s618 = sadd.s32 %s617, 1
      %s619 = scalar_select %p616, %s617, %s618
      %p622 = pneg %p616
      %p623 = scmp.eq.s32.totalorder %s41, 1
      %p624 = por %p622, %p623
      %p625 = scmp.ne.s32.totalorder %s617, %s620
      %p626 = scmp.eq.s32.totalorder %s41, 0
      %p627 = por %p625, %p626
      %p628 = scmp.ne.s32.totalorder %s617, %s620
      %p629 = scmp.eq.s32.totalorder %s46, 1
      %p630 = por %p628, %p629
      %p631 = scmp.ne.s32.totalorder %s620, %s621
      %p632 = scmp.eq.s32.totalorder %s46, 0
      %p633 = por %p631, %p632
      %p634 = scmp.ne.s32.totalorder %s620, %s621
      %p635 = scmp.eq.s32.totalorder %s47, 1
      %p636 = por %p634, %p635
      %p638 = scmp.ne.s32.totalorder %s621, %s637
      %p639 = scmp.eq.s32.totalorder %s47, 0
      %p640 = por %p638, %p639
      %s641 = ssub.s32 %s41, %s48
      %p642 = scmp.eq.s32.totalorder %s641, 0
      %s644 = sadd.s32 %s643, 1
      %s645 = scalar_select %p642, %s643, %s644
      %p648 = pneg %p642
      %p649 = scmp.eq.s32.totalorder %s41, 1
      %p650 = por %p648, %p649
      %p651 = scmp.ne.s32.totalorder %s643, %s646
      %p652 = scmp.eq.s32.totalorder %s41, 0
      %p653 = por %p651, %p652
      %p654 = scmp.ne.s32.totalorder %s643, %s646
      %p655 = scmp.eq.s32.totalorder %s46, 1
      %p656 = por %p654, %p655
      %p657 = scmp.ne.s32.totalorder %s646, %s647
      %p658 = scmp.eq.s32.totalorder %s46, 0
      %p659 = por %p657, %p658
      %p660 = scmp.ne.s32.totalorder %s646, %s647
      %p661 = scmp.eq.s32.totalorder %s47, 1
      %p662 = por %p660, %p661
      %p664 = scmp.ne.s32.totalorder %s647, %s663
      %p665 = scmp.eq.s32.totalorder %s47, 0
      %p666 = por %p664, %p665
      %s667 = ssub.s32 %s41, %s48
      %p668 = scmp.eq.s32.totalorder %s667, 0
      %s670 = sadd.s32 %s669, 1
      %s671 = scalar_select %p668, %s669, %s670
      %p674 = pneg %p668
      %p675 = scmp.eq.s32.totalorder %s41, 1
      %p676 = por %p674, %p675
      %p677 = scmp.ne.s32.totalorder %s669, %s672
      %p678 = scmp.eq.s32.totalorder %s41, 0
      %p679 = por %p677, %p678
      %p680 = scmp.ne.s32.totalorder %s669, %s672
      %p681 = scmp.eq.s32.totalorder %s46, 1
      %p682 = por %p680, %p681
      %p683 = scmp.ne.s32.totalorder %s672, %s673
      %p684 = scmp.eq.s32.totalorder %s46, 0
      %p685 = por %p683, %p684
      %p686 = scmp.ne.s32.totalorder %s672, %s673
      %p687 = scmp.eq.s32.totalorder %s47, 1
      %p688 = por %p686, %p687
      %p690 = scmp.ne.s32.totalorder %s673, %s689
      %p691 = scmp.eq.s32.totalorder %s47, 0
      %p692 = por %p690, %p691
      %p693 = scmp.le.s32.totalorder 1, %s41
      %p694 = scmp.lt.s32.totalorder %s41, 3
      %p695 = pnand %p693, %p694
      %p696 = pneg %p695
      // Predicated region
      $region9: #{hatnetc_forward.6} parent=5 // pred_check
        _
      $region10: #{hatnetc_forward.6} parent=5 // pred_check_branch
        %698 = sbr.rel (%p695) target = $region12
      $region11: #{hatnetc_forward.6} parent=5 // pred_region
        %s699 = ssub.s32 %s41, 1
        // Predicated region
        $region13: #{hatnetc_forward.6} parent=11 // pred_check
          %p700 = pneg %p114
        $region14: #{hatnetc_forward.6} parent=11 // pred_check_branch
          %702 = sbr.rel (%p700) target = $region16
        $region15: #{hatnetc_forward.6} parent=11 // pred_region
          _
        $region16: #{hatnetc_forward.6} parent=11 // pred_fallthru
          _
        // Predicated region
        $region17: #{hatnetc_forward.6} parent=11 // pred_check
          %p703 = pneg %p135
        $region18: #{hatnetc_forward.6} parent=11 // pred_check_branch
          %705 = sbr.rel (%p703) target = $region20
        $region19: #{hatnetc_forward.6} parent=11 // pred_region
          _
        $region20: #{hatnetc_forward.6} parent=11 // pred_fallthru
          _
        // Predicated region
        $region21: #{hatnetc_forward.6} parent=11 // pred_check
          %p706 = pneg %p156
        $region22: #{hatnetc_forward.6} parent=11 // pred_check_branch
          %708 = sbr.rel (%p706) target = $region24
        $region23: #{hatnetc_forward.6} parent=11 // pred_region
          _
        $region24: #{hatnetc_forward.6} parent=11 // pred_fallthru
          _
        // Predicated region
        $region25: #{hatnetc_forward.6} parent=11 // pred_check
          %p709 = pneg %p177
        $region26: #{hatnetc_forward.6} parent=11 // pred_check_branch
          %711 = sbr.rel (%p709) target = $region28
        $region27: #{hatnetc_forward.6} parent=11 // pred_region
          _
        $region28: #{hatnetc_forward.6} parent=11 // pred_fallthru
          _
        // Predicated region
        $region29: #{hatnetc_forward.6} parent=11 // pred_check
          %p712 = pneg %p198
        $region30: #{hatnetc_forward.6} parent=11 // pred_check_branch
          %714 = sbr.rel (%p712) target = $region32
        $region31: #{hatnetc_forward.6} parent=11 // pred_region
          _
        $region32: #{hatnetc_forward.6} parent=11 // pred_fallthru
          _
        // Predicated region
        $region33: #{hatnetc_forward.6} parent=11 // pred_check
          %p715 = pneg %p219
        $region34: #{hatnetc_forward.6} parent=11 // pred_check_branch
          %717 = sbr.rel (%p715) target = $region36
        $region35: #{hatnetc_forward.6} parent=11 // pred_region
          _
        $region36: #{hatnetc_forward.6} parent=11 // pred_fallthru
          _
        // Predicated region
        $region37: #{hatnetc_forward.6} parent=11 // pred_check
          %p718 = pneg %p240
        $region38: #{hatnetc_forward.6} parent=11 // pred_check_branch
          %720 = sbr.rel (%p718) target = $region40
        $region39: #{hatnetc_forward.6} parent=11 // pred_region
          _
        $region40: #{hatnetc_forward.6} parent=11 // pred_fallthru
          _
        // Predicated region
        $region41: #{hatnetc_forward.6} parent=11 // pred_check
          %p721 = pneg %p261
        $region42: #{hatnetc_forward.6} parent=11 // pred_check_branch
          %723 = sbr.rel (%p721) target = $region44
        $region43: #{hatnetc_forward.6} parent=11 // pred_region
          _
        $region44: #{hatnetc_forward.6} parent=11 // pred_fallthru
          _
        // Predicated region
        $region45: #{hatnetc_forward.6} parent=11 // pred_check
          %p724 = pneg %p282
        $region46: #{hatnetc_forward.6} parent=11 // pred_check_branch
          %726 = sbr.rel (%p724) target = $region48
        $region47: #{hatnetc_forward.6} parent=11 // pred_region
          _
        $region48: #{hatnetc_forward.6} parent=11 // pred_fallthru
          _
        // Predicated region
        $region49: #{hatnetc_forward.6} parent=11 // pred_check
          %p727 = pneg %p303
        $region50: #{hatnetc_forward.6} parent=11 // pred_check_branch
          %729 = sbr.rel (%p727) target = $region52
        $region51: #{hatnetc_forward.6} parent=11 // pred_region
          _
        $region52: #{hatnetc_forward.6} parent=11 // pred_fallthru
          _
        // Predicated region
        $region53: #{hatnetc_forward.6} parent=11 // pred_check
          %p730 = pneg %p324
        $region54: #{hatnetc_forward.6} parent=11 // pred_check_branch
          %732 = sbr.rel (%p730) target = $region56
        $region55: #{hatnetc_forward.6} parent=11 // pred_region
          _
        $region56: #{hatnetc_forward.6} parent=11 // pred_fallthru
          _
        // Predicated region
        $region57: #{hatnetc_forward.6} parent=11 // pred_check
          %p733 = pneg %p345
        $region58: #{hatnetc_forward.6} parent=11 // pred_check_branch
          %735 = sbr.rel (%p733) target = $region60
        $region59: #{hatnetc_forward.6} parent=11 // pred_region
          _
        $region60: #{hatnetc_forward.6} parent=11 // pred_fallthru
          _
        // Predicated region
        $region61: #{hatnetc_forward.6} parent=11 // pred_check
          %p736 = pneg %p366
        $region62: #{hatnetc_forward.6} parent=11 // pred_check_branch
          %738 = sbr.rel (%p736) target = $region64
        $region63: #{hatnetc_forward.6} parent=11 // pred_region
          _
        $region64: #{hatnetc_forward.6} parent=11 // pred_fallthru
          _
        // Predicated region
        $region65: #{hatnetc_forward.6} parent=11 // pred_check
          %p739 = pneg %p387
        $region66: #{hatnetc_forward.6} parent=11 // pred_check_branch
          %741 = sbr.rel (%p739) target = $region68
        $region67: #{hatnetc_forward.6} parent=11 // pred_region
          _
        $region68: #{hatnetc_forward.6} parent=11 // pred_fallthru
          _
        // Predicated region
        $region69: #{hatnetc_forward.6} parent=11 // pred_check
          %p742 = pneg %p408
        $region70: #{hatnetc_forward.6} parent=11 // pred_check_branch
          %744 = sbr.rel (%p742) target = $region72
        $region71: #{hatnetc_forward.6} parent=11 // pred_region
          _
        $region72: #{hatnetc_forward.6} parent=11 // pred_fallthru
          _
        // Predicated region
        $region73: #{hatnetc_forward.6} parent=11 // pred_check
          %p745 = pneg %p429
        $region74: #{hatnetc_forward.6} parent=11 // pred_check_branch
          %747 = sbr.rel (%p745) target = $region76
        $region75: #{hatnetc_forward.6} parent=11 // pred_region
          _
        $region76: #{hatnetc_forward.6} parent=11 // pred_fallthru
          _
        // Predicated region
        $region77: #{hatnetc_forward.6} parent=11 // pred_check
          %p748 = pneg %p450
        $region78: #{hatnetc_forward.6} parent=11 // pred_check_branch
          %750 = sbr.rel (%p748) target = $region80
        $region79: #{hatnetc_forward.6} parent=11 // pred_region
          _
        $region80: #{hatnetc_forward.6} parent=11 // pred_fallthru
          _
        // Predicated region
        $region81: #{hatnetc_forward.6} parent=11 // pred_check
          %p751 = pneg %p471
        $region82: #{hatnetc_forward.6} parent=11 // pred_check_branch
          %753 = sbr.rel (%p751) target = $region84
        $region83: #{hatnetc_forward.6} parent=11 // pred_region
          _
        $region84: #{hatnetc_forward.6} parent=11 // pred_fallthru
          _
        // Predicated region
        $region85: #{hatnetc_forward.6} parent=11 // pred_check
          %p754 = pneg %p492
        $region86: #{hatnetc_forward.6} parent=11 // pred_check_branch
          %756 = sbr.rel (%p754) target = $region88
        $region87: #{hatnetc_forward.6} parent=11 // pred_region
          _
        $region88: #{hatnetc_forward.6} parent=11 // pred_fallthru
          _
        // Predicated region
        $region89: #{hatnetc_forward.6} parent=11 // pred_check
          %p757 = pneg %p513
        $region90: #{hatnetc_forward.6} parent=11 // pred_check_branch
          %759 = sbr.rel (%p757) target = $region92
        $region91: #{hatnetc_forward.6} parent=11 // pred_region
          _
        $region92: #{hatnetc_forward.6} parent=11 // pred_fallthru
          _
        // Predicated region
        $region93: #{hatnetc_forward.6} parent=11 // pred_check
          %p760 = pneg %p534
        $region94: #{hatnetc_forward.6} parent=11 // pred_check_branch
          %762 = sbr.rel (%p760) target = $region96
        $region95: #{hatnetc_forward.6} parent=11 // pred_region
          _
        $region96: #{hatnetc_forward.6} parent=11 // pred_fallthru
          _
        // Predicated region
        $region97: #{hatnetc_forward.6} parent=11 // pred_check
          %p763 = pneg %p555
        $region98: #{hatnetc_forward.6} parent=11 // pred_check_branch
          %765 = sbr.rel (%p763) target = $region100
        $region99: #{hatnetc_forward.6} parent=11 // pred_region
          _
        $region100: #{hatnetc_forward.6} parent=11 // pred_fallthru
          _
      $region12: #{hatnetc_forward.6} parent=5 // pred_fallthru
        _
      %p766 = scmp.lt.s32.totalorder %s41, 2
      // Predicated region
      $region101: #{hatnetc_forward.6} parent=5 // pred_check
        %p767 = pneg %p766
      $region102: #{hatnetc_forward.6} parent=5 // pred_check_branch
        %769 = sbr.rel (%p767) target = $region104
      $region103: #{hatnetc_forward.6} parent=5 // pred_region
        // Predicated region
        $region105: #{hatnetc_forward.6} parent=103 // pred_check
          %p770 = pneg %p61
        $region106: #{hatnetc_forward.6} parent=103 // pred_check_branch
          %772 = sbr.rel (%p770) target = $region108
        $region107: #{hatnetc_forward.6} parent=103 // pred_region
          %p773 = scmp.lt.s32.totalorder %s41, 1
          %s774 = scalar_select %p773, %s41, 1
          %s775 = smul.addr %s774, 8
          %s776 = scalar_lea.vmem %s0, %s775
        $region108: #{hatnetc_forward.6} parent=103 // pred_fallthru
          _
        // Predicated region
        $region109: #{hatnetc_forward.6} parent=103 // pred_check
          %p777 = pneg %p87
        $region110: #{hatnetc_forward.6} parent=103 // pred_check_branch
          %779 = sbr.rel (%p777) target = $region112
        $region111: #{hatnetc_forward.6} parent=103 // pred_region
          %p780 = scmp.lt.s32.totalorder %s41, 1
          %s781 = scalar_select %p780, %s41, 1
          %s782 = smul.addr %s781, 8
          %s783 = scalar_lea.vmem %s1, %s782
        $region112: #{hatnetc_forward.6} parent=103 // pred_fallthru
          _
      $region104: #{hatnetc_forward.6} parent=5 // pred_fallthru
        _
      %p784 = scmp.le.s32.totalorder 1, %s41
      %p785 = scmp.lt.s32.totalorder %s41, 3
      %p786 = pnand %p784, %p785
      %p787 = pneg %p786
      // Predicated region
      $region113: #{hatnetc_forward.6} parent=5 // pred_check
        _
      $region114: #{hatnetc_forward.6} parent=5 // pred_check_branch
        %789 = sbr.rel (%p786) target = $region116
      $region115: #{hatnetc_forward.6} parent=5 // pred_region
        %s790 = ssub.s32 %s41, 1
        %p791 = scmp.lt.s32.totalorder %s46, 1
        %s792 = scalar_select %p791, %s46, 1
        %s793 = smul.addr %s792, 8
        %s794 = scalar_lea.vmem %s0, %s793
        %p795 = pneg %p67
        %p796 = pneg %p64
        %p797 = scmp.lt.s32.totalorder %s46, 1
        %s798 = scalar_select %p797, %s46, 1
        %s799 = smul.addr %s798, 8
        %s800 = scalar_lea.vmem %s1, %s799
        %p801 = pneg %p93
        %p802 = pneg %p90
        %p803 = pneg %p114
        %p804 = pneg %p111
        %p805 = pneg %p135
        %p806 = pneg %p132
        %p807 = pneg %p156
        %p808 = pneg %p153
        %p809 = pneg %p177
        %p810 = pneg %p174
        %p811 = pneg %p198
        %p812 = pneg %p195
        %p813 = pneg %p219
        %p814 = pneg %p216
        %p815 = pneg %p240
        %p816 = pneg %p237
        %p817 = pneg %p261
        %p818 = pneg %p258
        %p819 = pneg %p282
        %p820 = pneg %p279
        %p821 = pneg %p303
        %p822 = pneg %p300
        %p823 = pneg %p324
        %p824 = pneg %p321
        %p825 = pneg %p345
        %p826 = pneg %p342
        %p827 = pneg %p366
        %p828 = pneg %p363
        %p829 = pneg %p387
        %p830 = pneg %p384
        %p831 = pneg %p408
        %p832 = pneg %p405
        %p833 = pneg %p429
        %p834 = pneg %p426
        %p835 = pneg %p450
        %p836 = pneg %p447
        %p837 = pneg %p471
        %p838 = pneg %p468
        %p839 = pneg %p492
        %p840 = pneg %p489
        %p841 = pneg %p513
        %p842 = pneg %p510
        %p843 = pneg %p534
        %p844 = pneg %p531
        %p845 = pneg %p555
        %p846 = pneg %p552
        %p847 = pneg %p581
        %p848 = pneg %p578
        %p849 = scmp.lt.s32.totalorder %s46, 1
        %s850 = scalar_select %p849, %s46, 1
        %s851 = smul.addr %s850, 4
        %s852 = scalar_lea.vmem %s24, %s851
        %p853 = pneg %p607
        %p854 = pneg %p604
        %p855 = scmp.lt.s32.totalorder %s46, 1
        %s856 = scalar_select %p855, %s46, 1
        %s857 = smul.addr %s856, 4
        %s858 = scalar_lea.vmem %s25, %s857
        %p859 = pneg %p633
        %p860 = pneg %p630
        %p861 = scmp.lt.s32.totalorder %s46, 1
        %s862 = scalar_select %p861, %s46, 1
        %s863 = scalar_lea.vmem %s26, %s862
        %p864 = pneg %p659
        %p865 = pneg %p656
        %s866 = sand.u32 %s646, 1
        %s867 = scalar_lea.sflag [#allocation3], %s866
        %s868 = sand.u32 %s646, 1
        %s869 = scalar_lea.vmem [#allocation2], %s868
        %p870 = pneg %p685
        %p871 = pneg %p682
        %s872 = sand.u32 %s672, 1
        %s873 = scalar_lea.sflag [#allocation5], %s872
        %s874 = sand.u32 %s672, 1
        %s875 = scalar_lea.vmem [#allocation4], %s874
        %p876 = scmp.lt.s32.totalorder %s46, 1
        %s877 = scalar_select %p876, %s46, 1
        %s878 = smul.addr %s877, 8
        %s879 = scalar_lea.vmem %s0, %s878
        %p880 = scmp.lt.s32.totalorder %s46, 1
        %s881 = scalar_select %p880, %s46, 1
        %s882 = smul.addr %s881, 8
        %s883 = scalar_lea.vmem %s1, %s882
        %p884 = scmp.lt.s32.totalorder %s46, 1
        %s885 = scalar_select %p884, %s46, 1
        %s886 = smul.addr %s885, 4
        %s887 = scalar_lea.vmem %s24, %s886
        %p888 = scmp.lt.s32.totalorder %s46, 1
        %s889 = scalar_select %p888, %s46, 1
        %s890 = smul.addr %s889, 4
        %s891 = scalar_lea.vmem %s25, %s890
        %p892 = scmp.lt.s32.totalorder %s46, 1
        %s893 = scalar_select %p892, %s46, 1
        %s894 = scalar_lea.vmem %s26, %s893
        %v896 = vld [vmem:[%s879] sm:$0xff]
        %v897 = vld [vmem:[%s883] sm:$0xff]
        %v898 = vpack.c.bf16 %v897, %v897
        %v899 = vpack.c.bf16 %v896, %v896
        %vm900 = vcmask 64512
        %v902 = vsel %vm900, %v898, 0
        %vm904 = vcmask 1043456
        %v906 = vsel %vm904, %v899, 0
        %908 = vmatprep.subr.bf16.mxu0 0
        %909 = vmatpush1.bf16.msra.mxu0 0
        %910 = vmatprep.subr.bf16.mxu0 0
        %911 = vmatpush1.bf16.msra.mxu0 0
        %912 = vmatprep.subr.bf16.mxu0 0
        %913 = vmatpush1.bf16.msra.mxu0 0
        %914 = vmatprep.subr.bf16.mxu0 0
        %915 = vmatpush1.bf16.msra.mxu0 0
        %916 = vmatprep.subr.bf16.mxu0 0
        %917 = vmatpush1.bf16.msra.mxu0 0
        %918 = vmatprep.subr.bf16.mxu0 0
        %919 = vmatpush1.bf16.msra.mxu0 0
        %920 = vmatprep.subr.bf16.mxu0 0
        %921 = vmatpush1.bf16.msra.mxu0 0
        %922 = vmatprep.subr.bf16.mxu0 0
        %923 = vmatpush1.bf16.msra.mxu0 %v906
        %924 = vmatprep.subr.bf16.mxu0 0
        %925 = vmatpush2.bf16.msra.mxu0 0
        %926 = vmatprep.subr.bf16.mxu0 0
        %927 = vmatpush2.bf16.msra.mxu0 0
        %928 = vmatprep.subr.bf16.mxu0 0
        %929 = vmatpush2.bf16.msra.mxu0 0
        %930 = vmatprep.subr.bf16.mxu0 0
        %931 = vmatpush2.bf16.msra.mxu0 0
        %932 = vmatprep.subr.bf16.mxu0 0
        %933 = vmatpush2.bf16.msra.mxu0 0
        %934 = vmatprep.subr.bf16.mxu0 0
        %935 = vmatpush2.bf16.msra.mxu0 0
        %936 = vmatprep.subr.bf16.mxu0 0
        %937 = vmatpush2.bf16.msra.mxu0 0
        %938 = vmatprep.subr.bf16.mxu0 0
        %939 = vmatpush2.bf16.msra.mxu0 0
        %940 = vmatprep.mubr.bf16.mxu0 0
        %941 = vmatmul.mubr.bf16.gmra.mxu0 %v902
        %v942 = vpop.f32.mrf.mxu0
        %v943 = vadd.f32 0.0, %v942
        %v944 = vpop.f32.mrf.mxu0
        %v945 = vpop.f32.mrf.mxu0
        %v946 = vpop.f32.mrf.mxu0
        %947 = vdwg.mxu0
        %v948 = vadd.f32 %v896, %v943
        %v949 = vpack.c.bf16 %v948, %v948
        %v950 = vld [vmem:[%s2] sm:$0xf]
        %v951 = vld [vmem:[%s2 + $0x4] sm:$0xf]
        %v952 = vld [vmem:[%s2 + $0x8] sm:$0xf]
        %v953 = vld [vmem:[%s2 + $0xc] sm:$0xf]
        %v954 = vld [vmem:[%s3] sm:$0x1]
        %v956 = vlaneseq
        %v957 = vshrl.u32 %v956, 7
        %v958 = vsub.s32 0, %v957
        %v959 = vrot.slane %v954, %v958
        %v965 = vunpack.c.l.b16 %v950
        %v966 = vunpack.c.l.b16 %v951
        %v967 = vunpack.c.l.b16 %v952
        %v968 = vunpack.c.l.b16 %v953
        %v969 = vpack.c.b16 %v966, %v965
        %v970 = vpack.c.b16 %v968, %v967
        %vm973 = vcmask 261120
        %v975 = vsel %vm973, %v949, 0
        %977 = vmatprep.subr.bf16.mxu0 0
        %978 = vmatpush1.bf16.msra.mxu0 0
        %979 = vmatprep.subr.bf16.mxu0 0
        %980 = vmatpush1.bf16.msra.mxu0 0
        %981 = vmatprep.subr.bf16.mxu0 0
        %982 = vmatpush1.bf16.msra.mxu0 0
        %983 = vmatprep.subr.bf16.mxu0 0
        %984 = vmatpush1.bf16.msra.mxu0 0
        %985 = vmatprep.subr.bf16.mxu0 0
        %986 = vmatpush1.bf16.msra.mxu0 0
        %987 = vmatprep.subr.bf16.mxu0 0
        %988 = vmatpush1.bf16.msra.mxu0 0
        %989 = vmatprep.subr.bf16.mxu0 0
        %990 = vmatpush1.bf16.msra.mxu0 %v970
        %991 = vmatprep.subr.bf16.mxu0 0
        %992 = vmatpush1.bf16.msra.mxu0 %v969
        %993 = vmatprep.subr.bf16.mxu0 0
        %994 = vmatpush2.bf16.msra.mxu0 0
        %995 = vmatprep.subr.bf16.mxu0 0
        %996 = vmatpush2.bf16.msra.mxu0 0
        %997 = vmatprep.subr.bf16.mxu0 0
        %998 = vmatpush2.bf16.msra.mxu0 0
        %999 = vmatprep.subr.bf16.mxu0 0
        %1000 = vmatpush2.bf16.msra.mxu0 0
        %1001 = vmatprep.subr.bf16.mxu0 0
        %1002 = vmatpush2.bf16.msra.mxu0 0
        %1003 = vmatprep.subr.bf16.mxu0 0
        %1004 = vmatpush2.bf16.msra.mxu0 0
        %1005 = vmatprep.subr.bf16.mxu0 0
        %1006 = vmatpush2.bf16.msra.mxu0 0
        %1007 = vmatprep.subr.bf16.mxu0 0
        %1008 = vmatpush2.bf16.msra.mxu0 0
        %1009 = vmatprep.mubr.bf16.mxu0 0
        %1010 = vmatmul.mubr.bf16.gmra.mxu0 %v975
        %v1011 = vpop.f32.mrf.mxu0
        %v1012 = vadd.f32 %v959, %v1011
        %v1013 = vpop.f32.mrf.mxu0
        %v1014 = vpop.f32.mrf.mxu0
        %v1015 = vpop.f32.mrf.mxu0
        %1016 = vdwg.mxu0
        %v1017 = vmax.f32 %v1012, 0.0
        %v1018 = vpack.c.bf16 %v1017, %v1017
        %v1019 = vld [vmem:[%s4] sm:$0xf]
        %v1020 = vld [vmem:[%s4 + $0x4] sm:$0xf]
        %v1021 = vld [vmem:[%s4 + $0x8] sm:$0xf]
        %v1022 = vld [vmem:[%s4 + $0xc] sm:$0xf]
        %v1023 = vld [vmem:[%s5] sm:$0x1]
        %v1025 = vlaneseq
        %v1026 = vshrl.u32 %v1025, 7
        %v1027 = vsub.s32 0, %v1026
        %v1028 = vrot.slane %v1023, %v1027
        %v1034 = vunpack.c.l.b16 %v1019
        %v1035 = vunpack.c.l.b16 %v1020
        %v1036 = vunpack.c.l.b16 %v1021
        %v1037 = vunpack.c.l.b16 %v1022
        %v1038 = vpack.c.b16 %v1035, %v1034
        %v1039 = vpack.c.b16 %v1037, %v1036
        %v1043 = vsel %vm973, %v1018, 0
        %1045 = vmatprep.subr.bf16.mxu0 0
        %1046 = vmatpush1.bf16.msra.mxu0 0
        %1047 = vmatprep.subr.bf16.mxu0 0
        %1048 = vmatpush1.bf16.msra.mxu0 0
        %1049 = vmatprep.subr.bf16.mxu0 0
        %1050 = vmatpush1.bf16.msra.mxu0 0
        %1051 = vmatprep.subr.bf16.mxu0 0
        %1052 = vmatpush1.bf16.msra.mxu0 0
        %1053 = vmatprep.subr.bf16.mxu0 0
        %1054 = vmatpush1.bf16.msra.mxu0 0
        %1055 = vmatprep.subr.bf16.mxu0 0
        %1056 = vmatpush1.bf16.msra.mxu0 0
        %1057 = vmatprep.subr.bf16.mxu0 0
        %1058 = vmatpush1.bf16.msra.mxu0 %v1039
        %1059 = vmatprep.subr.bf16.mxu0 0
        %1060 = vmatpush1.bf16.msra.mxu0 %v1038
        %1061 = vmatprep.subr.bf16.mxu0 0
        %1062 = vmatpush2.bf16.msra.mxu0 0
        %1063 = vmatprep.subr.bf16.mxu0 0
        %1064 = vmatpush2.bf16.msra.mxu0 0
        %1065 = vmatprep.subr.bf16.mxu0 0
        %1066 = vmatpush2.bf16.msra.mxu0 0
        %1067 = vmatprep.subr.bf16.mxu0 0
        %1068 = vmatpush2.bf16.msra.mxu0 0
        %1069 = vmatprep.subr.bf16.mxu0 0
        %1070 = vmatpush2.bf16.msra.mxu0 0
        %1071 = vmatprep.subr.bf16.mxu0 0
        %1072 = vmatpush2.bf16.msra.mxu0 0
        %1073 = vmatprep.subr.bf16.mxu0 0
        %1074 = vmatpush2.bf16.msra.mxu0 0
        %1075 = vmatprep.subr.bf16.mxu0 0
        %1076 = vmatpush2.bf16.msra.mxu0 0
        %1077 = vmatprep.mubr.bf16.mxu0 0
        %1078 = vmatmul.mubr.bf16.gmra.mxu0 %v1043
        %v1079 = vpop.f32.mrf.mxu0
        %v1080 = vadd.f32 %v1028, %v1079
        %v1081 = vpop.f32.mrf.mxu0
        %v1082 = vpop.f32.mrf.mxu0
        %v1083 = vpop.f32.mrf.mxu0
        %1084 = vdwg.mxu0
        %v1085 = vmax.f32 %v1080, 0.0
        %v1086 = vpack.c.bf16 %v1085, %v1085
        %v1087 = vld [vmem:[%s6] sm:$0xf]
        %v1088 = vld [vmem:[%s6 + $0x4] sm:$0xf]
        %v1089 = vld [vmem:[%s6 + $0x8] sm:$0xf]
        %v1090 = vld [vmem:[%s6 + $0xc] sm:$0xf]
        %v1091 = vld [vmem:[%s7] sm:$0x1]
        %v1093 = vlaneseq
        %v1094 = vshrl.u32 %v1093, 7
        %v1095 = vsub.s32 0, %v1094
        %v1096 = vrot.slane %v1091, %v1095
        %v1102 = vunpack.c.l.b16 %v1087
        %v1103 = vunpack.c.l.b16 %v1088
        %v1104 = vunpack.c.l.b16 %v1089
        %v1105 = vunpack.c.l.b16 %v1090
        %v1106 = vpack.c.b16 %v1103, %v1102
        %v1107 = vpack.c.b16 %v1105, %v1104
        %v1111 = vsel %vm973, %v1086, 0
        %1113 = vmatprep.subr.bf16.mxu0 0
        %1114 = vmatpush1.bf16.msra.mxu0 0
        %1115 = vmatprep.subr.bf16.mxu0 0
        %1116 = vmatpush1.bf16.msra.mxu0 0
        %1117 = vmatprep.subr.bf16.mxu0 0
        %1118 = vmatpush1.bf16.msra.mxu0 0
        %1119 = vmatprep.subr.bf16.mxu0 0
        %1120 = vmatpush1.bf16.msra.mxu0 0
        %1121 = vmatprep.subr.bf16.mxu0 0
        %1122 = vmatpush1.bf16.msra.mxu0 0
        %1123 = vmatprep.subr.bf16.mxu0 0
        %1124 = vmatpush1.bf16.msra.mxu0 0
        %1125 = vmatprep.subr.bf16.mxu0 0
        %1126 = vmatpush1.bf16.msra.mxu0 %v1107
        %1127 = vmatprep.subr.bf16.mxu0 0
        %1128 = vmatpush1.bf16.msra.mxu0 %v1106
        %1129 = vmatprep.subr.bf16.mxu0 0
        %1130 = vmatpush2.bf16.msra.mxu0 0
        %1131 = vmatprep.subr.bf16.mxu0 0
        %1132 = vmatpush2.bf16.msra.mxu0 0
        %1133 = vmatprep.subr.bf16.mxu0 0
        %1134 = vmatpush2.bf16.msra.mxu0 0
        %1135 = vmatprep.subr.bf16.mxu0 0
        %1136 = vmatpush2.bf16.msra.mxu0 0
        %1137 = vmatprep.subr.bf16.mxu0 0
        %1138 = vmatpush2.bf16.msra.mxu0 0
        %1139 = vmatprep.subr.bf16.mxu0 0
        %1140 = vmatpush2.bf16.msra.mxu0 0
        %1141 = vmatprep.subr.bf16.mxu0 0
        %1142 = vmatpush2.bf16.msra.mxu0 0
        %1143 = vmatprep.subr.bf16.mxu0 0
        %1144 = vmatpush2.bf16.msra.mxu0 0
        %1145 = vmatprep.mubr.bf16.mxu0 0
        %1146 = vmatmul.mubr.bf16.gmra.mxu0 %v1111
        %v1147 = vpop.f32.mrf.mxu0
        %v1148 = vadd.f32 %v1096, %v1147
        %v1149 = vpop.f32.mrf.mxu0
        %v1150 = vpop.f32.mrf.mxu0
        %v1151 = vpop.f32.mrf.mxu0
        %1152 = vdwg.mxu0
        %vm1153 = vcmask 31744
        %v1154 = vsel %vm1153, %v1148, -inf
        %1155 = vmax.xlane.f32.xlu0 %v1154
        %v1156 = vpop.xlane.xlu0 %1155
        %v1157 = vsub.f32 %v1148, %v1156
        %v1158 = vmul.f32 %v1157, 1.442695
        %v1159 = vpow.pop %v1158
        %v1160 = vsel %vm1153, %v1159, 0.0
        %1161 = vadd.xlane.f32.xlu0 %v1160
        %v1162 = vpop.xlane.xlu0 %1161
        %v1163 = vrcp.pop %v1162
        %v1164 = vmul.f32 %v1159, %v1163
        %v1165 = vpack.c.bf16 %v1164, %v1164
        %1166 = vxpose.xlu0.c.b16.start [1/8] %v1165, 128
        %1167 = vxpose.xlu0.c.b16.cont [2/8] 0, 128
        %1168 = vxpose.xlu0.c.b16.cont [3/8] 0, 128
        %1169 = vxpose.xlu0.c.b16.cont [4/8] 0, 128
        %1170 = vxpose.xlu0.c.b16.cont [5/8] 0, 128
        %1171 = vxpose.xlu0.c.b16.cont [6/8] 0, 128
        %1172 = vxpose.xlu0.c.b16.cont [7/8] 0, 128
        %1173 = vxpose.xlu0.c.b16.end [8/8] 0, 128
        %v1174 = vpop.trf.xlu0
        %v1175 = vpop.trf.xlu0
        %v1176 = vpop.trf.xlu0
        %v1177 = vpop.trf.xlu0
        %v1178 = vpop.trf.xlu0
        %v1179 = vpop.trf.xlu0
        %v1180 = vpop.trf.xlu0
        %v1181 = vpop.trf.xlu0
        %v1183 = vsel %vm900, %v1174, 0
        %v1185 = vsel %vm904, %v1086, 0
        %1187 = vmatprep.subr.bf16.mxu0 0
        %1188 = vmatpush1.bf16.msra.mxu0 0
        %1189 = vmatprep.subr.bf16.mxu0 0
        %1190 = vmatpush1.bf16.msra.mxu0 0
        %1191 = vmatprep.subr.bf16.mxu0 0
        %1192 = vmatpush1.bf16.msra.mxu0 0
        %1193 = vmatprep.subr.bf16.mxu0 0
        %1194 = vmatpush1.bf16.msra.mxu0 0
        %1195 = vmatprep.subr.bf16.mxu0 0
        %1196 = vmatpush1.bf16.msra.mxu0 0
        %1197 = vmatprep.subr.bf16.mxu0 0
        %1198 = vmatpush1.bf16.msra.mxu0 0
        %1199 = vmatprep.subr.bf16.mxu0 0
        %1200 = vmatpush1.bf16.msra.mxu0 0
        %1201 = vmatprep.subr.bf16.mxu0 0
        %1202 = vmatpush1.bf16.msra.mxu0 %v1185
        %1203 = vmatprep.subr.bf16.mxu0 0
        %1204 = vmatpush2.bf16.msra.mxu0 0
        %1205 = vmatprep.subr.bf16.mxu0 0
        %1206 = vmatpush2.bf16.msra.mxu0 0
        %1207 = vmatprep.subr.bf16.mxu0 0
        %1208 = vmatpush2.bf16.msra.mxu0 0
        %1209 = vmatprep.subr.bf16.mxu0 0
        %1210 = vmatpush2.bf16.msra.mxu0 0
        %1211 = vmatprep.subr.bf16.mxu0 0
        %1212 = vmatpush2.bf16.msra.mxu0 0
        %1213 = vmatprep.subr.bf16.mxu0 0
        %1214 = vmatpush2.bf16.msra.mxu0 0
        %1215 = vmatprep.subr.bf16.mxu0 0
        %1216 = vmatpush2.bf16.msra.mxu0 0
        %1217 = vmatprep.subr.bf16.mxu0 0
        %1218 = vmatpush2.bf16.msra.mxu0 0
        %1219 = vmatprep.mubr.bf16.mxu0 0
        %1220 = vmatmul.mubr.bf16.gmra.mxu0 %v1183
        %v1221 = vpop.f32.mrf.mxu0
        %v1222 = vadd.f32 0.0, %v1221
        %v1223 = vpop.f32.mrf.mxu0
        %v1224 = vpop.f32.mrf.mxu0
        %v1225 = vpop.f32.mrf.mxu0
        %1226 = vdwg.mxu0
        %v1227 = vsel %vm904, %v898, 0
        %1229 = vmatprep.subr.bf16.mxu0 0
        %1230 = vmatpush1.bf16.msra.mxu0 0
        %1231 = vmatprep.subr.bf16.mxu0 0
        %1232 = vmatpush1.bf16.msra.mxu0 0
        %1233 = vmatprep.subr.bf16.mxu0 0
        %1234 = vmatpush1.bf16.msra.mxu0 0
        %1235 = vmatprep.subr.bf16.mxu0 0
        %1236 = vmatpush1.bf16.msra.mxu0 0
        %1237 = vmatprep.subr.bf16.mxu0 0
        %1238 = vmatpush1.bf16.msra.mxu0 0
        %1239 = vmatprep.subr.bf16.mxu0 0
        %1240 = vmatpush1.bf16.msra.mxu0 0
        %1241 = vmatprep.subr.bf16.mxu0 0
        %1242 = vmatpush1.bf16.msra.mxu0 0
        %1243 = vmatprep.subr.bf16.mxu0 0
        %1244 = vmatpush1.bf16.msra.mxu0 %v1227
        %1245 = vmatprep.subr.bf16.mxu0 0
        %1246 = vmatpush2.bf16.msra.mxu0 0
        %1247 = vmatprep.subr.bf16.mxu0 0
        %1248 = vmatpush2.bf16.msra.mxu0 0
        %1249 = vmatprep.subr.bf16.mxu0 0
        %1250 = vmatpush2.bf16.msra.mxu0 0
        %1251 = vmatprep.subr.bf16.mxu0 0
        %1252 = vmatpush2.bf16.msra.mxu0 0
        %1253 = vmatprep.subr.bf16.mxu0 0
        %1254 = vmatpush2.bf16.msra.mxu0 0
        %1255 = vmatprep.subr.bf16.mxu0 0
        %1256 = vmatpush2.bf16.msra.mxu0 0
        %1257 = vmatprep.subr.bf16.mxu0 0
        %1258 = vmatpush2.bf16.msra.mxu0 0
        %1259 = vmatprep.subr.bf16.mxu0 0
        %1260 = vmatpush2.bf16.msra.mxu0 0
        %1261 = vmatprep.mubr.bf16.mxu0 0
        %1262 = vmatmul.mubr.bf16.gmra.mxu0 %v1183
        %v1263 = vpop.f32.mrf.mxu0
        %v1264 = vadd.f32 0.0, %v1263
        %v1265 = vpop.f32.mrf.mxu0
        %v1266 = vpop.f32.mrf.mxu0
        %v1267 = vpop.f32.mrf.mxu0
        %1268 = vdwg.mxu0
        %v1269 = vpack.c.bf16 %v1264, %v1264
        %v1271 = vsel %vm900, %v1269, 0
        %v1274 = vsel %vm904, %v1165, 0
        %1276 = vmatprep.subr.bf16.mxu0 0
        %1277 = vmatpush1.bf16.msra.mxu0 0
        %1278 = vmatprep.subr.bf16.mxu0 0
        %1279 = vmatpush1.bf16.msra.mxu0 0
        %1280 = vmatprep.subr.bf16.mxu0 0
        %1281 = vmatpush1.bf16.msra.mxu0 0
        %1282 = vmatprep.subr.bf16.mxu0 0
        %1283 = vmatpush1.bf16.msra.mxu0 0
        %1284 = vmatprep.subr.bf16.mxu0 0
        %1285 = vmatpush1.bf16.msra.mxu0 0
        %1286 = vmatprep.subr.bf16.mxu0 0
        %1287 = vmatpush1.bf16.msra.mxu0 0
        %1288 = vmatprep.subr.bf16.mxu0 0
        %1289 = vmatpush1.bf16.msra.mxu0 0
        %1290 = vmatprep.subr.bf16.mxu0 0
        %1291 = vmatpush1.bf16.msra.mxu0 %v1274
        %1292 = vmatprep.subr.bf16.mxu0 0
        %1293 = vmatpush2.bf16.msra.mxu0 0
        %1294 = vmatprep.subr.bf16.mxu0 0
        %1295 = vmatpush2.bf16.msra.mxu0 0
        %1296 = vmatprep.subr.bf16.mxu0 0
        %1297 = vmatpush2.bf16.msra.mxu0 0
        %1298 = vmatprep.subr.bf16.mxu0 0
        %1299 = vmatpush2.bf16.msra.mxu0 0
        %1300 = vmatprep.subr.bf16.mxu0 0
        %1301 = vmatpush2.bf16.msra.mxu0 0
        %1302 = vmatprep.subr.bf16.mxu0 0
        %1303 = vmatpush2.bf16.msra.mxu0 0
        %1304 = vmatprep.subr.bf16.mxu0 0
        %1305 = vmatpush2.bf16.msra.mxu0 0
        %1306 = vmatprep.subr.bf16.mxu0 0
        %1307 = vmatpush2.bf16.msra.mxu0 0
        %1308 = vmatprep.mubr.bf16.mxu0 0
        %1309 = vmatmul.mubr.bf16.gmra.mxu0 %v1271
        %v1310 = vpop.f32.mrf.mxu0
        %v1311 = vadd.f32 0.0, %v1310
        %v1312 = vpop.f32.mrf.mxu0
        %v1313 = vpop.f32.mrf.mxu0
        %v1314 = vpop.f32.mrf.mxu0
        %1315 = vdwg.mxu0
        %1316 = vmatprep.subr.bf16.mxu0 0
        %1317 = vmatpush1.bf16.msra.mxu0 0
        %1318 = vmatprep.subr.bf16.mxu0 0
        %1319 = vmatpush1.bf16.msra.mxu0 0
        %1320 = vmatprep.subr.bf16.mxu0 0
        %1321 = vmatpush1.bf16.msra.mxu0 0
        %1322 = vmatprep.subr.bf16.mxu0 0
        %1323 = vmatpush1.bf16.msra.mxu0 0
        %1324 = vmatprep.subr.bf16.mxu0 0
        %1325 = vmatpush1.bf16.msra.mxu0 0
        %1326 = vmatprep.subr.bf16.mxu0 0
        %1327 = vmatpush1.bf16.msra.mxu0 0
        %1328 = vmatprep.subr.bf16.mxu0 0
        %1329 = vmatpush1.bf16.msra.mxu0 0
        %1330 = vmatprep.subr.bf16.mxu0 0
        %1331 = vmatpush1.bf16.msra.mxu0 %v1274
        %1332 = vmatprep.subr.bf16.mxu0 0
        %1333 = vmatpush2.bf16.msra.mxu0 0
        %1334 = vmatprep.subr.bf16.mxu0 0
        %1335 = vmatpush2.bf16.msra.mxu0 0
        %1336 = vmatprep.subr.bf16.mxu0 0
        %1337 = vmatpush2.bf16.msra.mxu0 0
        %1338 = vmatprep.subr.bf16.mxu0 0
        %1339 = vmatpush2.bf16.msra.mxu0 0
        %1340 = vmatprep.subr.bf16.mxu0 0
        %1341 = vmatpush2.bf16.msra.mxu0 0
        %1342 = vmatprep.subr.bf16.mxu0 0
        %1343 = vmatpush2.bf16.msra.mxu0 0
        %1344 = vmatprep.subr.bf16.mxu0 0
        %1345 = vmatpush2.bf16.msra.mxu0 0
        %1346 = vmatprep.subr.bf16.mxu0 0
        %1347 = vmatpush2.bf16.msra.mxu0 0
        %1348 = vmatprep.mubr.bf16.mxu0 0
        %1349 = vmatmul.mubr.bf16.gmra.mxu0 %v1183
        %v1350 = vpop.f32.mrf.mxu0
        %v1351 = vadd.f32 0.0, %v1350
        %v1352 = vpop.f32.mrf.mxu0
        %v1353 = vpop.f32.mrf.mxu0
        %v1354 = vpop.f32.mrf.mxu0
        %1355 = vdwg.mxu0
        %v1356 = vlaneseq
        %v1357 = vshrl.u32 %v1356, 7
        %v1358 = vlaneseq
        %v1359 = vand.u32 %v1358, 127
        %vm1360 = vcmp.eq.s32.totalorder %v1357, %v1359
        %v1361 = vsel %vm1360, 1, 0
        %v1362 = vcvt.s32.f32 %v1361
        %v1363 = vmul.f32 %v1311, %v1362
        %vm1364 = vcmask 27648
        %v1365 = vsel %vm1364, %v1363, 0.0
        %1366 = vadd.xlane.f32.xlu0 %v1365
        %v1367 = vpop.xlane.xlu0 %1366
        %v1368 = vrot.slane %v1367, 4
        %v1369 = vadd.f32 %v1367, %v1368
        %v1370 = vrot.slane %v1369, 2
        %v1371 = vadd.f32 %v1369, %v1370
        %v1372 = vrot.slane %v1371, 1
        %v1373 = vadd.f32 %v1371, %v1372
        %s1374 = vtos %v1373
        %v1375 = vstv %s1374
        %v1376 = vsel %vm900, %v897, 0.0
        %1377 = vadd.xlane.f32.xlu0 %v1376
        %v1378 = vpop.xlane.xlu0 %1377
        %v1379 = vmul.f32 %v1164, %v1164
        %v1380 = vsel %vm1153, %v1379, 0.0
        %1381 = vadd.xlane.f32.xlu0 %v1380
        %v1382 = vpop.xlane.xlu0 %1381
        %v1383 = vmul.f32 %v1378, %v1382
        %vm1384 = vcmask 7168
        %v1385 = vsel %vm1384, %v1383, 0.0
        %1386 = vadd.xlane.f32.xlu0 %v1385
        %v1387 = vpop.xlane.xlu0 %1386
        %v1388 = vrot.slane %v1387, 4
        %v1389 = vadd.f32 %v1387, %v1388
        %v1390 = vrot.slane %v1389, 2
        %v1391 = vadd.f32 %v1389, %v1390
        %v1392 = vrot.slane %v1391, 1
        %v1393 = vadd.f32 %v1391, %v1392
        %s1394 = vtos %v1393
        %v1395 = vstv %s1394
        %v1396 = vrcp.pop %v1395
        %v1397 = vmul.f32 %v1375, %v1396
        %v1398 = vsub.f32 0.0, %v1397
        %v1399 = vmul.f32 %v1351, %v1351
        %v1400 = vsel %vm1364, %v1399, 0.0
        %1401 = vadd.xlane.f32.xlu0 %v1400
        %v1402 = vpop.xlane.xlu0 %1401
        %v1403 = vrot.slane %v1402, 4
        %v1404 = vadd.f32 %v1402, %v1403
        %v1405 = vrot.slane %v1404, 2
        %v1406 = vadd.f32 %v1404, %v1405
        %v1407 = vrot.slane %v1406, 1
        %v1408 = vadd.f32 %v1406, %v1407
        %s1409 = vtos %v1408
        %v1410 = vstv %s1409
        %v1411 = vrsqrt.pop %v1410
        %v1412 = vmul.f32 %v1410, %v1411
        %vm1413 = vcmp.eq.f32.partialorder %v1410, inf
        %v1414 = vsel %vm1413, %v1410, %v1412
        %vm1415 = vcmp.eq.f32.partialorder %v1410, 0.0
        %v1416 = vand.u32 %v1410, 2147483648
        %v1417 = vsel %vm1415, %v1416, %v1414
        %v1418 = vrcp.pop %v1417
        %v1419 = vmul.f32 %v1351, %v1418
        %v1420 = vmul.f32 %v1362, 0.5
        %v1421 = vsub.f32 %v1419, %v1420
        %v1422 = vmul.f32 %v1421, %v1421
        %v1423 = vsel %vm1364, %v1422, 0.0
        %1424 = vadd.xlane.f32.xlu0 %v1423
        %v1425 = vpop.xlane.xlu0 %1424
        %v1426 = vrot.slane %v1425, 4
        %v1427 = vadd.f32 %v1425, %v1426
        %v1428 = vrot.slane %v1427, 2
        %v1429 = vadd.f32 %v1427, %v1428
        %v1430 = vrot.slane %v1429, 1
        %v1431 = vadd.f32 %v1429, %v1430
        %s1432 = vtos %v1431
        %v1433 = vstv %s1432
        %v1434 = vrsqrt.pop %v1433
        %v1435 = vmul.f32 %v1433, %v1434
        %vm1436 = vcmp.eq.f32.partialorder %v1433, inf
        %v1437 = vsel %vm1436, %v1433, %v1435
        %vm1438 = vcmp.eq.f32.partialorder %v1433, 0.0
        %v1439 = vand.u32 %v1433, 2147483648
        %v1440 = vsel %vm1438, %v1439, %v1437
        %v1441 = vsub.f32 1.0, %v1362
        %v1442 = vmul.f32 %v1311, %v1441
        %v1443 = vsel %vm1364, %v1442, 0.0
        %1444 = vadd.xlane.f32.xlu0 %v1443
        %v1445 = vpop.xlane.xlu0 %1444
        %v1446 = vrsqrt.pop %v1445
        %v1447 = vmul.f32 %v1445, %v1446
        %vm1448 = vcmp.eq.f32.partialorder %v1445, inf
        %v1449 = vsel %vm1448, %v1445, %v1447
        %vm1450 = vcmp.eq.f32.partialorder %v1445, 0.0
        %v1451 = vand.u32 %v1445, 2147483648
        %v1452 = vsel %vm1450, %v1451, %v1449
        %v1453 = vadd.f32 %v1452, 1e-15
        %v1454 = vmul.f32 %v1362, %v1453
        %v1455 = vsel %vm1364, %v1454, 0.0
        %v1456 = vrot.slane %v1455, 4
        %v1457 = vadd.f32 %v1455, %v1456
        %v1458 = vrot.slane %v1457, 2
        %v1459 = vadd.f32 %v1457, %v1458
        %v1460 = vrot.slane %v1459, 1
        %v1461 = vadd.f32 %v1459, %v1460
        %v1462 = vrcp.pop %v1453
        %v1463 = vmul.f32 %v1442, %v1462
        %v1464 = vrcp.pop %v1461
        %v1465 = vmul.f32 %v1463, %v1464
        %1466 = vst.msk [vmem:[%s891] sm:$0xf] %vm1364, %v1465
        %vm1467 = vcmask 0
        %1468 = vst.msk [vmem:[%s869] sm:$0x1] %vm1467, %v1398
        %1469 = vst.msk [vmem:[%s875] sm:$0x1] %vm1467, %v1440
        %v1470 = vld [vmem:[%s8] sm:$0xf]
        %v1471 = vld [vmem:[%s8 + $0x4] sm:$0xf]
        %v1472 = vld [vmem:[%s8 + $0x8] sm:$0xf]
        %v1473 = vld [vmem:[%s8 + $0xc] sm:$0xf]
        %v1474 = vld [vmem:[%s8 + $0x10] sm:$0xf]
        %v1475 = vld [vmem:[%s8 + $0x14] sm:$0xf]
        %v1476 = vld [vmem:[%s8 + $0x18] sm:$0xf]
        %v1477 = vld [vmem:[%s8 + $0x1c] sm:$0xf]
        %v1478 = vld [vmem:[%s9] sm:$0xf]
        %v1479 = vld [vmem:[%s9 + $0x4] sm:$0xf]
        %v1480 = vld [vmem:[%s9 + $0x8] sm:$0xf]
        %v1481 = vld [vmem:[%s9 + $0xc] sm:$0xf]
        %v1482 = vld [vmem:[%s9 + $0x10] sm:$0xf]
        %v1483 = vld [vmem:[%s9 + $0x14] sm:$0xf]
        %v1484 = vld [vmem:[%s9 + $0x18] sm:$0xf]
        %v1485 = vld [vmem:[%s9 + $0x1c] sm:$0xf]
        %v1486 = vld [vmem:[%s10] sm:$0xf]
        %v1487 = vld [vmem:[%s10 + $0x4] sm:$0xf]
        %v1488 = vld [vmem:[%s10 + $0x8] sm:$0xf]
        %v1489 = vld [vmem:[%s10 + $0xc] sm:$0xf]
        %v1490 = vld [vmem:[%s10 + $0x10] sm:$0xf]
        %v1491 = vld [vmem:[%s10 + $0x14] sm:$0xf]
        %v1492 = vld [vmem:[%s10 + $0x18] sm:$0xf]
        %v1493 = vld [vmem:[%s10 + $0x1c] sm:$0xf]
        %v1494 = vld [vmem:[%s11] sm:$0x1]
        %v1495 = vld [vmem:[%s11 + $0x1] sm:$0x1]
        %v1496 = vld [vmem:[%s12] sm:$0x1]
        %v1497 = vld [vmem:[%s12 + $0x1] sm:$0x1]
        %v1498 = vld [vmem:[%s13] sm:$0x1]
        %v1499 = vld [vmem:[%s13 + $0x1] sm:$0x1]
        %v1500 = vld [vmem:[%s14] sm:$0xf]
        %v1501 = vld [vmem:[%s14 + $0x4] sm:$0xf]
        %v1502 = vld [vmem:[%s14 + $0x8] sm:$0xf]
        %v1503 = vld [vmem:[%s14 + $0xc] sm:$0xf]
        %v1504 = vld [vmem:[%s15] sm:$0x1]
        %v1505 = vld [vmem:[%s16] sm:$0xf]
        %v1506 = vld [vmem:[%s16 + $0x4] sm:$0xf]
        %v1507 = vld [vmem:[%s16 + $0x8] sm:$0xf]
        %v1508 = vld [vmem:[%s16 + $0xc] sm:$0xf]
        %v1509 = vld [vmem:[%s17] sm:$0x1]
        %v1510 = vld [vmem:[%s18] sm:$0xf]
        %v1511 = vld [vmem:[%s18 + $0x4] sm:$0xf]
        %v1512 = vld [vmem:[%s18 + $0x8] sm:$0xf]
        %v1513 = vld [vmem:[%s18 + $0xc] sm:$0xf]
        %v1514 = vld [vmem:[%s19] sm:$0x1]
        %v1515 = vld [vmem:[%s20] sm:$0x1]
        %v1516 = vld [vmem:[%s21] sm:$0x1]
        %v1517 = vld [vmem:[%s22] sm:$0x1]
        %v1518 = vld [vmem:[%s23] sm:$0x1]
        loop: start=0, step=1, limit=6
        $region117: #{hatnetc_forward.6} parent=115 // loop_pre_header
          _
        $region118: #{hatnetc_forward.6} parent=115 // loop_header
          %s1520 = sphi 0, %s1524
          %p1521 = scmp.ge.s32.totalorder %s1520, 6
          %v1525 = vphi %v1222, %v2385
        $region119: #{hatnetc_forward.6} parent=115 // loop_header_branch
          %1523 = sbr.rel (%p1521) target = $region123
        $region120: #{hatnetc_forward.6} parent=115 // loop_body
          %v1526 = vpack.c.bf16 %v1525, %v1525
          %v1528 = vlaneseq
          %v1529 = vshrl.u32 %v1528, 7
          %v1530 = vsub.s32 0, %v1529
          %v1531 = vrot.slane %v1494, %v1530
          %v1537 = vunpack.c.l.b16 %v1470
          %v1538 = vunpack.c.l.b16 %v1471
          %v1539 = vunpack.c.l.b16 %v1472
          %v1540 = vunpack.c.l.b16 %v1473
          %v1541 = vpack.c.b16 %v1538, %v1537
          %v1542 = vpack.c.b16 %v1540, %v1539
          %v1546 = vsel %vm973, %v1526, 0
          %1548 = vmatprep.subr.bf16.mxu0 0
          %1549 = vmatpush1.bf16.msra.mxu0 0
          %1550 = vmatprep.subr.bf16.mxu0 0
          %1551 = vmatpush1.bf16.msra.mxu0 0
          %1552 = vmatprep.subr.bf16.mxu0 0
          %1553 = vmatpush1.bf16.msra.mxu0 0
          %1554 = vmatprep.subr.bf16.mxu0 0
          %1555 = vmatpush1.bf16.msra.mxu0 0
          %1556 = vmatprep.subr.bf16.mxu0 0
          %1557 = vmatpush1.bf16.msra.mxu0 0
          %1558 = vmatprep.subr.bf16.mxu0 0
          %1559 = vmatpush1.bf16.msra.mxu0 0
          %1560 = vmatprep.subr.bf16.mxu0 0
          %1561 = vmatpush1.bf16.msra.mxu0 %v1542
          %1562 = vmatprep.subr.bf16.mxu0 0
          %1563 = vmatpush1.bf16.msra.mxu0 %v1541
          %1564 = vmatprep.subr.bf16.mxu0 0
          %1565 = vmatpush2.bf16.msra.mxu0 0
          %1566 = vmatprep.subr.bf16.mxu0 0
          %1567 = vmatpush2.bf16.msra.mxu0 0
          %1568 = vmatprep.subr.bf16.mxu0 0
          %1569 = vmatpush2.bf16.msra.mxu0 0
          %1570 = vmatprep.subr.bf16.mxu0 0
          %1571 = vmatpush2.bf16.msra.mxu0 0
          %1572 = vmatprep.subr.bf16.mxu0 0
          %1573 = vmatpush2.bf16.msra.mxu0 0
          %1574 = vmatprep.subr.bf16.mxu0 0
          %1575 = vmatpush2.bf16.msra.mxu0 0
          %1576 = vmatprep.subr.bf16.mxu0 0
          %1577 = vmatpush2.bf16.msra.mxu0 0
          %1578 = vmatprep.subr.bf16.mxu0 0
          %1579 = vmatpush2.bf16.msra.mxu0 0
          %1580 = vmatprep.mubr.bf16.mxu0 0
          %1581 = vmatmul.mubr.bf16.gmra.mxu0 %v1546
          %v1582 = vpop.f32.mrf.mxu0
          %v1583 = vadd.f32 %v1531, %v1582
          %v1584 = vpop.f32.mrf.mxu0
          %v1585 = vpop.f32.mrf.mxu0
          %v1586 = vpop.f32.mrf.mxu0
          %1587 = vdwg.mxu0
          %v1588 = vmul.f32 %v1583, 0.25
          %v1590 = vlaneseq
          %v1591 = vshrl.u32 %v1590, 7
          %v1592 = vsub.s32 0, %v1591
          %v1593 = vrot.slane %v1496, %v1592
          %v1599 = vunpack.c.l.b16 %v1478
          %v1600 = vunpack.c.l.b16 %v1479
          %v1601 = vunpack.c.l.b16 %v1480
          %v1602 = vunpack.c.l.b16 %v1481
          %v1603 = vpack.c.b16 %v1600, %v1599
          %v1604 = vpack.c.b16 %v1602, %v1601
          %1607 = vmatprep.subr.bf16.mxu0 0
          %1608 = vmatpush1.bf16.msra.mxu0 0
          %1609 = vmatprep.subr.bf16.mxu0 0
          %1610 = vmatpush1.bf16.msra.mxu0 0
          %1611 = vmatprep.subr.bf16.mxu0 0
          %1612 = vmatpush1.bf16.msra.mxu0 0
          %1613 = vmatprep.subr.bf16.mxu0 0
          %1614 = vmatpush1.bf16.msra.mxu0 0
          %1615 = vmatprep.subr.bf16.mxu0 0
          %1616 = vmatpush1.bf16.msra.mxu0 0
          %1617 = vmatprep.subr.bf16.mxu0 0
          %1618 = vmatpush1.bf16.msra.mxu0 0
          %1619 = vmatprep.subr.bf16.mxu0 0
          %1620 = vmatpush1.bf16.msra.mxu0 %v1604
          %1621 = vmatprep.subr.bf16.mxu0 0
          %1622 = vmatpush1.bf16.msra.mxu0 %v1603
          %1623 = vmatprep.subr.bf16.mxu0 0
          %1624 = vmatpush2.bf16.msra.mxu0 0
          %1625 = vmatprep.subr.bf16.mxu0 0
          %1626 = vmatpush2.bf16.msra.mxu0 0
          %1627 = vmatprep.subr.bf16.mxu0 0
          %1628 = vmatpush2.bf16.msra.mxu0 0
          %1629 = vmatprep.subr.bf16.mxu0 0
          %1630 = vmatpush2.bf16.msra.mxu0 0
          %1631 = vmatprep.subr.bf16.mxu0 0
          %1632 = vmatpush2.bf16.msra.mxu0 0
          %1633 = vmatprep.subr.bf16.mxu0 0
          %1634 = vmatpush2.bf16.msra.mxu0 0
          %1635 = vmatprep.subr.bf16.mxu0 0
          %1636 = vmatpush2.bf16.msra.mxu0 0
          %1637 = vmatprep.subr.bf16.mxu0 0
          %1638 = vmatpush2.bf16.msra.mxu0 0
          %1639 = vmatprep.mubr.bf16.mxu0 0
          %1640 = vmatmul.mubr.bf16.gmra.mxu0 %v1546
          %v1641 = vpop.f32.mrf.mxu0
          %v1642 = vadd.f32 %v1593, %v1641
          %v1643 = vpop.f32.mrf.mxu0
          %v1644 = vpop.f32.mrf.mxu0
          %v1645 = vpop.f32.mrf.mxu0
          %1646 = vdwg.mxu0
          %v1648 = vlaneseq
          %v1649 = vshrl.u32 %v1648, 7
          %v1650 = vsub.s32 0, %v1649
          %v1651 = vrot.slane %v1498, %v1650
          %v1657 = vunpack.c.l.b16 %v1486
          %v1658 = vunpack.c.l.b16 %v1487
          %v1659 = vunpack.c.l.b16 %v1488
          %v1660 = vunpack.c.l.b16 %v1489
          %v1661 = vpack.c.b16 %v1658, %v1657
          %v1662 = vpack.c.b16 %v1660, %v1659
          %1665 = vmatprep.subr.bf16.mxu0 0
          %1666 = vmatpush1.bf16.msra.mxu0 0
          %1667 = vmatprep.subr.bf16.mxu0 0
          %1668 = vmatpush1.bf16.msra.mxu0 0
          %1669 = vmatprep.subr.bf16.mxu0 0
          %1670 = vmatpush1.bf16.msra.mxu0 0
          %1671 = vmatprep.subr.bf16.mxu0 0
          %1672 = vmatpush1.bf16.msra.mxu0 0
          %1673 = vmatprep.subr.bf16.mxu0 0
          %1674 = vmatpush1.bf16.msra.mxu0 0
          %1675 = vmatprep.subr.bf16.mxu0 0
          %1676 = vmatpush1.bf16.msra.mxu0 0
          %1677 = vmatprep.subr.bf16.mxu0 0
          %1678 = vmatpush1.bf16.msra.mxu0 %v1662
          %1679 = vmatprep.subr.bf16.mxu0 0
          %1680 = vmatpush1.bf16.msra.mxu0 %v1661
          %1681 = vmatprep.subr.bf16.mxu0 0
          %1682 = vmatpush2.bf16.msra.mxu0 0
          %1683 = vmatprep.subr.bf16.mxu0 0
          %1684 = vmatpush2.bf16.msra.mxu0 0
          %1685 = vmatprep.subr.bf16.mxu0 0
          %1686 = vmatpush2.bf16.msra.mxu0 0
          %1687 = vmatprep.subr.bf16.mxu0 0
          %1688 = vmatpush2.bf16.msra.mxu0 0
          %1689 = vmatprep.subr.bf16.mxu0 0
          %1690 = vmatpush2.bf16.msra.mxu0 0
          %1691 = vmatprep.subr.bf16.mxu0 0
          %1692 = vmatpush2.bf16.msra.mxu0 0
          %1693 = vmatprep.subr.bf16.mxu0 0
          %1694 = vmatpush2.bf16.msra.mxu0 0
          %1695 = vmatprep.subr.bf16.mxu0 0
          %1696 = vmatpush2.bf16.msra.mxu0 0
          %1697 = vmatprep.mubr.bf16.mxu0 0
          %1698 = vmatmul.mubr.bf16.gmra.mxu0 %v1546
          %v1699 = vpop.f32.mrf.mxu0
          %v1700 = vadd.f32 %v1651, %v1699
          %v1701 = vpop.f32.mrf.mxu0
          %v1702 = vpop.f32.mrf.mxu0
          %v1703 = vpop.f32.mrf.mxu0
          %1704 = vdwg.mxu0
          %v1705 = vpack.c.bf16 %v1588, %v1588
          %v1706 = vpack.c.bf16 %v1642, %v1642
          %vm1707 = vcmask 130048
          %v1709 = vsel %vm1707, %v1705, 0
          %v1712 = vsel %vm1707, %v1706, 0
          %1714 = vmatprep.subr.bf16.mxu0 0
          %1715 = vmatpush1.bf16.xpose.msra.mxu0 0
          %1716 = vmatprep.subr.bf16.mxu0 0
          %1717 = vmatpush1.bf16.xpose.msra.mxu0 0
          %1718 = vmatprep.subr.bf16.mxu0 0
          %1719 = vmatpush1.bf16.xpose.msra.mxu0 0
          %1720 = vmatprep.subr.bf16.mxu0 0
          %1721 = vmatpush1.bf16.xpose.msra.mxu0 0
          %1722 = vmatprep.subr.bf16.mxu0 0
          %1723 = vmatpush1.bf16.xpose.msra.mxu0 0
          %1724 = vmatprep.subr.bf16.mxu0 0
          %1725 = vmatpush1.bf16.xpose.msra.mxu0 0
          %1726 = vmatprep.subr.bf16.mxu0 0
          %1727 = vmatpush1.bf16.xpose.msra.mxu0 0
          %1728 = vmatprep.subr.bf16.mxu0 0
          %1729 = vmatpush1.bf16.xpose.msra.mxu0 %v1712
          %1730 = vmatprep.subr.bf16.mxu0 0
          %1731 = vmatpush2.bf16.xpose.msra.mxu0 0
          %1732 = vmatprep.subr.bf16.mxu0 0
          %1733 = vmatpush2.bf16.xpose.msra.mxu0 0
          %1734 = vmatprep.subr.bf16.mxu0 0
          %1735 = vmatpush2.bf16.xpose.msra.mxu0 0
          %1736 = vmatprep.subr.bf16.mxu0 0
          %1737 = vmatpush2.bf16.xpose.msra.mxu0 0
          %1738 = vmatprep.subr.bf16.mxu0 0
          %1739 = vmatpush2.bf16.xpose.msra.mxu0 0
          %1740 = vmatprep.subr.bf16.mxu0 0
          %1741 = vmatpush2.bf16.xpose.msra.mxu0 0
          %1742 = vmatprep.subr.bf16.mxu0 0
          %1743 = vmatpush2.bf16.xpose.msra.mxu0 0
          %1744 = vmatprep.subr.bf16.mxu0 0
          %1745 = vmatpush2.bf16.xpose.msra.mxu0 0
          %1746 = vmatprep.mubr.bf16.mxu0 0
          %1747 = vmatmul.mubr.bf16.gmra.mxu0 %v1709
          %v1748 = vpop.f32.mrf.mxu0
          %v1749 = vadd.f32 0.0, %v1748
          %v1750 = vpop.f32.mrf.mxu0
          %v1751 = vpop.f32.mrf.mxu0
          %v1752 = vpop.f32.mrf.mxu0
          %1753 = vdwg.mxu0
          %v1754 = vsel %vm1364, %v1749, -inf
          %1755 = vmax.xlane.f32.xlu0 %v1754
          %v1756 = vpop.xlane.xlu0 %1755
          %v1757 = vsub.f32 %v1749, %v1756
          %v1758 = vmul.f32 %v1757, 1.442695
          %v1759 = vpow.pop %v1758
          %v1760 = vsel %vm1364, %v1759, 0.0
          %1761 = vadd.xlane.f32.xlu0 %v1760
          %v1762 = vpop.xlane.xlu0 %1761
          %v1763 = vrcp.pop %v1762
          %v1764 = vmul.f32 %v1759, %v1763
          %v1765 = vpack.c.bf16 %v1764, %v1764
          %v1766 = vpack.c.bf16 %v1700, %v1700
          %v1768 = vsel %vm1153, %v1765, 0
          %vm1770 = vcmask 1041408
          %v1772 = vsel %vm1770, %v1766, 0
          %1774 = vmatprep.subr.bf16.mxu0 0
          %1775 = vmatpush1.bf16.msra.mxu0 0
          %1776 = vmatprep.subr.bf16.mxu0 0
          %1777 = vmatpush1.bf16.msra.mxu0 0
          %1778 = vmatprep.subr.bf16.mxu0 0
          %1779 = vmatpush1.bf16.msra.mxu0 0
          %1780 = vmatprep.subr.bf16.mxu0 0
          %1781 = vmatpush1.bf16.msra.mxu0 0
          %1782 = vmatprep.subr.bf16.mxu0 0
          %1783 = vmatpush1.bf16.msra.mxu0 0
          %1784 = vmatprep.subr.bf16.mxu0 0
          %1785 = vmatpush1.bf16.msra.mxu0 0
          %1786 = vmatprep.subr.bf16.mxu0 0
          %1787 = vmatpush1.bf16.msra.mxu0 0
          %1788 = vmatprep.subr.bf16.mxu0 0
          %1789 = vmatpush1.bf16.msra.mxu0 %v1772
          %1790 = vmatprep.subr.bf16.mxu0 0
          %1791 = vmatpush2.bf16.msra.mxu0 0
          %1792 = vmatprep.subr.bf16.mxu0 0
          %1793 = vmatpush2.bf16.msra.mxu0 0
          %1794 = vmatprep.subr.bf16.mxu0 0
          %1795 = vmatpush2.bf16.msra.mxu0 0
          %1796 = vmatprep.subr.bf16.mxu0 0
          %1797 = vmatpush2.bf16.msra.mxu0 0
          %1798 = vmatprep.subr.bf16.mxu0 0
          %1799 = vmatpush2.bf16.msra.mxu0 0
          %1800 = vmatprep.subr.bf16.mxu0 0
          %1801 = vmatpush2.bf16.msra.mxu0 0
          %1802 = vmatprep.subr.bf16.mxu0 0
          %1803 = vmatpush2.bf16.msra.mxu0 0
          %1804 = vmatprep.subr.bf16.mxu0 0
          %1805 = vmatpush2.bf16.msra.mxu0 0
          %1806 = vmatprep.mubr.bf16.mxu0 0
          %1807 = vmatmul.mubr.bf16.gmra.mxu0 %v1768
          %v1808 = vpop.f32.mrf.mxu0
          %v1809 = vadd.f32 0.0, %v1808
          %v1810 = vpop.f32.mrf.mxu0
          %v1811 = vpop.f32.mrf.mxu0
          %v1812 = vpop.f32.mrf.mxu0
          %1813 = vdwg.mxu0
          %v1814 = vpack.c.bf16 %v1809, %v1809
          %v1816 = vlaneseq
          %v1817 = vshrl.u32 %v1816, 7
          %v1818 = vsub.s32 0, %v1817
          %v1819 = vrot.slane %v1495, %v1818
          %v1825 = vunpack.c.l.b16 %v1474
          %v1826 = vunpack.c.l.b16 %v1475
          %v1827 = vunpack.c.l.b16 %v1476
          %v1828 = vunpack.c.l.b16 %v1477
          %v1829 = vpack.c.b16 %v1826, %v1825
          %v1830 = vpack.c.b16 %v1828, %v1827
          %1833 = vmatprep.subr.bf16.mxu0 0
          %1834 = vmatpush1.bf16.msra.mxu0 0
          %1835 = vmatprep.subr.bf16.mxu0 0
          %1836 = vmatpush1.bf16.msra.mxu0 0
          %1837 = vmatprep.subr.bf16.mxu0 0
          %1838 = vmatpush1.bf16.msra.mxu0 0
          %1839 = vmatprep.subr.bf16.mxu0 0
          %1840 = vmatpush1.bf16.msra.mxu0 0
          %1841 = vmatprep.subr.bf16.mxu0 0
          %1842 = vmatpush1.bf16.msra.mxu0 0
          %1843 = vmatprep.subr.bf16.mxu0 0
          %1844 = vmatpush1.bf16.msra.mxu0 0
          %1845 = vmatprep.subr.bf16.mxu0 0
          %1846 = vmatpush1.bf16.msra.mxu0 %v1830
          %1847 = vmatprep.subr.bf16.mxu0 0
          %1848 = vmatpush1.bf16.msra.mxu0 %v1829
          %1849 = vmatprep.subr.bf16.mxu0 0
          %1850 = vmatpush2.bf16.msra.mxu0 0
          %1851 = vmatprep.subr.bf16.mxu0 0
          %1852 = vmatpush2.bf16.msra.mxu0 0
          %1853 = vmatprep.subr.bf16.mxu0 0
          %1854 = vmatpush2.bf16.msra.mxu0 0
          %1855 = vmatprep.subr.bf16.mxu0 0
          %1856 = vmatpush2.bf16.msra.mxu0 0
          %1857 = vmatprep.subr.bf16.mxu0 0
          %1858 = vmatpush2.bf16.msra.mxu0 0
          %1859 = vmatprep.subr.bf16.mxu0 0
          %1860 = vmatpush2.bf16.msra.mxu0 0
          %1861 = vmatprep.subr.bf16.mxu0 0
          %1862 = vmatpush2.bf16.msra.mxu0 0
          %1863 = vmatprep.subr.bf16.mxu0 0
          %1864 = vmatpush2.bf16.msra.mxu0 0
          %1865 = vmatprep.mubr.bf16.mxu0 0
          %1866 = vmatmul.mubr.bf16.gmra.mxu0 %v1546
          %v1867 = vpop.f32.mrf.mxu0
          %v1868 = vadd.f32 %v1819, %v1867
          %v1869 = vpop.f32.mrf.mxu0
          %v1870 = vpop.f32.mrf.mxu0
          %v1871 = vpop.f32.mrf.mxu0
          %1872 = vdwg.mxu0
          %v1873 = vmul.f32 %v1868, 0.25
          %v1875 = vlaneseq
          %v1876 = vshrl.u32 %v1875, 7
          %v1877 = vsub.s32 0, %v1876
          %v1878 = vrot.slane %v1497, %v1877
          %v1884 = vunpack.c.l.b16 %v1482
          %v1885 = vunpack.c.l.b16 %v1483
          %v1886 = vunpack.c.l.b16 %v1484
          %v1887 = vunpack.c.l.b16 %v1485
          %v1888 = vpack.c.b16 %v1885, %v1884
          %v1889 = vpack.c.b16 %v1887, %v1886
          %1892 = vmatprep.subr.bf16.mxu0 0
          %1893 = vmatpush1.bf16.msra.mxu0 0
          %1894 = vmatprep.subr.bf16.mxu0 0
          %1895 = vmatpush1.bf16.msra.mxu0 0
          %1896 = vmatprep.subr.bf16.mxu0 0
          %1897 = vmatpush1.bf16.msra.mxu0 0
          %1898 = vmatprep.subr.bf16.mxu0 0
          %1899 = vmatpush1.bf16.msra.mxu0 0
          %1900 = vmatprep.subr.bf16.mxu0 0
          %1901 = vmatpush1.bf16.msra.mxu0 0
          %1902 = vmatprep.subr.bf16.mxu0 0
          %1903 = vmatpush1.bf16.msra.mxu0 0
          %1904 = vmatprep.subr.bf16.mxu0 0
          %1905 = vmatpush1.bf16.msra.mxu0 %v1889
          %1906 = vmatprep.subr.bf16.mxu0 0
          %1907 = vmatpush1.bf16.msra.mxu0 %v1888
          %1908 = vmatprep.subr.bf16.mxu0 0
          %1909 = vmatpush2.bf16.msra.mxu0 0
          %1910 = vmatprep.subr.bf16.mxu0 0
          %1911 = vmatpush2.bf16.msra.mxu0 0
          %1912 = vmatprep.subr.bf16.mxu0 0
          %1913 = vmatpush2.bf16.msra.mxu0 0
          %1914 = vmatprep.subr.bf16.mxu0 0
          %1915 = vmatpush2.bf16.msra.mxu0 0
          %1916 = vmatprep.subr.bf16.mxu0 0
          %1917 = vmatpush2.bf16.msra.mxu0 0
          %1918 = vmatprep.subr.bf16.mxu0 0
          %1919 = vmatpush2.bf16.msra.mxu0 0
          %1920 = vmatprep.subr.bf16.mxu0 0
          %1921 = vmatpush2.bf16.msra.mxu0 0
          %1922 = vmatprep.subr.bf16.mxu0 0
          %1923 = vmatpush2.bf16.msra.mxu0 0
          %1924 = vmatprep.mubr.bf16.mxu0 0
          %1925 = vmatmul.mubr.bf16.gmra.mxu0 %v1546
          %v1926 = vpop.f32.mrf.mxu0
          %v1927 = vadd.f32 %v1878, %v1926
          %v1928 = vpop.f32.mrf.mxu0
          %v1929 = vpop.f32.mrf.mxu0
          %v1930 = vpop.f32.mrf.mxu0
          %1931 = vdwg.mxu0
          %v1933 = vlaneseq
          %v1934 = vshrl.u32 %v1933, 7
          %v1935 = vsub.s32 0, %v1934
          %v1936 = vrot.slane %v1499, %v1935
          %v1942 = vunpack.c.l.b16 %v1490
          %v1943 = vunpack.c.l.b16 %v1491
          %v1944 = vunpack.c.l.b16 %v1492
          %v1945 = vunpack.c.l.b16 %v1493
          %v1946 = vpack.c.b16 %v1943, %v1942
          %v1947 = vpack.c.b16 %v1945, %v1944
          %1950 = vmatprep.subr.bf16.mxu0 0
          %1951 = vmatpush1.bf16.msra.mxu0 0
          %1952 = vmatprep.subr.bf16.mxu0 0
          %1953 = vmatpush1.bf16.msra.mxu0 0
          %1954 = vmatprep.subr.bf16.mxu0 0
          %1955 = vmatpush1.bf16.msra.mxu0 0
          %1956 = vmatprep.subr.bf16.mxu0 0
          %1957 = vmatpush1.bf16.msra.mxu0 0
          %1958 = vmatprep.subr.bf16.mxu0 0
          %1959 = vmatpush1.bf16.msra.mxu0 0
          %1960 = vmatprep.subr.bf16.mxu0 0
          %1961 = vmatpush1.bf16.msra.mxu0 0
          %1962 = vmatprep.subr.bf16.mxu0 0
          %1963 = vmatpush1.bf16.msra.mxu0 %v1947
          %1964 = vmatprep.subr.bf16.mxu0 0
          %1965 = vmatpush1.bf16.msra.mxu0 %v1946
          %1966 = vmatprep.subr.bf16.mxu0 0
          %1967 = vmatpush2.bf16.msra.mxu0 0
          %1968 = vmatprep.subr.bf16.mxu0 0
          %1969 = vmatpush2.bf16.msra.mxu0 0
          %1970 = vmatprep.subr.bf16.mxu0 0
          %1971 = vmatpush2.bf16.msra.mxu0 0
          %1972 = vmatprep.subr.bf16.mxu0 0
          %1973 = vmatpush2.bf16.msra.mxu0 0
          %1974 = vmatprep.subr.bf16.mxu0 0
          %1975 = vmatpush2.bf16.msra.mxu0 0
          %1976 = vmatprep.subr.bf16.mxu0 0
          %1977 = vmatpush2.bf16.msra.mxu0 0
          %1978 = vmatprep.subr.bf16.mxu0 0
          %1979 = vmatpush2.bf16.msra.mxu0 0
          %1980 = vmatprep.subr.bf16.mxu0 0
          %1981 = vmatpush2.bf16.msra.mxu0 0
          %1982 = vmatprep.mubr.bf16.mxu0 0
          %1983 = vmatmul.mubr.bf16.gmra.mxu0 %v1546
          %v1984 = vpop.f32.mrf.mxu0
          %v1985 = vadd.f32 %v1936, %v1984
          %v1986 = vpop.f32.mrf.mxu0
          %v1987 = vpop.f32.mrf.mxu0
          %v1988 = vpop.f32.mrf.mxu0
          %1989 = vdwg.mxu0
          %v1990 = vpack.c.bf16 %v1873, %v1873
          %v1991 = vpack.c.bf16 %v1927, %v1927
          %v1993 = vsel %vm1707, %v1990, 0
          %v1996 = vsel %vm1707, %v1991, 0
          %1998 = vmatprep.subr.bf16.mxu0 0
          %1999 = vmatpush1.bf16.xpose.msra.mxu0 0
          %2000 = vmatprep.subr.bf16.mxu0 0
          %2001 = vmatpush1.bf16.xpose.msra.mxu0 0
          %2002 = vmatprep.subr.bf16.mxu0 0
          %2003 = vmatpush1.bf16.xpose.msra.mxu0 0
          %2004 = vmatprep.subr.bf16.mxu0 0
          %2005 = vmatpush1.bf16.xpose.msra.mxu0 0
          %2006 = vmatprep.subr.bf16.mxu0 0
          %2007 = vmatpush1.bf16.xpose.msra.mxu0 0
          %2008 = vmatprep.subr.bf16.mxu0 0
          %2009 = vmatpush1.bf16.xpose.msra.mxu0 0
          %2010 = vmatprep.subr.bf16.mxu0 0
          %2011 = vmatpush1.bf16.xpose.msra.mxu0 0
          %2012 = vmatprep.subr.bf16.mxu0 0
          %2013 = vmatpush1.bf16.xpose.msra.mxu0 %v1996
          %2014 = vmatprep.subr.bf16.mxu0 0
          %2015 = vmatpush2.bf16.xpose.msra.mxu0 0
          %2016 = vmatprep.subr.bf16.mxu0 0
          %2017 = vmatpush2.bf16.xpose.msra.mxu0 0
          %2018 = vmatprep.subr.bf16.mxu0 0
          %2019 = vmatpush2.bf16.xpose.msra.mxu0 0
          %2020 = vmatprep.subr.bf16.mxu0 0
          %2021 = vmatpush2.bf16.xpose.msra.mxu0 0
          %2022 = vmatprep.subr.bf16.mxu0 0
          %2023 = vmatpush2.bf16.xpose.msra.mxu0 0
          %2024 = vmatprep.subr.bf16.mxu0 0
          %2025 = vmatpush2.bf16.xpose.msra.mxu0 0
          %2026 = vmatprep.subr.bf16.mxu0 0
          %2027 = vmatpush2.bf16.xpose.msra.mxu0 0
          %2028 = vmatprep.subr.bf16.mxu0 0
          %2029 = vmatpush2.bf16.xpose.msra.mxu0 0
          %2030 = vmatprep.mubr.bf16.mxu0 0
          %2031 = vmatmul.mubr.bf16.gmra.mxu0 %v1993
          %v2032 = vpop.f32.mrf.mxu0
          %v2033 = vadd.f32 0.0, %v2032
          %v2034 = vpop.f32.mrf.mxu0
          %v2035 = vpop.f32.mrf.mxu0
          %v2036 = vpop.f32.mrf.mxu0
          %2037 = vdwg.mxu0
          %v2038 = vsel %vm1364, %v2033, -inf
          %2039 = vmax.xlane.f32.xlu0 %v2038
          %v2040 = vpop.xlane.xlu0 %2039
          %v2041 = vsub.f32 %v2033, %v2040
          %v2042 = vmul.f32 %v2041, 1.442695
          %v2043 = vpow.pop %v2042
          %v2044 = vsel %vm1364, %v2043, 0.0
          %2045 = vadd.xlane.f32.xlu0 %v2044
          %v2046 = vpop.xlane.xlu0 %2045
          %v2047 = vrcp.pop %v2046
          %v2048 = vmul.f32 %v2043, %v2047
          %v2049 = vpack.c.bf16 %v2048, %v2048
          %v2050 = vpack.c.bf16 %v1985, %v1985
          %v2052 = vsel %vm1153, %v2049, 0
          %v2055 = vsel %vm1770, %v2050, 0
          %2057 = vmatprep.subr.bf16.mxu0 0
          %2058 = vmatpush1.bf16.msra.mxu0 0
          %2059 = vmatprep.subr.bf16.mxu0 0
          %2060 = vmatpush1.bf16.msra.mxu0 0
          %2061 = vmatprep.subr.bf16.mxu0 0
          %2062 = vmatpush1.bf16.msra.mxu0 0
          %2063 = vmatprep.subr.bf16.mxu0 0
          %2064 = vmatpush1.bf16.msra.mxu0 0
          %2065 = vmatprep.subr.bf16.mxu0 0
          %2066 = vmatpush1.bf16.msra.mxu0 0
          %2067 = vmatprep.subr.bf16.mxu0 0
          %2068 = vmatpush1.bf16.msra.mxu0 0
          %2069 = vmatprep.subr.bf16.mxu0 0
          %2070 = vmatpush1.bf16.msra.mxu0 0
          %2071 = vmatprep.subr.bf16.mxu0 0
          %2072 = vmatpush1.bf16.msra.mxu0 %v2055
          %2073 = vmatprep.subr.bf16.mxu0 0
          %2074 = vmatpush2.bf16.msra.mxu0 0
          %2075 = vmatprep.subr.bf16.mxu0 0
          %2076 = vmatpush2.bf16.msra.mxu0 0
          %2077 = vmatprep.subr.bf16.mxu0 0
          %2078 = vmatpush2.bf16.msra.mxu0 0
          %2079 = vmatprep.subr.bf16.mxu0 0
          %2080 = vmatpush2.bf16.msra.mxu0 0
          %2081 = vmatprep.subr.bf16.mxu0 0
          %2082 = vmatpush2.bf16.msra.mxu0 0
          %2083 = vmatprep.subr.bf16.mxu0 0
          %2084 = vmatpush2.bf16.msra.mxu0 0
          %2085 = vmatprep.subr.bf16.mxu0 0
          %2086 = vmatpush2.bf16.msra.mxu0 0
          %2087 = vmatprep.subr.bf16.mxu0 0
          %2088 = vmatpush2.bf16.msra.mxu0 0
          %2089 = vmatprep.mubr.bf16.mxu0 0
          %2090 = vmatmul.mubr.bf16.gmra.mxu0 %v2052
          %v2091 = vpop.f32.mrf.mxu0
          %v2092 = vadd.f32 0.0, %v2091
          %v2093 = vpop.f32.mrf.mxu0
          %v2094 = vpop.f32.mrf.mxu0
          %v2095 = vpop.f32.mrf.mxu0
          %2096 = vdwg.mxu0
          %v2097 = vpack.c.bf16 %v2092, %v2092
          %v2100 = vunpack.c.l.b16 %v1502
          %v2101 = vunpack.c.l.b16 %v1503
          %v2102 = vpack.c.b16 %v2101, %v2100
          %v2105 = vsel %vm1707, %v2097, 0
          %2107 = vmatprep.subr.bf16.mxu0 0
          %2108 = vmatpush1.bf16.msra.mxu0 0
          %2109 = vmatprep.subr.bf16.mxu0 0
          %2110 = vmatpush1.bf16.msra.mxu0 0
          %2111 = vmatprep.subr.bf16.mxu0 0
          %2112 = vmatpush1.bf16.msra.mxu0 0
          %2113 = vmatprep.subr.bf16.mxu0 0
          %2114 = vmatpush1.bf16.msra.mxu0 0
          %2115 = vmatprep.subr.bf16.mxu0 0
          %2116 = vmatpush1.bf16.msra.mxu0 0
          %2117 = vmatprep.subr.bf16.mxu0 0
          %2118 = vmatpush1.bf16.msra.mxu0 0
          %2119 = vmatprep.subr.bf16.mxu0 0
          %2120 = vmatpush1.bf16.msra.mxu0 0
          %2121 = vmatprep.subr.bf16.mxu0 0
          %2122 = vmatpush1.bf16.msra.mxu0 %v2102
          %2123 = vmatprep.subr.bf16.mxu0 0
          %2124 = vmatpush2.bf16.msra.mxu0 0
          %2125 = vmatprep.subr.bf16.mxu0 0
          %2126 = vmatpush2.bf16.msra.mxu0 0
          %2127 = vmatprep.subr.bf16.mxu0 0
          %2128 = vmatpush2.bf16.msra.mxu0 0
          %2129 = vmatprep.subr.bf16.mxu0 0
          %2130 = vmatpush2.bf16.msra.mxu0 0
          %2131 = vmatprep.subr.bf16.mxu0 0
          %2132 = vmatpush2.bf16.msra.mxu0 0
          %2133 = vmatprep.subr.bf16.mxu0 0
          %2134 = vmatpush2.bf16.msra.mxu0 0
          %2135 = vmatprep.subr.bf16.mxu0 0
          %2136 = vmatpush2.bf16.msra.mxu0 0
          %2137 = vmatprep.subr.bf16.mxu0 0
          %2138 = vmatpush2.bf16.msra.mxu0 0
          %2139 = vmatprep.mubr.bf16.mxu0 0
          %2140 = vmatmul.mubr.bf16.gmra.mxu0 %v2105
          %v2141 = vpop.f32.mrf.mxu0
          %v2142 = vadd.f32 0.0, %v2141
          %v2143 = vpop.f32.mrf.mxu0
          %v2144 = vpop.f32.mrf.mxu0
          %v2145 = vpop.f32.mrf.mxu0
          %2146 = vdwg.mxu0
          %v2149 = vunpack.c.l.b16 %v1500
          %v2150 = vunpack.c.l.b16 %v1501
          %v2151 = vpack.c.b16 %v2150, %v2149
          %v2154 = vsel %vm1707, %v1814, 0
          %2156 = vmatprep.subr.bf16.mxu0 0
          %2157 = vmatpush1.bf16.msra.mxu0 0
          %2158 = vmatprep.subr.bf16.mxu0 0
          %2159 = vmatpush1.bf16.msra.mxu0 0
          %2160 = vmatprep.subr.bf16.mxu0 0
          %2161 = vmatpush1.bf16.msra.mxu0 0
          %2162 = vmatprep.subr.bf16.mxu0 0
          %2163 = vmatpush1.bf16.msra.mxu0 0
          %2164 = vmatprep.subr.bf16.mxu0 0
          %2165 = vmatpush1.bf16.msra.mxu0 0
          %2166 = vmatprep.subr.bf16.mxu0 0
          %2167 = vmatpush1.bf16.msra.mxu0 0
          %2168 = vmatprep.subr.bf16.mxu0 0
          %2169 = vmatpush1.bf16.msra.mxu0 0
          %2170 = vmatprep.subr.bf16.mxu0 0
          %2171 = vmatpush1.bf16.msra.mxu0 %v2151
          %2172 = vmatprep.subr.bf16.mxu0 0
          %2173 = vmatpush2.bf16.msra.mxu0 0
          %2174 = vmatprep.subr.bf16.mxu0 0
          %2175 = vmatpush2.bf16.msra.mxu0 0
          %2176 = vmatprep.subr.bf16.mxu0 0
          %2177 = vmatpush2.bf16.msra.mxu0 0
          %2178 = vmatprep.subr.bf16.mxu0 0
          %2179 = vmatpush2.bf16.msra.mxu0 0
          %2180 = vmatprep.subr.bf16.mxu0 0
          %2181 = vmatpush2.bf16.msra.mxu0 0
          %2182 = vmatprep.subr.bf16.mxu0 0
          %2183 = vmatpush2.bf16.msra.mxu0 0
          %2184 = vmatprep.subr.bf16.mxu0 0
          %2185 = vmatpush2.bf16.msra.mxu0 0
          %2186 = vmatprep.subr.bf16.mxu0 0
          %2187 = vmatpush2.bf16.msra.mxu0 0
          %2188 = vmatprep.mubr.bf16.mxu0 0
          %2189 = vmatmul.mubr.bf16.gmra.mxu0 %v2154
          %v2190 = vpop.f32.mrf.mxu0
          %v2191 = vadd.f32 %v2142, %v2190
          %v2192 = vpop.f32.mrf.mxu0
          %v2193 = vpop.f32.mrf.mxu0
          %v2194 = vpop.f32.mrf.mxu0
          %2195 = vdwg.mxu0
          %v2196 = vadd.f32 %v1525, %v2191
          %v2198 = vlaneseq
          %v2199 = vshrl.u32 %v2198, 7
          %v2200 = vsub.s32 0, %v2199
          %v2201 = vrot.slane %v1504, %v2200
          %v2203 = vadd.f32 %v2196, %v2201
          %vm2204 = vcmask 257024
          %v2205 = vsel %vm2204, %v2203, 0.0
          %2206 = vadd.xlane.f32.xlu0 %v2205
          %v2207 = vpop.xlane.xlu0 %2206
          %v2208 = vrcp.pop 32.0
          %v2209 = vmul.f32 %v2207, %v2208
          %v2210 = vsub.f32 %v2203, %v2209
          %v2211 = vmul.f32 %v2210, %v2210
          %v2212 = vsel %vm2204, %v2211, 0.0
          %2213 = vadd.xlane.f32.xlu0 %v2212
          %v2214 = vpop.xlane.xlu0 %2213
          %v2215 = vmul.f32 %v2214, %v2208
          %v2216 = vadd.f32 %v2215, 1e-05
          %v2217 = vrsqrt.pop %v2216
          %v2218 = vmul.f32 %v2210, %v2217
          %v2220 = vlaneseq
          %v2221 = vshrl.u32 %v2220, 7
          %v2222 = vsub.s32 0, %v2221
          %v2223 = vrot.slane %v1515, %v2222
          %v2225 = vmul.f32 %v2218, %v2223
          %v2227 = vlaneseq
          %v2228 = vshrl.u32 %v2227, 7
          %v2229 = vsub.s32 0, %v2228
          %v2230 = vrot.slane %v1516, %v2229
          %v2232 = vadd.f32 %v2225, %v2230
          %v2233 = vpack.c.bf16 %v2232, %v2232
          %v2235 = vlaneseq
          %v2236 = vshrl.u32 %v2235, 7
          %v2237 = vsub.s32 0, %v2236
          %v2238 = vrot.slane %v1509, %v2237
          %v2244 = vunpack.c.l.b16 %v1505
          %v2245 = vunpack.c.l.b16 %v1506
          %v2246 = vunpack.c.l.b16 %v1507
          %v2247 = vunpack.c.l.b16 %v1508
          %v2248 = vpack.c.b16 %v2245, %v2244
          %v2249 = vpack.c.b16 %v2247, %v2246
          %v2253 = vsel %vm973, %v2233, 0
          %2255 = vmatprep.subr.bf16.mxu0 0
          %2256 = vmatpush1.bf16.msra.mxu0 0
          %2257 = vmatprep.subr.bf16.mxu0 0
          %2258 = vmatpush1.bf16.msra.mxu0 0
          %2259 = vmatprep.subr.bf16.mxu0 0
          %2260 = vmatpush1.bf16.msra.mxu0 0
          %2261 = vmatprep.subr.bf16.mxu0 0
          %2262 = vmatpush1.bf16.msra.mxu0 0
          %2263 = vmatprep.subr.bf16.mxu0 0
          %2264 = vmatpush1.bf16.msra.mxu0 0
          %2265 = vmatprep.subr.bf16.mxu0 0
          %2266 = vmatpush1.bf16.msra.mxu0 0
          %2267 = vmatprep.subr.bf16.mxu0 0
          %2268 = vmatpush1.bf16.msra.mxu0 %v2249
          %2269 = vmatprep.subr.bf16.mxu0 0
          %2270 = vmatpush1.bf16.msra.mxu0 %v2248
          %2271 = vmatprep.subr.bf16.mxu0 0
          %2272 = vmatpush2.bf16.msra.mxu0 0
          %2273 = vmatprep.subr.bf16.mxu0 0
          %2274 = vmatpush2.bf16.msra.mxu0 0
          %2275 = vmatprep.subr.bf16.mxu0 0
          %2276 = vmatpush2.bf16.msra.mxu0 0
          %2277 = vmatprep.subr.bf16.mxu0 0
          %2278 = vmatpush2.bf16.msra.mxu0 0
          %2279 = vmatprep.subr.bf16.mxu0 0
          %2280 = vmatpush2.bf16.msra.mxu0 0
          %2281 = vmatprep.subr.bf16.mxu0 0
          %2282 = vmatpush2.bf16.msra.mxu0 0
          %2283 = vmatprep.subr.bf16.mxu0 0
          %2284 = vmatpush2.bf16.msra.mxu0 0
          %2285 = vmatprep.subr.bf16.mxu0 0
          %2286 = vmatpush2.bf16.msra.mxu0 0
          %2287 = vmatprep.mubr.bf16.mxu0 0
          %2288 = vmatmul.mubr.bf16.gmra.mxu0 %v2253
          %v2289 = vpop.f32.mrf.mxu0
          %v2290 = vadd.f32 %v2238, %v2289
          %v2291 = vpop.f32.mrf.mxu0
          %v2292 = vpop.f32.mrf.mxu0
          %v2293 = vpop.f32.mrf.mxu0
          %2294 = vdwg.mxu0
          %v2295 = vmax.f32 %v2290, 0.0
          %v2296 = vpack.c.bf16 %v2295, %v2295
          %v2298 = vlaneseq
          %v2299 = vshrl.u32 %v2298, 7
          %v2300 = vsub.s32 0, %v2299
          %v2301 = vrot.slane %v1514, %v2300
          %v2307 = vunpack.c.l.b16 %v1510
          %v2308 = vunpack.c.l.b16 %v1511
          %v2309 = vunpack.c.l.b16 %v1512
          %v2310 = vunpack.c.l.b16 %v1513
          %v2311 = vpack.c.b16 %v2308, %v2307
          %v2312 = vpack.c.b16 %v2310, %v2309
          %v2316 = vsel %vm973, %v2296, 0
          %2318 = vmatprep.subr.bf16.mxu0 0
          %2319 = vmatpush1.bf16.msra.mxu0 0
          %2320 = vmatprep.subr.bf16.mxu0 0
          %2321 = vmatpush1.bf16.msra.mxu0 0
          %2322 = vmatprep.subr.bf16.mxu0 0
          %2323 = vmatpush1.bf16.msra.mxu0 0
          %2324 = vmatprep.subr.bf16.mxu0 0
          %2325 = vmatpush1.bf16.msra.mxu0 0
          %2326 = vmatprep.subr.bf16.mxu0 0
          %2327 = vmatpush1.bf16.msra.mxu0 0
          %2328 = vmatprep.subr.bf16.mxu0 0
          %2329 = vmatpush1.bf16.msra.mxu0 0
          %2330 = vmatprep.subr.bf16.mxu0 0
          %2331 = vmatpush1.bf16.msra.mxu0 %v2312
          %2332 = vmatprep.subr.bf16.mxu0 0
          %2333 = vmatpush1.bf16.msra.mxu0 %v2311
          %2334 = vmatprep.subr.bf16.mxu0 0
          %2335 = vmatpush2.bf16.msra.mxu0 0
          %2336 = vmatprep.subr.bf16.mxu0 0
          %2337 = vmatpush2.bf16.msra.mxu0 0
          %2338 = vmatprep.subr.bf16.mxu0 0
          %2339 = vmatpush2.bf16.msra.mxu0 0
          %2340 = vmatprep.subr.bf16.mxu0 0
          %2341 = vmatpush2.bf16.msra.mxu0 0
          %2342 = vmatprep.subr.bf16.mxu0 0
          %2343 = vmatpush2.bf16.msra.mxu0 0
          %2344 = vmatprep.subr.bf16.mxu0 0
          %2345 = vmatpush2.bf16.msra.mxu0 0
          %2346 = vmatprep.subr.bf16.mxu0 0
          %2347 = vmatpush2.bf16.msra.mxu0 0
          %2348 = vmatprep.subr.bf16.mxu0 0
          %2349 = vmatpush2.bf16.msra.mxu0 0
          %2350 = vmatprep.mubr.bf16.mxu0 0
          %2351 = vmatmul.mubr.bf16.gmra.mxu0 %v2316
          %v2352 = vpop.f32.mrf.mxu0
          %v2353 = vadd.f32 %v2301, %v2352
          %v2354 = vpop.f32.mrf.mxu0
          %v2355 = vpop.f32.mrf.mxu0
          %v2356 = vpop.f32.mrf.mxu0
          %2357 = vdwg.mxu0
          %v2358 = vadd.f32 %v2232, %v2353
          %v2359 = vsel %vm2204, %v2358, 0.0
          %2360 = vadd.xlane.f32.xlu0 %v2359
          %v2361 = vpop.xlane.xlu0 %2360
          %v2362 = vmul.f32 %v2361, %v2208
          %v2363 = vsub.f32 %v2358, %v2362
          %v2364 = vmul.f32 %v2363, %v2363
          %v2365 = vsel %vm2204, %v2364, 0.0
          %2366 = vadd.xlane.f32.xlu0 %v2365
          %v2367 = vpop.xlane.xlu0 %2366
          %v2368 = vmul.f32 %v2367, %v2208
          %v2369 = vadd.f32 %v2368, 1e-05
          %v2370 = vrsqrt.pop %v2369
          %v2371 = vmul.f32 %v2363, %v2370
          %v2373 = vlaneseq
          %v2374 = vshrl.u32 %v2373, 7
          %v2375 = vsub.s32 0, %v2374
          %v2376 = vrot.slane %v1517, %v2375
          %v2378 = vmul.f32 %v2371, %v2376
          %v2380 = vlaneseq
          %v2381 = vshrl.u32 %v2380, 7
          %v2382 = vsub.s32 0, %v2381
          %v2383 = vrot.slane %v1518, %v2382
          %v2385 = vadd.f32 %v2378, %v2383
        $region121: #{hatnetc_forward.6} parent=115 // loop_footer
          %s1524 = sadd.s32 1, %s1520
        $region122: #{hatnetc_forward.6} parent=115 // loop_footer_branch
          %1519 = sbr.rel target = $region118
        $region123: #{hatnetc_forward.6} parent=115 // loop_exit
          _
        %vm2386 = vcmask 257024
        %2387 = vst.msk [vmem:[%s887] sm:$0xf] %vm2386, %v1525
        %v2388 = vsel %vm2386, %v1525, -inf
        %v2389 = vrot.slane %v2388, 4
        %v2390 = vmax.f32 %v2388, %v2389
        %v2391 = vrot.slane %v2390, 2
        %v2392 = vmax.f32 %v2390, %v2391
        %v2393 = vrot.slane %v2392, 1
        %v2394 = vmax.f32 %v2392, %v2393
        %vm2395 = vcmask 253952
        %2396 = vst.msk [vmem:[%s894] sm:$0x1] %vm2395, %v2394
        %p2397 = scmp.lt.s32.totalorder %s46, 1
        %s2398 = scalar_select %p2397, %s46, 1
        %s2399 = smul.addr %s2398, 4
        %s2400 = scalar_lea.vmem %s24, %s2399
        %p2401 = scmp.lt.s32.totalorder %s46, 1
        %s2402 = scalar_select %p2401, %s46, 1
        %s2403 = smul.addr %s2402, 4
        %s2404 = scalar_lea.vmem %s25, %s2403
        %p2405 = scmp.lt.s32.totalorder %s46, 1
        %s2406 = scalar_select %p2405, %s46, 1
        %s2407 = scalar_lea.vmem %s26, %s2406
        %s2408 = sand.u32 %s646, 1
        %s2409 = scalar_lea.sflag [#allocation3], %s2408
        %s2410 = sand.u32 %s646, 1
        %s2411 = scalar_lea.vmem [#allocation2], %s2410
        %s2412 = sand.u32 %s672, 1
        %s2413 = scalar_lea.sflag [#allocation5], %s2412
        %s2414 = sand.u32 %s672, 1
        %s2415 = scalar_lea.vmem [#allocation4], %s2414
        // Predicated region
        $region124: #{hatnetc_forward.6} parent=115 // pred_check
          %p2416 = pneg %p578
        $region125: #{hatnetc_forward.6} parent=115 // pred_check_branch
          %2418 = sbr.rel (%p2416) target = $region127
        $region126: #{hatnetc_forward.6} parent=115 // pred_region
          _
        $region127: #{hatnetc_forward.6} parent=115 // pred_fallthru
          _
        // Predicated region
        $region128: #{hatnetc_forward.6} parent=115 // pred_check
          %p2419 = pneg %p604
        $region129: #{hatnetc_forward.6} parent=115 // pred_check_branch
          %2421 = sbr.rel (%p2419) target = $region131
        $region130: #{hatnetc_forward.6} parent=115 // pred_region
          _
        $region131: #{hatnetc_forward.6} parent=115 // pred_fallthru
          _
        // Predicated region
        $region132: #{hatnetc_forward.6} parent=115 // pred_check
          %p2422 = pneg %p630
        $region133: #{hatnetc_forward.6} parent=115 // pred_check_branch
          %2424 = sbr.rel (%p2422) target = $region135
        $region134: #{hatnetc_forward.6} parent=115 // pred_region
          _
        $region135: #{hatnetc_forward.6} parent=115 // pred_fallthru
          _
        // Predicated region
        $region136: #{hatnetc_forward.6} parent=115 // pred_check
          %p2425 = pneg %p656
        $region137: #{hatnetc_forward.6} parent=115 // pred_check_branch
          %2427 = sbr.rel (%p2425) target = $region139
        $region138: #{hatnetc_forward.6} parent=115 // pred_region
          %s2429 = ssub.s32 16, 16
          %2430 = vsyncadd %s2409, %s2429
          %s2431 = smul.addr %s46, 16
          %s2432 = scalar_lea.hbm %s27, %s2431
          %s2434 = sshll.u32 %s2411, 4
          %s2435 = int_to_ptr.vmem [resolvable:$true] %s2434
          %2437 = dma.vmem_to_hbm [thread:$0]  %s2435, 16, %s2432, %s2409
        $region139: #{hatnetc_forward.6} parent=115 // pred_fallthru
          _
        // Predicated region
        $region140: #{hatnetc_forward.6} parent=115 // pred_check
          %p2438 = pneg %p682
        $region141: #{hatnetc_forward.6} parent=115 // pred_check_branch
          %2440 = sbr.rel (%p2438) target = $region143
        $region142: #{hatnetc_forward.6} parent=115 // pred_region
          %s2442 = ssub.s32 16, 16
          %2443 = vsyncadd %s2413, %s2442
          %s2444 = smul.addr %s46, 16
          %s2445 = scalar_lea.hbm %s28, %s2444
          %s2447 = sshll.u32 %s2415, 4
          %s2448 = int_to_ptr.vmem [resolvable:$true] %s2447
          %2450 = dma.vmem_to_hbm [thread:$0]  %s2448, 16, %s2445, %s2413
        $region143: #{hatnetc_forward.6} parent=115 // pred_fallthru
          _
      $region116: #{hatnetc_forward.6} parent=5 // pred_fallthru
        _
      %p2451 = scmp.le.s32.totalorder 2, %s41
      // Predicated region
      $region144: #{hatnetc_forward.6} parent=5 // pred_check
        %p2452 = pneg %p2451
      $region145: #{hatnetc_forward.6} parent=5 // pred_check_branch
        %2454 = sbr.rel (%p2452) target = $region147
      $region146: #{hatnetc_forward.6} parent=5 // pred_region
        %s2455 = ssub.s32 %s41, 2
        // Predicated region
        $region148: #{hatnetc_forward.6} parent=146 // pred_check
          %p2456 = pneg %p584
        $region149: #{hatnetc_forward.6} parent=146 // pred_check_branch
          %2458 = sbr.rel (%p2456) target = $region151
        $region150: #{hatnetc_forward.6} parent=146 // pred_region
          %p2459 = scmp.lt.s32.totalorder %s47, 1
          %s2460 = scalar_select %p2459, %s47, 1
          %s2461 = smul.addr %s2460, 4
          %s2462 = scalar_lea.vmem %s24, %s2461
        $region151: #{hatnetc_forward.6} parent=146 // pred_fallthru
          _
        // Predicated region
        $region152: #{hatnetc_forward.6} parent=146 // pred_check
          %p2463 = pneg %p610
        $region153: #{hatnetc_forward.6} parent=146 // pred_check_branch
          %2465 = sbr.rel (%p2463) target = $region155
        $region154: #{hatnetc_forward.6} parent=146 // pred_region
          %p2466 = scmp.lt.s32.totalorder %s47, 1
          %s2467 = scalar_select %p2466, %s47, 1
          %s2468 = smul.addr %s2467, 4
          %s2469 = scalar_lea.vmem %s25, %s2468
        $region155: #{hatnetc_forward.6} parent=146 // pred_fallthru
          _
        // Predicated region
        $region156: #{hatnetc_forward.6} parent=146 // pred_check
          %p2470 = pneg %p636
        $region157: #{hatnetc_forward.6} parent=146 // pred_check_branch
          %2472 = sbr.rel (%p2470) target = $region159
        $region158: #{hatnetc_forward.6} parent=146 // pred_region
          %p2473 = scmp.lt.s32.totalorder %s47, 1
          %s2474 = scalar_select %p2473, %s47, 1
          %s2475 = scalar_lea.vmem %s26, %s2474
        $region159: #{hatnetc_forward.6} parent=146 // pred_fallthru
          _
        // Predicated region
        $region160: #{hatnetc_forward.6} parent=146 // pred_check
          %p2476 = pneg %p662
        $region161: #{hatnetc_forward.6} parent=146 // pred_check_branch
          %2478 = sbr.rel (%p2476) target = $region163
        $region162: #{hatnetc_forward.6} parent=146 // pred_region
          %s2479 = sand.u32 %s647, 1
          %s2480 = scalar_lea.sflag [#allocation3], %s2479
          %s2481 = sand.u32 %s647, 1
          %s2482 = scalar_lea.vmem [#allocation2], %s2481
          %2483 = dma.done %s2480, 16
        $region163: #{hatnetc_forward.6} parent=146 // pred_fallthru
          _
        // Predicated region
        $region164: #{hatnetc_forward.6} parent=146 // pred_check
          %p2484 = pneg %p688
        $region165: #{hatnetc_forward.6} parent=146 // pred_check_branch
          %2486 = sbr.rel (%p2484) target = $region167
        $region166: #{hatnetc_forward.6} parent=146 // pred_region
          %s2487 = sand.u32 %s673, 1
          %s2488 = scalar_lea.sflag [#allocation5], %s2487
          %s2489 = sand.u32 %s673, 1
          %s2490 = scalar_lea.vmem [#allocation4], %s2489
          %2491 = dma.done %s2488, 16
        $region167: #{hatnetc_forward.6} parent=146 // pred_fallthru
          _
      $region147: #{hatnetc_forward.6} parent=5 // pred_fallthru
        _
    $region6: #{hatnetc_forward.6} parent=1 // loop_footer
      %s45 = sadd.s32 1, %s41
    $region7: #{hatnetc_forward.6} parent=1 // loop_footer_branch
      %40 = sbr.rel target = $region3
    $region8: #{hatnetc_forward.6} parent=1 // loop_exit
      _
    %2492 = vsyncpa [#allocation3], 1
    %s2493 = scalar_lea.sflag [#allocation3], 1
    %2494 = vsyncpa %s2493, 1
    %2495 = vsyncpa [#allocation5], 1
    %s2496 = scalar_lea.sflag [#allocation5], 1
    %2497 = vsyncpa %s2496, 1

// kernel: hatnetc_forward.7
$region0: #{hatnetc_forward.7}
  #allocation0 [shape = 'u32[]', space=smem, size = 0x4, offset = 0x4, fixed_abs, tag = 'smem constant byte address 0x4 - core index']
  #allocation1 [shape = 'u32[144,128]{1,0:T(1,128)}', space=vmem, size = 0x12000, scoped, tag = 'internal scratch']
  %s0 = inlined_call_operand.vmem [shape: f32[2,4,32], index: 0, kind: input, shape index: {}]
  %s1 = inlined_call_operand.vmem [shape: f32[2,4,4], index: 1, kind: input, shape index: {}]
  %s2 = inlined_call_operand.vmem [shape: bf16[32,32], index: 2, kind: input, shape index: {}]
  %s3 = inlined_call_operand.vmem [shape: f32[1,32], index: 3, kind: input, shape index: {}]
  %s4 = inlined_call_operand.vmem [shape: bf16[32,32], index: 4, kind: input, shape index: {}]
  %s5 = inlined_call_operand.vmem [shape: f32[1,32], index: 5, kind: input, shape index: {}]
  %s6 = inlined_call_operand.vmem [shape: bf16[32,2], index: 6, kind: input, shape index: {}]
  %s7 = inlined_call_operand.vmem [shape: f32[1,2], index: 7, kind: input, shape index: {}]
  %s8 = inlined_call_operand.vmem [shape: bf16[2,32,16], index: 8, kind: input, shape index: {}]
  %s9 = inlined_call_operand.vmem [shape: bf16[2,32,16], index: 9, kind: input, shape index: {}]
  %s10 = inlined_call_operand.vmem [shape: bf16[2,32,16], index: 10, kind: input, shape index: {}]
  %s11 = inlined_call_operand.vmem [shape: f32[2,1,16], index: 11, kind: input, shape index: {}]
  %s12 = inlined_call_operand.vmem [shape: f32[2,1,16], index: 12, kind: input, shape index: {}]
  %s13 = inlined_call_operand.vmem [shape: f32[2,1,16], index: 13, kind: input, shape index: {}]
  %s14 = inlined_call_operand.vmem [shape: bf16[2,16,32], index: 14, kind: input, shape index: {}]
  %s15 = inlined_call_operand.vmem [shape: f32[1,32], index: 15, kind: input, shape index: {}]
  %s16 = inlined_call_operand.vmem [shape: bf16[32,32], index: 16, kind: input, shape index: {}]
  %s17 = inlined_call_operand.vmem [shape: f32[1,32], index: 17, kind: input, shape index: {}]
  %s18 = inlined_call_operand.vmem [shape: bf16[32,32], index: 18, kind: input, shape index: {}]
  %s19 = inlined_call_operand.vmem [shape: f32[1,32], index: 19, kind: input, shape index: {}]
  %s20 = inlined_call_operand.vmem [shape: f32[1,32], index: 20, kind: input, shape index: {}]
  %s21 = inlined_call_operand.vmem [shape: f32[1,32], index: 21, kind: input, shape index: {}]
  %s22 = inlined_call_operand.vmem [shape: f32[1,32], index: 22, kind: input, shape index: {}]
  %s23 = inlined_call_operand.vmem [shape: f32[1,32], index: 23, kind: input, shape index: {}]
  %s24 = inlined_call_operand.hbm [shape: f32[2,2,32], index: 24, kind: output, shape index: {0}]
  %s25 = inlined_call_operand.hbm [shape: f32[2,2,2], index: 25, kind: output, shape index: {1}]
  %s26 = inlined_call_operand.vmem [shape: f32[2,1,32], index: 26, kind: output, shape index: {2}]
  %s27 = inlined_call_operand.vmem [shape: f32[2,1,1], index: 27, kind: output, shape index: {3}]
  %s28 = inlined_call_operand.vmem [shape: f32[2,1,1], index: 28, kind: output, shape index: {4}]
  %29 = xla_tuple %s24, %s25, %s26, %s27, %s28
  %s30 = sld [smem:[#allocation0]]
  $region168: #{hatnetc_forward.7} parent=0
    _
  %s32 = ssub.s32 1, %s30
  %s33 = scalar_select 0, %s32, %s30
  $region1: #{hatnetc_forward.7} parent=0
    #allocation2 [shape = 'u8[2048]{0}', space=vmem, size = 0x800, scoped, tag = 'output window, operand 0']
    #allocation3 [shape = 's32[2]{0}', space=sflag, size = 0x8, scoped, tag = 'scoped memory for hatnetc_forward.7']
    #allocation4 [shape = 'u8[2048]{0}', space=vmem, size = 0x800, scoped, tag = 'output window, operand 1']
    #allocation5 [shape = 's32[2]{0}', space=sflag, size = 0x8, scoped, tag = 'scoped memory for hatnetc_forward.7']
    %34 = vsyncpa [#allocation3], 0
    %s35 = scalar_lea.sflag [#allocation3], 1
    %36 = vsyncpa %s35, 0
    %37 = vsyncpa [#allocation5], 0
    %s38 = scalar_lea.sflag [#allocation5], 1
    %39 = vsyncpa %s38, 0
    loop: start=0, step=1, limit=4
    $region2: #{hatnetc_forward.7} parent=1 // loop_pre_header
      _
    $region3: #{hatnetc_forward.7} parent=1 // loop_header
      %s41 = sphi 0, %s45
      %p42 = scmp.ge.s32.totalorder %s41, 4
      %s51 = sphi 0, %s53
      %s54 = sphi 0, %s51
      %s55 = sphi 0, %s54
      %s71 = sphi 0, %s55
      %s77 = sphi 0, %s79
      %s80 = sphi 0, %s77
      %s81 = sphi 0, %s80
      %s97 = sphi 0, %s81
      %s101 = sphi 0, %s101
      %s103 = sphi 0, %s101
      %s104 = sphi 0, %s103
      %s118 = sphi 0, %s104
      %s122 = sphi 0, %s122
      %s124 = sphi 0, %s122
      %s125 = sphi 0, %s124
      %s139 = sphi 0, %s125
      %s143 = sphi 0, %s143
      %s145 = sphi 0, %s143
      %s146 = sphi 0, %s145
      %s160 = sphi 0, %s146
      %s164 = sphi 0, %s164
      %s166 = sphi 0, %s164
      %s167 = sphi 0, %s166
      %s181 = sphi 0, %s167
      %s185 = sphi 0, %s185
      %s187 = sphi 0, %s185
      %s188 = sphi 0, %s187
      %s202 = sphi 0, %s188
      %s206 = sphi 0, %s206
      %s208 = sphi 0, %s206
      %s209 = sphi 0, %s208
      %s223 = sphi 0, %s209
      %s227 = sphi 0, %s227
      %s229 = sphi 0, %s227
      %s230 = sphi 0, %s229
      %s244 = sphi 0, %s230
      %s248 = sphi 0, %s248
      %s250 = sphi 0, %s248
      %s251 = sphi 0, %s250
      %s265 = sphi 0, %s251
      %s269 = sphi 0, %s269
      %s271 = sphi 0, %s269
      %s272 = sphi 0, %s271
      %s286 = sphi 0, %s272
      %s290 = sphi 0, %s290
      %s292 = sphi 0, %s290
      %s293 = sphi 0, %s292
      %s307 = sphi 0, %s293
      %s311 = sphi 0, %s311
      %s313 = sphi 0, %s311
      %s314 = sphi 0, %s313
      %s328 = sphi 0, %s314
      %s332 = sphi 0, %s332
      %s334 = sphi 0, %s332
      %s335 = sphi 0, %s334
      %s349 = sphi 0, %s335
      %s353 = sphi 0, %s353
      %s355 = sphi 0, %s353
      %s356 = sphi 0, %s355
      %s370 = sphi 0, %s356
      %s374 = sphi 0, %s374
      %s376 = sphi 0, %s374
      %s377 = sphi 0, %s376
      %s391 = sphi 0, %s377
      %s395 = sphi 0, %s395
      %s397 = sphi 0, %s395
      %s398 = sphi 0, %s397
      %s412 = sphi 0, %s398
      %s416 = sphi 0, %s416
      %s418 = sphi 0, %s416
      %s419 = sphi 0, %s418
      %s433 = sphi 0, %s419
      %s437 = sphi 0, %s437
      %s439 = sphi 0, %s437
      %s440 = sphi 0, %s439
      %s454 = sphi 0, %s440
      %s458 = sphi 0, %s458
      %s460 = sphi 0, %s458
      %s461 = sphi 0, %s460
      %s475 = sphi 0, %s461
      %s479 = sphi 0, %s479
      %s481 = sphi 0, %s479
      %s482 = sphi 0, %s481
      %s496 = sphi 0, %s482
      %s500 = sphi 0, %s500
      %s502 = sphi 0, %s500
      %s503 = sphi 0, %s502
      %s517 = sphi 0, %s503
      %s521 = sphi 0, %s521
      %s523 = sphi 0, %s521
      %s524 = sphi 0, %s523
      %s538 = sphi 0, %s524
      %s542 = sphi 0, %s542
      %s544 = sphi 0, %s542
      %s545 = sphi 0, %s544
      %s559 = sphi 0, %s545
      %s565 = sphi 0, %s567
      %s568 = sphi 0, %s565
      %s569 = sphi 0, %s568
      %s585 = sphi 0, %s569
      %s591 = sphi 0, %s593
      %s594 = sphi 0, %s591
      %s595 = sphi 0, %s594
      %s611 = sphi 0, %s595
      %s617 = sphi 0, %s619
      %s620 = sphi 0, %s617
      %s621 = sphi 0, %s620
      %s637 = sphi 0, %s621
      %s643 = sphi 0, %s645
      %s646 = sphi 0, %s643
      %s647 = sphi 0, %s646
      %s663 = sphi 0, %s647
      %s669 = sphi 0, %s671
      %s672 = sphi 0, %s669
      %s673 = sphi 0, %s672
      %s689 = sphi 0, %s673
    $region4: #{hatnetc_forward.7} parent=1 // loop_header_branch
      %44 = sbr.rel (%p42) target = $region8
    $region5: #{hatnetc_forward.7} parent=1 // loop_body
      %s46 = ssub.s32 %s41, 1
      %s47 = ssub.s32 %s41, 2
      %s48 = sadd.s32 %s41, 1
      %s49 = ssub.s32 %s41, %s48
      %p50 = scmp.eq.s32.totalorder %s49, 0
      %s52 = sadd.s32 %s51, 1
      %s53 = scalar_select %p50, %s51, %s52
      %p56 = pneg %p50
      %p57 = scmp.eq.s32.totalorder %s41, 1
      %p58 = por %p56, %p57
      %p59 = scmp.ne.s32.totalorder %s51, %s54
      %p60 = scmp.eq.s32.totalorder %s41, 0
      %p61 = por %p59, %p60
      %p62 = scmp.ne.s32.totalorder %s51, %s54
      %p63 = scmp.eq.s32.totalorder %s46, 1
      %p64 = por %p62, %p63
      %p65 = scmp.ne.s32.totalorder %s54, %s55
      %p66 = scmp.eq.s32.totalorder %s46, 0
      %p67 = por %p65, %p66
      %p68 = scmp.ne.s32.totalorder %s54, %s55
      %p69 = scmp.eq.s32.totalorder %s47, 1
      %p70 = por %p68, %p69
      %p72 = scmp.ne.s32.totalorder %s55, %s71
      %p73 = scmp.eq.s32.totalorder %s47, 0
      %p74 = por %p72, %p73
      %s75 = ssub.s32 %s41, %s48
      %p76 = scmp.eq.s32.totalorder %s75, 0
      %s78 = sadd.s32 %s77, 1
      %s79 = scalar_select %p76, %s77, %s78
      %p82 = pneg %p76
      %p83 = scmp.eq.s32.totalorder %s41, 1
      %p84 = por %p82, %p83
      %p85 = scmp.ne.s32.totalorder %s77, %s80
      %p86 = scmp.eq.s32.totalorder %s41, 0
      %p87 = por %p85, %p86
      %p88 = scmp.ne.s32.totalorder %s77, %s80
      %p89 = scmp.eq.s32.totalorder %s46, 1
      %p90 = por %p88, %p89
      %p91 = scmp.ne.s32.totalorder %s80, %s81
      %p92 = scmp.eq.s32.totalorder %s46, 0
      %p93 = por %p91, %p92
      %p94 = scmp.ne.s32.totalorder %s80, %s81
      %p95 = scmp.eq.s32.totalorder %s47, 1
      %p96 = por %p94, %p95
      %p98 = scmp.ne.s32.totalorder %s81, %s97
      %p99 = scmp.eq.s32.totalorder %s47, 0
      %p100 = por %p98, %p99
      %s102 = sadd.s32 %s101, 1
      %p105 = scmp.eq.s32.totalorder %s41, 1
      %p106 = scmp.ne.s32.totalorder %s101, %s103
      %p107 = scmp.eq.s32.totalorder %s41, 0
      %p108 = por %p106, %p107
      %p109 = scmp.ne.s32.totalorder %s101, %s103
      %p110 = scmp.eq.s32.totalorder %s46, 1
      %p111 = por %p109, %p110
      %p112 = scmp.ne.s32.totalorder %s103, %s104
      %p113 = scmp.eq.s32.totalorder %s46, 0
      %p114 = por %p112, %p113
      %p115 = scmp.ne.s32.totalorder %s103, %s104
      %p116 = scmp.eq.s32.totalorder %s47, 1
      %p117 = por %p115, %p116
      %p119 = scmp.ne.s32.totalorder %s104, %s118
      %p120 = scmp.eq.s32.totalorder %s47, 0
      %p121 = por %p119, %p120
      %s123 = sadd.s32 %s122, 1
      %p126 = scmp.eq.s32.totalorder %s41, 1
      %p127 = scmp.ne.s32.totalorder %s122, %s124
      %p128 = scmp.eq.s32.totalorder %s41, 0
      %p129 = por %p127, %p128
      %p130 = scmp.ne.s32.totalorder %s122, %s124
      %p131 = scmp.eq.s32.totalorder %s46, 1
      %p132 = por %p130, %p131
      %p133 = scmp.ne.s32.totalorder %s124, %s125
      %p134 = scmp.eq.s32.totalorder %s46, 0
      %p135 = por %p133, %p134
      %p136 = scmp.ne.s32.totalorder %s124, %s125
      %p137 = scmp.eq.s32.totalorder %s47, 1
      %p138 = por %p136, %p137
      %p140 = scmp.ne.s32.totalorder %s125, %s139
      %p141 = scmp.eq.s32.totalorder %s47, 0
      %p142 = por %p140, %p141
      %s144 = sadd.s32 %s143, 1
      %p147 = scmp.eq.s32.totalorder %s41, 1
      %p148 = scmp.ne.s32.totalorder %s143, %s145
      %p149 = scmp.eq.s32.totalorder %s41, 0
      %p150 = por %p148, %p149
      %p151 = scmp.ne.s32.totalorder %s143, %s145
      %p152 = scmp.eq.s32.totalorder %s46, 1
      %p153 = por %p151, %p152
      %p154 = scmp.ne.s32.totalorder %s145, %s146
      %p155 = scmp.eq.s32.totalorder %s46, 0
      %p156 = por %p154, %p155
      %p157 = scmp.ne.s32.totalorder %s145, %s146
      %p158 = scmp.eq.s32.totalorder %s47, 1
      %p159 = por %p157, %p158
      %p161 = scmp.ne.s32.totalorder %s146, %s160
      %p162 = scmp.eq.s32.totalorder %s47, 0
      %p163 = por %p161, %p162
      %s165 = sadd.s32 %s164, 1
      %p168 = scmp.eq.s32.totalorder %s41, 1
      %p169 = scmp.ne.s32.totalorder %s164, %s166
      %p170 = scmp.eq.s32.totalorder %s41, 0
      %p171 = por %p169, %p170
      %p172 = scmp.ne.s32.totalorder %s164, %s166
      %p173 = scmp.eq.s32.totalorder %s46, 1
      %p174 = por %p172, %p173
      %p175 = scmp.ne.s32.totalorder %s166, %s167
      %p176 = scmp.eq.s32.totalorder %s46, 0
      %p177 = por %p175, %p176
      %p178 = scmp.ne.s32.totalorder %s166, %s167
      %p179 = scmp.eq.s32.totalorder %s47, 1
      %p180 = por %p178, %p179
      %p182 = scmp.ne.s32.totalorder %s167, %s181
      %p183 = scmp.eq.s32.totalorder %s47, 0
      %p184 = por %p182, %p183
      %s186 = sadd.s32 %s185, 1
      %p189 = scmp.eq.s32.totalorder %s41, 1
      %p190 = scmp.ne.s32.totalorder %s185, %s187
      %p191 = scmp.eq.s32.totalorder %s41, 0
      %p192 = por %p190, %p191
      %p193 = scmp.ne.s32.totalorder %s185, %s187
      %p194 = scmp.eq.s32.totalorder %s46, 1
      %p195 = por %p193, %p194
      %p196 = scmp.ne.s32.totalorder %s187, %s188
      %p197 = scmp.eq.s32.totalorder %s46, 0
      %p198 = por %p196, %p197
      %p199 = scmp.ne.s32.totalorder %s187, %s188
      %p200 = scmp.eq.s32.totalorder %s47, 1
      %p201 = por %p199, %p200
      %p203 = scmp.ne.s32.totalorder %s188, %s202
      %p204 = scmp.eq.s32.totalorder %s47, 0
      %p205 = por %p203, %p204
      %s207 = sadd.s32 %s206, 1
      %p210 = scmp.eq.s32.totalorder %s41, 1
      %p211 = scmp.ne.s32.totalorder %s206, %s208
      %p212 = scmp.eq.s32.totalorder %s41, 0
      %p213 = por %p211, %p212
      %p214 = scmp.ne.s32.totalorder %s206, %s208
      %p215 = scmp.eq.s32.totalorder %s46, 1
      %p216 = por %p214, %p215
      %p217 = scmp.ne.s32.totalorder %s208, %s209
      %p218 = scmp.eq.s32.totalorder %s46, 0
      %p219 = por %p217, %p218
      %p220 = scmp.ne.s32.totalorder %s208, %s209
      %p221 = scmp.eq.s32.totalorder %s47, 1
      %p222 = por %p220, %p221
      %p224 = scmp.ne.s32.totalorder %s209, %s223
      %p225 = scmp.eq.s32.totalorder %s47, 0
      %p226 = por %p224, %p225
      %s228 = sadd.s32 %s227, 1
      %p231 = scmp.eq.s32.totalorder %s41, 1
      %p232 = scmp.ne.s32.totalorder %s227, %s229
      %p233 = scmp.eq.s32.totalorder %s41, 0
      %p234 = por %p232, %p233
      %p235 = scmp.ne.s32.totalorder %s227, %s229
      %p236 = scmp.eq.s32.totalorder %s46, 1
      %p237 = por %p235, %p236
      %p238 = scmp.ne.s32.totalorder %s229, %s230
      %p239 = scmp.eq.s32.totalorder %s46, 0
      %p240 = por %p238, %p239
      %p241 = scmp.ne.s32.totalorder %s229, %s230
      %p242 = scmp.eq.s32.totalorder %s47, 1
      %p243 = por %p241, %p242
      %p245 = scmp.ne.s32.totalorder %s230, %s244
      %p246 = scmp.eq.s32.totalorder %s47, 0
      %p247 = por %p245, %p246
      %s249 = sadd.s32 %s248, 1
      %p252 = scmp.eq.s32.totalorder %s41, 1
      %p253 = scmp.ne.s32.totalorder %s248, %s250
      %p254 = scmp.eq.s32.totalorder %s41, 0
      %p255 = por %p253, %p254
      %p256 = scmp.ne.s32.totalorder %s248, %s250
      %p257 = scmp.eq.s32.totalorder %s46, 1
      %p258 = por %p256, %p257
      %p259 = scmp.ne.s32.totalorder %s250, %s251
      %p260 = scmp.eq.s32.totalorder %s46, 0
      %p261 = por %p259, %p260
      %p262 = scmp.ne.s32.totalorder %s250, %s251
      %p263 = scmp.eq.s32.totalorder %s47, 1
      %p264 = por %p262, %p263
      %p266 = scmp.ne.s32.totalorder %s251, %s265
      %p267 = scmp.eq.s32.totalorder %s47, 0
      %p268 = por %p266, %p267
      %s270 = sadd.s32 %s269, 1
      %p273 = scmp.eq.s32.totalorder %s41, 1
      %p274 = scmp.ne.s32.totalorder %s269, %s271
      %p275 = scmp.eq.s32.totalorder %s41, 0
      %p276 = por %p274, %p275
      %p277 = scmp.ne.s32.totalorder %s269, %s271
      %p278 = scmp.eq.s32.totalorder %s46, 1
      %p279 = por %p277, %p278
      %p280 = scmp.ne.s32.totalorder %s271, %s272
      %p281 = scmp.eq.s32.totalorder %s46, 0
      %p282 = por %p280, %p281
      %p283 = scmp.ne.s32.totalorder %s271, %s272
      %p284 = scmp.eq.s32.totalorder %s47, 1
      %p285 = por %p283, %p284
      %p287 = scmp.ne.s32.totalorder %s272, %s286
      %p288 = scmp.eq.s32.totalorder %s47, 0
      %p289 = por %p287, %p288
      %s291 = sadd.s32 %s290, 1
      %p294 = scmp.eq.s32.totalorder %s41, 1
      %p295 = scmp.ne.s32.totalorder %s290, %s292
      %p296 = scmp.eq.s32.totalorder %s41, 0
      %p297 = por %p295, %p296
      %p298 = scmp.ne.s32.totalorder %s290, %s292
      %p299 = scmp.eq.s32.totalorder %s46, 1
      %p300 = por %p298, %p299
      %p301 = scmp.ne.s32.totalorder %s292, %s293
      %p302 = scmp.eq.s32.totalorder %s46, 0
      %p303 = por %p301, %p302
      %p304 = scmp.ne.s32.totalorder %s292, %s293
      %p305 = scmp.eq.s32.totalorder %s47, 1
      %p306 = por %p304, %p305
      %p308 = scmp.ne.s32.totalorder %s293, %s307
      %p309 = scmp.eq.s32.totalorder %s47, 0
      %p310 = por %p308, %p309
      %s312 = sadd.s32 %s311, 1
      %p315 = scmp.eq.s32.totalorder %s41, 1
      %p316 = scmp.ne.s32.totalorder %s311, %s313
      %p317 = scmp.eq.s32.totalorder %s41, 0
      %p318 = por %p316, %p317
      %p319 = scmp.ne.s32.totalorder %s311, %s313
      %p320 = scmp.eq.s32.totalorder %s46, 1
      %p321 = por %p319, %p320
      %p322 = scmp.ne.s32.totalorder %s313, %s314
      %p323 = scmp.eq.s32.totalorder %s46, 0
      %p324 = por %p322, %p323
      %p325 = scmp.ne.s32.totalorder %s313, %s314
      %p326 = scmp.eq.s32.totalorder %s47, 1
      %p327 = por %p325, %p326
      %p329 = scmp.ne.s32.totalorder %s314, %s328
      %p330 = scmp.eq.s32.totalorder %s47, 0
      %p331 = por %p329, %p330
      %s333 = sadd.s32 %s332, 1
      %p336 = scmp.eq.s32.totalorder %s41, 1
      %p337 = scmp.ne.s32.totalorder %s332, %s334
      %p338 = scmp.eq.s32.totalorder %s41, 0
      %p339 = por %p337, %p338
      %p340 = scmp.ne.s32.totalorder %s332, %s334
      %p341 = scmp.eq.s32.totalorder %s46, 1
      %p342 = por %p340, %p341
      %p343 = scmp.ne.s32.totalorder %s334, %s335
      %p344 = scmp.eq.s32.totalorder %s46, 0
      %p345 = por %p343, %p344
      %p346 = scmp.ne.s32.totalorder %s334, %s335
      %p347 = scmp.eq.s32.totalorder %s47, 1
      %p348 = por %p346, %p347
      %p350 = scmp.ne.s32.totalorder %s335, %s349
      %p351 = scmp.eq.s32.totalorder %s47, 0
      %p352 = por %p350, %p351
      %s354 = sadd.s32 %s353, 1
      %p357 = scmp.eq.s32.totalorder %s41, 1
      %p358 = scmp.ne.s32.totalorder %s353, %s355
      %p359 = scmp.eq.s32.totalorder %s41, 0
      %p360 = por %p358, %p359
      %p361 = scmp.ne.s32.totalorder %s353, %s355
      %p362 = scmp.eq.s32.totalorder %s46, 1
      %p363 = por %p361, %p362
      %p364 = scmp.ne.s32.totalorder %s355, %s356
      %p365 = scmp.eq.s32.totalorder %s46, 0
      %p366 = por %p364, %p365
      %p367 = scmp.ne.s32.totalorder %s355, %s356
      %p368 = scmp.eq.s32.totalorder %s47, 1
      %p369 = por %p367, %p368
      %p371 = scmp.ne.s32.totalorder %s356, %s370
      %p372 = scmp.eq.s32.totalorder %s47, 0
      %p373 = por %p371, %p372
      %s375 = sadd.s32 %s374, 1
      %p378 = scmp.eq.s32.totalorder %s41, 1
      %p379 = scmp.ne.s32.totalorder %s374, %s376
      %p380 = scmp.eq.s32.totalorder %s41, 0
      %p381 = por %p379, %p380
      %p382 = scmp.ne.s32.totalorder %s374, %s376
      %p383 = scmp.eq.s32.totalorder %s46, 1
      %p384 = por %p382, %p383
      %p385 = scmp.ne.s32.totalorder %s376, %s377
      %p386 = scmp.eq.s32.totalorder %s46, 0
      %p387 = por %p385, %p386
      %p388 = scmp.ne.s32.totalorder %s376, %s377
      %p389 = scmp.eq.s32.totalorder %s47, 1
      %p390 = por %p388, %p389
      %p392 = scmp.ne.s32.totalorder %s377, %s391
      %p393 = scmp.eq.s32.totalorder %s47, 0
      %p394 = por %p392, %p393
      %s396 = sadd.s32 %s395, 1
      %p399 = scmp.eq.s32.totalorder %s41, 1
      %p400 = scmp.ne.s32.totalorder %s395, %s397
      %p401 = scmp.eq.s32.totalorder %s41, 0
      %p402 = por %p400, %p401
      %p403 = scmp.ne.s32.totalorder %s395, %s397
      %p404 = scmp.eq.s32.totalorder %s46, 1
      %p405 = por %p403, %p404
      %p406 = scmp.ne.s32.totalorder %s397, %s398
      %p407 = scmp.eq.s32.totalorder %s46, 0
      %p408 = por %p406, %p407
      %p409 = scmp.ne.s32.totalorder %s397, %s398
      %p410 = scmp.eq.s32.totalorder %s47, 1
      %p411 = por %p409, %p410
      %p413 = scmp.ne.s32.totalorder %s398, %s412
      %p414 = scmp.eq.s32.totalorder %s47, 0
      %p415 = por %p413, %p414
      %s417 = sadd.s32 %s416, 1
      %p420 = scmp.eq.s32.totalorder %s41, 1
      %p421 = scmp.ne.s32.totalorder %s416, %s418
      %p422 = scmp.eq.s32.totalorder %s41, 0
      %p423 = por %p421, %p422
      %p424 = scmp.ne.s32.totalorder %s416, %s418
      %p425 = scmp.eq.s32.totalorder %s46, 1
      %p426 = por %p424, %p425
      %p427 = scmp.ne.s32.totalorder %s418, %s419
      %p428 = scmp.eq.s32.totalorder %s46, 0
      %p429 = por %p427, %p428
      %p430 = scmp.ne.s32.totalorder %s418, %s419
      %p431 = scmp.eq.s32.totalorder %s47, 1
      %p432 = por %p430, %p431
      %p434 = scmp.ne.s32.totalorder %s419, %s433
      %p435 = scmp.eq.s32.totalorder %s47, 0
      %p436 = por %p434, %p435
      %s438 = sadd.s32 %s437, 1
      %p441 = scmp.eq.s32.totalorder %s41, 1
      %p442 = scmp.ne.s32.totalorder %s437, %s439
      %p443 = scmp.eq.s32.totalorder %s41, 0
      %p444 = por %p442, %p443
      %p445 = scmp.ne.s32.totalorder %s437, %s439
      %p446 = scmp.eq.s32.totalorder %s46, 1
      %p447 = por %p445, %p446
      %p448 = scmp.ne.s32.totalorder %s439, %s440
      %p449 = scmp.eq.s32.totalorder %s46, 0
      %p450 = por %p448, %p449
      %p451 = scmp.ne.s32.totalorder %s439, %s440
      %p452 = scmp.eq.s32.totalorder %s47, 1
      %p453 = por %p451, %p452
      %p455 = scmp.ne.s32.totalorder %s440, %s454
      %p456 = scmp.eq.s32.totalorder %s47, 0
      %p457 = por %p455, %p456
      %s459 = sadd.s32 %s458, 1
      %p462 = scmp.eq.s32.totalorder %s41, 1
      %p463 = scmp.ne.s32.totalorder %s458, %s460
      %p464 = scmp.eq.s32.totalorder %s41, 0
      %p465 = por %p463, %p464
      %p466 = scmp.ne.s32.totalorder %s458, %s460
      %p467 = scmp.eq.s32.totalorder %s46, 1
      %p468 = por %p466, %p467
      %p469 = scmp.ne.s32.totalorder %s460, %s461
      %p470 = scmp.eq.s32.totalorder %s46, 0
      %p471 = por %p469, %p470
      %p472 = scmp.ne.s32.totalorder %s460, %s461
      %p473 = scmp.eq.s32.totalorder %s47, 1
      %p474 = por %p472, %p473
      %p476 = scmp.ne.s32.totalorder %s461, %s475
      %p477 = scmp.eq.s32.totalorder %s47, 0
      %p478 = por %p476, %p477
      %s480 = sadd.s32 %s479, 1
      %p483 = scmp.eq.s32.totalorder %s41, 1
      %p484 = scmp.ne.s32.totalorder %s479, %s481
      %p485 = scmp.eq.s32.totalorder %s41, 0
      %p486 = por %p484, %p485
      %p487 = scmp.ne.s32.totalorder %s479, %s481
      %p488 = scmp.eq.s32.totalorder %s46, 1
      %p489 = por %p487, %p488
      %p490 = scmp.ne.s32.totalorder %s481, %s482
      %p491 = scmp.eq.s32.totalorder %s46, 0
      %p492 = por %p490, %p491
      %p493 = scmp.ne.s32.totalorder %s481, %s482
      %p494 = scmp.eq.s32.totalorder %s47, 1
      %p495 = por %p493, %p494
      %p497 = scmp.ne.s32.totalorder %s482, %s496
      %p498 = scmp.eq.s32.totalorder %s47, 0
      %p499 = por %p497, %p498
      %s501 = sadd.s32 %s500, 1
      %p504 = scmp.eq.s32.totalorder %s41, 1
      %p505 = scmp.ne.s32.totalorder %s500, %s502
      %p506 = scmp.eq.s32.totalorder %s41, 0
      %p507 = por %p505, %p506
      %p508 = scmp.ne.s32.totalorder %s500, %s502
      %p509 = scmp.eq.s32.totalorder %s46, 1
      %p510 = por %p508, %p509
      %p511 = scmp.ne.s32.totalorder %s502, %s503
      %p512 = scmp.eq.s32.totalorder %s46, 0
      %p513 = por %p511, %p512
      %p514 = scmp.ne.s32.totalorder %s502, %s503
      %p515 = scmp.eq.s32.totalorder %s47, 1
      %p516 = por %p514, %p515
      %p518 = scmp.ne.s32.totalorder %s503, %s517
      %p519 = scmp.eq.s32.totalorder %s47, 0
      %p520 = por %p518, %p519
      %s522 = sadd.s32 %s521, 1
      %p525 = scmp.eq.s32.totalorder %s41, 1
      %p526 = scmp.ne.s32.totalorder %s521, %s523
      %p527 = scmp.eq.s32.totalorder %s41, 0
      %p528 = por %p526, %p527
      %p529 = scmp.ne.s32.totalorder %s521, %s523
      %p530 = scmp.eq.s32.totalorder %s46, 1
      %p531 = por %p529, %p530
      %p532 = scmp.ne.s32.totalorder %s523, %s524
      %p533 = scmp.eq.s32.totalorder %s46, 0
      %p534 = por %p532, %p533
      %p535 = scmp.ne.s32.totalorder %s523, %s524
      %p536 = scmp.eq.s32.totalorder %s47, 1
      %p537 = por %p535, %p536
      %p539 = scmp.ne.s32.totalorder %s524, %s538
      %p540 = scmp.eq.s32.totalorder %s47, 0
      %p541 = por %p539, %p540
      %s543 = sadd.s32 %s542, 1
      %p546 = scmp.eq.s32.totalorder %s41, 1
      %p547 = scmp.ne.s32.totalorder %s542, %s544
      %p548 = scmp.eq.s32.totalorder %s41, 0
      %p549 = por %p547, %p548
      %p550 = scmp.ne.s32.totalorder %s542, %s544
      %p551 = scmp.eq.s32.totalorder %s46, 1
      %p552 = por %p550, %p551
      %p553 = scmp.ne.s32.totalorder %s544, %s545
      %p554 = scmp.eq.s32.totalorder %s46, 0
      %p555 = por %p553, %p554
      %p556 = scmp.ne.s32.totalorder %s544, %s545
      %p557 = scmp.eq.s32.totalorder %s47, 1
      %p558 = por %p556, %p557
      %p560 = scmp.ne.s32.totalorder %s545, %s559
      %p561 = scmp.eq.s32.totalorder %s47, 0
      %p562 = por %p560, %p561
      %s563 = ssub.s32 %s41, %s48
      %p564 = scmp.eq.s32.totalorder %s563, 0
      %s566 = sadd.s32 %s565, 1
      %s567 = scalar_select %p564, %s565, %s566
      %p570 = pneg %p564
      %p571 = scmp.eq.s32.totalorder %s41, 1
      %p572 = por %p570, %p571
      %p573 = scmp.ne.s32.totalorder %s565, %s568
      %p574 = scmp.eq.s32.totalorder %s41, 0
      %p575 = por %p573, %p574
      %p576 = scmp.ne.s32.totalorder %s565, %s568
      %p577 = scmp.eq.s32.totalorder %s46, 1
      %p578 = por %p576, %p577
      %p579 = scmp.ne.s32.totalorder %s568, %s569
      %p580 = scmp.eq.s32.totalorder %s46, 0
      %p581 = por %p579, %p580
      %p582 = scmp.ne.s32.totalorder %s568, %s569
      %p583 = scmp.eq.s32.totalorder %s47, 1
      %p584 = por %p582, %p583
      %p586 = scmp.ne.s32.totalorder %s569, %s585
      %p587 = scmp.eq.s32.totalorder %s47, 0
      %p588 = por %p586, %p587
      %s589 = ssub.s32 %s41, %s48
      %p590 = scmp.eq.s32.totalorder %s589, 0
      %s592 = sadd.s32 %s591, 1
      %s593 = scalar_select %p590, %s591, %s592
      %p596 = pneg %p590
      %p597 = scmp.eq.s32.totalorder %s41, 1
      %p598 = por %p596, %p597
      %p599 = scmp.ne.s32.totalorder %s591, %s594
      %p600 = scmp.eq.s32.totalorder %s41, 0
      %p601 = por %p599, %p600
      %p602 = scmp.ne.s32.totalorder %s591, %s594
      %p603 = scmp.eq.s32.totalorder %s46, 1
      %p604 = por %p602, %p603
      %p605 = scmp.ne.s32.totalorder %s594, %s595
      %p606 = scmp.eq.s32.totalorder %s46, 0
      %p607 = por %p605, %p606
      %p608 = scmp.ne.s32.totalorder %s594, %s595
      %p609 = scmp.eq.s32.totalorder %s47, 1
      %p610 = por %p608, %p609
      %p612 = scmp.ne.s32.totalorder %s595, %s611
      %p613 = scmp.eq.s32.totalorder %s47, 0
      %p614 = por %p612, %p613
      %s615 = ssub.s32 %s41, %s48
      %p616 = scmp.eq.s32.totalorder %s615, 0
      %s618 = sadd.s32 %s617, 1
      %s619 = scalar_select %p616, %s617, %s618
      %p622 = pneg %p616
      %p623 = scmp.eq.s32.totalorder %s41, 1
      %p624 = por %p622, %p623
      %p625 = scmp.ne.s32.totalorder %s617, %s620
      %p626 = scmp.eq.s32.totalorder %s41, 0
      %p627 = por %p625, %p626
      %p628 = scmp.ne.s32.totalorder %s617, %s620
      %p629 = scmp.eq.s32.totalorder %s46, 1
      %p630 = por %p628, %p629
      %p631 = scmp.ne.s32.totalorder %s620, %s621
      %p632 = scmp.eq.s32.totalorder %s46, 0
      %p633 = por %p631, %p632
      %p634 = scmp.ne.s32.totalorder %s620, %s621
      %p635 = scmp.eq.s32.totalorder %s47, 1
      %p636 = por %p634, %p635
      %p638 = scmp.ne.s32.totalorder %s621, %s637
      %p639 = scmp.eq.s32.totalorder %s47, 0
      %p640 = por %p638, %p639
      %s641 = ssub.s32 %s41, %s48
      %p642 = scmp.eq.s32.totalorder %s641, 0
      %s644 = sadd.s32 %s643, 1
      %s645 = scalar_select %p642, %s643, %s644
      %p648 = pneg %p642
      %p649 = scmp.eq.s32.totalorder %s41, 1
      %p650 = por %p648, %p649
      %p651 = scmp.ne.s32.totalorder %s643, %s646
      %p652 = scmp.eq.s32.totalorder %s41, 0
      %p653 = por %p651, %p652
      %p654 = scmp.ne.s32.totalorder %s643, %s646
      %p655 = scmp.eq.s32.totalorder %s46, 1
      %p656 = por %p654, %p655
      %p657 = scmp.ne.s32.totalorder %s646, %s647
      %p658 = scmp.eq.s32.totalorder %s46, 0
      %p659 = por %p657, %p658
      %p660 = scmp.ne.s32.totalorder %s646, %s647
      %p661 = scmp.eq.s32.totalorder %s47, 1
      %p662 = por %p660, %p661
      %p664 = scmp.ne.s32.totalorder %s647, %s663
      %p665 = scmp.eq.s32.totalorder %s47, 0
      %p666 = por %p664, %p665
      %s667 = ssub.s32 %s41, %s48
      %p668 = scmp.eq.s32.totalorder %s667, 0
      %s670 = sadd.s32 %s669, 1
      %s671 = scalar_select %p668, %s669, %s670
      %p674 = pneg %p668
      %p675 = scmp.eq.s32.totalorder %s41, 1
      %p676 = por %p674, %p675
      %p677 = scmp.ne.s32.totalorder %s669, %s672
      %p678 = scmp.eq.s32.totalorder %s41, 0
      %p679 = por %p677, %p678
      %p680 = scmp.ne.s32.totalorder %s669, %s672
      %p681 = scmp.eq.s32.totalorder %s46, 1
      %p682 = por %p680, %p681
      %p683 = scmp.ne.s32.totalorder %s672, %s673
      %p684 = scmp.eq.s32.totalorder %s46, 0
      %p685 = por %p683, %p684
      %p686 = scmp.ne.s32.totalorder %s672, %s673
      %p687 = scmp.eq.s32.totalorder %s47, 1
      %p688 = por %p686, %p687
      %p690 = scmp.ne.s32.totalorder %s673, %s689
      %p691 = scmp.eq.s32.totalorder %s47, 0
      %p692 = por %p690, %p691
      %p693 = scmp.le.s32.totalorder 1, %s41
      %p694 = scmp.lt.s32.totalorder %s41, 3
      %p695 = pnand %p693, %p694
      %p696 = pneg %p695
      // Predicated region
      $region9: #{hatnetc_forward.7} parent=5 // pred_check
        _
      $region10: #{hatnetc_forward.7} parent=5 // pred_check_branch
        %698 = sbr.rel (%p695) target = $region12
      $region11: #{hatnetc_forward.7} parent=5 // pred_region
        %s699 = ssub.s32 %s41, 1
        // Predicated region
        $region13: #{hatnetc_forward.7} parent=11 // pred_check
          %p700 = pneg %p114
        $region14: #{hatnetc_forward.7} parent=11 // pred_check_branch
          %702 = sbr.rel (%p700) target = $region16
        $region15: #{hatnetc_forward.7} parent=11 // pred_region
          _
        $region16: #{hatnetc_forward.7} parent=11 // pred_fallthru
          _
        // Predicated region
        $region17: #{hatnetc_forward.7} parent=11 // pred_check
          %p703 = pneg %p135
        $region18: #{hatnetc_forward.7} parent=11 // pred_check_branch
          %705 = sbr.rel (%p703) target = $region20
        $region19: #{hatnetc_forward.7} parent=11 // pred_region
          _
        $region20: #{hatnetc_forward.7} parent=11 // pred_fallthru
          _
        // Predicated region
        $region21: #{hatnetc_forward.7} parent=11 // pred_check
          %p706 = pneg %p156
        $region22: #{hatnetc_forward.7} parent=11 // pred_check_branch
          %708 = sbr.rel (%p706) target = $region24
        $region23: #{hatnetc_forward.7} parent=11 // pred_region
          _
        $region24: #{hatnetc_forward.7} parent=11 // pred_fallthru
          _
        // Predicated region
        $region25: #{hatnetc_forward.7} parent=11 // pred_check
          %p709 = pneg %p177
        $region26: #{hatnetc_forward.7} parent=11 // pred_check_branch
          %711 = sbr.rel (%p709) target = $region28
        $region27: #{hatnetc_forward.7} parent=11 // pred_region
          _
        $region28: #{hatnetc_forward.7} parent=11 // pred_fallthru
          _
        // Predicated region
        $region29: #{hatnetc_forward.7} parent=11 // pred_check
          %p712 = pneg %p198
        $region30: #{hatnetc_forward.7} parent=11 // pred_check_branch
          %714 = sbr.rel (%p712) target = $region32
        $region31: #{hatnetc_forward.7} parent=11 // pred_region
          _
        $region32: #{hatnetc_forward.7} parent=11 // pred_fallthru
          _
        // Predicated region
        $region33: #{hatnetc_forward.7} parent=11 // pred_check
          %p715 = pneg %p219
        $region34: #{hatnetc_forward.7} parent=11 // pred_check_branch
          %717 = sbr.rel (%p715) target = $region36
        $region35: #{hatnetc_forward.7} parent=11 // pred_region
          _
        $region36: #{hatnetc_forward.7} parent=11 // pred_fallthru
          _
        // Predicated region
        $region37: #{hatnetc_forward.7} parent=11 // pred_check
          %p718 = pneg %p240
        $region38: #{hatnetc_forward.7} parent=11 // pred_check_branch
          %720 = sbr.rel (%p718) target = $region40
        $region39: #{hatnetc_forward.7} parent=11 // pred_region
          _
        $region40: #{hatnetc_forward.7} parent=11 // pred_fallthru
          _
        // Predicated region
        $region41: #{hatnetc_forward.7} parent=11 // pred_check
          %p721 = pneg %p261
        $region42: #{hatnetc_forward.7} parent=11 // pred_check_branch
          %723 = sbr.rel (%p721) target = $region44
        $region43: #{hatnetc_forward.7} parent=11 // pred_region
          _
        $region44: #{hatnetc_forward.7} parent=11 // pred_fallthru
          _
        // Predicated region
        $region45: #{hatnetc_forward.7} parent=11 // pred_check
          %p724 = pneg %p282
        $region46: #{hatnetc_forward.7} parent=11 // pred_check_branch
          %726 = sbr.rel (%p724) target = $region48
        $region47: #{hatnetc_forward.7} parent=11 // pred_region
          _
        $region48: #{hatnetc_forward.7} parent=11 // pred_fallthru
          _
        // Predicated region
        $region49: #{hatnetc_forward.7} parent=11 // pred_check
          %p727 = pneg %p303
        $region50: #{hatnetc_forward.7} parent=11 // pred_check_branch
          %729 = sbr.rel (%p727) target = $region52
        $region51: #{hatnetc_forward.7} parent=11 // pred_region
          _
        $region52: #{hatnetc_forward.7} parent=11 // pred_fallthru
          _
        // Predicated region
        $region53: #{hatnetc_forward.7} parent=11 // pred_check
          %p730 = pneg %p324
        $region54: #{hatnetc_forward.7} parent=11 // pred_check_branch
          %732 = sbr.rel (%p730) target = $region56
        $region55: #{hatnetc_forward.7} parent=11 // pred_region
          _
        $region56: #{hatnetc_forward.7} parent=11 // pred_fallthru
          _
        // Predicated region
        $region57: #{hatnetc_forward.7} parent=11 // pred_check
          %p733 = pneg %p345
        $region58: #{hatnetc_forward.7} parent=11 // pred_check_branch
          %735 = sbr.rel (%p733) target = $region60
        $region59: #{hatnetc_forward.7} parent=11 // pred_region
          _
        $region60: #{hatnetc_forward.7} parent=11 // pred_fallthru
          _
        // Predicated region
        $region61: #{hatnetc_forward.7} parent=11 // pred_check
          %p736 = pneg %p366
        $region62: #{hatnetc_forward.7} parent=11 // pred_check_branch
          %738 = sbr.rel (%p736) target = $region64
        $region63: #{hatnetc_forward.7} parent=11 // pred_region
          _
        $region64: #{hatnetc_forward.7} parent=11 // pred_fallthru
          _
        // Predicated region
        $region65: #{hatnetc_forward.7} parent=11 // pred_check
          %p739 = pneg %p387
        $region66: #{hatnetc_forward.7} parent=11 // pred_check_branch
          %741 = sbr.rel (%p739) target = $region68
        $region67: #{hatnetc_forward.7} parent=11 // pred_region
          _
        $region68: #{hatnetc_forward.7} parent=11 // pred_fallthru
          _
        // Predicated region
        $region69: #{hatnetc_forward.7} parent=11 // pred_check
          %p742 = pneg %p408
        $region70: #{hatnetc_forward.7} parent=11 // pred_check_branch
          %744 = sbr.rel (%p742) target = $region72
        $region71: #{hatnetc_forward.7} parent=11 // pred_region
          _
        $region72: #{hatnetc_forward.7} parent=11 // pred_fallthru
          _
        // Predicated region
        $region73: #{hatnetc_forward.7} parent=11 // pred_check
          %p745 = pneg %p429
        $region74: #{hatnetc_forward.7} parent=11 // pred_check_branch
          %747 = sbr.rel (%p745) target = $region76
        $region75: #{hatnetc_forward.7} parent=11 // pred_region
          _
        $region76: #{hatnetc_forward.7} parent=11 // pred_fallthru
          _
        // Predicated region
        $region77: #{hatnetc_forward.7} parent=11 // pred_check
          %p748 = pneg %p450
        $region78: #{hatnetc_forward.7} parent=11 // pred_check_branch
          %750 = sbr.rel (%p748) target = $region80
        $region79: #{hatnetc_forward.7} parent=11 // pred_region
          _
        $region80: #{hatnetc_forward.7} parent=11 // pred_fallthru
          _
        // Predicated region
        $region81: #{hatnetc_forward.7} parent=11 // pred_check
          %p751 = pneg %p471
        $region82: #{hatnetc_forward.7} parent=11 // pred_check_branch
          %753 = sbr.rel (%p751) target = $region84
        $region83: #{hatnetc_forward.7} parent=11 // pred_region
          _
        $region84: #{hatnetc_forward.7} parent=11 // pred_fallthru
          _
        // Predicated region
        $region85: #{hatnetc_forward.7} parent=11 // pred_check
          %p754 = pneg %p492
        $region86: #{hatnetc_forward.7} parent=11 // pred_check_branch
          %756 = sbr.rel (%p754) target = $region88
        $region87: #{hatnetc_forward.7} parent=11 // pred_region
          _
        $region88: #{hatnetc_forward.7} parent=11 // pred_fallthru
          _
        // Predicated region
        $region89: #{hatnetc_forward.7} parent=11 // pred_check
          %p757 = pneg %p513
        $region90: #{hatnetc_forward.7} parent=11 // pred_check_branch
          %759 = sbr.rel (%p757) target = $region92
        $region91: #{hatnetc_forward.7} parent=11 // pred_region
          _
        $region92: #{hatnetc_forward.7} parent=11 // pred_fallthru
          _
        // Predicated region
        $region93: #{hatnetc_forward.7} parent=11 // pred_check
          %p760 = pneg %p534
        $region94: #{hatnetc_forward.7} parent=11 // pred_check_branch
          %762 = sbr.rel (%p760) target = $region96
        $region95: #{hatnetc_forward.7} parent=11 // pred_region
          _
        $region96: #{hatnetc_forward.7} parent=11 // pred_fallthru
          _
        // Predicated region
        $region97: #{hatnetc_forward.7} parent=11 // pred_check
          %p763 = pneg %p555
        $region98: #{hatnetc_forward.7} parent=11 // pred_check_branch
          %765 = sbr.rel (%p763) target = $region100
        $region99: #{hatnetc_forward.7} parent=11 // pred_region
          _
        $region100: #{hatnetc_forward.7} parent=11 // pred_fallthru
          _
      $region12: #{hatnetc_forward.7} parent=5 // pred_fallthru
        _
      %p766 = scmp.lt.s32.totalorder %s41, 2
      // Predicated region
      $region101: #{hatnetc_forward.7} parent=5 // pred_check
        %p767 = pneg %p766
      $region102: #{hatnetc_forward.7} parent=5 // pred_check_branch
        %769 = sbr.rel (%p767) target = $region104
      $region103: #{hatnetc_forward.7} parent=5 // pred_region
        // Predicated region
        $region105: #{hatnetc_forward.7} parent=103 // pred_check
          %p770 = pneg %p61
        $region106: #{hatnetc_forward.7} parent=103 // pred_check_branch
          %772 = sbr.rel (%p770) target = $region108
        $region107: #{hatnetc_forward.7} parent=103 // pred_region
          %p773 = scmp.lt.s32.totalorder %s41, 1
          %s774 = scalar_select %p773, %s41, 1
          %s775 = smul.addr %s774, 4
          %s776 = scalar_lea.vmem %s0, %s775
        $region108: #{hatnetc_forward.7} parent=103 // pred_fallthru
          _
        // Predicated region
        $region109: #{hatnetc_forward.7} parent=103 // pred_check
          %p777 = pneg %p87
        $region110: #{hatnetc_forward.7} parent=103 // pred_check_branch
          %779 = sbr.rel (%p777) target = $region112
        $region111: #{hatnetc_forward.7} parent=103 // pred_region
          %p780 = scmp.lt.s32.totalorder %s41, 1
          %s781 = scalar_select %p780, %s41, 1
          %s782 = smul.addr %s781, 4
          %s783 = scalar_lea.vmem %s1, %s782
        $region112: #{hatnetc_forward.7} parent=103 // pred_fallthru
          _
      $region104: #{hatnetc_forward.7} parent=5 // pred_fallthru
        _
      %p784 = scmp.le.s32.totalorder 1, %s41
      %p785 = scmp.lt.s32.totalorder %s41, 3
      %p786 = pnand %p784, %p785
      %p787 = pneg %p786
      // Predicated region
      $region113: #{hatnetc_forward.7} parent=5 // pred_check
        _
      $region114: #{hatnetc_forward.7} parent=5 // pred_check_branch
        %789 = sbr.rel (%p786) target = $region116
      $region115: #{hatnetc_forward.7} parent=5 // pred_region
        %s790 = ssub.s32 %s41, 1
        %p791 = scmp.lt.s32.totalorder %s46, 1
        %s792 = scalar_select %p791, %s46, 1
        %s793 = smul.addr %s792, 4
        %s794 = scalar_lea.vmem %s0, %s793
        %p795 = pneg %p67
        %p796 = pneg %p64
        %p797 = scmp.lt.s32.totalorder %s46, 1
        %s798 = scalar_select %p797, %s46, 1
        %s799 = smul.addr %s798, 4
        %s800 = scalar_lea.vmem %s1, %s799
        %p801 = pneg %p93
        %p802 = pneg %p90
        %p803 = pneg %p114
        %p804 = pneg %p111
        %p805 = pneg %p135
        %p806 = pneg %p132
        %p807 = pneg %p156
        %p808 = pneg %p153
        %p809 = pneg %p177
        %p810 = pneg %p174
        %p811 = pneg %p198
        %p812 = pneg %p195
        %p813 = pneg %p219
        %p814 = pneg %p216
        %p815 = pneg %p240
        %p816 = pneg %p237
        %p817 = pneg %p261
        %p818 = pneg %p258
        %p819 = pneg %p282
        %p820 = pneg %p279
        %p821 = pneg %p303
        %p822 = pneg %p300
        %p823 = pneg %p324
        %p824 = pneg %p321
        %p825 = pneg %p345
        %p826 = pneg %p342
        %p827 = pneg %p366
        %p828 = pneg %p363
        %p829 = pneg %p387
        %p830 = pneg %p384
        %p831 = pneg %p408
        %p832 = pneg %p405
        %p833 = pneg %p429
        %p834 = pneg %p426
        %p835 = pneg %p450
        %p836 = pneg %p447
        %p837 = pneg %p471
        %p838 = pneg %p468
        %p839 = pneg %p492
        %p840 = pneg %p489
        %p841 = pneg %p513
        %p842 = pneg %p510
        %p843 = pneg %p534
        %p844 = pneg %p531
        %p845 = pneg %p555
        %p846 = pneg %p552
        %p847 = pneg %p581
        %p848 = pneg %p578
        %s849 = sand.u32 %s568, 1
        %s850 = scalar_lea.sflag [#allocation3], %s849
        %s851 = sand.u32 %s568, 1
        %s852 = smul.addr %s851, 2
        %s853 = scalar_lea.vmem [#allocation2], %s852
        %p854 = pneg %p607
        %p855 = pneg %p604
        %s856 = sand.u32 %s594, 1
        %s857 = scalar_lea.sflag [#allocation5], %s856
        %s858 = sand.u32 %s594, 1
        %s859 = smul.addr %s858, 2
        %s860 = scalar_lea.vmem [#allocation4], %s859
        %p861 = pneg %p633
        %p862 = pneg %p630
        %p863 = scmp.lt.s32.totalorder %s46, 1
        %s864 = scalar_select %p863, %s46, 1
        %s865 = scalar_lea.vmem %s26, %s864
        %p866 = pneg %p659
        %p867 = pneg %p656
        %p868 = scmp.lt.s32.totalorder %s46, 1
        %s869 = scalar_select %p868, %s46, 1
        %s870 = scalar_lea.vmem %s27, %s869
        %p871 = pneg %p685
        %p872 = pneg %p682
        %p873 = scmp.lt.s32.totalorder %s46, 1
        %s874 = scalar_select %p873, %s46, 1
        %s875 = scalar_lea.vmem %s28, %s874
        %p876 = scmp.lt.s32.totalorder %s46, 1
        %s877 = scalar_select %p876, %s46, 1
        %s878 = smul.addr %s877, 4
        %s879 = scalar_lea.vmem %s0, %s878
        %p880 = scmp.lt.s32.totalorder %s46, 1
        %s881 = scalar_select %p880, %s46, 1
        %s882 = smul.addr %s881, 4
        %s883 = scalar_lea.vmem %s1, %s882
        %p884 = scmp.lt.s32.totalorder %s46, 1
        %s885 = scalar_select %p884, %s46, 1
        %s886 = scalar_lea.vmem %s26, %s885
        %p887 = scmp.lt.s32.totalorder %s46, 1
        %s888 = scalar_select %p887, %s46, 1
        %s889 = scalar_lea.vmem %s27, %s888
        %p890 = scmp.lt.s32.totalorder %s46, 1
        %s891 = scalar_select %p890, %s46, 1
        %s892 = scalar_lea.vmem %s28, %s891
        %v894 = vld [vmem:[%s879] sm:$0xf]
        %v895 = vld [vmem:[%s883] sm:$0xf]
        %v896 = vpack.c.bf16 %v895, %v895
        %v897 = vpack.c.bf16 %v894, %v894
        %vm898 = vcmask 31744
        %v900 = vsel %vm898, %v896, 0
        %vm902 = vcmask 1041408
        %v904 = vsel %vm902, %v897, 0
        %906 = vmatprep.subr.bf16.mxu0 0
        %907 = vmatpush1.bf16.msra.mxu0 0
        %908 = vmatprep.subr.bf16.mxu0 0
        %909 = vmatpush1.bf16.msra.mxu0 0
        %910 = vmatprep.subr.bf16.mxu0 0
        %911 = vmatpush1.bf16.msra.mxu0 0
        %912 = vmatprep.subr.bf16.mxu0 0
        %913 = vmatpush1.bf16.msra.mxu0 0
        %914 = vmatprep.subr.bf16.mxu0 0
        %915 = vmatpush1.bf16.msra.mxu0 0
        %916 = vmatprep.subr.bf16.mxu0 0
        %917 = vmatpush1.bf16.msra.mxu0 0
        %918 = vmatprep.subr.bf16.mxu0 0
        %919 = vmatpush1.bf16.msra.mxu0 0
        %920 = vmatprep.subr.bf16.mxu0 0
        %921 = vmatpush1.bf16.msra.mxu0 %v904
        %922 = vmatprep.subr.bf16.mxu0 0
        %923 = vmatpush2.bf16.msra.mxu0 0
        %924 = vmatprep.subr.bf16.mxu0 0
        %925 = vmatpush2.bf16.msra.mxu0 0
        %926 = vmatprep.subr.bf16.mxu0 0
        %927 = vmatpush2.bf16.msra.mxu0 0
        %928 = vmatprep.subr.bf16.mxu0 0
        %929 = vmatpush2.bf16.msra.mxu0 0
        %930 = vmatprep.subr.bf16.mxu0 0
        %931 = vmatpush2.bf16.msra.mxu0 0
        %932 = vmatprep.subr.bf16.mxu0 0
        %933 = vmatpush2.bf16.msra.mxu0 0
        %934 = vmatprep.subr.bf16.mxu0 0
        %935 = vmatpush2.bf16.msra.mxu0 0
        %936 = vmatprep.subr.bf16.mxu0 0
        %937 = vmatpush2.bf16.msra.mxu0 0
        %938 = vmatprep.mubr.bf16.mxu0 0
        %939 = vmatmul.mubr.bf16.gmra.mxu0 %v900
        %v940 = vpop.f32.mrf.mxu0
        %v941 = vadd.f32 0.0, %v940
        %v942 = vpop.f32.mrf.mxu0
        %v943 = vpop.f32.mrf.mxu0
        %v944 = vpop.f32.mrf.mxu0
        %945 = vdwg.mxu0
        %v946 = vadd.f32 %v894, %v941
        %v947 = vpack.c.bf16 %v946, %v946
        %v948 = vld [vmem:[%s2] sm:$0xf]
        %v949 = vld [vmem:[%s2 + $0x4] sm:$0xf]
        %v950 = vld [vmem:[%s2 + $0x8] sm:$0xf]
        %v951 = vld [vmem:[%s2 + $0xc] sm:$0xf]
        %v952 = vld [vmem:[%s3] sm:$0x1]
        %v954 = vlaneseq
        %v955 = vshrl.u32 %v954, 7
        %v956 = vsub.s32 0, %v955
        %v957 = vrot.slane %v952, %v956
        %v963 = vunpack.c.l.b16 %v948
        %v964 = vunpack.c.l.b16 %v949
        %v965 = vunpack.c.l.b16 %v950
        %v966 = vunpack.c.l.b16 %v951
        %v967 = vpack.c.b16 %v964, %v963
        %v968 = vpack.c.b16 %v966, %v965
        %vm971 = vcmask 261120
        %v973 = vsel %vm971, %v947, 0
        %975 = vmatprep.subr.bf16.mxu0 0
        %976 = vmatpush1.bf16.msra.mxu0 0
        %977 = vmatprep.subr.bf16.mxu0 0
        %978 = vmatpush1.bf16.msra.mxu0 0
        %979 = vmatprep.subr.bf16.mxu0 0
        %980 = vmatpush1.bf16.msra.mxu0 0
        %981 = vmatprep.subr.bf16.mxu0 0
        %982 = vmatpush1.bf16.msra.mxu0 0
        %983 = vmatprep.subr.bf16.mxu0 0
        %984 = vmatpush1.bf16.msra.mxu0 0
        %985 = vmatprep.subr.bf16.mxu0 0
        %986 = vmatpush1.bf16.msra.mxu0 0
        %987 = vmatprep.subr.bf16.mxu0 0
        %988 = vmatpush1.bf16.msra.mxu0 %v968
        %989 = vmatprep.subr.bf16.mxu0 0
        %990 = vmatpush1.bf16.msra.mxu0 %v967
        %991 = vmatprep.subr.bf16.mxu0 0
        %992 = vmatpush2.bf16.msra.mxu0 0
        %993 = vmatprep.subr.bf16.mxu0 0
        %994 = vmatpush2.bf16.msra.mxu0 0
        %995 = vmatprep.subr.bf16.mxu0 0
        %996 = vmatpush2.bf16.msra.mxu0 0
        %997 = vmatprep.subr.bf16.mxu0 0
        %998 = vmatpush2.bf16.msra.mxu0 0
        %999 = vmatprep.subr.bf16.mxu0 0
        %1000 = vmatpush2.bf16.msra.mxu0 0
        %1001 = vmatprep.subr.bf16.mxu0 0
        %1002 = vmatpush2.bf16.msra.mxu0 0
        %1003 = vmatprep.subr.bf16.mxu0 0
        %1004 = vmatpush2.bf16.msra.mxu0 0
        %1005 = vmatprep.subr.bf16.mxu0 0
        %1006 = vmatpush2.bf16.msra.mxu0 0
        %1007 = vmatprep.mubr.bf16.mxu0 0
        %1008 = vmatmul.mubr.bf16.gmra.mxu0 %v973
        %v1009 = vpop.f32.mrf.mxu0
        %v1010 = vadd.f32 %v957, %v1009
        %v1011 = vpop.f32.mrf.mxu0
        %v1012 = vpop.f32.mrf.mxu0
        %v1013 = vpop.f32.mrf.mxu0
        %1014 = vdwg.mxu0
        %v1015 = vmax.f32 %v1010, 0.0
        %v1016 = vpack.c.bf16 %v1015, %v1015
        %v1017 = vld [vmem:[%s4] sm:$0xf]
        %v1018 = vld [vmem:[%s4 + $0x4] sm:$0xf]
        %v1019 = vld [vmem:[%s4 + $0x8] sm:$0xf]
        %v1020 = vld [vmem:[%s4 + $0xc] sm:$0xf]
        %v1021 = vld [vmem:[%s5] sm:$0x1]
        %v1023 = vlaneseq
        %v1024 = vshrl.u32 %v1023, 7
        %v1025 = vsub.s32 0, %v1024
        %v1026 = vrot.slane %v1021, %v1025
        %v1032 = vunpack.c.l.b16 %v1017
        %v1033 = vunpack.c.l.b16 %v1018
        %v1034 = vunpack.c.l.b16 %v1019
        %v1035 = vunpack.c.l.b16 %v1020
        %v1036 = vpack.c.b16 %v1033, %v1032
        %v1037 = vpack.c.b16 %v1035, %v1034
        %v1041 = vsel %vm971, %v1016, 0
        %1043 = vmatprep.subr.bf16.mxu0 0
        %1044 = vmatpush1.bf16.msra.mxu0 0
        %1045 = vmatprep.subr.bf16.mxu0 0
        %1046 = vmatpush1.bf16.msra.mxu0 0
        %1047 = vmatprep.subr.bf16.mxu0 0
        %1048 = vmatpush1.bf16.msra.mxu0 0
        %1049 = vmatprep.subr.bf16.mxu0 0
        %1050 = vmatpush1.bf16.msra.mxu0 0
        %1051 = vmatprep.subr.bf16.mxu0 0
        %1052 = vmatpush1.bf16.msra.mxu0 0
        %1053 = vmatprep.subr.bf16.mxu0 0
        %1054 = vmatpush1.bf16.msra.mxu0 0
        %1055 = vmatprep.subr.bf16.mxu0 0
        %1056 = vmatpush1.bf16.msra.mxu0 %v1037
        %1057 = vmatprep.subr.bf16.mxu0 0
        %1058 = vmatpush1.bf16.msra.mxu0 %v1036
        %1059 = vmatprep.subr.bf16.mxu0 0
        %1060 = vmatpush2.bf16.msra.mxu0 0
        %1061 = vmatprep.subr.bf16.mxu0 0
        %1062 = vmatpush2.bf16.msra.mxu0 0
        %1063 = vmatprep.subr.bf16.mxu0 0
        %1064 = vmatpush2.bf16.msra.mxu0 0
        %1065 = vmatprep.subr.bf16.mxu0 0
        %1066 = vmatpush2.bf16.msra.mxu0 0
        %1067 = vmatprep.subr.bf16.mxu0 0
        %1068 = vmatpush2.bf16.msra.mxu0 0
        %1069 = vmatprep.subr.bf16.mxu0 0
        %1070 = vmatpush2.bf16.msra.mxu0 0
        %1071 = vmatprep.subr.bf16.mxu0 0
        %1072 = vmatpush2.bf16.msra.mxu0 0
        %1073 = vmatprep.subr.bf16.mxu0 0
        %1074 = vmatpush2.bf16.msra.mxu0 0
        %1075 = vmatprep.mubr.bf16.mxu0 0
        %1076 = vmatmul.mubr.bf16.gmra.mxu0 %v1041
        %v1077 = vpop.f32.mrf.mxu0
        %v1078 = vadd.f32 %v1026, %v1077
        %v1079 = vpop.f32.mrf.mxu0
        %v1080 = vpop.f32.mrf.mxu0
        %v1081 = vpop.f32.mrf.mxu0
        %1082 = vdwg.mxu0
        %v1083 = vmax.f32 %v1078, 0.0
        %v1084 = vpack.c.bf16 %v1083, %v1083
        %v1085 = vld [vmem:[%s6] sm:$0xf]
        %v1086 = vld [vmem:[%s6 + $0x4] sm:$0xf]
        %v1087 = vld [vmem:[%s6 + $0x8] sm:$0xf]
        %v1088 = vld [vmem:[%s6 + $0xc] sm:$0xf]
        %v1089 = vld [vmem:[%s7] sm:$0x1]
        %v1091 = vlaneseq
        %v1092 = vshrl.u32 %v1091, 7
        %v1093 = vsub.s32 0, %v1092
        %v1094 = vrot.slane %v1089, %v1093
        %v1100 = vunpack.c.l.b16 %v1085
        %v1101 = vunpack.c.l.b16 %v1086
        %v1102 = vunpack.c.l.b16 %v1087
        %v1103 = vunpack.c.l.b16 %v1088
        %v1104 = vpack.c.b16 %v1101, %v1100
        %v1105 = vpack.c.b16 %v1103, %v1102
        %v1109 = vsel %vm971, %v1084, 0
        %1111 = vmatprep.subr.bf16.mxu0 0
        %1112 = vmatpush1.bf16.msra.mxu0 0
        %1113 = vmatprep.subr.bf16.mxu0 0
        %1114 = vmatpush1.bf16.msra.mxu0 0
        %1115 = vmatprep.subr.bf16.mxu0 0
        %1116 = vmatpush1.bf16.msra.mxu0 0
        %1117 = vmatprep.subr.bf16.mxu0 0
        %1118 = vmatpush1.bf16.msra.mxu0 0
        %1119 = vmatprep.subr.bf16.mxu0 0
        %1120 = vmatpush1.bf16.msra.mxu0 0
        %1121 = vmatprep.subr.bf16.mxu0 0
        %1122 = vmatpush1.bf16.msra.mxu0 0
        %1123 = vmatprep.subr.bf16.mxu0 0
        %1124 = vmatpush1.bf16.msra.mxu0 %v1105
        %1125 = vmatprep.subr.bf16.mxu0 0
        %1126 = vmatpush1.bf16.msra.mxu0 %v1104
        %1127 = vmatprep.subr.bf16.mxu0 0
        %1128 = vmatpush2.bf16.msra.mxu0 0
        %1129 = vmatprep.subr.bf16.mxu0 0
        %1130 = vmatpush2.bf16.msra.mxu0 0
        %1131 = vmatprep.subr.bf16.mxu0 0
        %1132 = vmatpush2.bf16.msra.mxu0 0
        %1133 = vmatprep.subr.bf16.mxu0 0
        %1134 = vmatpush2.bf16.msra.mxu0 0
        %1135 = vmatprep.subr.bf16.mxu0 0
        %1136 = vmatpush2.bf16.msra.mxu0 0
        %1137 = vmatprep.subr.bf16.mxu0 0
        %1138 = vmatpush2.bf16.msra.mxu0 0
        %1139 = vmatprep.subr.bf16.mxu0 0
        %1140 = vmatpush2.bf16.msra.mxu0 0
        %1141 = vmatprep.subr.bf16.mxu0 0
        %1142 = vmatpush2.bf16.msra.mxu0 0
        %1143 = vmatprep.mubr.bf16.mxu0 0
        %1144 = vmatmul.mubr.bf16.gmra.mxu0 %v1109
        %v1145 = vpop.f32.mrf.mxu0
        %v1146 = vadd.f32 %v1094, %v1145
        %v1147 = vpop.f32.mrf.mxu0
        %v1148 = vpop.f32.mrf.mxu0
        %v1149 = vpop.f32.mrf.mxu0
        %1150 = vdwg.mxu0
        %vm1151 = vcmask 11264
        %v1152 = vsel %vm1151, %v1146, -inf
        %1153 = vmax.xlane.f32.xlu0 %v1152
        %v1154 = vpop.xlane.xlu0 %1153
        %v1155 = vsub.f32 %v1146, %v1154
        %v1156 = vmul.f32 %v1155, 1.442695
        %v1157 = vpow.pop %v1156
        %v1158 = vsel %vm1151, %v1157, 0.0
        %1159 = vadd.xlane.f32.xlu0 %v1158
        %v1160 = vpop.xlane.xlu0 %1159
        %v1161 = vrcp.pop %v1160
        %v1162 = vmul.f32 %v1157, %v1161
        %v1163 = vpack.c.bf16 %v1162, %v1162
        %1164 = vxpose.xlu0.c.b16.start [1/8] %v1163, 128
        %1165 = vxpose.xlu0.c.b16.cont [2/8] 0, 128
        %1166 = vxpose.xlu0.c.b16.cont [3/8] 0, 128
        %1167 = vxpose.xlu0.c.b16.cont [4/8] 0, 128
        %1168 = vxpose.xlu0.c.b16.cont [5/8] 0, 128
        %1169 = vxpose.xlu0.c.b16.cont [6/8] 0, 128
        %1170 = vxpose.xlu0.c.b16.cont [7/8] 0, 128
        %1171 = vxpose.xlu0.c.b16.end [8/8] 0, 128
        %v1172 = vpop.trf.xlu0
        %v1173 = vpop.trf.xlu0
        %v1174 = vpop.trf.xlu0
        %v1175 = vpop.trf.xlu0
        %v1176 = vpop.trf.xlu0
        %v1177 = vpop.trf.xlu0
        %v1178 = vpop.trf.xlu0
        %v1179 = vpop.trf.xlu0
        %v1181 = vsel %vm898, %v1172, 0
        %v1183 = vsel %vm902, %v1084, 0
        %1185 = vmatprep.subr.bf16.mxu0 0
        %1186 = vmatpush1.bf16.msra.mxu0 0
        %1187 = vmatprep.subr.bf16.mxu0 0
        %1188 = vmatpush1.bf16.msra.mxu0 0
        %1189 = vmatprep.subr.bf16.mxu0 0
        %1190 = vmatpush1.bf16.msra.mxu0 0
        %1191 = vmatprep.subr.bf16.mxu0 0
        %1192 = vmatpush1.bf16.msra.mxu0 0
        %1193 = vmatprep.subr.bf16.mxu0 0
        %1194 = vmatpush1.bf16.msra.mxu0 0
        %1195 = vmatprep.subr.bf16.mxu0 0
        %1196 = vmatpush1.bf16.msra.mxu0 0
        %1197 = vmatprep.subr.bf16.mxu0 0
        %1198 = vmatpush1.bf16.msra.mxu0 0
        %1199 = vmatprep.subr.bf16.mxu0 0
        %1200 = vmatpush1.bf16.msra.mxu0 %v1183
        %1201 = vmatprep.subr.bf16.mxu0 0
        %1202 = vmatpush2.bf16.msra.mxu0 0
        %1203 = vmatprep.subr.bf16.mxu0 0
        %1204 = vmatpush2.bf16.msra.mxu0 0
        %1205 = vmatprep.subr.bf16.mxu0 0
        %1206 = vmatpush2.bf16.msra.mxu0 0
        %1207 = vmatprep.subr.bf16.mxu0 0
        %1208 = vmatpush2.bf16.msra.mxu0 0
        %1209 = vmatprep.subr.bf16.mxu0 0
        %1210 = vmatpush2.bf16.msra.mxu0 0
        %1211 = vmatprep.subr.bf16.mxu0 0
        %1212 = vmatpush2.bf16.msra.mxu0 0
        %1213 = vmatprep.subr.bf16.mxu0 0
        %1214 = vmatpush2.bf16.msra.mxu0 0
        %1215 = vmatprep.subr.bf16.mxu0 0
        %1216 = vmatpush2.bf16.msra.mxu0 0
        %1217 = vmatprep.mubr.bf16.mxu0 0
        %1218 = vmatmul.mubr.bf16.gmra.mxu0 %v1181
        %v1219 = vpop.f32.mrf.mxu0
        %v1220 = vadd.f32 0.0, %v1219
        %v1221 = vpop.f32.mrf.mxu0
        %v1222 = vpop.f32.mrf.mxu0
        %v1223 = vpop.f32.mrf.mxu0
        %1224 = vdwg.mxu0
        %v1225 = vsel %vm902, %v896, 0
        %1227 = vmatprep.subr.bf16.mxu0 0
        %1228 = vmatpush1.bf16.msra.mxu0 0
        %1229 = vmatprep.subr.bf16.mxu0 0
        %1230 = vmatpush1.bf16.msra.mxu0 0
        %1231 = vmatprep.subr.bf16.mxu0 0
        %1232 = vmatpush1.bf16.msra.mxu0 0
        %1233 = vmatprep.subr.bf16.mxu0 0
        %1234 = vmatpush1.bf16.msra.mxu0 0
        %1235 = vmatprep.subr.bf16.mxu0 0
        %1236 = vmatpush1.bf16.msra.mxu0 0
        %1237 = vmatprep.subr.bf16.mxu0 0
        %1238 = vmatpush1.bf16.msra.mxu0 0
        %1239 = vmatprep.subr.bf16.mxu0 0
        %1240 = vmatpush1.bf16.msra.mxu0 0
        %1241 = vmatprep.subr.bf16.mxu0 0
        %1242 = vmatpush1.bf16.msra.mxu0 %v1225
        %1243 = vmatprep.subr.bf16.mxu0 0
        %1244 = vmatpush2.bf16.msra.mxu0 0
        %1245 = vmatprep.subr.bf16.mxu0 0
        %1246 = vmatpush2.bf16.msra.mxu0 0
        %1247 = vmatprep.subr.bf16.mxu0 0
        %1248 = vmatpush2.bf16.msra.mxu0 0
        %1249 = vmatprep.subr.bf16.mxu0 0
        %1250 = vmatpush2.bf16.msra.mxu0 0
        %1251 = vmatprep.subr.bf16.mxu0 0
        %1252 = vmatpush2.bf16.msra.mxu0 0
        %1253 = vmatprep.subr.bf16.mxu0 0
        %1254 = vmatpush2.bf16.msra.mxu0 0
        %1255 = vmatprep.subr.bf16.mxu0 0
        %1256 = vmatpush2.bf16.msra.mxu0 0
        %1257 = vmatprep.subr.bf16.mxu0 0
        %1258 = vmatpush2.bf16.msra.mxu0 0
        %1259 = vmatprep.mubr.bf16.mxu0 0
        %1260 = vmatmul.mubr.bf16.gmra.mxu0 %v1181
        %v1261 = vpop.f32.mrf.mxu0
        %v1262 = vadd.f32 0.0, %v1261
        %v1263 = vpop.f32.mrf.mxu0
        %v1264 = vpop.f32.mrf.mxu0
        %v1265 = vpop.f32.mrf.mxu0
        %1266 = vdwg.mxu0
        %v1267 = vpack.c.bf16 %v1262, %v1262
        %v1269 = vsel %vm898, %v1267, 0
        %v1272 = vsel %vm902, %v1163, 0
        %1274 = vmatprep.subr.bf16.mxu0 0
        %1275 = vmatpush1.bf16.msra.mxu0 0
        %1276 = vmatprep.subr.bf16.mxu0 0
        %1277 = vmatpush1.bf16.msra.mxu0 0
        %1278 = vmatprep.subr.bf16.mxu0 0
        %1279 = vmatpush1.bf16.msra.mxu0 0
        %1280 = vmatprep.subr.bf16.mxu0 0
        %1281 = vmatpush1.bf16.msra.mxu0 0
        %1282 = vmatprep.subr.bf16.mxu0 0
        %1283 = vmatpush1.bf16.msra.mxu0 0
        %1284 = vmatprep.subr.bf16.mxu0 0
        %1285 = vmatpush1.bf16.msra.mxu0 0
        %1286 = vmatprep.subr.bf16.mxu0 0
        %1287 = vmatpush1.bf16.msra.mxu0 0
        %1288 = vmatprep.subr.bf16.mxu0 0
        %1289 = vmatpush1.bf16.msra.mxu0 %v1272
        %1290 = vmatprep.subr.bf16.mxu0 0
        %1291 = vmatpush2.bf16.msra.mxu0 0
        %1292 = vmatprep.subr.bf16.mxu0 0
        %1293 = vmatpush2.bf16.msra.mxu0 0
        %1294 = vmatprep.subr.bf16.mxu0 0
        %1295 = vmatpush2.bf16.msra.mxu0 0
        %1296 = vmatprep.subr.bf16.mxu0 0
        %1297 = vmatpush2.bf16.msra.mxu0 0
        %1298 = vmatprep.subr.bf16.mxu0 0
        %1299 = vmatpush2.bf16.msra.mxu0 0
        %1300 = vmatprep.subr.bf16.mxu0 0
        %1301 = vmatpush2.bf16.msra.mxu0 0
        %1302 = vmatprep.subr.bf16.mxu0 0
        %1303 = vmatpush2.bf16.msra.mxu0 0
        %1304 = vmatprep.subr.bf16.mxu0 0
        %1305 = vmatpush2.bf16.msra.mxu0 0
        %1306 = vmatprep.mubr.bf16.mxu0 0
        %1307 = vmatmul.mubr.bf16.gmra.mxu0 %v1269
        %v1308 = vpop.f32.mrf.mxu0
        %v1309 = vadd.f32 0.0, %v1308
        %v1310 = vpop.f32.mrf.mxu0
        %v1311 = vpop.f32.mrf.mxu0
        %v1312 = vpop.f32.mrf.mxu0
        %1313 = vdwg.mxu0
        %1314 = vmatprep.subr.bf16.mxu0 0
        %1315 = vmatpush1.bf16.msra.mxu0 0
        %1316 = vmatprep.subr.bf16.mxu0 0
        %1317 = vmatpush1.bf16.msra.mxu0 0
        %1318 = vmatprep.subr.bf16.mxu0 0
        %1319 = vmatpush1.bf16.msra.mxu0 0
        %1320 = vmatprep.subr.bf16.mxu0 0
        %1321 = vmatpush1.bf16.msra.mxu0 0
        %1322 = vmatprep.subr.bf16.mxu0 0
        %1323 = vmatpush1.bf16.msra.mxu0 0
        %1324 = vmatprep.subr.bf16.mxu0 0
        %1325 = vmatpush1.bf16.msra.mxu0 0
        %1326 = vmatprep.subr.bf16.mxu0 0
        %1327 = vmatpush1.bf16.msra.mxu0 0
        %1328 = vmatprep.subr.bf16.mxu0 0
        %1329 = vmatpush1.bf16.msra.mxu0 %v1272
        %1330 = vmatprep.subr.bf16.mxu0 0
        %1331 = vmatpush2.bf16.msra.mxu0 0
        %1332 = vmatprep.subr.bf16.mxu0 0
        %1333 = vmatpush2.bf16.msra.mxu0 0
        %1334 = vmatprep.subr.bf16.mxu0 0
        %1335 = vmatpush2.bf16.msra.mxu0 0
        %1336 = vmatprep.subr.bf16.mxu0 0
        %1337 = vmatpush2.bf16.msra.mxu0 0
        %1338 = vmatprep.subr.bf16.mxu0 0
        %1339 = vmatpush2.bf16.msra.mxu0 0
        %1340 = vmatprep.subr.bf16.mxu0 0
        %1341 = vmatpush2.bf16.msra.mxu0 0
        %1342 = vmatprep.subr.bf16.mxu0 0
        %1343 = vmatpush2.bf16.msra.mxu0 0
        %1344 = vmatprep.subr.bf16.mxu0 0
        %1345 = vmatpush2.bf16.msra.mxu0 0
        %1346 = vmatprep.mubr.bf16.mxu0 0
        %1347 = vmatmul.mubr.bf16.gmra.mxu0 %v1181
        %v1348 = vpop.f32.mrf.mxu0
        %v1349 = vadd.f32 0.0, %v1348
        %v1350 = vpop.f32.mrf.mxu0
        %v1351 = vpop.f32.mrf.mxu0
        %v1352 = vpop.f32.mrf.mxu0
        %1353 = vdwg.mxu0
        %v1354 = vlaneseq
        %v1355 = vshrl.u32 %v1354, 7
        %v1356 = vlaneseq
        %v1357 = vand.u32 %v1356, 127
        %vm1358 = vcmp.eq.s32.totalorder %v1355, %v1357
        %v1359 = vsel %vm1358, 1, 0
        %v1360 = vcvt.s32.f32 %v1359
        %v1361 = vmul.f32 %v1309, %v1360
        %vm1362 = vcmask 9216
        %v1363 = vsel %vm1362, %v1361, 0.0
        %1364 = vadd.xlane.f32.xlu0 %v1363
        %v1365 = vpop.xlane.xlu0 %1364
        %v1366 = vrot.slane %v1365, 4
        %v1367 = vadd.f32 %v1365, %v1366
        %v1368 = vrot.slane %v1367, 2
        %v1369 = vadd.f32 %v1367, %v1368
        %v1370 = vrot.slane %v1369, 1
        %v1371 = vadd.f32 %v1369, %v1370
        %s1372 = vtos %v1371
        %v1373 = vstv %s1372
        %vm1374 = vcmask 27648
        %v1375 = vsel %vm1374, %v895, 0.0
        %1376 = vadd.xlane.f32.xlu0 %v1375
        %v1377 = vpop.xlane.xlu0 %1376
        %v1378 = vmul.f32 %v1162, %v1162
        %v1379 = vsel %vm1151, %v1378, 0.0
        %1380 = vadd.xlane.f32.xlu0 %v1379
        %v1381 = vpop.xlane.xlu0 %1380
        %v1382 = vmul.f32 %v1377, %v1381
        %vm1383 = vcmask 3072
        %v1384 = vsel %vm1383, %v1382, 0.0
        %1385 = vadd.xlane.f32.xlu0 %v1384
        %v1386 = vpop.xlane.xlu0 %1385
        %v1387 = vrot.slane %v1386, 4
        %v1388 = vadd.f32 %v1386, %v1387
        %v1389 = vrot.slane %v1388, 2
        %v1390 = vadd.f32 %v1388, %v1389
        %v1391 = vrot.slane %v1390, 1
        %v1392 = vadd.f32 %v1390, %v1391
        %s1393 = vtos %v1392
        %v1394 = vstv %s1393
        %v1395 = vrcp.pop %v1394
        %v1396 = vmul.f32 %v1373, %v1395
        %v1397 = vsub.f32 0.0, %v1396
        %v1398 = vmul.f32 %v1349, %v1349
        %v1399 = vsel %vm1362, %v1398, 0.0
        %1400 = vadd.xlane.f32.xlu0 %v1399
        %v1401 = vpop.xlane.xlu0 %1400
        %v1402 = vrot.slane %v1401, 4
        %v1403 = vadd.f32 %v1401, %v1402
        %v1404 = vrot.slane %v1403, 2
        %v1405 = vadd.f32 %v1403, %v1404
        %v1406 = vrot.slane %v1405, 1
        %v1407 = vadd.f32 %v1405, %v1406
        %s1408 = vtos %v1407
        %v1409 = vstv %s1408
        %v1410 = vrsqrt.pop %v1409
        %v1411 = vmul.f32 %v1409, %v1410
        %vm1412 = vcmp.eq.f32.partialorder %v1409, inf
        %v1413 = vsel %vm1412, %v1409, %v1411
        %vm1414 = vcmp.eq.f32.partialorder %v1409, 0.0
        %v1415 = vand.u32 %v1409, 2147483648
        %v1416 = vsel %vm1414, %v1415, %v1413
        %v1417 = vrcp.pop %v1416
        %v1418 = vmul.f32 %v1349, %v1417
        %v1419 = vmul.f32 %v1360, 0.70710677
        %v1420 = vsub.f32 %v1418, %v1419
        %v1421 = vmul.f32 %v1420, %v1420
        %v1422 = vsel %vm1362, %v1421, 0.0
        %1423 = vadd.xlane.f32.xlu0 %v1422
        %v1424 = vpop.xlane.xlu0 %1423
        %v1425 = vrot.slane %v1424, 4
        %v1426 = vadd.f32 %v1424, %v1425
        %v1427 = vrot.slane %v1426, 2
        %v1428 = vadd.f32 %v1426, %v1427
        %v1429 = vrot.slane %v1428, 1
        %v1430 = vadd.f32 %v1428, %v1429
        %s1431 = vtos %v1430
        %v1432 = vstv %s1431
        %v1433 = vrsqrt.pop %v1432
        %v1434 = vmul.f32 %v1432, %v1433
        %vm1435 = vcmp.eq.f32.partialorder %v1432, inf
        %v1436 = vsel %vm1435, %v1432, %v1434
        %vm1437 = vcmp.eq.f32.partialorder %v1432, 0.0
        %v1438 = vand.u32 %v1432, 2147483648
        %v1439 = vsel %vm1437, %v1438, %v1436
        %v1440 = vsub.f32 1.0, %v1360
        %v1441 = vmul.f32 %v1309, %v1440
        %v1442 = vsel %vm1362, %v1441, 0.0
        %1443 = vadd.xlane.f32.xlu0 %v1442
        %v1444 = vpop.xlane.xlu0 %1443
        %v1445 = vrsqrt.pop %v1444
        %v1446 = vmul.f32 %v1444, %v1445
        %vm1447 = vcmp.eq.f32.partialorder %v1444, inf
        %v1448 = vsel %vm1447, %v1444, %v1446
        %vm1449 = vcmp.eq.f32.partialorder %v1444, 0.0
        %v1450 = vand.u32 %v1444, 2147483648
        %v1451 = vsel %vm1449, %v1450, %v1448
        %v1452 = vadd.f32 %v1451, 1e-15
        %v1453 = vmul.f32 %v1360, %v1452
        %v1454 = vsel %vm1362, %v1453, 0.0
        %v1455 = vrot.slane %v1454, 4
        %v1456 = vadd.f32 %v1454, %v1455
        %v1457 = vrot.slane %v1456, 2
        %v1458 = vadd.f32 %v1456, %v1457
        %v1459 = vrot.slane %v1458, 1
        %v1460 = vadd.f32 %v1458, %v1459
        %v1461 = vrcp.pop %v1452
        %v1462 = vmul.f32 %v1441, %v1461
        %v1463 = vrcp.pop %v1460
        %v1464 = vmul.f32 %v1462, %v1463
        %1465 = vst.msk [vmem:[%s860] sm:$0x3] %vm1362, %v1464
        %vm1466 = vcmask 0
        %1467 = vst.msk [vmem:[%s889] sm:$0x1] %vm1466, %v1397
        %1468 = vst.msk [vmem:[%s892] sm:$0x1] %vm1466, %v1439
        %v1469 = vld [vmem:[%s8] sm:$0xf]
        %v1470 = vld [vmem:[%s8 + $0x4] sm:$0xf]
        %v1471 = vld [vmem:[%s8 + $0x8] sm:$0xf]
        %v1472 = vld [vmem:[%s8 + $0xc] sm:$0xf]
        %v1473 = vld [vmem:[%s8 + $0x10] sm:$0xf]
        %v1474 = vld [vmem:[%s8 + $0x14] sm:$0xf]
        %v1475 = vld [vmem:[%s8 + $0x18] sm:$0xf]
        %v1476 = vld [vmem:[%s8 + $0x1c] sm:$0xf]
        %v1477 = vld [vmem:[%s9] sm:$0xf]
        %v1478 = vld [vmem:[%s9 + $0x4] sm:$0xf]
        %v1479 = vld [vmem:[%s9 + $0x8] sm:$0xf]
        %v1480 = vld [vmem:[%s9 + $0xc] sm:$0xf]
        %v1481 = vld [vmem:[%s9 + $0x10] sm:$0xf]
        %v1482 = vld [vmem:[%s9 + $0x14] sm:$0xf]
        %v1483 = vld [vmem:[%s9 + $0x18] sm:$0xf]
        %v1484 = vld [vmem:[%s9 + $0x1c] sm:$0xf]
        %v1485 = vld [vmem:[%s10] sm:$0xf]
        %v1486 = vld [vmem:[%s10 + $0x4] sm:$0xf]
        %v1487 = vld [vmem:[%s10 + $0x8] sm:$0xf]
        %v1488 = vld [vmem:[%s10 + $0xc] sm:$0xf]
        %v1489 = vld [vmem:[%s10 + $0x10] sm:$0xf]
        %v1490 = vld [vmem:[%s10 + $0x14] sm:$0xf]
        %v1491 = vld [vmem:[%s10 + $0x18] sm:$0xf]
        %v1492 = vld [vmem:[%s10 + $0x1c] sm:$0xf]
        %v1493 = vld [vmem:[%s11] sm:$0x1]
        %v1494 = vld [vmem:[%s11 + $0x1] sm:$0x1]
        %v1495 = vld [vmem:[%s12] sm:$0x1]
        %v1496 = vld [vmem:[%s12 + $0x1] sm:$0x1]
        %v1497 = vld [vmem:[%s13] sm:$0x1]
        %v1498 = vld [vmem:[%s13 + $0x1] sm:$0x1]
        %v1499 = vld [vmem:[%s14] sm:$0xf]
        %v1500 = vld [vmem:[%s14 + $0x4] sm:$0xf]
        %v1501 = vld [vmem:[%s14 + $0x8] sm:$0xf]
        %v1502 = vld [vmem:[%s14 + $0xc] sm:$0xf]
        %v1503 = vld [vmem:[%s15] sm:$0x1]
        %v1504 = vld [vmem:[%s16] sm:$0xf]
        %v1505 = vld [vmem:[%s16 + $0x4] sm:$0xf]
        %v1506 = vld [vmem:[%s16 + $0x8] sm:$0xf]
        %v1507 = vld [vmem:[%s16 + $0xc] sm:$0xf]
        %v1508 = vld [vmem:[%s17] sm:$0x1]
        %v1509 = vld [vmem:[%s18] sm:$0xf]
        %v1510 = vld [vmem:[%s18 + $0x4] sm:$0xf]
        %v1511 = vld [vmem:[%s18 + $0x8] sm:$0xf]
        %v1512 = vld [vmem:[%s18 + $0xc] sm:$0xf]
        %v1513 = vld [vmem:[%s19] sm:$0x1]
        %v1514 = vld [vmem:[%s20] sm:$0x1]
        %v1515 = vld [vmem:[%s21] sm:$0x1]
        %v1516 = vld [vmem:[%s22] sm:$0x1]
        %v1517 = vld [vmem:[%s23] sm:$0x1]
        loop: start=0, step=1, limit=6
        $region117: #{hatnetc_forward.7} parent=115 // loop_pre_header
          _
        $region118: #{hatnetc_forward.7} parent=115 // loop_header
          %s1519 = sphi 0, %s1523
          %p1520 = scmp.ge.s32.totalorder %s1519, 6
          %v1524 = vphi %v1220, %v2385
        $region119: #{hatnetc_forward.7} parent=115 // loop_header_branch
          %1522 = sbr.rel (%p1520) target = $region123
        $region120: #{hatnetc_forward.7} parent=115 // loop_body
          %v1525 = vpack.c.bf16 %v1524, %v1524
          %v1527 = vlaneseq
          %v1528 = vshrl.u32 %v1527, 7
          %v1529 = vsub.s32 0, %v1528
          %v1530 = vrot.slane %v1493, %v1529
          %v1536 = vunpack.c.l.b16 %v1469
          %v1537 = vunpack.c.l.b16 %v1470
          %v1538 = vunpack.c.l.b16 %v1471
          %v1539 = vunpack.c.l.b16 %v1472
          %v1540 = vpack.c.b16 %v1537, %v1536
          %v1541 = vpack.c.b16 %v1539, %v1538
          %v1545 = vsel %vm971, %v1525, 0
          %1547 = vmatprep.subr.bf16.mxu0 0
          %1548 = vmatpush1.bf16.msra.mxu0 0
          %1549 = vmatprep.subr.bf16.mxu0 0
          %1550 = vmatpush1.bf16.msra.mxu0 0
          %1551 = vmatprep.subr.bf16.mxu0 0
          %1552 = vmatpush1.bf16.msra.mxu0 0
          %1553 = vmatprep.subr.bf16.mxu0 0
          %1554 = vmatpush1.bf16.msra.mxu0 0
          %1555 = vmatprep.subr.bf16.mxu0 0
          %1556 = vmatpush1.bf16.msra.mxu0 0
          %1557 = vmatprep.subr.bf16.mxu0 0
          %1558 = vmatpush1.bf16.msra.mxu0 0
          %1559 = vmatprep.subr.bf16.mxu0 0
          %1560 = vmatpush1.bf16.msra.mxu0 %v1541
          %1561 = vmatprep.subr.bf16.mxu0 0
          %1562 = vmatpush1.bf16.msra.mxu0 %v1540
          %1563 = vmatprep.subr.bf16.mxu0 0
          %1564 = vmatpush2.bf16.msra.mxu0 0
          %1565 = vmatprep.subr.bf16.mxu0 0
          %1566 = vmatpush2.bf16.msra.mxu0 0
          %1567 = vmatprep.subr.bf16.mxu0 0
          %1568 = vmatpush2.bf16.msra.mxu0 0
          %1569 = vmatprep.subr.bf16.mxu0 0
          %1570 = vmatpush2.bf16.msra.mxu0 0
          %1571 = vmatprep.subr.bf16.mxu0 0
          %1572 = vmatpush2.bf16.msra.mxu0 0
          %1573 = vmatprep.subr.bf16.mxu0 0
          %1574 = vmatpush2.bf16.msra.mxu0 0
          %1575 = vmatprep.subr.bf16.mxu0 0
          %1576 = vmatpush2.bf16.msra.mxu0 0
          %1577 = vmatprep.subr.bf16.mxu0 0
          %1578 = vmatpush2.bf16.msra.mxu0 0
          %1579 = vmatprep.mubr.bf16.mxu0 0
          %1580 = vmatmul.mubr.bf16.gmra.mxu0 %v1545
          %v1581 = vpop.f32.mrf.mxu0
          %v1582 = vadd.f32 %v1530, %v1581
          %v1583 = vpop.f32.mrf.mxu0
          %v1584 = vpop.f32.mrf.mxu0
          %v1585 = vpop.f32.mrf.mxu0
          %1586 = vdwg.mxu0
          %v1587 = vmul.f32 %v1582, 0.25
          %v1589 = vlaneseq
          %v1590 = vshrl.u32 %v1589, 7
          %v1591 = vsub.s32 0, %v1590
          %v1592 = vrot.slane %v1495, %v1591
          %v1598 = vunpack.c.l.b16 %v1477
          %v1599 = vunpack.c.l.b16 %v1478
          %v1600 = vunpack.c.l.b16 %v1479
          %v1601 = vunpack.c.l.b16 %v1480
          %v1602 = vpack.c.b16 %v1599, %v1598
          %v1603 = vpack.c.b16 %v1601, %v1600
          %1606 = vmatprep.subr.bf16.mxu0 0
          %1607 = vmatpush1.bf16.msra.mxu0 0
          %1608 = vmatprep.subr.bf16.mxu0 0
          %1609 = vmatpush1.bf16.msra.mxu0 0
          %1610 = vmatprep.subr.bf16.mxu0 0
          %1611 = vmatpush1.bf16.msra.mxu0 0
          %1612 = vmatprep.subr.bf16.mxu0 0
          %1613 = vmatpush1.bf16.msra.mxu0 0
          %1614 = vmatprep.subr.bf16.mxu0 0
          %1615 = vmatpush1.bf16.msra.mxu0 0
          %1616 = vmatprep.subr.bf16.mxu0 0
          %1617 = vmatpush1.bf16.msra.mxu0 0
          %1618 = vmatprep.subr.bf16.mxu0 0
          %1619 = vmatpush1.bf16.msra.mxu0 %v1603
          %1620 = vmatprep.subr.bf16.mxu0 0
          %1621 = vmatpush1.bf16.msra.mxu0 %v1602
          %1622 = vmatprep.subr.bf16.mxu0 0
          %1623 = vmatpush2.bf16.msra.mxu0 0
          %1624 = vmatprep.subr.bf16.mxu0 0
          %1625 = vmatpush2.bf16.msra.mxu0 0
          %1626 = vmatprep.subr.bf16.mxu0 0
          %1627 = vmatpush2.bf16.msra.mxu0 0
          %1628 = vmatprep.subr.bf16.mxu0 0
          %1629 = vmatpush2.bf16.msra.mxu0 0
          %1630 = vmatprep.subr.bf16.mxu0 0
          %1631 = vmatpush2.bf16.msra.mxu0 0
          %1632 = vmatprep.subr.bf16.mxu0 0
          %1633 = vmatpush2.bf16.msra.mxu0 0
          %1634 = vmatprep.subr.bf16.mxu0 0
          %1635 = vmatpush2.bf16.msra.mxu0 0
          %1636 = vmatprep.subr.bf16.mxu0 0
          %1637 = vmatpush2.bf16.msra.mxu0 0
          %1638 = vmatprep.mubr.bf16.mxu0 0
          %1639 = vmatmul.mubr.bf16.gmra.mxu0 %v1545
          %v1640 = vpop.f32.mrf.mxu0
          %v1641 = vadd.f32 %v1592, %v1640
          %v1642 = vpop.f32.mrf.mxu0
          %v1643 = vpop.f32.mrf.mxu0
          %v1644 = vpop.f32.mrf.mxu0
          %1645 = vdwg.mxu0
          %v1647 = vlaneseq
          %v1648 = vshrl.u32 %v1647, 7
          %v1649 = vsub.s32 0, %v1648
          %v1650 = vrot.slane %v1497, %v1649
          %v1656 = vunpack.c.l.b16 %v1485
          %v1657 = vunpack.c.l.b16 %v1486
          %v1658 = vunpack.c.l.b16 %v1487
          %v1659 = vunpack.c.l.b16 %v1488
          %v1660 = vpack.c.b16 %v1657, %v1656
          %v1661 = vpack.c.b16 %v1659, %v1658
          %1664 = vmatprep.subr.bf16.mxu0 0
          %1665 = vmatpush1.bf16.msra.mxu0 0
          %1666 = vmatprep.subr.bf16.mxu0 0
          %1667 = vmatpush1.bf16.msra.mxu0 0
          %1668 = vmatprep.subr.bf16.mxu0 0
          %1669 = vmatpush1.bf16.msra.mxu0 0
          %1670 = vmatprep.subr.bf16.mxu0 0
          %1671 = vmatpush1.bf16.msra.mxu0 0
          %1672 = vmatprep.subr.bf16.mxu0 0
          %1673 = vmatpush1.bf16.msra.mxu0 0
          %1674 = vmatprep.subr.bf16.mxu0 0
          %1675 = vmatpush1.bf16.msra.mxu0 0
          %1676 = vmatprep.subr.bf16.mxu0 0
          %1677 = vmatpush1.bf16.msra.mxu0 %v1661
          %1678 = vmatprep.subr.bf16.mxu0 0
          %1679 = vmatpush1.bf16.msra.mxu0 %v1660
          %1680 = vmatprep.subr.bf16.mxu0 0
          %1681 = vmatpush2.bf16.msra.mxu0 0
          %1682 = vmatprep.subr.bf16.mxu0 0
          %1683 = vmatpush2.bf16.msra.mxu0 0
          %1684 = vmatprep.subr.bf16.mxu0 0
          %1685 = vmatpush2.bf16.msra.mxu0 0
          %1686 = vmatprep.subr.bf16.mxu0 0
          %1687 = vmatpush2.bf16.msra.mxu0 0
          %1688 = vmatprep.subr.bf16.mxu0 0
          %1689 = vmatpush2.bf16.msra.mxu0 0
          %1690 = vmatprep.subr.bf16.mxu0 0
          %1691 = vmatpush2.bf16.msra.mxu0 0
          %1692 = vmatprep.subr.bf16.mxu0 0
          %1693 = vmatpush2.bf16.msra.mxu0 0
          %1694 = vmatprep.subr.bf16.mxu0 0
          %1695 = vmatpush2.bf16.msra.mxu0 0
          %1696 = vmatprep.mubr.bf16.mxu0 0
          %1697 = vmatmul.mubr.bf16.gmra.mxu0 %v1545
          %v1698 = vpop.f32.mrf.mxu0
          %v1699 = vadd.f32 %v1650, %v1698
          %v1700 = vpop.f32.mrf.mxu0
          %v1701 = vpop.f32.mrf.mxu0
          %v1702 = vpop.f32.mrf.mxu0
          %1703 = vdwg.mxu0
          %v1704 = vpack.c.bf16 %v1587, %v1587
          %v1705 = vpack.c.bf16 %v1641, %v1641
          %vm1706 = vcmask 130048
          %v1708 = vsel %vm1706, %v1704, 0
          %v1711 = vsel %vm1706, %v1705, 0
          %1713 = vmatprep.subr.bf16.mxu0 0
          %1714 = vmatpush1.bf16.xpose.msra.mxu0 0
          %1715 = vmatprep.subr.bf16.mxu0 0
          %1716 = vmatpush1.bf16.xpose.msra.mxu0 0
          %1717 = vmatprep.subr.bf16.mxu0 0
          %1718 = vmatpush1.bf16.xpose.msra.mxu0 0
          %1719 = vmatprep.subr.bf16.mxu0 0
          %1720 = vmatpush1.bf16.xpose.msra.mxu0 0
          %1721 = vmatprep.subr.bf16.mxu0 0
          %1722 = vmatpush1.bf16.xpose.msra.mxu0 0
          %1723 = vmatprep.subr.bf16.mxu0 0
          %1724 = vmatpush1.bf16.xpose.msra.mxu0 0
          %1725 = vmatprep.subr.bf16.mxu0 0
          %1726 = vmatpush1.bf16.xpose.msra.mxu0 0
          %1727 = vmatprep.subr.bf16.mxu0 0
          %1728 = vmatpush1.bf16.xpose.msra.mxu0 %v1711
          %1729 = vmatprep.subr.bf16.mxu0 0
          %1730 = vmatpush2.bf16.xpose.msra.mxu0 0
          %1731 = vmatprep.subr.bf16.mxu0 0
          %1732 = vmatpush2.bf16.xpose.msra.mxu0 0
          %1733 = vmatprep.subr.bf16.mxu0 0
          %1734 = vmatpush2.bf16.xpose.msra.mxu0 0
          %1735 = vmatprep.subr.bf16.mxu0 0
          %1736 = vmatpush2.bf16.xpose.msra.mxu0 0
          %1737 = vmatprep.subr.bf16.mxu0 0
          %1738 = vmatpush2.bf16.xpose.msra.mxu0 0
          %1739 = vmatprep.subr.bf16.mxu0 0
          %1740 = vmatpush2.bf16.xpose.msra.mxu0 0
          %1741 = vmatprep.subr.bf16.mxu0 0
          %1742 = vmatpush2.bf16.xpose.msra.mxu0 0
          %1743 = vmatprep.subr.bf16.mxu0 0
          %1744 = vmatpush2.bf16.xpose.msra.mxu0 0
          %1745 = vmatprep.mubr.bf16.mxu0 0
          %1746 = vmatmul.mubr.bf16.gmra.mxu0 %v1708
          %v1747 = vpop.f32.mrf.mxu0
          %v1748 = vadd.f32 0.0, %v1747
          %v1749 = vpop.f32.mrf.mxu0
          %v1750 = vpop.f32.mrf.mxu0
          %v1751 = vpop.f32.mrf.mxu0
          %1752 = vdwg.mxu0
          %v1753 = vsel %vm1362, %v1748, -inf
          %1754 = vmax.xlane.f32.xlu0 %v1753
          %v1755 = vpop.xlane.xlu0 %1754
          %v1756 = vsub.f32 %v1748, %v1755
          %v1757 = vmul.f32 %v1756, 1.442695
          %v1758 = vpow.pop %v1757
          %v1759 = vsel %vm1362, %v1758, 0.0
          %1760 = vadd.xlane.f32.xlu0 %v1759
          %v1761 = vpop.xlane.xlu0 %1760
          %v1762 = vrcp.pop %v1761
          %v1763 = vmul.f32 %v1758, %v1762
          %v1764 = vpack.c.bf16 %v1763, %v1763
          %v1765 = vpack.c.bf16 %v1699, %v1699
          %vm1766 = vcmask 15360
          %v1768 = vsel %vm1766, %v1764, 0
          %vm1770 = vcmask 1040384
          %v1772 = vsel %vm1770, %v1765, 0
          %1774 = vmatprep.subr.bf16.mxu0 0
          %1775 = vmatpush1.bf16.msra.mxu0 0
          %1776 = vmatprep.subr.bf16.mxu0 0
          %1777 = vmatpush1.bf16.msra.mxu0 0
          %1778 = vmatprep.subr.bf16.mxu0 0
          %1779 = vmatpush1.bf16.msra.mxu0 0
          %1780 = vmatprep.subr.bf16.mxu0 0
          %1781 = vmatpush1.bf16.msra.mxu0 0
          %1782 = vmatprep.subr.bf16.mxu0 0
          %1783 = vmatpush1.bf16.msra.mxu0 0
          %1784 = vmatprep.subr.bf16.mxu0 0
          %1785 = vmatpush1.bf16.msra.mxu0 0
          %1786 = vmatprep.subr.bf16.mxu0 0
          %1787 = vmatpush1.bf16.msra.mxu0 0
          %1788 = vmatprep.subr.bf16.mxu0 0
          %1789 = vmatpush1.bf16.msra.mxu0 %v1772
          %1790 = vmatprep.subr.bf16.mxu0 0
          %1791 = vmatpush2.bf16.msra.mxu0 0
          %1792 = vmatprep.subr.bf16.mxu0 0
          %1793 = vmatpush2.bf16.msra.mxu0 0
          %1794 = vmatprep.subr.bf16.mxu0 0
          %1795 = vmatpush2.bf16.msra.mxu0 0
          %1796 = vmatprep.subr.bf16.mxu0 0
          %1797 = vmatpush2.bf16.msra.mxu0 0
          %1798 = vmatprep.subr.bf16.mxu0 0
          %1799 = vmatpush2.bf16.msra.mxu0 0
          %1800 = vmatprep.subr.bf16.mxu0 0
          %1801 = vmatpush2.bf16.msra.mxu0 0
          %1802 = vmatprep.subr.bf16.mxu0 0
          %1803 = vmatpush2.bf16.msra.mxu0 0
          %1804 = vmatprep.subr.bf16.mxu0 0
          %1805 = vmatpush2.bf16.msra.mxu0 0
          %1806 = vmatprep.mubr.bf16.mxu0 0
          %1807 = vmatmul.mubr.bf16.gmra.mxu0 %v1768
          %v1808 = vpop.f32.mrf.mxu0
          %v1809 = vadd.f32 0.0, %v1808
          %v1810 = vpop.f32.mrf.mxu0
          %v1811 = vpop.f32.mrf.mxu0
          %v1812 = vpop.f32.mrf.mxu0
          %1813 = vdwg.mxu0
          %v1814 = vpack.c.bf16 %v1809, %v1809
          %v1816 = vlaneseq
          %v1817 = vshrl.u32 %v1816, 7
          %v1818 = vsub.s32 0, %v1817
          %v1819 = vrot.slane %v1494, %v1818
          %v1825 = vunpack.c.l.b16 %v1473
          %v1826 = vunpack.c.l.b16 %v1474
          %v1827 = vunpack.c.l.b16 %v1475
          %v1828 = vunpack.c.l.b16 %v1476
          %v1829 = vpack.c.b16 %v1826, %v1825
          %v1830 = vpack.c.b16 %v1828, %v1827
          %1833 = vmatprep.subr.bf16.mxu0 0
          %1834 = vmatpush1.bf16.msra.mxu0 0
          %1835 = vmatprep.subr.bf16.mxu0 0
          %1836 = vmatpush1.bf16.msra.mxu0 0
          %1837 = vmatprep.subr.bf16.mxu0 0
          %1838 = vmatpush1.bf16.msra.mxu0 0
          %1839 = vmatprep.subr.bf16.mxu0 0
          %1840 = vmatpush1.bf16.msra.mxu0 0
          %1841 = vmatprep.subr.bf16.mxu0 0
          %1842 = vmatpush1.bf16.msra.mxu0 0
          %1843 = vmatprep.subr.bf16.mxu0 0
          %1844 = vmatpush1.bf16.msra.mxu0 0
          %1845 = vmatprep.subr.bf16.mxu0 0
          %1846 = vmatpush1.bf16.msra.mxu0 %v1830
          %1847 = vmatprep.subr.bf16.mxu0 0
          %1848 = vmatpush1.bf16.msra.mxu0 %v1829
          %1849 = vmatprep.subr.bf16.mxu0 0
          %1850 = vmatpush2.bf16.msra.mxu0 0
          %1851 = vmatprep.subr.bf16.mxu0 0
          %1852 = vmatpush2.bf16.msra.mxu0 0
          %1853 = vmatprep.subr.bf16.mxu0 0
          %1854 = vmatpush2.bf16.msra.mxu0 0
          %1855 = vmatprep.subr.bf16.mxu0 0
          %1856 = vmatpush2.bf16.msra.mxu0 0
          %1857 = vmatprep.subr.bf16.mxu0 0
          %1858 = vmatpush2.bf16.msra.mxu0 0
          %1859 = vmatprep.subr.bf16.mxu0 0
          %1860 = vmatpush2.bf16.msra.mxu0 0
          %1861 = vmatprep.subr.bf16.mxu0 0
          %1862 = vmatpush2.bf16.msra.mxu0 0
          %1863 = vmatprep.subr.bf16.mxu0 0
          %1864 = vmatpush2.bf16.msra.mxu0 0
          %1865 = vmatprep.mubr.bf16.mxu0 0
          %1866 = vmatmul.mubr.bf16.gmra.mxu0 %v1545
          %v1867 = vpop.f32.mrf.mxu0
          %v1868 = vadd.f32 %v1819, %v1867
          %v1869 = vpop.f32.mrf.mxu0
          %v1870 = vpop.f32.mrf.mxu0
          %v1871 = vpop.f32.mrf.mxu0
          %1872 = vdwg.mxu0
          %v1873 = vmul.f32 %v1868, 0.25
          %v1875 = vlaneseq
          %v1876 = vshrl.u32 %v1875, 7
          %v1877 = vsub.s32 0, %v1876
          %v1878 = vrot.slane %v1496, %v1877
          %v1884 = vunpack.c.l.b16 %v1481
          %v1885 = vunpack.c.l.b16 %v1482
          %v1886 = vunpack.c.l.b16 %v1483
          %v1887 = vunpack.c.l.b16 %v1484
          %v1888 = vpack.c.b16 %v1885, %v1884
          %v1889 = vpack.c.b16 %v1887, %v1886
          %1892 = vmatprep.subr.bf16.mxu0 0
          %1893 = vmatpush1.bf16.msra.mxu0 0
          %1894 = vmatprep.subr.bf16.mxu0 0
          %1895 = vmatpush1.bf16.msra.mxu0 0
          %1896 = vmatprep.subr.bf16.mxu0 0
          %1897 = vmatpush1.bf16.msra.mxu0 0
          %1898 = vmatprep.subr.bf16.mxu0 0
          %1899 = vmatpush1.bf16.msra.mxu0 0
          %1900 = vmatprep.subr.bf16.mxu0 0
          %1901 = vmatpush1.bf16.msra.mxu0 0
          %1902 = vmatprep.subr.bf16.mxu0 0
          %1903 = vmatpush1.bf16.msra.mxu0 0
          %1904 = vmatprep.subr.bf16.mxu0 0
          %1905 = vmatpush1.bf16.msra.mxu0 %v1889
          %1906 = vmatprep.subr.bf16.mxu0 0
          %1907 = vmatpush1.bf16.msra.mxu0 %v1888
          %1908 = vmatprep.subr.bf16.mxu0 0
          %1909 = vmatpush2.bf16.msra.mxu0 0
          %1910 = vmatprep.subr.bf16.mxu0 0
          %1911 = vmatpush2.bf16.msra.mxu0 0
          %1912 = vmatprep.subr.bf16.mxu0 0
          %1913 = vmatpush2.bf16.msra.mxu0 0
          %1914 = vmatprep.subr.bf16.mxu0 0
          %1915 = vmatpush2.bf16.msra.mxu0 0
          %1916 = vmatprep.subr.bf16.mxu0 0
          %1917 = vmatpush2.bf16.msra.mxu0 0
          %1918 = vmatprep.subr.bf16.mxu0 0
          %1919 = vmatpush2.bf16.msra.mxu0 0
          %1920 = vmatprep.subr.bf16.mxu0 0
          %1921 = vmatpush2.bf16.msra.mxu0 0
          %1922 = vmatprep.subr.bf16.mxu0 0
          %1923 = vmatpush2.bf16.msra.mxu0 0
          %1924 = vmatprep.mubr.bf16.mxu0 0
          %1925 = vmatmul.mubr.bf16.gmra.mxu0 %v1545
          %v1926 = vpop.f32.mrf.mxu0
          %v1927 = vadd.f32 %v1878, %v1926
          %v1928 = vpop.f32.mrf.mxu0
          %v1929 = vpop.f32.mrf.mxu0
          %v1930 = vpop.f32.mrf.mxu0
          %1931 = vdwg.mxu0
          %v1933 = vlaneseq
          %v1934 = vshrl.u32 %v1933, 7
          %v1935 = vsub.s32 0, %v1934
          %v1936 = vrot.slane %v1498, %v1935
          %v1942 = vunpack.c.l.b16 %v1489
          %v1943 = vunpack.c.l.b16 %v1490
          %v1944 = vunpack.c.l.b16 %v1491
          %v1945 = vunpack.c.l.b16 %v1492
          %v1946 = vpack.c.b16 %v1943, %v1942
          %v1947 = vpack.c.b16 %v1945, %v1944
          %1950 = vmatprep.subr.bf16.mxu0 0
          %1951 = vmatpush1.bf16.msra.mxu0 0
          %1952 = vmatprep.subr.bf16.mxu0 0
          %1953 = vmatpush1.bf16.msra.mxu0 0
          %1954 = vmatprep.subr.bf16.mxu0 0
          %1955 = vmatpush1.bf16.msra.mxu0 0
          %1956 = vmatprep.subr.bf16.mxu0 0
          %1957 = vmatpush1.bf16.msra.mxu0 0
          %1958 = vmatprep.subr.bf16.mxu0 0
          %1959 = vmatpush1.bf16.msra.mxu0 0
          %1960 = vmatprep.subr.bf16.mxu0 0
          %1961 = vmatpush1.bf16.msra.mxu0 0
          %1962 = vmatprep.subr.bf16.mxu0 0
          %1963 = vmatpush1.bf16.msra.mxu0 %v1947
          %1964 = vmatprep.subr.bf16.mxu0 0
          %1965 = vmatpush1.bf16.msra.mxu0 %v1946
          %1966 = vmatprep.subr.bf16.mxu0 0
          %1967 = vmatpush2.bf16.msra.mxu0 0
          %1968 = vmatprep.subr.bf16.mxu0 0
          %1969 = vmatpush2.bf16.msra.mxu0 0
          %1970 = vmatprep.subr.bf16.mxu0 0
          %1971 = vmatpush2.bf16.msra.mxu0 0
          %1972 = vmatprep.subr.bf16.mxu0 0
          %1973 = vmatpush2.bf16.msra.mxu0 0
          %1974 = vmatprep.subr.bf16.mxu0 0
          %1975 = vmatpush2.bf16.msra.mxu0 0
          %1976 = vmatprep.subr.bf16.mxu0 0
          %1977 = vmatpush2.bf16.msra.mxu0 0
          %1978 = vmatprep.subr.bf16.mxu0 0
          %1979 = vmatpush2.bf16.msra.mxu0 0
          %1980 = vmatprep.subr.bf16.mxu0 0
          %1981 = vmatpush2.bf16.msra.mxu0 0
          %1982 = vmatprep.mubr.bf16.mxu0 0
          %1983 = vmatmul.mubr.bf16.gmra.mxu0 %v1545
          %v1984 = vpop.f32.mrf.mxu0
          %v1985 = vadd.f32 %v1936, %v1984
          %v1986 = vpop.f32.mrf.mxu0
          %v1987 = vpop.f32.mrf.mxu0
          %v1988 = vpop.f32.mrf.mxu0
          %1989 = vdwg.mxu0
          %v1990 = vpack.c.bf16 %v1873, %v1873
          %v1991 = vpack.c.bf16 %v1927, %v1927
          %v1993 = vsel %vm1706, %v1990, 0
          %v1996 = vsel %vm1706, %v1991, 0
          %1998 = vmatprep.subr.bf16.mxu0 0
          %1999 = vmatpush1.bf16.xpose.msra.mxu0 0
          %2000 = vmatprep.subr.bf16.mxu0 0
          %2001 = vmatpush1.bf16.xpose.msra.mxu0 0
          %2002 = vmatprep.subr.bf16.mxu0 0
          %2003 = vmatpush1.bf16.xpose.msra.mxu0 0
          %2004 = vmatprep.subr.bf16.mxu0 0
          %2005 = vmatpush1.bf16.xpose.msra.mxu0 0
          %2006 = vmatprep.subr.bf16.mxu0 0
          %2007 = vmatpush1.bf16.xpose.msra.mxu0 0
          %2008 = vmatprep.subr.bf16.mxu0 0
          %2009 = vmatpush1.bf16.xpose.msra.mxu0 0
          %2010 = vmatprep.subr.bf16.mxu0 0
          %2011 = vmatpush1.bf16.xpose.msra.mxu0 0
          %2012 = vmatprep.subr.bf16.mxu0 0
          %2013 = vmatpush1.bf16.xpose.msra.mxu0 %v1996
          %2014 = vmatprep.subr.bf16.mxu0 0
          %2015 = vmatpush2.bf16.xpose.msra.mxu0 0
          %2016 = vmatprep.subr.bf16.mxu0 0
          %2017 = vmatpush2.bf16.xpose.msra.mxu0 0
          %2018 = vmatprep.subr.bf16.mxu0 0
          %2019 = vmatpush2.bf16.xpose.msra.mxu0 0
          %2020 = vmatprep.subr.bf16.mxu0 0
          %2021 = vmatpush2.bf16.xpose.msra.mxu0 0
          %2022 = vmatprep.subr.bf16.mxu0 0
          %2023 = vmatpush2.bf16.xpose.msra.mxu0 0
          %2024 = vmatprep.subr.bf16.mxu0 0
          %2025 = vmatpush2.bf16.xpose.msra.mxu0 0
          %2026 = vmatprep.subr.bf16.mxu0 0
          %2027 = vmatpush2.bf16.xpose.msra.mxu0 0
          %2028 = vmatprep.subr.bf16.mxu0 0
          %2029 = vmatpush2.bf16.xpose.msra.mxu0 0
          %2030 = vmatprep.mubr.bf16.mxu0 0
          %2031 = vmatmul.mubr.bf16.gmra.mxu0 %v1993
          %v2032 = vpop.f32.mrf.mxu0
          %v2033 = vadd.f32 0.0, %v2032
          %v2034 = vpop.f32.mrf.mxu0
          %v2035 = vpop.f32.mrf.mxu0
          %v2036 = vpop.f32.mrf.mxu0
          %2037 = vdwg.mxu0
          %v2038 = vsel %vm1362, %v2033, -inf
          %2039 = vmax.xlane.f32.xlu0 %v2038
          %v2040 = vpop.xlane.xlu0 %2039
          %v2041 = vsub.f32 %v2033, %v2040
          %v2042 = vmul.f32 %v2041, 1.442695
          %v2043 = vpow.pop %v2042
          %v2044 = vsel %vm1362, %v2043, 0.0
          %2045 = vadd.xlane.f32.xlu0 %v2044
          %v2046 = vpop.xlane.xlu0 %2045
          %v2047 = vrcp.pop %v2046
          %v2048 = vmul.f32 %v2043, %v2047
          %v2049 = vpack.c.bf16 %v2048, %v2048
          %v2050 = vpack.c.bf16 %v1985, %v1985
          %v2052 = vsel %vm1766, %v2049, 0
          %v2055 = vsel %vm1770, %v2050, 0
          %2057 = vmatprep.subr.bf16.mxu0 0
          %2058 = vmatpush1.bf16.msra.mxu0 0
          %2059 = vmatprep.subr.bf16.mxu0 0
          %2060 = vmatpush1.bf16.msra.mxu0 0
          %2061 = vmatprep.subr.bf16.mxu0 0
          %2062 = vmatpush1.bf16.msra.mxu0 0
          %2063 = vmatprep.subr.bf16.mxu0 0
          %2064 = vmatpush1.bf16.msra.mxu0 0
          %2065 = vmatprep.subr.bf16.mxu0 0
          %2066 = vmatpush1.bf16.msra.mxu0 0
          %2067 = vmatprep.subr.bf16.mxu0 0
          %2068 = vmatpush1.bf16.msra.mxu0 0
          %2069 = vmatprep.subr.bf16.mxu0 0
          %2070 = vmatpush1.bf16.msra.mxu0 0
          %2071 = vmatprep.subr.bf16.mxu0 0
          %2072 = vmatpush1.bf16.msra.mxu0 %v2055
          %2073 = vmatprep.subr.bf16.mxu0 0
          %2074 = vmatpush2.bf16.msra.mxu0 0
          %2075 = vmatprep.subr.bf16.mxu0 0
          %2076 = vmatpush2.bf16.msra.mxu0 0
          %2077 = vmatprep.subr.bf16.mxu0 0
          %2078 = vmatpush2.bf16.msra.mxu0 0
          %2079 = vmatprep.subr.bf16.mxu0 0
          %2080 = vmatpush2.bf16.msra.mxu0 0
          %2081 = vmatprep.subr.bf16.mxu0 0
          %2082 = vmatpush2.bf16.msra.mxu0 0
          %2083 = vmatprep.subr.bf16.mxu0 0
          %2084 = vmatpush2.bf16.msra.mxu0 0
          %2085 = vmatprep.subr.bf16.mxu0 0
          %2086 = vmatpush2.bf16.msra.mxu0 0
          %2087 = vmatprep.subr.bf16.mxu0 0
          %2088 = vmatpush2.bf16.msra.mxu0 0
          %2089 = vmatprep.mubr.bf16.mxu0 0
          %2090 = vmatmul.mubr.bf16.gmra.mxu0 %v2052
          %v2091 = vpop.f32.mrf.mxu0
          %v2092 = vadd.f32 0.0, %v2091
          %v2093 = vpop.f32.mrf.mxu0
          %v2094 = vpop.f32.mrf.mxu0
          %v2095 = vpop.f32.mrf.mxu0
          %2096 = vdwg.mxu0
          %v2097 = vpack.c.bf16 %v2092, %v2092
          %v2100 = vunpack.c.l.b16 %v1501
          %v2101 = vunpack.c.l.b16 %v1502
          %v2102 = vpack.c.b16 %v2101, %v2100
          %v2105 = vsel %vm1706, %v2097, 0
          %2107 = vmatprep.subr.bf16.mxu0 0
          %2108 = vmatpush1.bf16.msra.mxu0 0
          %2109 = vmatprep.subr.bf16.mxu0 0
          %2110 = vmatpush1.bf16.msra.mxu0 0
          %2111 = vmatprep.subr.bf16.mxu0 0
          %2112 = vmatpush1.bf16.msra.mxu0 0
          %2113 = vmatprep.subr.bf16.mxu0 0
          %2114 = vmatpush1.bf16.msra.mxu0 0
          %2115 = vmatprep.subr.bf16.mxu0 0
          %2116 = vmatpush1.bf16.msra.mxu0 0
          %2117 = vmatprep.subr.bf16.mxu0 0
          %2118 = vmatpush1.bf16.msra.mxu0 0
          %2119 = vmatprep.subr.bf16.mxu0 0
          %2120 = vmatpush1.bf16.msra.mxu0 0
          %2121 = vmatprep.subr.bf16.mxu0 0
          %2122 = vmatpush1.bf16.msra.mxu0 %v2102
          %2123 = vmatprep.subr.bf16.mxu0 0
          %2124 = vmatpush2.bf16.msra.mxu0 0
          %2125 = vmatprep.subr.bf16.mxu0 0
          %2126 = vmatpush2.bf16.msra.mxu0 0
          %2127 = vmatprep.subr.bf16.mxu0 0
          %2128 = vmatpush2.bf16.msra.mxu0 0
          %2129 = vmatprep.subr.bf16.mxu0 0
          %2130 = vmatpush2.bf16.msra.mxu0 0
          %2131 = vmatprep.subr.bf16.mxu0 0
          %2132 = vmatpush2.bf16.msra.mxu0 0
          %2133 = vmatprep.subr.bf16.mxu0 0
          %2134 = vmatpush2.bf16.msra.mxu0 0
          %2135 = vmatprep.subr.bf16.mxu0 0
          %2136 = vmatpush2.bf16.msra.mxu0 0
          %2137 = vmatprep.subr.bf16.mxu0 0
          %2138 = vmatpush2.bf16.msra.mxu0 0
          %2139 = vmatprep.mubr.bf16.mxu0 0
          %2140 = vmatmul.mubr.bf16.gmra.mxu0 %v2105
          %v2141 = vpop.f32.mrf.mxu0
          %v2142 = vadd.f32 0.0, %v2141
          %v2143 = vpop.f32.mrf.mxu0
          %v2144 = vpop.f32.mrf.mxu0
          %v2145 = vpop.f32.mrf.mxu0
          %2146 = vdwg.mxu0
          %v2149 = vunpack.c.l.b16 %v1499
          %v2150 = vunpack.c.l.b16 %v1500
          %v2151 = vpack.c.b16 %v2150, %v2149
          %v2154 = vsel %vm1706, %v1814, 0
          %2156 = vmatprep.subr.bf16.mxu0 0
          %2157 = vmatpush1.bf16.msra.mxu0 0
          %2158 = vmatprep.subr.bf16.mxu0 0
          %2159 = vmatpush1.bf16.msra.mxu0 0
          %2160 = vmatprep.subr.bf16.mxu0 0
          %2161 = vmatpush1.bf16.msra.mxu0 0
          %2162 = vmatprep.subr.bf16.mxu0 0
          %2163 = vmatpush1.bf16.msra.mxu0 0
          %2164 = vmatprep.subr.bf16.mxu0 0
          %2165 = vmatpush1.bf16.msra.mxu0 0
          %2166 = vmatprep.subr.bf16.mxu0 0
          %2167 = vmatpush1.bf16.msra.mxu0 0
          %2168 = vmatprep.subr.bf16.mxu0 0
          %2169 = vmatpush1.bf16.msra.mxu0 0
          %2170 = vmatprep.subr.bf16.mxu0 0
          %2171 = vmatpush1.bf16.msra.mxu0 %v2151
          %2172 = vmatprep.subr.bf16.mxu0 0
          %2173 = vmatpush2.bf16.msra.mxu0 0
          %2174 = vmatprep.subr.bf16.mxu0 0
          %2175 = vmatpush2.bf16.msra.mxu0 0
          %2176 = vmatprep.subr.bf16.mxu0 0
          %2177 = vmatpush2.bf16.msra.mxu0 0
          %2178 = vmatprep.subr.bf16.mxu0 0
          %2179 = vmatpush2.bf16.msra.mxu0 0
          %2180 = vmatprep.subr.bf16.mxu0 0
          %2181 = vmatpush2.bf16.msra.mxu0 0
          %2182 = vmatprep.subr.bf16.mxu0 0
          %2183 = vmatpush2.bf16.msra.mxu0 0
          %2184 = vmatprep.subr.bf16.mxu0 0
          %2185 = vmatpush2.bf16.msra.mxu0 0
          %2186 = vmatprep.subr.bf16.mxu0 0
          %2187 = vmatpush2.bf16.msra.mxu0 0
          %2188 = vmatprep.mubr.bf16.mxu0 0
          %2189 = vmatmul.mubr.bf16.gmra.mxu0 %v2154
          %v2190 = vpop.f32.mrf.mxu0
          %v2191 = vadd.f32 %v2142, %v2190
          %v2192 = vpop.f32.mrf.mxu0
          %v2193 = vpop.f32.mrf.mxu0
          %v2194 = vpop.f32.mrf.mxu0
          %2195 = vdwg.mxu0
          %v2196 = vadd.f32 %v1524, %v2191
          %v2198 = vlaneseq
          %v2199 = vshrl.u32 %v2198, 7
          %v2200 = vsub.s32 0, %v2199
          %v2201 = vrot.slane %v1503, %v2200
          %v2203 = vadd.f32 %v2196, %v2201
          %vm2204 = vcmask 254976
          %v2205 = vsel %vm2204, %v2203, 0.0
          %2206 = vadd.xlane.f32.xlu0 %v2205
          %v2207 = vpop.xlane.xlu0 %2206
          %v2208 = vrcp.pop 32.0
          %v2209 = vmul.f32 %v2207, %v2208
          %v2210 = vsub.f32 %v2203, %v2209
          %v2211 = vmul.f32 %v2210, %v2210
          %v2212 = vsel %vm2204, %v2211, 0.0
          %2213 = vadd.xlane.f32.xlu0 %v2212
          %v2214 = vpop.xlane.xlu0 %2213
          %v2215 = vmul.f32 %v2214, %v2208
          %v2216 = vadd.f32 %v2215, 1e-05
          %v2217 = vrsqrt.pop %v2216
          %v2218 = vmul.f32 %v2210, %v2217
          %v2220 = vlaneseq
          %v2221 = vshrl.u32 %v2220, 7
          %v2222 = vsub.s32 0, %v2221
          %v2223 = vrot.slane %v1514, %v2222
          %v2225 = vmul.f32 %v2218, %v2223
          %v2227 = vlaneseq
          %v2228 = vshrl.u32 %v2227, 7
          %v2229 = vsub.s32 0, %v2228
          %v2230 = vrot.slane %v1515, %v2229
          %v2232 = vadd.f32 %v2225, %v2230
          %v2233 = vpack.c.bf16 %v2232, %v2232
          %v2235 = vlaneseq
          %v2236 = vshrl.u32 %v2235, 7
          %v2237 = vsub.s32 0, %v2236
          %v2238 = vrot.slane %v1508, %v2237
          %v2244 = vunpack.c.l.b16 %v1504
          %v2245 = vunpack.c.l.b16 %v1505
          %v2246 = vunpack.c.l.b16 %v1506
          %v2247 = vunpack.c.l.b16 %v1507
          %v2248 = vpack.c.b16 %v2245, %v2244
          %v2249 = vpack.c.b16 %v2247, %v2246
          %v2253 = vsel %vm971, %v2233, 0
          %2255 = vmatprep.subr.bf16.mxu0 0
          %2256 = vmatpush1.bf16.msra.mxu0 0
          %2257 = vmatprep.subr.bf16.mxu0 0
          %2258 = vmatpush1.bf16.msra.mxu0 0
          %2259 = vmatprep.subr.bf16.mxu0 0
          %2260 = vmatpush1.bf16.msra.mxu0 0
          %2261 = vmatprep.subr.bf16.mxu0 0
          %2262 = vmatpush1.bf16.msra.mxu0 0
          %2263 = vmatprep.subr.bf16.mxu0 0
          %2264 = vmatpush1.bf16.msra.mxu0 0
          %2265 = vmatprep.subr.bf16.mxu0 0
          %2266 = vmatpush1.bf16.msra.mxu0 0
          %2267 = vmatprep.subr.bf16.mxu0 0
          %2268 = vmatpush1.bf16.msra.mxu0 %v2249
          %2269 = vmatprep.subr.bf16.mxu0 0
          %2270 = vmatpush1.bf16.msra.mxu0 %v2248
          %2271 = vmatprep.subr.bf16.mxu0 0
          %2272 = vmatpush2.bf16.msra.mxu0 0
          %2273 = vmatprep.subr.bf16.mxu0 0
          %2274 = vmatpush2.bf16.msra.mxu0 0
          %2275 = vmatprep.subr.bf16.mxu0 0
          %2276 = vmatpush2.bf16.msra.mxu0 0
          %2277 = vmatprep.subr.bf16.mxu0 0
          %2278 = vmatpush2.bf16.msra.mxu0 0
          %2279 = vmatprep.subr.bf16.mxu0 0
          %2280 = vmatpush2.bf16.msra.mxu0 0
          %2281 = vmatprep.subr.bf16.mxu0 0
          %2282 = vmatpush2.bf16.msra.mxu0 0
          %2283 = vmatprep.subr.bf16.mxu0 0
          %2284 = vmatpush2.bf16.msra.mxu0 0
          %2285 = vmatprep.subr.bf16.mxu0 0
          %2286 = vmatpush2.bf16.msra.mxu0 0
          %2287 = vmatprep.mubr.bf16.mxu0 0
          %2288 = vmatmul.mubr.bf16.gmra.mxu0 %v2253
          %v2289 = vpop.f32.mrf.mxu0
          %v2290 = vadd.f32 %v2238, %v2289
          %v2291 = vpop.f32.mrf.mxu0
          %v2292 = vpop.f32.mrf.mxu0
          %v2293 = vpop.f32.mrf.mxu0
          %2294 = vdwg.mxu0
          %v2295 = vmax.f32 %v2290, 0.0
          %v2296 = vpack.c.bf16 %v2295, %v2295
          %v2298 = vlaneseq
          %v2299 = vshrl.u32 %v2298, 7
          %v2300 = vsub.s32 0, %v2299
          %v2301 = vrot.slane %v1513, %v2300
          %v2307 = vunpack.c.l.b16 %v1509
          %v2308 = vunpack.c.l.b16 %v1510
          %v2309 = vunpack.c.l.b16 %v1511
          %v2310 = vunpack.c.l.b16 %v1512
          %v2311 = vpack.c.b16 %v2308, %v2307
          %v2312 = vpack.c.b16 %v2310, %v2309
          %v2316 = vsel %vm971, %v2296, 0
          %2318 = vmatprep.subr.bf16.mxu0 0
          %2319 = vmatpush1.bf16.msra.mxu0 0
          %2320 = vmatprep.subr.bf16.mxu0 0
          %2321 = vmatpush1.bf16.msra.mxu0 0
          %2322 = vmatprep.subr.bf16.mxu0 0
          %2323 = vmatpush1.bf16.msra.mxu0 0
          %2324 = vmatprep.subr.bf16.mxu0 0
          %2325 = vmatpush1.bf16.msra.mxu0 0
          %2326 = vmatprep.subr.bf16.mxu0 0
          %2327 = vmatpush1.bf16.msra.mxu0 0
          %2328 = vmatprep.subr.bf16.mxu0 0
          %2329 = vmatpush1.bf16.msra.mxu0 0
          %2330 = vmatprep.subr.bf16.mxu0 0
          %2331 = vmatpush1.bf16.msra.mxu0 %v2312
          %2332 = vmatprep.subr.bf16.mxu0 0
          %2333 = vmatpush1.bf16.msra.mxu0 %v2311
          %2334 = vmatprep.subr.bf16.mxu0 0
          %2335 = vmatpush2.bf16.msra.mxu0 0
          %2336 = vmatprep.subr.bf16.mxu0 0
          %2337 = vmatpush2.bf16.msra.mxu0 0
          %2338 = vmatprep.subr.bf16.mxu0 0
          %2339 = vmatpush2.bf16.msra.mxu0 0
          %2340 = vmatprep.subr.bf16.mxu0 0
          %2341 = vmatpush2.bf16.msra.mxu0 0
          %2342 = vmatprep.subr.bf16.mxu0 0
          %2343 = vmatpush2.bf16.msra.mxu0 0
          %2344 = vmatprep.subr.bf16.mxu0 0
          %2345 = vmatpush2.bf16.msra.mxu0 0
          %2346 = vmatprep.subr.bf16.mxu0 0
          %2347 = vmatpush2.bf16.msra.mxu0 0
          %2348 = vmatprep.subr.bf16.mxu0 0
          %2349 = vmatpush2.bf16.msra.mxu0 0
          %2350 = vmatprep.mubr.bf16.mxu0 0
          %2351 = vmatmul.mubr.bf16.gmra.mxu0 %v2316
          %v2352 = vpop.f32.mrf.mxu0
          %v2353 = vadd.f32 %v2301, %v2352
          %v2354 = vpop.f32.mrf.mxu0
          %v2355 = vpop.f32.mrf.mxu0
          %v2356 = vpop.f32.mrf.mxu0
          %2357 = vdwg.mxu0
          %v2358 = vadd.f32 %v2232, %v2353
          %v2359 = vsel %vm2204, %v2358, 0.0
          %2360 = vadd.xlane.f32.xlu0 %v2359
          %v2361 = vpop.xlane.xlu0 %2360
          %v2362 = vmul.f32 %v2361, %v2208
          %v2363 = vsub.f32 %v2358, %v2362
          %v2364 = vmul.f32 %v2363, %v2363
          %v2365 = vsel %vm2204, %v2364, 0.0
          %2366 = vadd.xlane.f32.xlu0 %v2365
          %v2367 = vpop.xlane.xlu0 %2366
          %v2368 = vmul.f32 %v2367, %v2208
          %v2369 = vadd.f32 %v2368, 1e-05
          %v2370 = vrsqrt.pop %v2369
          %v2371 = vmul.f32 %v2363, %v2370
          %v2373 = vlaneseq
          %v2374 = vshrl.u32 %v2373, 7
          %v2375 = vsub.s32 0, %v2374
          %v2376 = vrot.slane %v1516, %v2375
          %v2378 = vmul.f32 %v2371, %v2376
          %v2380 = vlaneseq
          %v2381 = vshrl.u32 %v2380, 7
          %v2382 = vsub.s32 0, %v2381
          %v2383 = vrot.slane %v1517, %v2382
          %v2385 = vadd.f32 %v2378, %v2383
        $region121: #{hatnetc_forward.7} parent=115 // loop_footer
          %s1523 = sadd.s32 1, %s1519
        $region122: #{hatnetc_forward.7} parent=115 // loop_footer_branch
          %1518 = sbr.rel target = $region118
        $region123: #{hatnetc_forward.7} parent=115 // loop_exit
          _
        %vm2386 = vcmask 254976
        %2387 = vst.msk [vmem:[%s853] sm:$0x3] %vm2386, %v1524
        %v2388 = vsel %vm2386, %v1524, -inf
        %v2389 = vrot.slane %v2388, 4
        %v2390 = vmax.f32 %v2388, %v2389
        %v2391 = vrot.slane %v2390, 2
        %v2392 = vmax.f32 %v2390, %v2391
        %v2393 = vrot.slane %v2392, 1
        %v2394 = vmax.f32 %v2392, %v2393
        %vm2395 = vcmask 253952
        %2396 = vst.msk [vmem:[%s886] sm:$0x1] %vm2395, %v2394
        %s2397 = sand.u32 %s568, 1
        %s2398 = scalar_lea.sflag [#allocation3], %s2397
        %s2399 = sand.u32 %s568, 1
        %s2400 = smul.addr %s2399, 2
        %s2401 = scalar_lea.vmem [#allocation2], %s2400
        %s2402 = sand.u32 %s594, 1
        %s2403 = scalar_lea.sflag [#allocation5], %s2402
        %s2404 = sand.u32 %s594, 1
        %s2405 = smul.addr %s2404, 2
        %s2406 = scalar_lea.vmem [#allocation4], %s2405
        %p2407 = scmp.lt.s32.totalorder %s46, 1
        %s2408 = scalar_select %p2407, %s46, 1
        %s2409 = scalar_lea.vmem %s26, %s2408
        %p2410 = scmp.lt.s32.totalorder %s46, 1
        %s2411 = scalar_select %p2410, %s46, 1
        %s2412 = scalar_lea.vmem %s27, %s2411
        %p2413 = scmp.lt.s32.totalorder %s46, 1
        %s2414 = scalar_select %p2413, %s46, 1
        %s2415 = scalar_lea.vmem %s28, %s2414
        // Predicated region
        $region124: #{hatnetc_forward.7} parent=115 // pred_check
          %p2416 = pneg %p578
        $region125: #{hatnetc_forward.7} parent=115 // pred_check_branch
          %2418 = sbr.rel (%p2416) target = $region127
        $region126: #{hatnetc_forward.7} parent=115 // pred_region
          %s2420 = ssub.s32 32, 32
          %2421 = vsyncadd %s2398, %s2420
          %s2422 = smul.addr %s46, 32
          %s2423 = scalar_lea.hbm %s24, %s2422
          %s2425 = sshll.u32 %s2401, 4
          %s2426 = int_to_ptr.vmem [resolvable:$true] %s2425
          %2428 = dma.vmem_to_hbm [thread:$0]  %s2426, 32, %s2423, %s2398
        $region127: #{hatnetc_forward.7} parent=115 // pred_fallthru
          _
        // Predicated region
        $region128: #{hatnetc_forward.7} parent=115 // pred_check
          %p2429 = pneg %p604
        $region129: #{hatnetc_forward.7} parent=115 // pred_check_branch
          %2431 = sbr.rel (%p2429) target = $region131
        $region130: #{hatnetc_forward.7} parent=115 // pred_region
          %s2433 = ssub.s32 32, 32
          %2434 = vsyncadd %s2403, %s2433
          %s2435 = smul.addr %s46, 32
          %s2436 = scalar_lea.hbm %s25, %s2435
          %s2438 = sshll.u32 %s2406, 4
          %s2439 = int_to_ptr.vmem [resolvable:$true] %s2438
          %2441 = dma.vmem_to_hbm [thread:$0]  %s2439, 32, %s2436, %s2403
        $region131: #{hatnetc_forward.7} parent=115 // pred_fallthru
          _
        // Predicated region
        $region132: #{hatnetc_forward.7} parent=115 // pred_check
          %p2442 = pneg %p630
        $region133: #{hatnetc_forward.7} parent=115 // pred_check_branch
          %2444 = sbr.rel (%p2442) target = $region135
        $region134: #{hatnetc_forward.7} parent=115 // pred_region
          _
        $region135: #{hatnetc_forward.7} parent=115 // pred_fallthru
          _
        // Predicated region
        $region136: #{hatnetc_forward.7} parent=115 // pred_check
          %p2445 = pneg %p656
        $region137: #{hatnetc_forward.7} parent=115 // pred_check_branch
          %2447 = sbr.rel (%p2445) target = $region139
        $region138: #{hatnetc_forward.7} parent=115 // pred_region
          _
        $region139: #{hatnetc_forward.7} parent=115 // pred_fallthru
          _
        // Predicated region
        $region140: #{hatnetc_forward.7} parent=115 // pred_check
          %p2448 = pneg %p682
        $region141: #{hatnetc_forward.7} parent=115 // pred_check_branch
          %2450 = sbr.rel (%p2448) target = $region143
        $region142: #{hatnetc_forward.7} parent=115 // pred_region
          _
        $region143: #{hatnetc_forward.7} parent=115 // pred_fallthru
          _
      $region116: #{hatnetc_forward.7} parent=5 // pred_fallthru
        _
      %p2451 = scmp.le.s32.totalorder 2, %s41
      // Predicated region
      $region144: #{hatnetc_forward.7} parent=5 // pred_check
        %p2452 = pneg %p2451
      $region145: #{hatnetc_forward.7} parent=5 // pred_check_branch
        %2454 = sbr.rel (%p2452) target = $region147
      $region146: #{hatnetc_forward.7} parent=5 // pred_region
        %s2455 = ssub.s32 %s41, 2
        // Predicated region
        $region148: #{hatnetc_forward.7} parent=146 // pred_check
          %p2456 = pneg %p584
        $region149: #{hatnetc_forward.7} parent=146 // pred_check_branch
          %2458 = sbr.rel (%p2456) target = $region151
        $region150: #{hatnetc_forward.7} parent=146 // pred_region
          %s2459 = sand.u32 %s569, 1
          %s2460 = scalar_lea.sflag [#allocation3], %s2459
          %s2461 = sand.u32 %s569, 1
          %s2462 = smul.addr %s2461, 2
          %s2463 = scalar_lea.vmem [#allocation2], %s2462
          %2464 = dma.done %s2460, 32
        $region151: #{hatnetc_forward.7} parent=146 // pred_fallthru
          _
        // Predicated region
        $region152: #{hatnetc_forward.7} parent=146 // pred_check
          %p2465 = pneg %p610
        $region153: #{hatnetc_forward.7} parent=146 // pred_check_branch
          %2467 = sbr.rel (%p2465) target = $region155
        $region154: #{hatnetc_forward.7} parent=146 // pred_region
          %s2468 = sand.u32 %s595, 1
          %s2469 = scalar_lea.sflag [#allocation5], %s2468
          %s2470 = sand.u32 %s595, 1
          %s2471 = smul.addr %s2470, 2
          %s2472 = scalar_lea.vmem [#allocation4], %s2471
          %2473 = dma.done %s2469, 32
        $region155: #{hatnetc_forward.7} parent=146 // pred_fallthru
          _
        // Predicated region
        $region156: #{hatnetc_forward.7} parent=146 // pred_check
          %p2474 = pneg %p636
        $region157: #{hatnetc_forward.7} parent=146 // pred_check_branch
          %2476 = sbr.rel (%p2474) target = $region159
        $region158: #{hatnetc_forward.7} parent=146 // pred_region
          %p2477 = scmp.lt.s32.totalorder %s47, 1
          %s2478 = scalar_select %p2477, %s47, 1
          %s2479 = scalar_lea.vmem %s26, %s2478
        $region159: #{hatnetc_forward.7} parent=146 // pred_fallthru
          _
        // Predicated region
        $region160: #{hatnetc_forward.7} parent=146 // pred_check
          %p2480 = pneg %p662
        $region161: #{hatnetc_forward.7} parent=146 // pred_check_branch
          %2482 = sbr.rel (%p2480) target = $region163
        $region162: #{hatnetc_forward.7} parent=146 // pred_region
          %p2483 = scmp.lt.s32.totalorder %s47, 1
          %s2484 = scalar_select %p2483, %s47, 1
          %s2485 = scalar_lea.vmem %s27, %s2484
        $region163: #{hatnetc_forward.7} parent=146 // pred_fallthru
          _
        // Predicated region
        $region164: #{hatnetc_forward.7} parent=146 // pred_check
          %p2486 = pneg %p688
        $region165: #{hatnetc_forward.7} parent=146 // pred_check_branch
          %2488 = sbr.rel (%p2486) target = $region167
        $region166: #{hatnetc_forward.7} parent=146 // pred_region
          %p2489 = scmp.lt.s32.totalorder %s47, 1
          %s2490 = scalar_select %p2489, %s47, 1
          %s2491 = scalar_lea.vmem %s28, %s2490
        $region167: #{hatnetc_forward.7} parent=146 // pred_fallthru
          _
      $region147: #{hatnetc_forward.7} parent=5 // pred_fallthru
        _
    $region6: #{hatnetc_forward.7} parent=1 // loop_footer
      %s45 = sadd.s32 1, %s41
    $region7: #{hatnetc_forward.7} parent=1 // loop_footer_branch
      %40 = sbr.rel target = $region3
    $region8: #{hatnetc_forward.7} parent=1 // loop_exit
      _
    %2492 = vsyncpa [#allocation3], 1
    %s2493 = scalar_lea.sflag [#allocation3], 1
    %2494 = vsyncpa %s2493, 1
    %2495 = vsyncpa [#allocation5], 1
    %s2496 = scalar_lea.sflag [#allocation5], 1
    %2497 = vsyncpa %s2496, 1

</llo_original>
